<compile_context>
chip_gen: v7x
topology: tpu7x:2x2x1
jax: 0.10.0
libtpu: 0.0.40
codegen_flags: <defaults>
</compile_context>

<pallas_src>
import functools
import math

import jax
import jax.numpy as jnp
from jax.experimental import pallas as pl
from jax.experimental.pallas import tpu as pltpu


_VMEM_LIMIT_BYTES = 32 * 1024 * 1024       # explicit scoped-VMEM limit (safe on v5e/v6e/v7x)
_VMEM_STEP_BUDGET = 16 * 1024 * 1024       # target working-set bytes per grid step


# ---------------------------------------------------------------------------
# Fused kernel: QKV projection -> per-head attention -> out projection + mask
# ---------------------------------------------------------------------------
def _fused_mha_kernel(x_ref, kmask_ref, rowmask_ref,
                      w_in_ref, b_in_ref, w_out_ref, b_out_ref,
                      o_ref, *, n_head):
    tb, S, E = x_ref.shape
    H = n_head
    hd = E // H
    cd = w_in_ref.dtype                     # compute dtype for MXU inputs (bf16 or f32)

    # ---- fused QKV in-projection (query scale already folded into the Q weights) ----
    x2 = x_ref[...].reshape(tb * S, E).astype(cd)
    qkv = jnp.dot(x2, w_in_ref[...], preferred_element_type=jnp.float32) + b_in_ref[...]

    # E-last (lane-dense) q/k/v slabs — no transposes, heads are lane slices.
    q = qkv[:, :E].reshape(tb, S, E).astype(cd)
    k = qkv[:, E:2 * E].reshape(tb, S, E).astype(cd)
    v = qkv[:, 2 * E:].reshape(tb, S, E).astype(cd)

    km = kmask_ref[...]                     # (tb, 1, S), 1.0 = valid key
    neg = jnp.float32(-1e30)

    ctx_heads = []
    for h in range(H):                      # static unroll over heads
        sl = slice(h * hd, (h + 1) * hd)
        qh, kh, vh = q[:, :, sl], k[:, :, sl], v[:, :, sl]

        s = jnp.einsum("bqd,bkd->bqk", qh, kh, preferred_element_type=jnp.float32)
        s = jnp.where(km > 0.0, s, neg)     # key padding mask, broadcast over queries

        # numerically safe softmax (max-subtraction); EUP reciprocal + 1 Newton step
        m = jnp.max(s, axis=-1, keepdims=True)
        e = jnp.exp(s - m)
        denom = jnp.sum(e, axis=-1, keepdims=True)
        r = pl.reciprocal(denom, approx=True)
        r = r * (2.0 - denom * r)
        p = (e * r).astype(cd)

        ctx_heads.append(
            jnp.einsum("bqk,bkd->bqd", p, vh, preferred_element_type=jnp.float32))

    ctx = jnp.concatenate(ctx_heads, axis=-1)           # (tb, S, E), f32, E-last

    # ---- out-projection + bias + row masking (NaN-fill / query_mask semantics) ----
    y = jnp.dot(ctx.reshape(tb * S, E).astype(cd), w_out_ref[...],
                preferred_element_type=jnp.float32) + b_out_ref[...]
    y = y.reshape(tb, S, E) * rowmask_ref[...]
    o_ref[...] = y.astype(o_ref.dtype)


# ---------------------------------------------------------------------------
# VMEM-aware batch-block selection
# ---------------------------------------------------------------------------
def _pick_batch_block(B, S, E, budget_bytes=_VMEM_STEP_BUDGET):
    """Pick batches/step from a bytes-per-step estimate, then keep >=2 grid steps."""
    weight_bytes = 2 * (E * 3 * E + E * E) * 2          # bf16 weights, 2 buffers

    def step_bytes(tb):
        io = 2 * 2 * tb * S * E * 4                     # x + out blocks, double-buffered
        tmp = tb * S * (40 * E + 16 * S)                # in-kernel temporaries (rough)
        return weight_bytes + io + tmp

    if step_bytes(1) > budget_bytes:
        # TODO(synk): staged pipeline (N-tiled projections + flash-style kv blocking)
        # for problems that do not fit the fused VMEM-resident kernel.
        raise NotImplementedError(
            "problem too large for the fused VMEM-resident attention kernel")

    divisors = [d for d in range(1, B + 1) if B % d == 0]
    tb = max(d for d in divisors if step_bytes(d) <= budget_bytes)
    if B > 1:                                           # >=2 parallel steps (v7x: 2 TCs)
        tb = max(d for d in divisors if d <= min(tb, max(1, B // 2)))
    return tb


def _const_spec(shape, single_buffer):
    """BlockSpec for a grid-invariant (weight/bias) operand."""
    ndim = len(shape)
    imap = lambda i, _n=ndim: (0,) * _n
    if single_buffer:
        # constant index map => double-buffering is pure VMEM waste
        return pl.BlockSpec(shape, imap, pipeline_mode=pl.Buffered(1))
    return pl.BlockSpec(shape, imap)


# ---------------------------------------------------------------------------
# Forward pass
# ---------------------------------------------------------------------------
@functools.partial(jax.jit, static_argnames=("n_head", "single_buffer_weights"))
def _mha_forward(query, key_mask, query_mask, w_in, b_in, w_out, b_out,
                 *, n_head, single_buffer_weights):
    B, S, E = query.shape
    assert E % n_head == 0, "input_size must be divisible by n_head"
    tb = _pick_batch_block(B, S, E)

    kmask3 = key_mask.reshape(B, 1, S).astype(jnp.float32)
    # Row mask reproducing the module's post-processing:
    #  * batch with ALL keys padded -> NaN rows in torch -> masked_fill(isnan, 0)
    #  * query_mask == 0 rows       -> zero
    kvalid = (jnp.max(key_mask, axis=-1, keepdims=True) > 0.0).astype(jnp.float32)
    rowmask = (query_mask.astype(jnp.float32) * kvalid).reshape(B, S, 1)

    out = pl.pallas_call(
        functools.partial(_fused_mha_kernel, n_head=n_head),
        out_shape=jax.ShapeDtypeStruct((B, S, E), jnp.float32),
        grid=(B // tb,),
        in_specs=[
            pl.BlockSpec((tb, S, E), lambda i: (i, 0, 0)),
            pl.BlockSpec((tb, 1, S), lambda i: (i, 0, 0)),
            pl.BlockSpec((tb, S, 1), lambda i: (i, 0, 0)),
            _const_spec((E, 3 * E), single_buffer_weights),
            _const_spec((1, 3 * E), single_buffer_weights),
            _const_spec((E, E), single_buffer_weights),
            _const_spec((1, E), single_buffer_weights),
        ],
        out_specs=pl.BlockSpec((tb, S, E), lambda i: (i, 0, 0)),
        compiler_params=pltpu.CompilerParams(
            dimension_semantics=("parallel",),
            vmem_limit_bytes=_VMEM_LIMIT_BYTES),
    )(query.astype(jnp.float32), kmask3, rowmask, w_in, b_in, w_out, b_out)
    return out


def multihead_attention_forward(query, key_mask, query_mask, params, *, n_head):
    try:
        return _mha_forward(query, key_mask, query_mask, *params,
                            n_head=n_head, single_buffer_weights=True)
    except Exception:
        # pl.Buffered(1) is a perf-only buffering hint; fall back to default
        # double buffering if this Pallas build rejects it.
        return _mha_forward(query, key_mask, query_mask, *params,
                            n_head=n_head, single_buffer_weights=False)


def prepare_params(in_proj_weight, in_proj_bias, out_proj_weight, out_proj_bias,
                   *, n_head, compute_dtype=jnp.bfloat16):
    """One-time parameter prep: transpose, fold 1/sqrt(hd) into Q, cast to MXU dtype."""
    E = out_proj_weight.shape[0]
    hd = E // n_head
    scale = 1.0 / math.sqrt(hd)
    scale_vec = jnp.concatenate([jnp.full((E,), scale, jnp.float32),
                                 jnp.ones((2 * E,), jnp.float32)])
    w_in_t = jnp.asarray(in_proj_weight, jnp.float32).T * scale_vec[None, :]   # (E, 3E)
    b_in = (jnp.asarray(in_proj_bias, jnp.float32) * scale_vec).reshape(1, 3 * E)
    w_out_t = jnp.asarray(out_proj_weight, jnp.float32).T                      # (E, E)
    b_out = jnp.asarray(out_proj_bias, jnp.float32).reshape(1, E)
    return (w_in_t.astype(compute_dtype), b_in, w_out_t.astype(compute_dtype), b_out)


def multihead_attention_layer(query, key=None, value=None, query_mask=None,
                              key_mask=None, *, params, n_head):
    """Mirrors MultiheadAttentionLayer.forward (self-attention inference path)."""
    if key is not None or value is not None:
        # TODO(synk): cross-attention path (separate key/value projections) not implemented.
        raise NotImplementedError("self-attention path only (key/value must be None)")
    B, S, _ = query.shape
    if key_mask is None:
        key_mask = jnp.ones((B, S), jnp.float32)
    if query_mask is None:
        query_mask = jnp.ones((B, S), jnp.float32)
    return multihead_attention_forward(
        query, key_mask.astype(jnp.float32), query_mask.astype(jnp.float32),
        params, n_head=n_head)


# ---------------------------------------------------------------------------
# References
# ---------------------------------------------------------------------------
def reference_torch_f32(query, key_mask, query_mask, in_proj_weight, in_proj_bias,
                        out_proj_weight, out_proj_bias, n_head):
    """Pure-JAX f32 reference faithful to the PyTorch module's forward."""
    B, S, E = query.shape
    hd = E // n_head
    qkv = query @ in_proj_weight.T + in_proj_bias
    q, k, v = jnp.split(qkv, 3, axis=-1)

    def to_heads(t):
        return t.reshape(B, S, n_head, hd).transpose(0, 2, 1, 3)

    q, k, v = to_heads(q), to_heads(k), to_heads(v)
    q = q * (1.0 / math.sqrt(hd))
    s = jnp.einsum("bhqd,bhkd->bhqk", q, k)
    s = jnp.where(key_mask[:, None, None, :] > 0, s, -jnp.inf)
    p = jax.nn.softmax(s, axis=-1)
    ctx = jnp.einsum("bhqk,bhkd->bhqd", p, v)
    ctx = ctx.transpose(0, 2, 1, 3).reshape(B, S, E)
    out = ctx @ out_proj_weight.T + out_proj_bias
    out = jnp.where(jnp.isnan(out), 0.0, out)            # masked_fill(isnan, 0)
    out = out * (query_mask[:, :, None] > 0)
    return out


def reference_with_params(query, key_mask, query_mask, params, *, n_head):
    """XLA reference applying the same compute-dtype casts as the kernel."""
    w_in, b_in, w_out, b_out = params
    cd = w_in.dtype
    B, S, E = query.shape
    hd = E // n_head
    qkv = jnp.dot(query.reshape(B * S, E).astype(cd), w_in,
                  preferred_element_type=jnp.float32) + b_in

    def to_heads(t):
        return t.reshape(B, S, n_head, hd).transpose(0, 2, 1, 3)

    q = to_heads(qkv[:, :E]).astype(cd)
    k = to_heads(qkv[:, E:2 * E]).astype(cd)
    v = to_heads(qkv[:, 2 * E:]).astype(cd)
    s = jnp.einsum("bhqd,bhkd->bhqk", q, k, preferred_element_type=jnp.float32)
    s = jnp.where(key_mask[:, None, None, :] > 0, s, jnp.float32(-1e30))
    p = jax.nn.softmax(s, axis=-1)
    ctx = jnp.einsum("bhqk,bhkd->bhqd", p.astype(cd), v,
                     preferred_element_type=jnp.float32)
    ctx = ctx.transpose(0, 2, 1, 3).reshape(B * S, E)
    out = jnp.dot(ctx.astype(cd), w_out, preferred_element_type=jnp.float32) + b_out
    out = out.reshape(B, S, E)
    kvalid = (jnp.max(key_mask, axis=-1, keepdims=True) > 0).astype(jnp.float32)
    return out * (query_mask * kvalid)[:, :, None]


if __name__ == "__main__":
    B, S, E, H = 4, 8, 32, 8   # batch, max_seq_len, input_size, n_head (head_dim = 4)

    key = jax.random.PRNGKey(0)
    k_x, k_win, k_bin, k_wout, k_bout = jax.random.split(key, 5)

    query = jax.random.normal(k_x, (B, S, E), dtype=jnp.float32)

    # key padding mask: 1 = valid, 0 = pad
    key_mask = jnp.ones((B, S), jnp.float32)
    key_mask = key_mask.at[1, S - 3:].set(0.0)      # batch 1: last 3 keys padded
    key_mask = key_mask.at[2, :].set(0.0)           # batch 2: ALL keys padded (NaN-fill path)
    # query mask: 1 = valid, 0 = pad
    query_mask = jnp.ones((B, S), jnp.float32)
    query_mask = query_mask.at[3, S - 2:].set(0.0)  # batch 3: last 2 queries padded

    bound = 1.0 / math.sqrt(E)
    in_proj_weight = jax.random.uniform(k_win, (3 * E, E), jnp.float32, -bound, bound)
    in_proj_bias = jax.random.uniform(k_bin, (3 * E,), jnp.float32, -bound, bound)
    out_proj_weight = jax.random.uniform(k_wout, (E, E), jnp.float32, -bound, bound)
    out_proj_bias = jax.random.uniform(k_bout, (E,), jnp.float32, -bound, bound)

    ref_f32 = reference_torch_f32(query, key_mask, query_mask, in_proj_weight,
                                  in_proj_bias, out_proj_weight, out_proj_bias, H)

    # ---- exact-semantics check: f32 compute path vs the torch-faithful reference ----
    params_f32 = prepare_params(in_proj_weight, in_proj_bias, out_proj_weight,
                                out_proj_bias, n_head=H, compute_dtype=jnp.float32)
    out_f32 = multihead_attention_layer(query, query_mask=query_mask, key_mask=key_mask,
                                        params=params_f32, n_head=H)
    out_f32 = jax.block_until_ready(out_f32)
    assert out_f32.shape == (B, S, E), out_f32.shape
    assert bool(jnp.all(jnp.isfinite(out_f32))), "non-finite output (f32 path)"
    err32 = float(jnp.max(jnp.abs(out_f32 - ref_f32)))
    assert jnp.allclose(out_f32, ref_f32, atol=1e-4, rtol=1e-4), (
        "f32-path mismatch vs reference, max abs diff = %g" % err32)

    # ---- performance path: bf16 MXU inputs, checked vs a cast-matched reference ----
    params_bf16 = prepare_params(in_proj_weight, in_proj_bias, out_proj_weight,
                                 out_proj_bias, n_head=H, compute_dtype=jnp.bfloat16)
    out_bf16 = multihead_attention_layer(query, query_mask=query_mask, key_mask=key_mask,
                                         params=params_bf16, n_head=H)
    out_bf16 = jax.block_until_ready(out_bf16)
    assert bool(jnp.all(jnp.isfinite(out_bf16))), "non-finite output (bf16 path)"
    ref_bf16 = reference_with_params(query, key_mask, query_mask, params_bf16, n_head=H)
    errbf = float(jnp.max(jnp.abs(out_bf16 - ref_bf16)))
    assert jnp.allclose(out_bf16, ref_bf16, atol=2e-3, rtol=2e-3), (
        "bf16-path mismatch vs cast-matched reference, max abs diff = %g" % errbf)
    # coarse sanity vs the full-f32 reference (bf16 rounding tolerance)
    assert float(jnp.max(jnp.abs(out_bf16 - ref_f32))) < 0.1

    print("KERNEL_OK")
</pallas_src>

<mosaic_0001>
module attributes {stable_mosaic.version = 11 : i64} {
  func.func @_fused_mha_kernel(%arg0: i32, %arg1: memref<2x8x32xf32, #tpu.memory_space<vmem>>, %arg2: memref<2x1x8xf32, #tpu.memory_space<vmem>>, %arg3: memref<2x8x1xf32, #tpu.memory_space<vmem>>, %arg4: memref<32x96xf32, #tpu.memory_space<vmem>>, %arg5: memref<1x96xf32, #tpu.memory_space<vmem>>, %arg6: memref<32x32xf32, #tpu.memory_space<vmem>>, %arg7: memref<1x32xf32, #tpu.memory_space<vmem>>, %arg8: memref<2x8x32xf32, #tpu.memory_space<vmem>>) attributes {dimension_semantics = [#tpu.dimension_semantics<parallel>], iteration_bounds = array<i64: 2>, scalar_prefetch = 0 : i64, scratch_operands = 0 : i64, tpu.core_type = #tpu.core_type<tc>, window_params = [{transform_indices = @transform_0, window_bounds = array<i64: 2, 8, 32>}, {transform_indices = @transform_1, window_bounds = array<i64: 2, 1, 8>}, {transform_indices = @transform_2, window_bounds = array<i64: 2, 8, 1>}, {pipeline_mode = #tpu.pipeline_mode<synchronous>, transform_indices = @transform_3, window_bounds = array<i64: 32, 96>}, {pipeline_mode = #tpu.pipeline_mode<synchronous>, transform_indices = @transform_4, window_bounds = array<i64: 1, 96>}, {pipeline_mode = #tpu.pipeline_mode<synchronous>, transform_indices = @transform_5, window_bounds = array<i64: 32, 32>}, {pipeline_mode = #tpu.pipeline_mode<synchronous>, transform_indices = @transform_6, window_bounds = array<i64: 1, 32>}, {transform_indices = @transform_7, window_bounds = array<i64: 2, 8, 32>}]} {
    %c0 = arith.constant 0 : index
    %c0_0 = arith.constant 0 : index
    %c0_1 = arith.constant 0 : index
    %0 = vector.load %arg1[%c0, %c0_0, %c0_1] : memref<2x8x32xf32, #tpu.memory_space<vmem>>, vector<2x8x32xf32>
    %1 = vector.shape_cast %0 : vector<2x8x32xf32> to vector<16x32xf32>
    %c0_2 = arith.constant 0 : index
    %c0_3 = arith.constant 0 : index
    %2 = vector.load %arg4[%c0_2, %c0_3] : memref<32x96xf32, #tpu.memory_space<vmem>>, vector<32x96xf32>
    %cst = arith.constant dense<0.000000e+00> : vector<16x96xf32>
    %3 = tpu.matmul %1, %2, %cst {dimension_numbers = #tpu.dot_dimension_numbers<[1], [0], [0], [1], [0, 0, 1, 1], [], []>} : vector<16x32xf32>, vector<32x96xf32>, vector<16x96xf32> -> vector<16x96xf32>
    %c0_4 = arith.constant 0 : index
    %c0_5 = arith.constant 0 : index
    %4 = vector.load %arg5[%c0_4, %c0_5] : memref<1x96xf32, #tpu.memory_space<vmem>>, vector<1x96xf32>
    %5 = vector.broadcast %4 : vector<1x96xf32> to vector<16x96xf32>
    %6 = arith.addf %3, %5 : vector<16x96xf32>
    %7 = vector.extract_strided_slice %6 {offsets = [0, 0], sizes = [16, 32], strides = [1, 1]} : vector<16x96xf32> to vector<16x32xf32>
    %8 = vector.shape_cast %7 : vector<16x32xf32> to vector<2x8x32xf32>
    %9 = vector.extract_strided_slice %6 {offsets = [0, 32], sizes = [16, 32], strides = [1, 1]} : vector<16x96xf32> to vector<16x32xf32>
    %10 = vector.shape_cast %9 : vector<16x32xf32> to vector<2x8x32xf32>
    %11 = vector.extract_strided_slice %6 {offsets = [0, 64], sizes = [16, 32], strides = [1, 1]} : vector<16x96xf32> to vector<16x32xf32>
    %12 = vector.shape_cast %11 : vector<16x32xf32> to vector<2x8x32xf32>
    %c0_6 = arith.constant 0 : index
    %c0_7 = arith.constant 0 : index
    %c0_8 = arith.constant 0 : index
    %13 = vector.load %arg2[%c0_6, %c0_7, %c0_8] : memref<2x1x8xf32, #tpu.memory_space<vmem>>, vector<2x1x8xf32>
    %14 = vector.extract_strided_slice %8 {offsets = [0, 0, 0], sizes = [2, 8, 4], strides = [1, 1, 1]} : vector<2x8x32xf32> to vector<2x8x4xf32>
    %15 = vector.extract_strided_slice %10 {offsets = [0, 0, 0], sizes = [2, 8, 4], strides = [1, 1, 1]} : vector<2x8x32xf32> to vector<2x8x4xf32>
    %16 = vector.extract_strided_slice %12 {offsets = [0, 0, 0], sizes = [2, 8, 4], strides = [1, 1, 1]} : vector<2x8x32xf32> to vector<2x8x4xf32>
    "tpu.trace_start"() <{level = 10 : i32, message = "bqd,bkd->bqk"}> : () -> ()
    %cst_9 = arith.constant dense<0.000000e+00> : vector<2x8x8xf32>
    %17 = tpu.matmul %14, %15, %cst_9 {dimension_numbers = #tpu.dot_dimension_numbers<[2], [2], [1], [1], [0, 0, 0, 1, 1, 1], [0], [0]>} : vector<2x8x4xf32>, vector<2x8x4xf32>, vector<2x8x8xf32> -> vector<2x8x8xf32>
    %cst_10 = arith.constant 0.000000e+00 : f32
    "tpu.trace_stop"() : () -> ()
    %18 = vector.broadcast %cst_10 : f32 to vector<2x1x8xf32>
    %19 = arith.cmpf ogt, %13, %18 : vector<2x1x8xf32>
    %cst_11 = arith.constant -1.000000e+30 : f32
    %20 = vector.shape_cast %19 : vector<2x1x8xi1> to vector<2x1x8xi1>
    %21 = vector.broadcast %20 : vector<2x1x8xi1> to vector<2x8x8xi1>
    %22 = vector.broadcast %cst_11 : f32 to vector<2x8x8xf32>
    %23 = arith.select %21, %17, %22 : vector<2x8x8xi1>, vector<2x8x8xf32>
    %cst_12 = arith.constant dense<0xFF800000> : vector<2x8xf32>
    %24 = vector.multi_reduction <maximumf>, %23, %cst_12 [2] : vector<2x8x8xf32> to vector<2x8xf32>
    %25 = vector.shape_cast %24 : vector<2x8xf32> to vector<2x8x1xf32>
    %26 = vector.broadcast %25 : vector<2x8x1xf32> to vector<2x8x8xf32>
    %27 = arith.subf %23, %26 : vector<2x8x8xf32>
    %28 = math.exp %27 : vector<2x8x8xf32>
    %cst_13 = arith.constant dense<0.000000e+00> : vector<2x8xf32>
    %29 = vector.multi_reduction <add>, %28, %cst_13 [2] : vector<2x8x8xf32> to vector<2x8xf32>
    %30 = vector.shape_cast %29 : vector<2x8xf32> to vector<2x8x1xf32>
    %31 = tpu.reciprocal %30 {approx = true} : vector<2x8x1xf32> -> vector<2x8x1xf32>
    %32 = arith.mulf %30, %31 : vector<2x8x1xf32>
    %cst_14 = arith.constant 2.000000e+00 : f32
    %33 = vector.broadcast %cst_14 : f32 to vector<2x8x1xf32>
    %34 = arith.subf %33, %32 : vector<2x8x1xf32>
    %35 = arith.mulf %31, %34 : vector<2x8x1xf32>
    %36 = vector.broadcast %35 : vector<2x8x1xf32> to vector<2x8x8xf32>
    %37 = arith.mulf %28, %36 : vector<2x8x8xf32>
    "tpu.trace_start"() <{level = 10 : i32, message = "bqk,bkd->bqd"}> : () -> ()
    %cst_15 = arith.constant dense<0.000000e+00> : vector<2x8x4xf32>
    %38 = tpu.matmul %37, %16, %cst_15 {dimension_numbers = #tpu.dot_dimension_numbers<[2], [1], [1], [2], [0, 0, 0, 1, 1, 2], [0], [0]>} : vector<2x8x8xf32>, vector<2x8x4xf32>, vector<2x8x4xf32> -> vector<2x8x4xf32>
    "tpu.trace_stop"() : () -> ()
    %39 = vector.extract_strided_slice %8 {offsets = [0, 0, 4], sizes = [2, 8, 4], strides = [1, 1, 1]} : vector<2x8x32xf32> to vector<2x8x4xf32>
    %40 = vector.extract_strided_slice %10 {offsets = [0, 0, 4], sizes = [2, 8, 4], strides = [1, 1, 1]} : vector<2x8x32xf32> to vector<2x8x4xf32>
    %41 = vector.extract_strided_slice %12 {offsets = [0, 0, 4], sizes = [2, 8, 4], strides = [1, 1, 1]} : vector<2x8x32xf32> to vector<2x8x4xf32>
    "tpu.trace_start"() <{level = 10 : i32, message = "bqd,bkd->bqk"}> : () -> ()
    %cst_16 = arith.constant dense<0.000000e+00> : vector<2x8x8xf32>
    %42 = tpu.matmul %39, %40, %cst_16 {dimension_numbers = #tpu.dot_dimension_numbers<[2], [2], [1], [1], [0, 0, 0, 1, 1, 1], [0], [0]>} : vector<2x8x4xf32>, vector<2x8x4xf32>, vector<2x8x8xf32> -> vector<2x8x8xf32>
    %cst_17 = arith.constant 0.000000e+00 : f32
    "tpu.trace_stop"() : () -> ()
    %43 = vector.broadcast %cst_17 : f32 to vector<2x1x8xf32>
    %44 = arith.cmpf ogt, %13, %43 : vector<2x1x8xf32>
    %cst_18 = arith.constant -1.000000e+30 : f32
    %45 = vector.shape_cast %44 : vector<2x1x8xi1> to vector<2x1x8xi1>
    %46 = vector.broadcast %45 : vector<2x1x8xi1> to vector<2x8x8xi1>
    %47 = vector.broadcast %cst_18 : f32 to vector<2x8x8xf32>
    %48 = arith.select %46, %42, %47 : vector<2x8x8xi1>, vector<2x8x8xf32>
    %cst_19 = arith.constant dense<0xFF800000> : vector<2x8xf32>
    %49 = vector.multi_reduction <maximumf>, %48, %cst_19 [2] : vector<2x8x8xf32> to vector<2x8xf32>
    %50 = vector.shape_cast %49 : vector<2x8xf32> to vector<2x8x1xf32>
    %51 = vector.broadcast %50 : vector<2x8x1xf32> to vector<2x8x8xf32>
    %52 = arith.subf %48, %51 : vector<2x8x8xf32>
    %53 = math.exp %52 : vector<2x8x8xf32>
    %cst_20 = arith.constant dense<0.000000e+00> : vector<2x8xf32>
    %54 = vector.multi_reduction <add>, %53, %cst_20 [2] : vector<2x8x8xf32> to vector<2x8xf32>
    %55 = vector.shape_cast %54 : vector<2x8xf32> to vector<2x8x1xf32>
    %56 = tpu.reciprocal %55 {approx = true} : vector<2x8x1xf32> -> vector<2x8x1xf32>
    %57 = arith.mulf %55, %56 : vector<2x8x1xf32>
    %cst_21 = arith.constant 2.000000e+00 : f32
    %58 = vector.broadcast %cst_21 : f32 to vector<2x8x1xf32>
    %59 = arith.subf %58, %57 : vector<2x8x1xf32>
    %60 = arith.mulf %56, %59 : vector<2x8x1xf32>
    %61 = vector.broadcast %60 : vector<2x8x1xf32> to vector<2x8x8xf32>
    %62 = arith.mulf %53, %61 : vector<2x8x8xf32>
    "tpu.trace_start"() <{level = 10 : i32, message = "bqk,bkd->bqd"}> : () -> ()
    %cst_22 = arith.constant dense<0.000000e+00> : vector<2x8x4xf32>
    %63 = tpu.matmul %62, %41, %cst_22 {dimension_numbers = #tpu.dot_dimension_numbers<[2], [1], [1], [2], [0, 0, 0, 1, 1, 2], [0], [0]>} : vector<2x8x8xf32>, vector<2x8x4xf32>, vector<2x8x4xf32> -> vector<2x8x4xf32>
    "tpu.trace_stop"() : () -> ()
    %64 = vector.extract_strided_slice %8 {offsets = [0, 0, 8], sizes = [2, 8, 4], strides = [1, 1, 1]} : vector<2x8x32xf32> to vector<2x8x4xf32>
    %65 = vector.extract_strided_slice %10 {offsets = [0, 0, 8], sizes = [2, 8, 4], strides = [1, 1, 1]} : vector<2x8x32xf32> to vector<2x8x4xf32>
    %66 = vector.extract_strided_slice %12 {offsets = [0, 0, 8], sizes = [2, 8, 4], strides = [1, 1, 1]} : vector<2x8x32xf32> to vector<2x8x4xf32>
    "tpu.trace_start"() <{level = 10 : i32, message = "bqd,bkd->bqk"}> : () -> ()
    %cst_23 = arith.constant dense<0.000000e+00> : vector<2x8x8xf32>
    %67 = tpu.matmul %64, %65, %cst_23 {dimension_numbers = #tpu.dot_dimension_numbers<[2], [2], [1], [1], [0, 0, 0, 1, 1, 1], [0], [0]>} : vector<2x8x4xf32>, vector<2x8x4xf32>, vector<2x8x8xf32> -> vector<2x8x8xf32>
    %cst_24 = arith.constant 0.000000e+00 : f32
    "tpu.trace_stop"() : () -> ()
    %68 = vector.broadcast %cst_24 : f32 to vector<2x1x8xf32>
    %69 = arith.cmpf ogt, %13, %68 : vector<2x1x8xf32>
    %cst_25 = arith.constant -1.000000e+30 : f32
    %70 = vector.shape_cast %69 : vector<2x1x8xi1> to vector<2x1x8xi1>
    %71 = vector.broadcast %70 : vector<2x1x8xi1> to vector<2x8x8xi1>
    %72 = vector.broadcast %cst_25 : f32 to vector<2x8x8xf32>
    %73 = arith.select %71, %67, %72 : vector<2x8x8xi1>, vector<2x8x8xf32>
    %cst_26 = arith.constant dense<0xFF800000> : vector<2x8xf32>
    %74 = vector.multi_reduction <maximumf>, %73, %cst_26 [2] : vector<2x8x8xf32> to vector<2x8xf32>
    %75 = vector.shape_cast %74 : vector<2x8xf32> to vector<2x8x1xf32>
    %76 = vector.broadcast %75 : vector<2x8x1xf32> to vector<2x8x8xf32>
    %77 = arith.subf %73, %76 : vector<2x8x8xf32>
    %78 = math.exp %77 : vector<2x8x8xf32>
    %cst_27 = arith.constant dense<0.000000e+00> : vector<2x8xf32>
    %79 = vector.multi_reduction <add>, %78, %cst_27 [2] : vector<2x8x8xf32> to vector<2x8xf32>
    %80 = vector.shape_cast %79 : vector<2x8xf32> to vector<2x8x1xf32>
    %81 = tpu.reciprocal %80 {approx = true} : vector<2x8x1xf32> -> vector<2x8x1xf32>
    %82 = arith.mulf %80, %81 : vector<2x8x1xf32>
    %cst_28 = arith.constant 2.000000e+00 : f32
    %83 = vector.broadcast %cst_28 : f32 to vector<2x8x1xf32>
    %84 = arith.subf %83, %82 : vector<2x8x1xf32>
    %85 = arith.mulf %81, %84 : vector<2x8x1xf32>
    %86 = vector.broadcast %85 : vector<2x8x1xf32> to vector<2x8x8xf32>
    %87 = arith.mulf %78, %86 : vector<2x8x8xf32>
    "tpu.trace_start"() <{level = 10 : i32, message = "bqk,bkd->bqd"}> : () -> ()
    %cst_29 = arith.constant dense<0.000000e+00> : vector<2x8x4xf32>
    %88 = tpu.matmul %87, %66, %cst_29 {dimension_numbers = #tpu.dot_dimension_numbers<[2], [1], [1], [2], [0, 0, 0, 1, 1, 2], [0], [0]>} : vector<2x8x8xf32>, vector<2x8x4xf32>, vector<2x8x4xf32> -> vector<2x8x4xf32>
    "tpu.trace_stop"() : () -> ()
    %89 = vector.extract_strided_slice %8 {offsets = [0, 0, 12], sizes = [2, 8, 4], strides = [1, 1, 1]} : vector<2x8x32xf32> to vector<2x8x4xf32>
    %90 = vector.extract_strided_slice %10 {offsets = [0, 0, 12], sizes = [2, 8, 4], strides = [1, 1, 1]} : vector<2x8x32xf32> to vector<2x8x4xf32>
    %91 = vector.extract_strided_slice %12 {offsets = [0, 0, 12], sizes = [2, 8, 4], strides = [1, 1, 1]} : vector<2x8x32xf32> to vector<2x8x4xf32>
    "tpu.trace_start"() <{level = 10 : i32, message = "bqd,bkd->bqk"}> : () -> ()
    %cst_30 = arith.constant dense<0.000000e+00> : vector<2x8x8xf32>
    %92 = tpu.matmul %89, %90, %cst_30 {dimension_numbers = #tpu.dot_dimension_numbers<[2], [2], [1], [1], [0, 0, 0, 1, 1, 1], [0], [0]>} : vector<2x8x4xf32>, vector<2x8x4xf32>, vector<2x8x8xf32> -> vector<2x8x8xf32>
    %cst_31 = arith.constant 0.000000e+00 : f32
    "tpu.trace_stop"() : () -> ()
    %93 = vector.broadcast %cst_31 : f32 to vector<2x1x8xf32>
    %94 = arith.cmpf ogt, %13, %93 : vector<2x1x8xf32>
    %cst_32 = arith.constant -1.000000e+30 : f32
    %95 = vector.shape_cast %94 : vector<2x1x8xi1> to vector<2x1x8xi1>
    %96 = vector.broadcast %95 : vector<2x1x8xi1> to vector<2x8x8xi1>
    %97 = vector.broadcast %cst_32 : f32 to vector<2x8x8xf32>
    %98 = arith.select %96, %92, %97 : vector<2x8x8xi1>, vector<2x8x8xf32>
    %cst_33 = arith.constant dense<0xFF800000> : vector<2x8xf32>
    %99 = vector.multi_reduction <maximumf>, %98, %cst_33 [2] : vector<2x8x8xf32> to vector<2x8xf32>
    %100 = vector.shape_cast %99 : vector<2x8xf32> to vector<2x8x1xf32>
    %101 = vector.broadcast %100 : vector<2x8x1xf32> to vector<2x8x8xf32>
    %102 = arith.subf %98, %101 : vector<2x8x8xf32>
    %103 = math.exp %102 : vector<2x8x8xf32>
    %cst_34 = arith.constant dense<0.000000e+00> : vector<2x8xf32>
    %104 = vector.multi_reduction <add>, %103, %cst_34 [2] : vector<2x8x8xf32> to vector<2x8xf32>
    %105 = vector.shape_cast %104 : vector<2x8xf32> to vector<2x8x1xf32>
    %106 = tpu.reciprocal %105 {approx = true} : vector<2x8x1xf32> -> vector<2x8x1xf32>
    %107 = arith.mulf %105, %106 : vector<2x8x1xf32>
    %cst_35 = arith.constant 2.000000e+00 : f32
    %108 = vector.broadcast %cst_35 : f32 to vector<2x8x1xf32>
    %109 = arith.subf %108, %107 : vector<2x8x1xf32>
    %110 = arith.mulf %106, %109 : vector<2x8x1xf32>
    %111 = vector.broadcast %110 : vector<2x8x1xf32> to vector<2x8x8xf32>
    %112 = arith.mulf %103, %111 : vector<2x8x8xf32>
    "tpu.trace_start"() <{level = 10 : i32, message = "bqk,bkd->bqd"}> : () -> ()
    %cst_36 = arith.constant dense<0.000000e+00> : vector<2x8x4xf32>
    %113 = tpu.matmul %112, %91, %cst_36 {dimension_numbers = #tpu.dot_dimension_numbers<[2], [1], [1], [2], [0, 0, 0, 1, 1, 2], [0], [0]>} : vector<2x8x8xf32>, vector<2x8x4xf32>, vector<2x8x4xf32> -> vector<2x8x4xf32>
    "tpu.trace_stop"() : () -> ()
    %114 = vector.extract_strided_slice %8 {offsets = [0, 0, 16], sizes = [2, 8, 4], strides = [1, 1, 1]} : vector<2x8x32xf32> to vector<2x8x4xf32>
    %115 = vector.extract_strided_slice %10 {offsets = [0, 0, 16], sizes = [2, 8, 4], strides = [1, 1, 1]} : vector<2x8x32xf32> to vector<2x8x4xf32>
    %116 = vector.extract_strided_slice %12 {offsets = [0, 0, 16], sizes = [2, 8, 4], strides = [1, 1, 1]} : vector<2x8x32xf32> to vector<2x8x4xf32>
    "tpu.trace_start"() <{level = 10 : i32, message = "bqd,bkd->bqk"}> : () -> ()
    %cst_37 = arith.constant dense<0.000000e+00> : vector<2x8x8xf32>
    %117 = tpu.matmul %114, %115, %cst_37 {dimension_numbers = #tpu.dot_dimension_numbers<[2], [2], [1], [1], [0, 0, 0, 1, 1, 1], [0], [0]>} : vector<2x8x4xf32>, vector<2x8x4xf32>, vector<2x8x8xf32> -> vector<2x8x8xf32>
    %cst_38 = arith.constant 0.000000e+00 : f32
    "tpu.trace_stop"() : () -> ()
    %118 = vector.broadcast %cst_38 : f32 to vector<2x1x8xf32>
    %119 = arith.cmpf ogt, %13, %118 : vector<2x1x8xf32>
    %cst_39 = arith.constant -1.000000e+30 : f32
    %120 = vector.shape_cast %119 : vector<2x1x8xi1> to vector<2x1x8xi1>
    %121 = vector.broadcast %120 : vector<2x1x8xi1> to vector<2x8x8xi1>
    %122 = vector.broadcast %cst_39 : f32 to vector<2x8x8xf32>
    %123 = arith.select %121, %117, %122 : vector<2x8x8xi1>, vector<2x8x8xf32>
    %cst_40 = arith.constant dense<0xFF800000> : vector<2x8xf32>
    %124 = vector.multi_reduction <maximumf>, %123, %cst_40 [2] : vector<2x8x8xf32> to vector<2x8xf32>
    %125 = vector.shape_cast %124 : vector<2x8xf32> to vector<2x8x1xf32>
    %126 = vector.broadcast %125 : vector<2x8x1xf32> to vector<2x8x8xf32>
    %127 = arith.subf %123, %126 : vector<2x8x8xf32>
    %128 = math.exp %127 : vector<2x8x8xf32>
    %cst_41 = arith.constant dense<0.000000e+00> : vector<2x8xf32>
    %129 = vector.multi_reduction <add>, %128, %cst_41 [2] : vector<2x8x8xf32> to vector<2x8xf32>
    %130 = vector.shape_cast %129 : vector<2x8xf32> to vector<2x8x1xf32>
    %131 = tpu.reciprocal %130 {approx = true} : vector<2x8x1xf32> -> vector<2x8x1xf32>
    %132 = arith.mulf %130, %131 : vector<2x8x1xf32>
    %cst_42 = arith.constant 2.000000e+00 : f32
    %133 = vector.broadcast %cst_42 : f32 to vector<2x8x1xf32>
    %134 = arith.subf %133, %132 : vector<2x8x1xf32>
    %135 = arith.mulf %131, %134 : vector<2x8x1xf32>
    %136 = vector.broadcast %135 : vector<2x8x1xf32> to vector<2x8x8xf32>
    %137 = arith.mulf %128, %136 : vector<2x8x8xf32>
    "tpu.trace_start"() <{level = 10 : i32, message = "bqk,bkd->bqd"}> : () -> ()
    %cst_43 = arith.constant dense<0.000000e+00> : vector<2x8x4xf32>
    %138 = tpu.matmul %137, %116, %cst_43 {dimension_numbers = #tpu.dot_dimension_numbers<[2], [1], [1], [2], [0, 0, 0, 1, 1, 2], [0], [0]>} : vector<2x8x8xf32>, vector<2x8x4xf32>, vector<2x8x4xf32> -> vector<2x8x4xf32>
    "tpu.trace_stop"() : () -> ()
    %139 = vector.extract_strided_slice %8 {offsets = [0, 0, 20], sizes = [2, 8, 4], strides = [1, 1, 1]} : vector<2x8x32xf32> to vector<2x8x4xf32>
    %140 = vector.extract_strided_slice %10 {offsets = [0, 0, 20], sizes = [2, 8, 4], strides = [1, 1, 1]} : vector<2x8x32xf32> to vector<2x8x4xf32>
    %141 = vector.extract_strided_slice %12 {offsets = [0, 0, 20], sizes = [2, 8, 4], strides = [1, 1, 1]} : vector<2x8x32xf32> to vector<2x8x4xf32>
    "tpu.trace_start"() <{level = 10 : i32, message = "bqd,bkd->bqk"}> : () -> ()
    %cst_44 = arith.constant dense<0.000000e+00> : vector<2x8x8xf32>
    %142 = tpu.matmul %139, %140, %cst_44 {dimension_numbers = #tpu.dot_dimension_numbers<[2], [2], [1], [1], [0, 0, 0, 1, 1, 1], [0], [0]>} : vector<2x8x4xf32>, vector<2x8x4xf32>, vector<2x8x8xf32> -> vector<2x8x8xf32>
    %cst_45 = arith.constant 0.000000e+00 : f32
    "tpu.trace_stop"() : () -> ()
    %143 = vector.broadcast %cst_45 : f32 to vector<2x1x8xf32>
    %144 = arith.cmpf ogt, %13, %143 : vector<2x1x8xf32>
    %cst_46 = arith.constant -1.000000e+30 : f32
    %145 = vector.shape_cast %144 : vector<2x1x8xi1> to vector<2x1x8xi1>
    %146 = vector.broadcast %145 : vector<2x1x8xi1> to vector<2x8x8xi1>
    %147 = vector.broadcast %cst_46 : f32 to vector<2x8x8xf32>
    %148 = arith.select %146, %142, %147 : vector<2x8x8xi1>, vector<2x8x8xf32>
    %cst_47 = arith.constant dense<0xFF800000> : vector<2x8xf32>
    %149 = vector.multi_reduction <maximumf>, %148, %cst_47 [2] : vector<2x8x8xf32> to vector<2x8xf32>
    %150 = vector.shape_cast %149 : vector<2x8xf32> to vector<2x8x1xf32>
    %151 = vector.broadcast %150 : vector<2x8x1xf32> to vector<2x8x8xf32>
    %152 = arith.subf %148, %151 : vector<2x8x8xf32>
    %153 = math.exp %152 : vector<2x8x8xf32>
    %cst_48 = arith.constant dense<0.000000e+00> : vector<2x8xf32>
    %154 = vector.multi_reduction <add>, %153, %cst_48 [2] : vector<2x8x8xf32> to vector<2x8xf32>
    %155 = vector.shape_cast %154 : vector<2x8xf32> to vector<2x8x1xf32>
    %156 = tpu.reciprocal %155 {approx = true} : vector<2x8x1xf32> -> vector<2x8x1xf32>
    %157 = arith.mulf %155, %156 : vector<2x8x1xf32>
    %cst_49 = arith.constant 2.000000e+00 : f32
    %158 = vector.broadcast %cst_49 : f32 to vector<2x8x1xf32>
    %159 = arith.subf %158, %157 : vector<2x8x1xf32>
    %160 = arith.mulf %156, %159 : vector<2x8x1xf32>
    %161 = vector.broadcast %160 : vector<2x8x1xf32> to vector<2x8x8xf32>
    %162 = arith.mulf %153, %161 : vector<2x8x8xf32>
    "tpu.trace_start"() <{level = 10 : i32, message = "bqk,bkd->bqd"}> : () -> ()
    %cst_50 = arith.constant dense<0.000000e+00> : vector<2x8x4xf32>
    %163 = tpu.matmul %162, %141, %cst_50 {dimension_numbers = #tpu.dot_dimension_numbers<[2], [1], [1], [2], [0, 0, 0, 1, 1, 2], [0], [0]>} : vector<2x8x8xf32>, vector<2x8x4xf32>, vector<2x8x4xf32> -> vector<2x8x4xf32>
    "tpu.trace_stop"() : () -> ()
    %164 = vector.extract_strided_slice %8 {offsets = [0, 0, 24], sizes = [2, 8, 4], strides = [1, 1, 1]} : vector<2x8x32xf32> to vector<2x8x4xf32>
    %165 = vector.extract_strided_slice %10 {offsets = [0, 0, 24], sizes = [2, 8, 4], strides = [1, 1, 1]} : vector<2x8x32xf32> to vector<2x8x4xf32>
    %166 = vector.extract_strided_slice %12 {offsets = [0, 0, 24], sizes = [2, 8, 4], strides = [1, 1, 1]} : vector<2x8x32xf32> to vector<2x8x4xf32>
    "tpu.trace_start"() <{level = 10 : i32, message = "bqd,bkd->bqk"}> : () -> ()
    %cst_51 = arith.constant dense<0.000000e+00> : vector<2x8x8xf32>
    %167 = tpu.matmul %164, %165, %cst_51 {dimension_numbers = #tpu.dot_dimension_numbers<[2], [2], [1], [1], [0, 0, 0, 1, 1, 1], [0], [0]>} : vector<2x8x4xf32>, vector<2x8x4xf32>, vector<2x8x8xf32> -> vector<2x8x8xf32>
    %cst_52 = arith.constant 0.000000e+00 : f32
    "tpu.trace_stop"() : () -> ()
    %168 = vector.broadcast %cst_52 : f32 to vector<2x1x8xf32>
    %169 = arith.cmpf ogt, %13, %168 : vector<2x1x8xf32>
    %cst_53 = arith.constant -1.000000e+30 : f32
    %170 = vector.shape_cast %169 : vector<2x1x8xi1> to vector<2x1x8xi1>
    %171 = vector.broadcast %170 : vector<2x1x8xi1> to vector<2x8x8xi1>
    %172 = vector.broadcast %cst_53 : f32 to vector<2x8x8xf32>
    %173 = arith.select %171, %167, %172 : vector<2x8x8xi1>, vector<2x8x8xf32>
    %cst_54 = arith.constant dense<0xFF800000> : vector<2x8xf32>
    %174 = vector.multi_reduction <maximumf>, %173, %cst_54 [2] : vector<2x8x8xf32> to vector<2x8xf32>
    %175 = vector.shape_cast %174 : vector<2x8xf32> to vector<2x8x1xf32>
    %176 = vector.broadcast %175 : vector<2x8x1xf32> to vector<2x8x8xf32>
    %177 = arith.subf %173, %176 : vector<2x8x8xf32>
    %178 = math.exp %177 : vector<2x8x8xf32>
    %cst_55 = arith.constant dense<0.000000e+00> : vector<2x8xf32>
    %179 = vector.multi_reduction <add>, %178, %cst_55 [2] : vector<2x8x8xf32> to vector<2x8xf32>
    %180 = vector.shape_cast %179 : vector<2x8xf32> to vector<2x8x1xf32>
    %181 = tpu.reciprocal %180 {approx = true} : vector<2x8x1xf32> -> vector<2x8x1xf32>
    %182 = arith.mulf %180, %181 : vector<2x8x1xf32>
    %cst_56 = arith.constant 2.000000e+00 : f32
    %183 = vector.broadcast %cst_56 : f32 to vector<2x8x1xf32>
    %184 = arith.subf %183, %182 : vector<2x8x1xf32>
    %185 = arith.mulf %181, %184 : vector<2x8x1xf32>
    %186 = vector.broadcast %185 : vector<2x8x1xf32> to vector<2x8x8xf32>
    %187 = arith.mulf %178, %186 : vector<2x8x8xf32>
    "tpu.trace_start"() <{level = 10 : i32, message = "bqk,bkd->bqd"}> : () -> ()
    %cst_57 = arith.constant dense<0.000000e+00> : vector<2x8x4xf32>
    %188 = tpu.matmul %187, %166, %cst_57 {dimension_numbers = #tpu.dot_dimension_numbers<[2], [1], [1], [2], [0, 0, 0, 1, 1, 2], [0], [0]>} : vector<2x8x8xf32>, vector<2x8x4xf32>, vector<2x8x4xf32> -> vector<2x8x4xf32>
    "tpu.trace_stop"() : () -> ()
    %189 = vector.extract_strided_slice %8 {offsets = [0, 0, 28], sizes = [2, 8, 4], strides = [1, 1, 1]} : vector<2x8x32xf32> to vector<2x8x4xf32>
    %190 = vector.extract_strided_slice %10 {offsets = [0, 0, 28], sizes = [2, 8, 4], strides = [1, 1, 1]} : vector<2x8x32xf32> to vector<2x8x4xf32>
    %191 = vector.extract_strided_slice %12 {offsets = [0, 0, 28], sizes = [2, 8, 4], strides = [1, 1, 1]} : vector<2x8x32xf32> to vector<2x8x4xf32>
    "tpu.trace_start"() <{level = 10 : i32, message = "bqd,bkd->bqk"}> : () -> ()
    %cst_58 = arith.constant dense<0.000000e+00> : vector<2x8x8xf32>
    %192 = tpu.matmul %189, %190, %cst_58 {dimension_numbers = #tpu.dot_dimension_numbers<[2], [2], [1], [1], [0, 0, 0, 1, 1, 1], [0], [0]>} : vector<2x8x4xf32>, vector<2x8x4xf32>, vector<2x8x8xf32> -> vector<2x8x8xf32>
    %cst_59 = arith.constant 0.000000e+00 : f32
    "tpu.trace_stop"() : () -> ()
    %193 = vector.broadcast %cst_59 : f32 to vector<2x1x8xf32>
    %194 = arith.cmpf ogt, %13, %193 : vector<2x1x8xf32>
    %cst_60 = arith.constant -1.000000e+30 : f32
    %195 = vector.shape_cast %194 : vector<2x1x8xi1> to vector<2x1x8xi1>
    %196 = vector.broadcast %195 : vector<2x1x8xi1> to vector<2x8x8xi1>
    %197 = vector.broadcast %cst_60 : f32 to vector<2x8x8xf32>
    %198 = arith.select %196, %192, %197 : vector<2x8x8xi1>, vector<2x8x8xf32>
    %cst_61 = arith.constant dense<0xFF800000> : vector<2x8xf32>
    %199 = vector.multi_reduction <maximumf>, %198, %cst_61 [2] : vector<2x8x8xf32> to vector<2x8xf32>
    %200 = vector.shape_cast %199 : vector<2x8xf32> to vector<2x8x1xf32>
    %201 = vector.broadcast %200 : vector<2x8x1xf32> to vector<2x8x8xf32>
    %202 = arith.subf %198, %201 : vector<2x8x8xf32>
    %203 = math.exp %202 : vector<2x8x8xf32>
    %cst_62 = arith.constant dense<0.000000e+00> : vector<2x8xf32>
    %204 = vector.multi_reduction <add>, %203, %cst_62 [2] : vector<2x8x8xf32> to vector<2x8xf32>
    %205 = vector.shape_cast %204 : vector<2x8xf32> to vector<2x8x1xf32>
    %206 = tpu.reciprocal %205 {approx = true} : vector<2x8x1xf32> -> vector<2x8x1xf32>
    %207 = arith.mulf %205, %206 : vector<2x8x1xf32>
    %cst_63 = arith.constant 2.000000e+00 : f32
    %208 = vector.broadcast %cst_63 : f32 to vector<2x8x1xf32>
    %209 = arith.subf %208, %207 : vector<2x8x1xf32>
    %210 = arith.mulf %206, %209 : vector<2x8x1xf32>
    %211 = vector.broadcast %210 : vector<2x8x1xf32> to vector<2x8x8xf32>
    %212 = arith.mulf %203, %211 : vector<2x8x8xf32>
    "tpu.trace_start"() <{level = 10 : i32, message = "bqk,bkd->bqd"}> : () -> ()
    %cst_64 = arith.constant dense<0.000000e+00> : vector<2x8x4xf32>
    %213 = tpu.matmul %212, %191, %cst_64 {dimension_numbers = #tpu.dot_dimension_numbers<[2], [1], [1], [2], [0, 0, 0, 1, 1, 2], [0], [0]>} : vector<2x8x8xf32>, vector<2x8x4xf32>, vector<2x8x4xf32> -> vector<2x8x4xf32>
    "tpu.trace_stop"() : () -> ()
    %214 = tpu.concatenate %38, %63, %88, %113, %138, %163, %188, %213 in 2 : vector<2x8x4xf32>, vector<2x8x4xf32>, vector<2x8x4xf32>, vector<2x8x4xf32>, vector<2x8x4xf32>, vector<2x8x4xf32>, vector<2x8x4xf32>, vector<2x8x4xf32> -> vector<2x8x32xf32>
    %215 = vector.shape_cast %214 : vector<2x8x32xf32> to vector<16x32xf32>
    %c0_65 = arith.constant 0 : index
    %c0_66 = arith.constant 0 : index
    %216 = vector.load %arg6[%c0_65, %c0_66] : memref<32x32xf32, #tpu.memory_space<vmem>>, vector<32x32xf32>
    %cst_67 = arith.constant dense<0.000000e+00> : vector<16x32xf32>
    %217 = tpu.matmul %215, %216, %cst_67 {dimension_numbers = #tpu.dot_dimension_numbers<[1], [0], [0], [1], [0, 0, 1, 1], [], []>} : vector<16x32xf32>, vector<32x32xf32>, vector<16x32xf32> -> vector<16x32xf32>
    %c0_68 = arith.constant 0 : index
    %c0_69 = arith.constant 0 : index
    %218 = vector.load %arg7[%c0_68, %c0_69] : memref<1x32xf32, #tpu.memory_space<vmem>>, vector<1x32xf32>
    %219 = vector.broadcast %218 : vector<1x32xf32> to vector<16x32xf32>
    %220 = arith.addf %217, %219 : vector<16x32xf32>
    %221 = vector.shape_cast %220 : vector<16x32xf32> to vector<2x8x32xf32>
    %c0_70 = arith.constant 0 : index
    %c0_71 = arith.constant 0 : index
    %c0_72 = arith.constant 0 : index
    %222 = vector.load %arg3[%c0_70, %c0_71, %c0_72] : memref<2x8x1xf32, #tpu.memory_space<vmem>>, vector<2x8x1xf32>
    %223 = vector.broadcast %222 : vector<2x8x1xf32> to vector<2x8x32xf32>
    %224 = arith.mulf %221, %223 : vector<2x8x32xf32>
    %c0_73 = arith.constant 0 : index
    %c0_74 = arith.constant 0 : index
    %c0_75 = arith.constant 0 : index
    %225 = vector.load %arg8[%c0_73, %c0_74, %c0_75] : memref<2x8x32xf32, #tpu.memory_space<vmem>>, vector<2x8x32xf32>
    tpu.vector_store %arg8[%c0_73, %c0_74, %c0_75], %224 {strides = array<i32>} : memref<2x8x32xf32, #tpu.memory_space<vmem>>, vector<2x8x32xf32>,
    return
  }
  func.func @transform_0(%arg0: i32) -> (i32, i32, i32) {
    %c0_i32 = arith.constant 0 : i32
    %c0_i32_0 = arith.constant 0 : i32
    %c0_i32_1 = arith.constant 0 : i32
    return %arg0, %c0_i32, %c0_i32_0 : i32, i32, i32
  }
  func.func @transform_1(%arg0: i32) -> (i32, i32, i32) {
    %c0_i32 = arith.constant 0 : i32
    %c0_i32_0 = arith.constant 0 : i32
    %c0_i32_1 = arith.constant 0 : i32
    return %arg0, %c0_i32, %c0_i32_0 : i32, i32, i32
  }
  func.func @transform_2(%arg0: i32) -> (i32, i32, i32) {
    %c0_i32 = arith.constant 0 : i32
    %c0_i32_0 = arith.constant 0 : i32
    %c0_i32_1 = arith.constant 0 : i32
    return %arg0, %c0_i32, %c0_i32_0 : i32, i32, i32
  }
  func.func @transform_3(%arg0: i32) -> (i32, i32) {
    %c0_i32 = arith.constant 0 : i32
    %c0_i32_0 = arith.constant 0 : i32
    %c0_i32_1 = arith.constant 0 : i32
    return %c0_i32, %c0_i32_0 : i32, i32
  }
  func.func @transform_4(%arg0: i32) -> (i32, i32) {
    %c0_i32 = arith.constant 0 : i32
    %c0_i32_0 = arith.constant 0 : i32
    %c0_i32_1 = arith.constant 0 : i32
    return %c0_i32, %c0_i32_0 : i32, i32
  }
  func.func @transform_5(%arg0: i32) -> (i32, i32) {
    %c0_i32 = arith.constant 0 : i32
    %c0_i32_0 = arith.constant 0 : i32
    %c0_i32_1 = arith.constant 0 : i32
    return %c0_i32, %c0_i32_0 : i32, i32
  }
  func.func @transform_6(%arg0: i32) -> (i32, i32) {
    %c0_i32 = arith.constant 0 : i32
    %c0_i32_0 = arith.constant 0 : i32
    %c0_i32_1 = arith.constant 0 : i32
    return %c0_i32, %c0_i32_0 : i32, i32
  }
  func.func @transform_7(%arg0: i32) -> (i32, i32, i32) {
    %c0_i32 = arith.constant 0 : i32
    %c0_i32_0 = arith.constant 0 : i32
    %c0_i32_1 = arith.constant 0 : i32
    return %arg0, %c0_i32, %c0_i32_0 : i32, i32, i32
  }
}

module attributes {stable_mosaic.version = 11 : i64} {
  func.func @_fused_mha_kernel(%arg0: i32, %arg1: memref<2x8x32xf32, #tpu.memory_space<vmem>>, %arg2: memref<2x1x8xf32, #tpu.memory_space<vmem>>, %arg3: memref<2x8x1xf32, #tpu.memory_space<vmem>>, %arg4: memref<32x96xf32, #tpu.memory_space<vmem>>, %arg5: memref<1x96xf32, #tpu.memory_space<vmem>>, %arg6: memref<32x32xf32, #tpu.memory_space<vmem>>, %arg7: memref<1x32xf32, #tpu.memory_space<vmem>>, %arg8: memref<2x8x32xf32, #tpu.memory_space<vmem>>) attributes {dimension_semantics = [#tpu.dimension_semantics<parallel>], iteration_bounds = array<i64: 2>, scalar_prefetch = 0 : i64, scratch_operands = 0 : i64, tpu.core_type = #tpu.core_type<tc>, window_params = [{transform_indices = @transform_0, window_bounds = array<i64: 2, 8, 32>}, {transform_indices = @transform_1, window_bounds = array<i64: 2, 1, 8>}, {transform_indices = @transform_2, window_bounds = array<i64: 2, 8, 1>}, {pipeline_mode = #tpu.pipeline_mode<synchronous>, transform_indices = @transform_3, window_bounds = array<i64: 32, 96>}, {pipeline_mode = #tpu.pipeline_mode<synchronous>, transform_indices = @transform_4, window_bounds = array<i64: 1, 96>}, {pipeline_mode = #tpu.pipeline_mode<synchronous>, transform_indices = @transform_5, window_bounds = array<i64: 32, 32>}, {pipeline_mode = #tpu.pipeline_mode<synchronous>, transform_indices = @transform_6, window_bounds = array<i64: 1, 32>}, {transform_indices = @transform_7, window_bounds = array<i64: 2, 8, 32>}]} {
    %c0 = arith.constant 0 : index
    %c0_0 = arith.constant 0 : index
    %c0_1 = arith.constant 0 : index
    %0 = vector.load %arg1[%c0, %c0_0, %c0_1] : memref<2x8x32xf32, #tpu.memory_space<vmem>>, vector<2x8x32xf32>
    %1 = vector.shape_cast %0 : vector<2x8x32xf32> to vector<16x32xf32>
    %c0_2 = arith.constant 0 : index
    %c0_3 = arith.constant 0 : index
    %2 = vector.load %arg4[%c0_2, %c0_3] : memref<32x96xf32, #tpu.memory_space<vmem>>, vector<32x96xf32>
    %cst = arith.constant dense<0.000000e+00> : vector<16x96xf32>
    %3 = tpu.matmul %1, %2, %cst {dimension_numbers = #tpu.dot_dimension_numbers<[1], [0], [0], [1], [0, 0, 1, 1], [], []>} : vector<16x32xf32>, vector<32x96xf32>, vector<16x96xf32> -> vector<16x96xf32>
    %c0_4 = arith.constant 0 : index
    %c0_5 = arith.constant 0 : index
    %4 = vector.load %arg5[%c0_4, %c0_5] : memref<1x96xf32, #tpu.memory_space<vmem>>, vector<1x96xf32>
    %5 = vector.broadcast %4 : vector<1x96xf32> to vector<16x96xf32>
    %6 = arith.addf %3, %5 : vector<16x96xf32>
    %7 = vector.extract_strided_slice %6 {offsets = [0, 0], sizes = [16, 32], strides = [1, 1]} : vector<16x96xf32> to vector<16x32xf32>
    %8 = vector.shape_cast %7 : vector<16x32xf32> to vector<2x8x32xf32>
    %9 = vector.extract_strided_slice %6 {offsets = [0, 32], sizes = [16, 32], strides = [1, 1]} : vector<16x96xf32> to vector<16x32xf32>
    %10 = vector.shape_cast %9 : vector<16x32xf32> to vector<2x8x32xf32>
    %11 = vector.extract_strided_slice %6 {offsets = [0, 64], sizes = [16, 32], strides = [1, 1]} : vector<16x96xf32> to vector<16x32xf32>
    %12 = vector.shape_cast %11 : vector<16x32xf32> to vector<2x8x32xf32>
    %c0_6 = arith.constant 0 : index
    %c0_7 = arith.constant 0 : index
    %c0_8 = arith.constant 0 : index
    %13 = vector.load %arg2[%c0_6, %c0_7, %c0_8] : memref<2x1x8xf32, #tpu.memory_space<vmem>>, vector<2x1x8xf32>
    %14 = vector.extract_strided_slice %8 {offsets = [0, 0, 0], sizes = [2, 8, 4], strides = [1, 1, 1]} : vector<2x8x32xf32> to vector<2x8x4xf32>
    %15 = vector.extract_strided_slice %10 {offsets = [0, 0, 0], sizes = [2, 8, 4], strides = [1, 1, 1]} : vector<2x8x32xf32> to vector<2x8x4xf32>
    %16 = vector.extract_strided_slice %12 {offsets = [0, 0, 0], sizes = [2, 8, 4], strides = [1, 1, 1]} : vector<2x8x32xf32> to vector<2x8x4xf32>
    "tpu.trace_start"() <{level = 10 : i32, message = "bqd,bkd->bqk"}> : () -> ()
    %cst_9 = arith.constant dense<0.000000e+00> : vector<2x8x8xf32>
    %17 = tpu.matmul %14, %15, %cst_9 {dimension_numbers = #tpu.dot_dimension_numbers<[2], [2], [1], [1], [0, 0, 0, 1, 1, 1], [0], [0]>} : vector<2x8x4xf32>, vector<2x8x4xf32>, vector<2x8x8xf32> -> vector<2x8x8xf32>
    %cst_10 = arith.constant 0.000000e+00 : f32
    "tpu.trace_stop"() : () -> ()
    %18 = vector.broadcast %cst_10 : f32 to vector<2x1x8xf32>
    %19 = arith.cmpf ogt, %13, %18 : vector<2x1x8xf32>
    %cst_11 = arith.constant -1.000000e+30 : f32
    %20 = vector.shape_cast %19 : vector<2x1x8xi1> to vector<2x1x8xi1>
    %21 = vector.broadcast %20 : vector<2x1x8xi1> to vector<2x8x8xi1>
    %22 = vector.broadcast %cst_11 : f32 to vector<2x8x8xf32>
    %23 = arith.select %21, %17, %22 : vector<2x8x8xi1>, vector<2x8x8xf32>
    %cst_12 = arith.constant dense<0xFF800000> : vector<2x8xf32>
    %24 = vector.multi_reduction <maximumf>, %23, %cst_12 [2] : vector<2x8x8xf32> to vector<2x8xf32>
    %25 = vector.shape_cast %24 : vector<2x8xf32> to vector<2x8x1xf32>
    %26 = vector.broadcast %25 : vector<2x8x1xf32> to vector<2x8x8xf32>
    %27 = arith.subf %23, %26 : vector<2x8x8xf32>
    %28 = math.exp %27 : vector<2x8x8xf32>
    %cst_13 = arith.constant dense<0.000000e+00> : vector<2x8xf32>
    %29 = vector.multi_reduction <add>, %28, %cst_13 [2] : vector<2x8x8xf32> to vector<2x8xf32>
    %30 = vector.shape_cast %29 : vector<2x8xf32> to vector<2x8x1xf32>
    %31 = tpu.reciprocal %30 {approx = true} : vector<2x8x1xf32> -> vector<2x8x1xf32>
    %32 = arith.mulf %30, %31 : vector<2x8x1xf32>
    %cst_14 = arith.constant 2.000000e+00 : f32
    %33 = vector.broadcast %cst_14 : f32 to vector<2x8x1xf32>
    %34 = arith.subf %33, %32 : vector<2x8x1xf32>
    %35 = arith.mulf %31, %34 : vector<2x8x1xf32>
    %36 = vector.broadcast %35 : vector<2x8x1xf32> to vector<2x8x8xf32>
    %37 = arith.mulf %28, %36 : vector<2x8x8xf32>
    "tpu.trace_start"() <{level = 10 : i32, message = "bqk,bkd->bqd"}> : () -> ()
    %cst_15 = arith.constant dense<0.000000e+00> : vector<2x8x4xf32>
    %38 = tpu.matmul %37, %16, %cst_15 {dimension_numbers = #tpu.dot_dimension_numbers<[2], [1], [1], [2], [0, 0, 0, 1, 1, 2], [0], [0]>} : vector<2x8x8xf32>, vector<2x8x4xf32>, vector<2x8x4xf32> -> vector<2x8x4xf32>
    "tpu.trace_stop"() : () -> ()
    %39 = vector.extract_strided_slice %8 {offsets = [0, 0, 4], sizes = [2, 8, 4], strides = [1, 1, 1]} : vector<2x8x32xf32> to vector<2x8x4xf32>
    %40 = vector.extract_strided_slice %10 {offsets = [0, 0, 4], sizes = [2, 8, 4], strides = [1, 1, 1]} : vector<2x8x32xf32> to vector<2x8x4xf32>
    %41 = vector.extract_strided_slice %12 {offsets = [0, 0, 4], sizes = [2, 8, 4], strides = [1, 1, 1]} : vector<2x8x32xf32> to vector<2x8x4xf32>
    "tpu.trace_start"() <{level = 10 : i32, message = "bqd,bkd->bqk"}> : () -> ()
    %cst_16 = arith.constant dense<0.000000e+00> : vector<2x8x8xf32>
    %42 = tpu.matmul %39, %40, %cst_16 {dimension_numbers = #tpu.dot_dimension_numbers<[2], [2], [1], [1], [0, 0, 0, 1, 1, 1], [0], [0]>} : vector<2x8x4xf32>, vector<2x8x4xf32>, vector<2x8x8xf32> -> vector<2x8x8xf32>
    %cst_17 = arith.constant 0.000000e+00 : f32
    "tpu.trace_stop"() : () -> ()
    %43 = vector.broadcast %cst_17 : f32 to vector<2x1x8xf32>
    %44 = arith.cmpf ogt, %13, %43 : vector<2x1x8xf32>
    %cst_18 = arith.constant -1.000000e+30 : f32
    %45 = vector.shape_cast %44 : vector<2x1x8xi1> to vector<2x1x8xi1>
    %46 = vector.broadcast %45 : vector<2x1x8xi1> to vector<2x8x8xi1>
    %47 = vector.broadcast %cst_18 : f32 to vector<2x8x8xf32>
    %48 = arith.select %46, %42, %47 : vector<2x8x8xi1>, vector<2x8x8xf32>
    %cst_19 = arith.constant dense<0xFF800000> : vector<2x8xf32>
    %49 = vector.multi_reduction <maximumf>, %48, %cst_19 [2] : vector<2x8x8xf32> to vector<2x8xf32>
    %50 = vector.shape_cast %49 : vector<2x8xf32> to vector<2x8x1xf32>
    %51 = vector.broadcast %50 : vector<2x8x1xf32> to vector<2x8x8xf32>
    %52 = arith.subf %48, %51 : vector<2x8x8xf32>
    %53 = math.exp %52 : vector<2x8x8xf32>
    %cst_20 = arith.constant dense<0.000000e+00> : vector<2x8xf32>
    %54 = vector.multi_reduction <add>, %53, %cst_20 [2] : vector<2x8x8xf32> to vector<2x8xf32>
    %55 = vector.shape_cast %54 : vector<2x8xf32> to vector<2x8x1xf32>
    %56 = tpu.reciprocal %55 {approx = true} : vector<2x8x1xf32> -> vector<2x8x1xf32>
    %57 = arith.mulf %55, %56 : vector<2x8x1xf32>
    %cst_21 = arith.constant 2.000000e+00 : f32
    %58 = vector.broadcast %cst_21 : f32 to vector<2x8x1xf32>
    %59 = arith.subf %58, %57 : vector<2x8x1xf32>
    %60 = arith.mulf %56, %59 : vector<2x8x1xf32>
    %61 = vector.broadcast %60 : vector<2x8x1xf32> to vector<2x8x8xf32>
    %62 = arith.mulf %53, %61 : vector<2x8x8xf32>
    "tpu.trace_start"() <{level = 10 : i32, message = "bqk,bkd->bqd"}> : () -> ()
    %cst_22 = arith.constant dense<0.000000e+00> : vector<2x8x4xf32>
    %63 = tpu.matmul %62, %41, %cst_22 {dimension_numbers = #tpu.dot_dimension_numbers<[2], [1], [1], [2], [0, 0, 0, 1, 1, 2], [0], [0]>} : vector<2x8x8xf32>, vector<2x8x4xf32>, vector<2x8x4xf32> -> vector<2x8x4xf32>
    "tpu.trace_stop"() : () -> ()
    %64 = vector.extract_strided_slice %8 {offsets = [0, 0, 8], sizes = [2, 8, 4], strides = [1, 1, 1]} : vector<2x8x32xf32> to vector<2x8x4xf32>
    %65 = vector.extract_strided_slice %10 {offsets = [0, 0, 8], sizes = [2, 8, 4], strides = [1, 1, 1]} : vector<2x8x32xf32> to vector<2x8x4xf32>
    %66 = vector.extract_strided_slice %12 {offsets = [0, 0, 8], sizes = [2, 8, 4], strides = [1, 1, 1]} : vector<2x8x32xf32> to vector<2x8x4xf32>
    "tpu.trace_start"() <{level = 10 : i32, message = "bqd,bkd->bqk"}> : () -> ()
    %cst_23 = arith.constant dense<0.000000e+00> : vector<2x8x8xf32>
    %67 = tpu.matmul %64, %65, %cst_23 {dimension_numbers = #tpu.dot_dimension_numbers<[2], [2], [1], [1], [0, 0, 0, 1, 1, 1], [0], [0]>} : vector<2x8x4xf32>, vector<2x8x4xf32>, vector<2x8x8xf32> -> vector<2x8x8xf32>
    %cst_24 = arith.constant 0.000000e+00 : f32
    "tpu.trace_stop"() : () -> ()
    %68 = vector.broadcast %cst_24 : f32 to vector<2x1x8xf32>
    %69 = arith.cmpf ogt, %13, %68 : vector<2x1x8xf32>
    %cst_25 = arith.constant -1.000000e+30 : f32
    %70 = vector.shape_cast %69 : vector<2x1x8xi1> to vector<2x1x8xi1>
    %71 = vector.broadcast %70 : vector<2x1x8xi1> to vector<2x8x8xi1>
    %72 = vector.broadcast %cst_25 : f32 to vector<2x8x8xf32>
    %73 = arith.select %71, %67, %72 : vector<2x8x8xi1>, vector<2x8x8xf32>
    %cst_26 = arith.constant dense<0xFF800000> : vector<2x8xf32>
    %74 = vector.multi_reduction <maximumf>, %73, %cst_26 [2] : vector<2x8x8xf32> to vector<2x8xf32>
    %75 = vector.shape_cast %74 : vector<2x8xf32> to vector<2x8x1xf32>
    %76 = vector.broadcast %75 : vector<2x8x1xf32> to vector<2x8x8xf32>
    %77 = arith.subf %73, %76 : vector<2x8x8xf32>
    %78 = math.exp %77 : vector<2x8x8xf32>
    %cst_27 = arith.constant dense<0.000000e+00> : vector<2x8xf32>
    %79 = vector.multi_reduction <add>, %78, %cst_27 [2] : vector<2x8x8xf32> to vector<2x8xf32>
    %80 = vector.shape_cast %79 : vector<2x8xf32> to vector<2x8x1xf32>
    %81 = tpu.reciprocal %80 {approx = true} : vector<2x8x1xf32> -> vector<2x8x1xf32>
    %82 = arith.mulf %80, %81 : vector<2x8x1xf32>
    %cst_28 = arith.constant 2.000000e+00 : f32
    %83 = vector.broadcast %cst_28 : f32 to vector<2x8x1xf32>
    %84 = arith.subf %83, %82 : vector<2x8x1xf32>
    %85 = arith.mulf %81, %84 : vector<2x8x1xf32>
    %86 = vector.broadcast %85 : vector<2x8x1xf32> to vector<2x8x8xf32>
    %87 = arith.mulf %78, %86 : vector<2x8x8xf32>
    "tpu.trace_start"() <{level = 10 : i32, message = "bqk,bkd->bqd"}> : () -> ()
    %cst_29 = arith.constant dense<0.000000e+00> : vector<2x8x4xf32>
    %88 = tpu.matmul %87, %66, %cst_29 {dimension_numbers = #tpu.dot_dimension_numbers<[2], [1], [1], [2], [0, 0, 0, 1, 1, 2], [0], [0]>} : vector<2x8x8xf32>, vector<2x8x4xf32>, vector<2x8x4xf32> -> vector<2x8x4xf32>
    "tpu.trace_stop"() : () -> ()
    %89 = vector.extract_strided_slice %8 {offsets = [0, 0, 12], sizes = [2, 8, 4], strides = [1, 1, 1]} : vector<2x8x32xf32> to vector<2x8x4xf32>
    %90 = vector.extract_strided_slice %10 {offsets = [0, 0, 12], sizes = [2, 8, 4], strides = [1, 1, 1]} : vector<2x8x32xf32> to vector<2x8x4xf32>
    %91 = vector.extract_strided_slice %12 {offsets = [0, 0, 12], sizes = [2, 8, 4], strides = [1, 1, 1]} : vector<2x8x32xf32> to vector<2x8x4xf32>
    "tpu.trace_start"() <{level = 10 : i32, message = "bqd,bkd->bqk"}> : () -> ()
    %cst_30 = arith.constant dense<0.000000e+00> : vector<2x8x8xf32>
    %92 = tpu.matmul %89, %90, %cst_30 {dimension_numbers = #tpu.dot_dimension_numbers<[2], [2], [1], [1], [0, 0, 0, 1, 1, 1], [0], [0]>} : vector<2x8x4xf32>, vector<2x8x4xf32>, vector<2x8x8xf32> -> vector<2x8x8xf32>
    %cst_31 = arith.constant 0.000000e+00 : f32
    "tpu.trace_stop"() : () -> ()
    %93 = vector.broadcast %cst_31 : f32 to vector<2x1x8xf32>
    %94 = arith.cmpf ogt, %13, %93 : vector<2x1x8xf32>
    %cst_32 = arith.constant -1.000000e+30 : f32
    %95 = vector.shape_cast %94 : vector<2x1x8xi1> to vector<2x1x8xi1>
    %96 = vector.broadcast %95 : vector<2x1x8xi1> to vector<2x8x8xi1>
    %97 = vector.broadcast %cst_32 : f32 to vector<2x8x8xf32>
    %98 = arith.select %96, %92, %97 : vector<2x8x8xi1>, vector<2x8x8xf32>
    %cst_33 = arith.constant dense<0xFF800000> : vector<2x8xf32>
    %99 = vector.multi_reduction <maximumf>, %98, %cst_33 [2] : vector<2x8x8xf32> to vector<2x8xf32>
    %100 = vector.shape_cast %99 : vector<2x8xf32> to vector<2x8x1xf32>
    %101 = vector.broadcast %100 : vector<2x8x1xf32> to vector<2x8x8xf32>
    %102 = arith.subf %98, %101 : vector<2x8x8xf32>
    %103 = math.exp %102 : vector<2x8x8xf32>
    %cst_34 = arith.constant dense<0.000000e+00> : vector<2x8xf32>
    %104 = vector.multi_reduction <add>, %103, %cst_34 [2] : vector<2x8x8xf32> to vector<2x8xf32>
    %105 = vector.shape_cast %104 : vector<2x8xf32> to vector<2x8x1xf32>
    %106 = tpu.reciprocal %105 {approx = true} : vector<2x8x1xf32> -> vector<2x8x1xf32>
    %107 = arith.mulf %105, %106 : vector<2x8x1xf32>
    %cst_35 = arith.constant 2.000000e+00 : f32
    %108 = vector.broadcast %cst_35 : f32 to vector<2x8x1xf32>
    %109 = arith.subf %108, %107 : vector<2x8x1xf32>
    %110 = arith.mulf %106, %109 : vector<2x8x1xf32>
    %111 = vector.broadcast %110 : vector<2x8x1xf32> to vector<2x8x8xf32>
    %112 = arith.mulf %103, %111 : vector<2x8x8xf32>
    "tpu.trace_start"() <{level = 10 : i32, message = "bqk,bkd->bqd"}> : () -> ()
    %cst_36 = arith.constant dense<0.000000e+00> : vector<2x8x4xf32>
    %113 = tpu.matmul %112, %91, %cst_36 {dimension_numbers = #tpu.dot_dimension_numbers<[2], [1], [1], [2], [0, 0, 0, 1, 1, 2], [0], [0]>} : vector<2x8x8xf32>, vector<2x8x4xf32>, vector<2x8x4xf32> -> vector<2x8x4xf32>
    "tpu.trace_stop"() : () -> ()
    %114 = vector.extract_strided_slice %8 {offsets = [0, 0, 16], sizes = [2, 8, 4], strides = [1, 1, 1]} : vector<2x8x32xf32> to vector<2x8x4xf32>
    %115 = vector.extract_strided_slice %10 {offsets = [0, 0, 16], sizes = [2, 8, 4], strides = [1, 1, 1]} : vector<2x8x32xf32> to vector<2x8x4xf32>
    %116 = vector.extract_strided_slice %12 {offsets = [0, 0, 16], sizes = [2, 8, 4], strides = [1, 1, 1]} : vector<2x8x32xf32> to vector<2x8x4xf32>
    "tpu.trace_start"() <{level = 10 : i32, message = "bqd,bkd->bqk"}> : () -> ()
    %cst_37 = arith.constant dense<0.000000e+00> : vector<2x8x8xf32>
    %117 = tpu.matmul %114, %115, %cst_37 {dimension_numbers = #tpu.dot_dimension_numbers<[2], [2], [1], [1], [0, 0, 0, 1, 1, 1], [0], [0]>} : vector<2x8x4xf32>, vector<2x8x4xf32>, vector<2x8x8xf32> -> vector<2x8x8xf32>
    %cst_38 = arith.constant 0.000000e+00 : f32
    "tpu.trace_stop"() : () -> ()
    %118 = vector.broadcast %cst_38 : f32 to vector<2x1x8xf32>
    %119 = arith.cmpf ogt, %13, %118 : vector<2x1x8xf32>
    %cst_39 = arith.constant -1.000000e+30 : f32
    %120 = vector.shape_cast %119 : vector<2x1x8xi1> to vector<2x1x8xi1>
    %121 = vector.broadcast %120 : vector<2x1x8xi1> to vector<2x8x8xi1>
    %122 = vector.broadcast %cst_39 : f32 to vector<2x8x8xf32>
    %123 = arith.select %121, %117, %122 : vector<2x8x8xi1>, vector<2x8x8xf32>
    %cst_40 = arith.constant dense<0xFF800000> : vector<2x8xf32>
    %124 = vector.multi_reduction <maximumf>, %123, %cst_40 [2] : vector<2x8x8xf32> to vector<2x8xf32>
    %125 = vector.shape_cast %124 : vector<2x8xf32> to vector<2x8x1xf32>
    %126 = vector.broadcast %125 : vector<2x8x1xf32> to vector<2x8x8xf32>
    %127 = arith.subf %123, %126 : vector<2x8x8xf32>
    %128 = math.exp %127 : vector<2x8x8xf32>
    %cst_41 = arith.constant dense<0.000000e+00> : vector<2x8xf32>
    %129 = vector.multi_reduction <add>, %128, %cst_41 [2] : vector<2x8x8xf32> to vector<2x8xf32>
    %130 = vector.shape_cast %129 : vector<2x8xf32> to vector<2x8x1xf32>
    %131 = tpu.reciprocal %130 {approx = true} : vector<2x8x1xf32> -> vector<2x8x1xf32>
    %132 = arith.mulf %130, %131 : vector<2x8x1xf32>
    %cst_42 = arith.constant 2.000000e+00 : f32
    %133 = vector.broadcast %cst_42 : f32 to vector<2x8x1xf32>
    %134 = arith.subf %133, %132 : vector<2x8x1xf32>
    %135 = arith.mulf %131, %134 : vector<2x8x1xf32>
    %136 = vector.broadcast %135 : vector<2x8x1xf32> to vector<2x8x8xf32>
    %137 = arith.mulf %128, %136 : vector<2x8x8xf32>
    "tpu.trace_start"() <{level = 10 : i32, message = "bqk,bkd->bqd"}> : () -> ()
    %cst_43 = arith.constant dense<0.000000e+00> : vector<2x8x4xf32>
    %138 = tpu.matmul %137, %116, %cst_43 {dimension_numbers = #tpu.dot_dimension_numbers<[2], [1], [1], [2], [0, 0, 0, 1, 1, 2], [0], [0]>} : vector<2x8x8xf32>, vector<2x8x4xf32>, vector<2x8x4xf32> -> vector<2x8x4xf32>
    "tpu.trace_stop"() : () -> ()
    %139 = vector.extract_strided_slice %8 {offsets = [0, 0, 20], sizes = [2, 8, 4], strides = [1, 1, 1]} : vector<2x8x32xf32> to vector<2x8x4xf32>
    %140 = vector.extract_strided_slice %10 {offsets = [0, 0, 20], sizes = [2, 8, 4], strides = [1, 1, 1]} : vector<2x8x32xf32> to vector<2x8x4xf32>
    %141 = vector.extract_strided_slice %12 {offsets = [0, 0, 20], sizes = [2, 8, 4], strides = [1, 1, 1]} : vector<2x8x32xf32> to vector<2x8x4xf32>
    "tpu.trace_start"() <{level = 10 : i32, message = "bqd,bkd->bqk"}> : () -> ()
    %cst_44 = arith.constant dense<0.000000e+00> : vector<2x8x8xf32>
    %142 = tpu.matmul %139, %140, %cst_44 {dimension_numbers = #tpu.dot_dimension_numbers<[2], [2], [1], [1], [0, 0, 0, 1, 1, 1], [0], [0]>} : vector<2x8x4xf32>, vector<2x8x4xf32>, vector<2x8x8xf32> -> vector<2x8x8xf32>
    %cst_45 = arith.constant 0.000000e+00 : f32
    "tpu.trace_stop"() : () -> ()
    %143 = vector.broadcast %cst_45 : f32 to vector<2x1x8xf32>
    %144 = arith.cmpf ogt, %13, %143 : vector<2x1x8xf32>
    %cst_46 = arith.constant -1.000000e+30 : f32
    %145 = vector.shape_cast %144 : vector<2x1x8xi1> to vector<2x1x8xi1>
    %146 = vector.broadcast %145 : vector<2x1x8xi1> to vector<2x8x8xi1>
    %147 = vector.broadcast %cst_46 : f32 to vector<2x8x8xf32>
    %148 = arith.select %146, %142, %147 : vector<2x8x8xi1>, vector<2x8x8xf32>
    %cst_47 = arith.constant dense<0xFF800000> : vector<2x8xf32>
    %149 = vector.multi_reduction <maximumf>, %148, %cst_47 [2] : vector<2x8x8xf32> to vector<2x8xf32>
    %150 = vector.shape_cast %149 : vector<2x8xf32> to vector<2x8x1xf32>
    %151 = vector.broadcast %150 : vector<2x8x1xf32> to vector<2x8x8xf32>
    %152 = arith.subf %148, %151 : vector<2x8x8xf32>
    %153 = math.exp %152 : vector<2x8x8xf32>
    %cst_48 = arith.constant dense<0.000000e+00> : vector<2x8xf32>
    %154 = vector.multi_reduction <add>, %153, %cst_48 [2] : vector<2x8x8xf32> to vector<2x8xf32>
    %155 = vector.shape_cast %154 : vector<2x8xf32> to vector<2x8x1xf32>
    %156 = tpu.reciprocal %155 {approx = true} : vector<2x8x1xf32> -> vector<2x8x1xf32>
    %157 = arith.mulf %155, %156 : vector<2x8x1xf32>
    %cst_49 = arith.constant 2.000000e+00 : f32
    %158 = vector.broadcast %cst_49 : f32 to vector<2x8x1xf32>
    %159 = arith.subf %158, %157 : vector<2x8x1xf32>
    %160 = arith.mulf %156, %159 : vector<2x8x1xf32>
    %161 = vector.broadcast %160 : vector<2x8x1xf32> to vector<2x8x8xf32>
    %162 = arith.mulf %153, %161 : vector<2x8x8xf32>
    "tpu.trace_start"() <{level = 10 : i32, message = "bqk,bkd->bqd"}> : () -> ()
    %cst_50 = arith.constant dense<0.000000e+00> : vector<2x8x4xf32>
    %163 = tpu.matmul %162, %141, %cst_50 {dimension_numbers = #tpu.dot_dimension_numbers<[2], [1], [1], [2], [0, 0, 0, 1, 1, 2], [0], [0]>} : vector<2x8x8xf32>, vector<2x8x4xf32>, vector<2x8x4xf32> -> vector<2x8x4xf32>
    "tpu.trace_stop"() : () -> ()
    %164 = vector.extract_strided_slice %8 {offsets = [0, 0, 24], sizes = [2, 8, 4], strides = [1, 1, 1]} : vector<2x8x32xf32> to vector<2x8x4xf32>
    %165 = vector.extract_strided_slice %10 {offsets = [0, 0, 24], sizes = [2, 8, 4], strides = [1, 1, 1]} : vector<2x8x32xf32> to vector<2x8x4xf32>
    %166 = vector.extract_strided_slice %12 {offsets = [0, 0, 24], sizes = [2, 8, 4], strides = [1, 1, 1]} : vector<2x8x32xf32> to vector<2x8x4xf32>
    "tpu.trace_start"() <{level = 10 : i32, message = "bqd,bkd->bqk"}> : () -> ()
    %cst_51 = arith.constant dense<0.000000e+00> : vector<2x8x8xf32>
    %167 = tpu.matmul %164, %165, %cst_51 {dimension_numbers = #tpu.dot_dimension_numbers<[2], [2], [1], [1], [0, 0, 0, 1, 1, 1], [0], [0]>} : vector<2x8x4xf32>, vector<2x8x4xf32>, vector<2x8x8xf32> -> vector<2x8x8xf32>
    %cst_52 = arith.constant 0.000000e+00 : f32
    "tpu.trace_stop"() : () -> ()
    %168 = vector.broadcast %cst_52 : f32 to vector<2x1x8xf32>
    %169 = arith.cmpf ogt, %13, %168 : vector<2x1x8xf32>
    %cst_53 = arith.constant -1.000000e+30 : f32
    %170 = vector.shape_cast %169 : vector<2x1x8xi1> to vector<2x1x8xi1>
    %171 = vector.broadcast %170 : vector<2x1x8xi1> to vector<2x8x8xi1>
    %172 = vector.broadcast %cst_53 : f32 to vector<2x8x8xf32>
    %173 = arith.select %171, %167, %172 : vector<2x8x8xi1>, vector<2x8x8xf32>
    %cst_54 = arith.constant dense<0xFF800000> : vector<2x8xf32>
    %174 = vector.multi_reduction <maximumf>, %173, %cst_54 [2] : vector<2x8x8xf32> to vector<2x8xf32>
    %175 = vector.shape_cast %174 : vector<2x8xf32> to vector<2x8x1xf32>
    %176 = vector.broadcast %175 : vector<2x8x1xf32> to vector<2x8x8xf32>
    %177 = arith.subf %173, %176 : vector<2x8x8xf32>
    %178 = math.exp %177 : vector<2x8x8xf32>
    %cst_55 = arith.constant dense<0.000000e+00> : vector<2x8xf32>
    %179 = vector.multi_reduction <add>, %178, %cst_55 [2] : vector<2x8x8xf32> to vector<2x8xf32>
    %180 = vector.shape_cast %179 : vector<2x8xf32> to vector<2x8x1xf32>
    %181 = tpu.reciprocal %180 {approx = true} : vector<2x8x1xf32> -> vector<2x8x1xf32>
    %182 = arith.mulf %180, %181 : vector<2x8x1xf32>
    %cst_56 = arith.constant 2.000000e+00 : f32
    %183 = vector.broadcast %cst_56 : f32 to vector<2x8x1xf32>
    %184 = arith.subf %183, %182 : vector<2x8x1xf32>
    %185 = arith.mulf %181, %184 : vector<2x8x1xf32>
    %186 = vector.broadcast %185 : vector<2x8x1xf32> to vector<2x8x8xf32>
    %187 = arith.mulf %178, %186 : vector<2x8x8xf32>
    "tpu.trace_start"() <{level = 10 : i32, message = "bqk,bkd->bqd"}> : () -> ()
    %cst_57 = arith.constant dense<0.000000e+00> : vector<2x8x4xf32>
    %188 = tpu.matmul %187, %166, %cst_57 {dimension_numbers = #tpu.dot_dimension_numbers<[2], [1], [1], [2], [0, 0, 0, 1, 1, 2], [0], [0]>} : vector<2x8x8xf32>, vector<2x8x4xf32>, vector<2x8x4xf32> -> vector<2x8x4xf32>
    "tpu.trace_stop"() : () -> ()
    %189 = vector.extract_strided_slice %8 {offsets = [0, 0, 28], sizes = [2, 8, 4], strides = [1, 1, 1]} : vector<2x8x32xf32> to vector<2x8x4xf32>
    %190 = vector.extract_strided_slice %10 {offsets = [0, 0, 28], sizes = [2, 8, 4], strides = [1, 1, 1]} : vector<2x8x32xf32> to vector<2x8x4xf32>
    %191 = vector.extract_strided_slice %12 {offsets = [0, 0, 28], sizes = [2, 8, 4], strides = [1, 1, 1]} : vector<2x8x32xf32> to vector<2x8x4xf32>
    "tpu.trace_start"() <{level = 10 : i32, message = "bqd,bkd->bqk"}> : () -> ()
    %cst_58 = arith.constant dense<0.000000e+00> : vector<2x8x8xf32>
    %192 = tpu.matmul %189, %190, %cst_58 {dimension_numbers = #tpu.dot_dimension_numbers<[2], [2], [1], [1], [0, 0, 0, 1, 1, 1], [0], [0]>} : vector<2x8x4xf32>, vector<2x8x4xf32>, vector<2x8x8xf32> -> vector<2x8x8xf32>
    %cst_59 = arith.constant 0.000000e+00 : f32
    "tpu.trace_stop"() : () -> ()
    %193 = vector.broadcast %cst_59 : f32 to vector<2x1x8xf32>
    %194 = arith.cmpf ogt, %13, %193 : vector<2x1x8xf32>
    %cst_60 = arith.constant -1.000000e+30 : f32
    %195 = vector.shape_cast %194 : vector<2x1x8xi1> to vector<2x1x8xi1>
    %196 = vector.broadcast %195 : vector<2x1x8xi1> to vector<2x8x8xi1>
    %197 = vector.broadcast %cst_60 : f32 to vector<2x8x8xf32>
    %198 = arith.select %196, %192, %197 : vector<2x8x8xi1>, vector<2x8x8xf32>
    %cst_61 = arith.constant dense<0xFF800000> : vector<2x8xf32>
    %199 = vector.multi_reduction <maximumf>, %198, %cst_61 [2] : vector<2x8x8xf32> to vector<2x8xf32>
    %200 = vector.shape_cast %199 : vector<2x8xf32> to vector<2x8x1xf32>
    %201 = vector.broadcast %200 : vector<2x8x1xf32> to vector<2x8x8xf32>
    %202 = arith.subf %198, %201 : vector<2x8x8xf32>
    %203 = math.exp %202 : vector<2x8x8xf32>
    %cst_62 = arith.constant dense<0.000000e+00> : vector<2x8xf32>
    %204 = vector.multi_reduction <add>, %203, %cst_62 [2] : vector<2x8x8xf32> to vector<2x8xf32>
    %205 = vector.shape_cast %204 : vector<2x8xf32> to vector<2x8x1xf32>
    %206 = tpu.reciprocal %205 {approx = true} : vector<2x8x1xf32> -> vector<2x8x1xf32>
    %207 = arith.mulf %205, %206 : vector<2x8x1xf32>
    %cst_63 = arith.constant 2.000000e+00 : f32
    %208 = vector.broadcast %cst_63 : f32 to vector<2x8x1xf32>
    %209 = arith.subf %208, %207 : vector<2x8x1xf32>
    %210 = arith.mulf %206, %209 : vector<2x8x1xf32>
    %211 = vector.broadcast %210 : vector<2x8x1xf32> to vector<2x8x8xf32>
    %212 = arith.mulf %203, %211 : vector<2x8x8xf32>
    "tpu.trace_start"() <{level = 10 : i32, message = "bqk,bkd->bqd"}> : () -> ()
    %cst_64 = arith.constant dense<0.000000e+00> : vector<2x8x4xf32>
    %213 = tpu.matmul %212, %191, %cst_64 {dimension_numbers = #tpu.dot_dimension_numbers<[2], [1], [1], [2], [0, 0, 0, 1, 1, 2], [0], [0]>} : vector<2x8x8xf32>, vector<2x8x4xf32>, vector<2x8x4xf32> -> vector<2x8x4xf32>
    "tpu.trace_stop"() : () -> ()
    %214 = tpu.concatenate %38, %63, %88, %113, %138, %163, %188, %213 in 2 : vector<2x8x4xf32>, vector<2x8x4xf32>, vector<2x8x4xf32>, vector<2x8x4xf32>, vector<2x8x4xf32>, vector<2x8x4xf32>, vector<2x8x4xf32>, vector<2x8x4xf32> -> vector<2x8x32xf32>
    %215 = vector.shape_cast %214 : vector<2x8x32xf32> to vector<16x32xf32>
    %c0_65 = arith.constant 0 : index
    %c0_66 = arith.constant 0 : index
    %216 = vector.load %arg6[%c0_65, %c0_66] : memref<32x32xf32, #tpu.memory_space<vmem>>, vector<32x32xf32>
    %cst_67 = arith.constant dense<0.000000e+00> : vector<16x32xf32>
    %217 = tpu.matmul %215, %216, %cst_67 {dimension_numbers = #tpu.dot_dimension_numbers<[1], [0], [0], [1], [0, 0, 1, 1], [], []>} : vector<16x32xf32>, vector<32x32xf32>, vector<16x32xf32> -> vector<16x32xf32>
    %c0_68 = arith.constant 0 : index
    %c0_69 = arith.constant 0 : index
    %218 = vector.load %arg7[%c0_68, %c0_69] : memref<1x32xf32, #tpu.memory_space<vmem>>, vector<1x32xf32>
    %219 = vector.broadcast %218 : vector<1x32xf32> to vector<16x32xf32>
    %220 = arith.addf %217, %219 : vector<16x32xf32>
    %221 = vector.shape_cast %220 : vector<16x32xf32> to vector<2x8x32xf32>
    %c0_70 = arith.constant 0 : index
    %c0_71 = arith.constant 0 : index
    %c0_72 = arith.constant 0 : index
    %222 = vector.load %arg3[%c0_70, %c0_71, %c0_72] : memref<2x8x1xf32, #tpu.memory_space<vmem>>, vector<2x8x1xf32>
    %223 = vector.broadcast %222 : vector<2x8x1xf32> to vector<2x8x32xf32>
    %224 = arith.mulf %221, %223 : vector<2x8x32xf32>
    %c0_73 = arith.constant 0 : index
    %c0_74 = arith.constant 0 : index
    %c0_75 = arith.constant 0 : index
    %225 = vector.load %arg8[%c0_73, %c0_74, %c0_75] : memref<2x8x32xf32, #tpu.memory_space<vmem>>, vector<2x8x32xf32>
    tpu.vector_store %arg8[%c0_73, %c0_74, %c0_75], %224 {strides = array<i32>} : memref<2x8x32xf32, #tpu.memory_space<vmem>>, vector<2x8x32xf32>,
    return
  }
  func.func @transform_0(%arg0: i32) -> (i32, i32, i32) {
    %c0_i32 = arith.constant 0 : i32
    %c0_i32_0 = arith.constant 0 : i32
    %c0_i32_1 = arith.constant 0 : i32
    return %arg0, %c0_i32, %c0_i32_0 : i32, i32, i32
  }
  func.func @transform_1(%arg0: i32) -> (i32, i32, i32) {
    %c0_i32 = arith.constant 0 : i32
    %c0_i32_0 = arith.constant 0 : i32
    %c0_i32_1 = arith.constant 0 : i32
    return %arg0, %c0_i32, %c0_i32_0 : i32, i32, i32
  }
  func.func @transform_2(%arg0: i32) -> (i32, i32, i32) {
    %c0_i32 = arith.constant 0 : i32
    %c0_i32_0 = arith.constant 0 : i32
    %c0_i32_1 = arith.constant 0 : i32
    return %arg0, %c0_i32, %c0_i32_0 : i32, i32, i32
  }
  func.func @transform_3(%arg0: i32) -> (i32, i32) {
    %c0_i32 = arith.constant 0 : i32
    %c0_i32_0 = arith.constant 0 : i32
    %c0_i32_1 = arith.constant 0 : i32
    return %c0_i32, %c0_i32_0 : i32, i32
  }
  func.func @transform_4(%arg0: i32) -> (i32, i32) {
    %c0_i32 = arith.constant 0 : i32
    %c0_i32_0 = arith.constant 0 : i32
    %c0_i32_1 = arith.constant 0 : i32
    return %c0_i32, %c0_i32_0 : i32, i32
  }
  func.func @transform_5(%arg0: i32) -> (i32, i32) {
    %c0_i32 = arith.constant 0 : i32
    %c0_i32_0 = arith.constant 0 : i32
    %c0_i32_1 = arith.constant 0 : i32
    return %c0_i32, %c0_i32_0 : i32, i32
  }
  func.func @transform_6(%arg0: i32) -> (i32, i32) {
    %c0_i32 = arith.constant 0 : i32
    %c0_i32_0 = arith.constant 0 : i32
    %c0_i32_1 = arith.constant 0 : i32
    return %c0_i32, %c0_i32_0 : i32, i32
  }
  func.func @transform_7(%arg0: i32) -> (i32, i32, i32) {
    %c0_i32 = arith.constant 0 : i32
    %c0_i32_0 = arith.constant 0 : i32
    %c0_i32_1 = arith.constant 0 : i32
    return %arg0, %c0_i32, %c0_i32_0 : i32, i32, i32
  }
}

</mosaic_0001>

<llo_original>
// kernel: _mha_forward.1
$region0: #{_mha_forward.1}
  #allocation0 [shape = 'u32[]', space=smem, size = 0x4, offset = 0x4, fixed_abs, tag = 'smem constant byte address 0x4 - core index']
  #allocation1 [shape = 'u32[144,128]{1,0:T(1,128)}', space=vmem, size = 0x12000, scoped, tag = 'internal scratch']
  %s0 = inlined_call_operand.vmem [shape: f32[4,8,32], index: 0, kind: input, shape index: {}]
  %s1 = inlined_call_operand.vmem [shape: f32[4,1,8], index: 1, kind: input, shape index: {}]
  %s2 = inlined_call_operand.vmem [shape: f32[4,8,1], index: 2, kind: input, shape index: {}]
  %s3 = inlined_call_operand.vmem [shape: f32[32,96], index: 3, kind: input, shape index: {}]
  %s4 = inlined_call_operand.vmem [shape: f32[1,96], index: 4, kind: input, shape index: {}]
  %s5 = inlined_call_operand.hbm [shape: f32[32,32], index: 5, kind: input, shape index: {}]
  %s6 = inlined_call_operand.vmem [shape: f32[1,32], index: 6, kind: input, shape index: {}]
  %s7 = inlined_call_operand.hbm [shape: f32[4,8,32], index: 7, kind: output, shape index: {}]
  %s8 = sld [smem:[#allocation0]]
  $region65: #{_mha_forward.1} parent=0
    _
  %s10 = ssub.s32 1, %s8
  %s11 = scalar_select 0, %s10, %s8
  $region1: #{_mha_forward.1} parent=0
    #allocation2 [shape = 'u8[16384]{0}', space=vmem, size = 0x4000, scoped, tag = 'input window, operand 5, single buffered']
    #allocation3 [shape = 's32[2]{0}', space=sflag, size = 0x8, scoped, tag = 'scoped memory for _mha_forward.1']
    #allocation4 [shape = 's32[2]{0}', space=sflag, size = 0x8, scoped, tag = 'scoped memory for _mha_forward.1']
    #allocation5 [shape = 'u8[16384]{0}', space=vmem, size = 0x4000, scoped, tag = 'output window, operand 0']
    %12 = vsyncpa [#allocation3], 0
    %13 = vsyncpa [#allocation4], 0
    %s14 = scalar_lea.sflag [#allocation4], 1
    %15 = vsyncpa %s14, 0
    loop: start=0, step=1, limit=4
    $region2: #{_mha_forward.1} parent=1 // loop_pre_header
      _
    $region3: #{_mha_forward.1} parent=1 // loop_header
      %s17 = sphi 0, %s21
      %p18 = scmp.ge.s32.totalorder %s17, 4
      %s27 = sphi 0, %s29
      %s30 = sphi 0, %s27
      %s31 = sphi 0, %s30
      %s47 = sphi 0, %s31
      %s53 = sphi 0, %s55
      %s56 = sphi 0, %s53
      %s57 = sphi 0, %s56
      %s73 = sphi 0, %s57
      %s79 = sphi 0, %s81
      %s82 = sphi 0, %s79
      %s83 = sphi 0, %s82
      %s99 = sphi 0, %s83
      %s103 = sphi 0, %s103
      %s105 = sphi 0, %s103
      %s106 = sphi 0, %s105
      %s120 = sphi 0, %s106
      %s124 = sphi 0, %s124
      %s126 = sphi 0, %s124
      %s127 = sphi 0, %s126
      %s141 = sphi 0, %s127
      %s145 = sphi 0, %s145
      %s147 = sphi 0, %s145
      %s148 = sphi 0, %s147
      %s162 = sphi 0, %s148
      %s166 = sphi 0, %s166
      %s168 = sphi 0, %s166
      %s169 = sphi 0, %s168
      %s183 = sphi 0, %s169
      %s189 = sphi 0, %s191
      %s192 = sphi 0, %s189
      %s193 = sphi 0, %s192
      %s209 = sphi 0, %s193
    $region4: #{_mha_forward.1} parent=1 // loop_header_branch
      %20 = sbr.rel (%p18) target = $region8
    $region5: #{_mha_forward.1} parent=1 // loop_body
      %s22 = ssub.s32 %s17, 1
      %s23 = ssub.s32 %s17, 2
      %s24 = sadd.s32 %s17, 1
      %s25 = ssub.s32 %s17, %s24
      %p26 = scmp.eq.s32.totalorder %s25, 0
      %s28 = sadd.s32 %s27, 1
      %s29 = scalar_select %p26, %s27, %s28
      %p32 = pneg %p26
      %p33 = scmp.eq.s32.totalorder %s17, 1
      %p34 = por %p32, %p33
      %p35 = scmp.ne.s32.totalorder %s27, %s30
      %p36 = scmp.eq.s32.totalorder %s17, 0
      %p37 = por %p35, %p36
      %p38 = scmp.ne.s32.totalorder %s27, %s30
      %p39 = scmp.eq.s32.totalorder %s22, 1
      %p40 = por %p38, %p39
      %p41 = scmp.ne.s32.totalorder %s30, %s31
      %p42 = scmp.eq.s32.totalorder %s22, 0
      %p43 = por %p41, %p42
      %p44 = scmp.ne.s32.totalorder %s30, %s31
      %p45 = scmp.eq.s32.totalorder %s23, 1
      %p46 = por %p44, %p45
      %p48 = scmp.ne.s32.totalorder %s31, %s47
      %p49 = scmp.eq.s32.totalorder %s23, 0
      %p50 = por %p48, %p49
      %s51 = ssub.s32 %s17, %s24
      %p52 = scmp.eq.s32.totalorder %s51, 0
      %s54 = sadd.s32 %s53, 1
      %s55 = scalar_select %p52, %s53, %s54
      %p58 = pneg %p52
      %p59 = scmp.eq.s32.totalorder %s17, 1
      %p60 = por %p58, %p59
      %p61 = scmp.ne.s32.totalorder %s53, %s56
      %p62 = scmp.eq.s32.totalorder %s17, 0
      %p63 = por %p61, %p62
      %p64 = scmp.ne.s32.totalorder %s53, %s56
      %p65 = scmp.eq.s32.totalorder %s22, 1
      %p66 = por %p64, %p65
      %p67 = scmp.ne.s32.totalorder %s56, %s57
      %p68 = scmp.eq.s32.totalorder %s22, 0
      %p69 = por %p67, %p68
      %p70 = scmp.ne.s32.totalorder %s56, %s57
      %p71 = scmp.eq.s32.totalorder %s23, 1
      %p72 = por %p70, %p71
      %p74 = scmp.ne.s32.totalorder %s57, %s73
      %p75 = scmp.eq.s32.totalorder %s23, 0
      %p76 = por %p74, %p75
      %s77 = ssub.s32 %s17, %s24
      %p78 = scmp.eq.s32.totalorder %s77, 0
      %s80 = sadd.s32 %s79, 1
      %s81 = scalar_select %p78, %s79, %s80
      %p84 = pneg %p78
      %p85 = scmp.eq.s32.totalorder %s17, 1
      %p86 = por %p84, %p85
      %p87 = scmp.ne.s32.totalorder %s79, %s82
      %p88 = scmp.eq.s32.totalorder %s17, 0
      %p89 = por %p87, %p88
      %p90 = scmp.ne.s32.totalorder %s79, %s82
      %p91 = scmp.eq.s32.totalorder %s22, 1
      %p92 = por %p90, %p91
      %p93 = scmp.ne.s32.totalorder %s82, %s83
      %p94 = scmp.eq.s32.totalorder %s22, 0
      %p95 = por %p93, %p94
      %p96 = scmp.ne.s32.totalorder %s82, %s83
      %p97 = scmp.eq.s32.totalorder %s23, 1
      %p98 = por %p96, %p97
      %p100 = scmp.ne.s32.totalorder %s83, %s99
      %p101 = scmp.eq.s32.totalorder %s23, 0
      %p102 = por %p100, %p101
      %s104 = sadd.s32 %s103, 1
      %p107 = scmp.eq.s32.totalorder %s17, 1
      %p108 = scmp.ne.s32.totalorder %s103, %s105
      %p109 = scmp.eq.s32.totalorder %s17, 0
      %p110 = por %p108, %p109
      %p111 = scmp.ne.s32.totalorder %s103, %s105
      %p112 = scmp.eq.s32.totalorder %s22, 1
      %p113 = por %p111, %p112
      %p114 = scmp.ne.s32.totalorder %s105, %s106
      %p115 = scmp.eq.s32.totalorder %s22, 0
      %p116 = por %p114, %p115
      %p117 = scmp.ne.s32.totalorder %s105, %s106
      %p118 = scmp.eq.s32.totalorder %s23, 1
      %p119 = por %p117, %p118
      %p121 = scmp.ne.s32.totalorder %s106, %s120
      %p122 = scmp.eq.s32.totalorder %s23, 0
      %p123 = por %p121, %p122
      %s125 = sadd.s32 %s124, 1
      %p128 = scmp.eq.s32.totalorder %s17, 1
      %p129 = scmp.ne.s32.totalorder %s124, %s126
      %p130 = scmp.eq.s32.totalorder %s17, 0
      %p131 = por %p129, %p130
      %p132 = scmp.ne.s32.totalorder %s124, %s126
      %p133 = scmp.eq.s32.totalorder %s22, 1
      %p134 = por %p132, %p133
      %p135 = scmp.ne.s32.totalorder %s126, %s127
      %p136 = scmp.eq.s32.totalorder %s22, 0
      %p137 = por %p135, %p136
      %p138 = scmp.ne.s32.totalorder %s126, %s127
      %p139 = scmp.eq.s32.totalorder %s23, 1
      %p140 = por %p138, %p139
      %p142 = scmp.ne.s32.totalorder %s127, %s141
      %p143 = scmp.eq.s32.totalorder %s23, 0
      %p144 = por %p142, %p143
      %s146 = sadd.s32 %s145, 1
      %p149 = scmp.eq.s32.totalorder %s17, 1
      %p150 = scmp.ne.s32.totalorder %s145, %s147
      %p151 = scmp.eq.s32.totalorder %s17, 0
      %p152 = por %p150, %p151
      %p153 = scmp.ne.s32.totalorder %s145, %s147
      %p154 = scmp.eq.s32.totalorder %s22, 1
      %p155 = por %p153, %p154
      %p156 = scmp.ne.s32.totalorder %s147, %s148
      %p157 = scmp.eq.s32.totalorder %s22, 0
      %p158 = por %p156, %p157
      %p159 = scmp.ne.s32.totalorder %s147, %s148
      %p160 = scmp.eq.s32.totalorder %s23, 1
      %p161 = por %p159, %p160
      %p163 = scmp.ne.s32.totalorder %s148, %s162
      %p164 = scmp.eq.s32.totalorder %s23, 0
      %p165 = por %p163, %p164
      %s167 = sadd.s32 %s166, 1
      %p170 = scmp.eq.s32.totalorder %s17, 1
      %p171 = scmp.ne.s32.totalorder %s166, %s168
      %p172 = scmp.eq.s32.totalorder %s17, 0
      %p173 = por %p171, %p172
      %p174 = scmp.ne.s32.totalorder %s166, %s168
      %p175 = scmp.eq.s32.totalorder %s22, 1
      %p176 = por %p174, %p175
      %p177 = scmp.ne.s32.totalorder %s168, %s169
      %p178 = scmp.eq.s32.totalorder %s22, 0
      %p179 = por %p177, %p178
      %p180 = scmp.ne.s32.totalorder %s168, %s169
      %p181 = scmp.eq.s32.totalorder %s23, 1
      %p182 = por %p180, %p181
      %p184 = scmp.ne.s32.totalorder %s169, %s183
      %p185 = scmp.eq.s32.totalorder %s23, 0
      %p186 = por %p184, %p185
      %s187 = ssub.s32 %s17, %s24
      %p188 = scmp.eq.s32.totalorder %s187, 0
      %s190 = sadd.s32 %s189, 1
      %s191 = scalar_select %p188, %s189, %s190
      %p194 = pneg %p188
      %p195 = scmp.eq.s32.totalorder %s17, 1
      %p196 = por %p194, %p195
      %p197 = scmp.ne.s32.totalorder %s189, %s192
      %p198 = scmp.eq.s32.totalorder %s17, 0
      %p199 = por %p197, %p198
      %p200 = scmp.ne.s32.totalorder %s189, %s192
      %p201 = scmp.eq.s32.totalorder %s22, 1
      %p202 = por %p200, %p201
      %p203 = scmp.ne.s32.totalorder %s192, %s193
      %p204 = scmp.eq.s32.totalorder %s22, 0
      %p205 = por %p203, %p204
      %p206 = scmp.ne.s32.totalorder %s192, %s193
      %p207 = scmp.eq.s32.totalorder %s23, 1
      %p208 = por %p206, %p207
      %p210 = scmp.ne.s32.totalorder %s193, %s209
      %p211 = scmp.eq.s32.totalorder %s23, 0
      %p212 = por %p210, %p211
      %p213 = scmp.le.s32.totalorder 1, %s17
      %p214 = scmp.lt.s32.totalorder %s17, 3
      %p215 = pnand %p213, %p214
      %p216 = pneg %p215
      // Predicated region
      $region9: #{_mha_forward.1} parent=5 // pred_check
        _
      $region10: #{_mha_forward.1} parent=5 // pred_check_branch
        %218 = sbr.rel (%p215) target = $region12
      $region11: #{_mha_forward.1} parent=5 // pred_region
        %s219 = ssub.s32 %s17, 1
        // Predicated region
        $region13: #{_mha_forward.1} parent=11 // pred_check
          %p220 = pneg %p116
        $region14: #{_mha_forward.1} parent=11 // pred_check_branch
          %222 = sbr.rel (%p220) target = $region16
        $region15: #{_mha_forward.1} parent=11 // pred_region
          _
        $region16: #{_mha_forward.1} parent=11 // pred_fallthru
          _
        // Predicated region
        $region17: #{_mha_forward.1} parent=11 // pred_check
          %p223 = pneg %p137
        $region18: #{_mha_forward.1} parent=11 // pred_check_branch
          %225 = sbr.rel (%p223) target = $region20
        $region19: #{_mha_forward.1} parent=11 // pred_region
          _
        $region20: #{_mha_forward.1} parent=11 // pred_fallthru
          _
        // Predicated region
        $region21: #{_mha_forward.1} parent=11 // pred_check
          %p226 = pneg %p158
        $region22: #{_mha_forward.1} parent=11 // pred_check_branch
          %228 = sbr.rel (%p226) target = $region24
        $region23: #{_mha_forward.1} parent=11 // pred_region
          %s230 = ssub.s32 512, 512
          %231 = vsyncadd [#allocation3], %s230
          %s232 = sshll.u32 [#allocation2], 4
          %s233 = int_to_ptr.vmem [resolvable:$true] %s232
          %238 = dma.hbm_to_vmem [thread:$0]  %s5, 512, %s233, [#allocation3], 128, 128, 8
        $region24: #{_mha_forward.1} parent=11 // pred_fallthru
          _
        // Predicated region
        $region25: #{_mha_forward.1} parent=11 // pred_check
          %p239 = pneg %p179
        $region26: #{_mha_forward.1} parent=11 // pred_check_branch
          %241 = sbr.rel (%p239) target = $region28
        $region27: #{_mha_forward.1} parent=11 // pred_region
          _
        $region28: #{_mha_forward.1} parent=11 // pred_fallthru
          _
      $region12: #{_mha_forward.1} parent=5 // pred_fallthru
        _
      %p242 = scmp.lt.s32.totalorder %s17, 2
      // Predicated region
      $region29: #{_mha_forward.1} parent=5 // pred_check
        %p243 = pneg %p242
      $region30: #{_mha_forward.1} parent=5 // pred_check_branch
        %245 = sbr.rel (%p243) target = $region32
      $region31: #{_mha_forward.1} parent=5 // pred_region
        // Predicated region
        $region33: #{_mha_forward.1} parent=31 // pred_check
          %p246 = pneg %p37
        $region34: #{_mha_forward.1} parent=31 // pred_check_branch
          %248 = sbr.rel (%p246) target = $region36
        $region35: #{_mha_forward.1} parent=31 // pred_region
          %s249 = smul.u32 2, %s17
          %p250 = scmp.lt.s32.totalorder %s249, 3
          %s251 = scalar_select %p250, %s249, 3
          %s252 = smul.addr %s251, 8
          %s253 = scalar_lea.vmem %s0, %s252
          %s254 = smul.u32 2, %s17
        $region36: #{_mha_forward.1} parent=31 // pred_fallthru
          _
        // Predicated region
        $region37: #{_mha_forward.1} parent=31 // pred_check
          %p255 = pneg %p63
        $region38: #{_mha_forward.1} parent=31 // pred_check_branch
          %257 = sbr.rel (%p255) target = $region40
        $region39: #{_mha_forward.1} parent=31 // pred_region
          %s258 = smul.u32 2, %s17
          %p259 = scmp.lt.s32.totalorder %s258, 3
          %s260 = scalar_select %p259, %s258, 3
          %s261 = scalar_lea.vmem %s1, %s260
          %s262 = smul.u32 2, %s17
        $region40: #{_mha_forward.1} parent=31 // pred_fallthru
          _
        // Predicated region
        $region41: #{_mha_forward.1} parent=31 // pred_check
          %p263 = pneg %p89
        $region42: #{_mha_forward.1} parent=31 // pred_check_branch
          %265 = sbr.rel (%p263) target = $region44
        $region43: #{_mha_forward.1} parent=31 // pred_region
          %s266 = smul.u32 2, %s17
          %p267 = scmp.lt.s32.totalorder %s266, 3
          %s268 = scalar_select %p267, %s266, 3
          %s269 = smul.addr %s268, 8
          %s270 = scalar_lea.vmem %s2, %s269
          %s271 = smul.u32 2, %s17
        $region44: #{_mha_forward.1} parent=31 // pred_fallthru
          _
      $region32: #{_mha_forward.1} parent=5 // pred_fallthru
        _
      %p272 = scmp.le.s32.totalorder 1, %s17
      %p273 = scmp.lt.s32.totalorder %s17, 3
      %p274 = pnand %p272, %p273
      %p275 = pneg %p274
      // Predicated region
      $region45: #{_mha_forward.1} parent=5 // pred_check
        _
      $region46: #{_mha_forward.1} parent=5 // pred_check_branch
        %277 = sbr.rel (%p274) target = $region48
      $region47: #{_mha_forward.1} parent=5 // pred_region
        %s278 = ssub.s32 %s17, 1
        // Predicated region
        $region49: #{_mha_forward.1} parent=47 // pred_check
          %p279 = pneg %p158
        $region50: #{_mha_forward.1} parent=47 // pred_check_branch
          %281 = sbr.rel (%p279) target = $region52
        $region51: #{_mha_forward.1} parent=47 // pred_region
          %282 = dma.done [#allocation3], 512
        $region52: #{_mha_forward.1} parent=47 // pred_fallthru
          _
        %s283 = smul.u32 2, %s22
        %p284 = scmp.lt.s32.totalorder %s283, 3
        %s285 = scalar_select %p284, %s283, 3
        %s286 = smul.addr %s285, 8
        %s287 = scalar_lea.vmem %s0, %s286
        %p288 = pneg %p43
        %p289 = pneg %p40
        %s290 = smul.u32 2, %s22
        %p291 = scmp.lt.s32.totalorder %s290, 3
        %s292 = scalar_select %p291, %s290, 3
        %s293 = scalar_lea.vmem %s1, %s292
        %p294 = pneg %p69
        %p295 = pneg %p66
        %s296 = smul.u32 2, %s22
        %p297 = scmp.lt.s32.totalorder %s296, 3
        %s298 = scalar_select %p297, %s296, 3
        %s299 = smul.addr %s298, 8
        %s300 = scalar_lea.vmem %s2, %s299
        %p301 = pneg %p95
        %p302 = pneg %p92
        %p303 = pneg %p116
        %p304 = pneg %p113
        %p305 = pneg %p137
        %p306 = pneg %p134
        %p307 = pneg %p158
        %p308 = pneg %p155
        %p309 = pneg %p179
        %p310 = pneg %p176
        %p311 = pneg %p205
        %p312 = pneg %p202
        %s313 = sand.u32 %s192, 1
        %s314 = scalar_lea.sflag [#allocation4], %s313
        %s315 = sand.u32 %s192, 1
        %s316 = smul.addr %s315, 16
        %s317 = scalar_lea.vmem [#allocation5], %s316
        %s318 = smul.u32 2, %s22
        %p319 = scmp.lt.s32.totalorder %s318, 3
        %s320 = scalar_select %p319, %s318, 3
        %s321 = smul.addr %s320, 8
        %s322 = scalar_lea.vmem %s0, %s321
        %s323 = smul.u32 2, %s22
        %s324 = smul.u32 2, %s22
        %p325 = scmp.lt.s32.totalorder %s324, 3
        %s326 = scalar_select %p325, %s324, 3
        %s327 = scalar_lea.vmem %s1, %s326
        %s328 = smul.u32 2, %s22
        %s329 = smul.u32 2, %s22
        %p330 = scmp.lt.s32.totalorder %s329, 3
        %s331 = scalar_select %p330, %s329, 3
        %s332 = smul.addr %s331, 8
        %s333 = scalar_lea.vmem %s2, %s332
        %s334 = smul.u32 2, %s22
        %s335 = smul.u32 2, %s22
        %v336 = vld [vmem:[%s322] sm:$0xff]
        %v337 = vld [vmem:[%s322 + $0x8] sm:$0xff]
        %v338 = vld [vmem:[%s3] sm:$0xff]
        %v339 = vld [vmem:[%s3 + $0x8] sm:$0xff]
        %v340 = vld [vmem:[%s3 + $0x10] sm:$0xff]
        %v341 = vld [vmem:[%s3 + $0x18] sm:$0xff]
        %v342 = vld [vmem:[%s4] sm:$0x1]
        %v344 = vlaneseq
        %v345 = vshrl.u32 %v344, 7
        %v346 = vsub.s32 0, %v345
        %v347 = vrot.slane %v342, %v346
        %vm349 = vcmask 261120
        %v351 = vsel %vm349, %v336, 0
        %v354 = vsel %vm349, %v337, 0
        %356 = vmatprep.subr.mxu0 0.0
        %357 = vmatpush1.msra.mxu0 %v338
        %358 = vmatprep.subr.mxu0 0.0
        %359 = vmatpush1.msra.mxu0 %v339
        %360 = vmatprep.subr.mxu0 0.0
        %361 = vmatpush1.msra.mxu0 %v340
        %362 = vmatprep.subr.mxu0 0.0
        %363 = vmatpush1.msra.mxu0 %v341
        %364 = vmatprep.subr.mxu0 0.0
        %365 = vmatpush1.msra.mxu0 0.0
        %366 = vmatprep.subr.mxu0 0.0
        %367 = vmatpush1.msra.mxu0 0.0
        %368 = vmatprep.subr.mxu0 0.0
        %369 = vmatpush1.msra.mxu0 0.0
        %370 = vmatprep.subr.mxu0 0.0
        %371 = vmatpush1.msra.mxu0 0.0
        %372 = vmatprep.subr.mxu0 0.0
        %373 = vmatpush1.msra.mxu0 0.0
        %374 = vmatprep.subr.mxu0 0.0
        %375 = vmatpush1.msra.mxu0 0.0
        %376 = vmatprep.subr.mxu0 0.0
        %377 = vmatpush1.msra.mxu0 0.0
        %378 = vmatprep.subr.mxu0 0.0
        %379 = vmatpush1.msra.mxu0 0.0
        %380 = vmatprep.subr.mxu0 0.0
        %381 = vmatpush1.msra.mxu0 0.0
        %382 = vmatprep.subr.mxu0 0.0
        %383 = vmatpush1.msra.mxu0 0.0
        %384 = vmatprep.subr.mxu0 0.0
        %385 = vmatpush1.msra.mxu0 0.0
        %386 = vmatprep.subr.mxu0 0.0
        %387 = vmatpush1.msra.mxu0 0.0
        %388 = vmatprep.subr.mxu0 0.0
        %389 = vmatpush1.msra.mxu0 0.0
        %390 = vmatprep.subr.mxu0 0.0
        %391 = vmatpush1.msra.mxu0 0.0
        %392 = vmatprep.subr.mxu0 0.0
        %393 = vmatpush1.msra.mxu0 0.0
        %394 = vmatprep.subr.mxu0 0.0
        %395 = vmatpush1.msra.mxu0 0.0
        %396 = vmatprep.subr.mxu0 0.0
        %397 = vmatpush1.msra.mxu0 0.0
        %398 = vmatprep.subr.mxu0 0.0
        %399 = vmatpush1.msra.mxu0 0.0
        %400 = vmatprep.subr.mxu0 0.0
        %401 = vmatpush1.msra.mxu0 0.0
        %402 = vmatprep.subr.mxu0 0.0
        %403 = vmatpush1.msra.mxu0 0.0
        %404 = vmatprep.subr.mxu0 0.0
        %405 = vmatpush1.msra.mxu0 0.0
        %406 = vmatprep.subr.mxu0 0.0
        %407 = vmatpush1.msra.mxu0 0.0
        %408 = vmatprep.subr.mxu0 0.0
        %409 = vmatpush1.msra.mxu0 0.0
        %410 = vmatprep.subr.mxu0 0.0
        %411 = vmatpush1.msra.mxu0 0.0
        %412 = vmatprep.subr.mxu0 0.0
        %413 = vmatpush1.msra.mxu0 0.0
        %414 = vmatprep.subr.mxu0 0.0
        %415 = vmatpush1.msra.mxu0 0.0
        %416 = vmatprep.subr.mxu0 0.0
        %417 = vmatpush1.msra.mxu0 0.0
        %418 = vmatprep.subr.mxu0 0.0
        %419 = vmatpush1.msra.mxu0 0.0
        %420 = vmatprep.mubr.f32.mxu0 0.0
        %421 = vmatmul.mubr.f32.gmra.mrb[0].mxu0 %v351
        %v422 = vpop.f32.mrb[0].mxu0
        %v423 = vadd.f32 %v347, %v422
        %v424 = vpop.f32.mrb[0].mxu0
        %425 = vmatprep.mubr.f32.mxu0 0.0
        %426 = vmatmul.mubr.f32.gmra.mrb[0].mxu0 %v354
        %v427 = vpop.f32.mrb[0].mxu0
        %v428 = vadd.f32 %v347, %v427
        %v429 = vpop.f32.mrb[0].mxu0
        %430 = vdwg.mxu0
        %v431 = vld [vmem:[%s327] sm:$0x1]
        %v432 = vld [vmem:[%s327 + $0x1] sm:$0x1]
        %434 = vrot.lane.b32.xlu0 %v423, 96
        %v435 = vpop.permute.xlu0 %434
        %vm436 = vcmask 31744
        %v437 = vsel %vm436, %v423, 0
        %v439 = vsel %vm436, %v435, 0
        %441 = vmatprep.subr.mxu0 0.0
        %442 = vmatpush1.xpose.msra.mxu0 %v439
        %443 = vmatprep.subr.mxu0 0.0
        %444 = vmatpush1.xpose.msra.mxu0 0.0
        %445 = vmatprep.subr.mxu0 0.0
        %446 = vmatpush1.xpose.msra.mxu0 0.0
        %447 = vmatprep.subr.mxu0 0.0
        %448 = vmatpush1.xpose.msra.mxu0 0.0
        %449 = vmatprep.subr.mxu0 0.0
        %450 = vmatpush1.xpose.msra.mxu0 0.0
        %451 = vmatprep.subr.mxu0 0.0
        %452 = vmatpush1.xpose.msra.mxu0 0.0
        %453 = vmatprep.subr.mxu0 0.0
        %454 = vmatpush1.xpose.msra.mxu0 0.0
        %455 = vmatprep.subr.mxu0 0.0
        %456 = vmatpush1.xpose.msra.mxu0 0.0
        %457 = vmatprep.subr.mxu0 0.0
        %458 = vmatpush1.xpose.msra.mxu0 0.0
        %459 = vmatprep.subr.mxu0 0.0
        %460 = vmatpush1.xpose.msra.mxu0 0.0
        %461 = vmatprep.subr.mxu0 0.0
        %462 = vmatpush1.xpose.msra.mxu0 0.0
        %463 = vmatprep.subr.mxu0 0.0
        %464 = vmatpush1.xpose.msra.mxu0 0.0
        %465 = vmatprep.subr.mxu0 0.0
        %466 = vmatpush1.xpose.msra.mxu0 0.0
        %467 = vmatprep.subr.mxu0 0.0
        %468 = vmatpush1.xpose.msra.mxu0 0.0
        %469 = vmatprep.subr.mxu0 0.0
        %470 = vmatpush1.xpose.msra.mxu0 0.0
        %471 = vmatprep.subr.mxu0 0.0
        %472 = vmatpush1.xpose.msra.mxu0 0.0
        %473 = vmatprep.subr.mxu0 0.0
        %474 = vmatpush1.xpose.msra.mxu0 0.0
        %475 = vmatprep.subr.mxu0 0.0
        %476 = vmatpush1.xpose.msra.mxu0 0.0
        %477 = vmatprep.subr.mxu0 0.0
        %478 = vmatpush1.xpose.msra.mxu0 0.0
        %479 = vmatprep.subr.mxu0 0.0
        %480 = vmatpush1.xpose.msra.mxu0 0.0
        %481 = vmatprep.subr.mxu0 0.0
        %482 = vmatpush1.xpose.msra.mxu0 0.0
        %483 = vmatprep.subr.mxu0 0.0
        %484 = vmatpush1.xpose.msra.mxu0 0.0
        %485 = vmatprep.subr.mxu0 0.0
        %486 = vmatpush1.xpose.msra.mxu0 0.0
        %487 = vmatprep.subr.mxu0 0.0
        %488 = vmatpush1.xpose.msra.mxu0 0.0
        %489 = vmatprep.subr.mxu0 0.0
        %490 = vmatpush1.xpose.msra.mxu0 0.0
        %491 = vmatprep.subr.mxu0 0.0
        %492 = vmatpush1.xpose.msra.mxu0 0.0
        %493 = vmatprep.subr.mxu0 0.0
        %494 = vmatpush1.xpose.msra.mxu0 0.0
        %495 = vmatprep.subr.mxu0 0.0
        %496 = vmatpush1.xpose.msra.mxu0 0.0
        %497 = vmatprep.subr.mxu0 0.0
        %498 = vmatpush1.xpose.msra.mxu0 0.0
        %499 = vmatprep.subr.mxu0 0.0
        %500 = vmatpush1.xpose.msra.mxu0 0.0
        %501 = vmatprep.subr.mxu0 0.0
        %502 = vmatpush1.xpose.msra.mxu0 0.0
        %503 = vmatprep.subr.mxu0 0.0
        %504 = vmatpush1.xpose.msra.mxu0 0.0
        %505 = vmatprep.mubr.f32.mxu0 0.0
        %506 = vmatmul.mubr.f32.gmra.mrb[0].mxu0 %v437
        %v507 = vpop.f32.mrb[0].mxu0
        %v508 = vadd.f32 0.0, %v507
        %v509 = vpop.f32.mrb[0].mxu0
        %510 = vdwg.mxu0
        %512 = vrot.lane.b32.xlu0 %v428, 96
        %v513 = vpop.permute.xlu0 %512
        %v514 = vsel %vm436, %v428, 0
        %v516 = vsel %vm436, %v513, 0
        %518 = vmatprep.subr.mxu0 0.0
        %519 = vmatpush1.xpose.msra.mxu0 %v516
        %520 = vmatprep.subr.mxu0 0.0
        %521 = vmatpush1.xpose.msra.mxu0 0.0
        %522 = vmatprep.subr.mxu0 0.0
        %523 = vmatpush1.xpose.msra.mxu0 0.0
        %524 = vmatprep.subr.mxu0 0.0
        %525 = vmatpush1.xpose.msra.mxu0 0.0
        %526 = vmatprep.subr.mxu0 0.0
        %527 = vmatpush1.xpose.msra.mxu0 0.0
        %528 = vmatprep.subr.mxu0 0.0
        %529 = vmatpush1.xpose.msra.mxu0 0.0
        %530 = vmatprep.subr.mxu0 0.0
        %531 = vmatpush1.xpose.msra.mxu0 0.0
        %532 = vmatprep.subr.mxu0 0.0
        %533 = vmatpush1.xpose.msra.mxu0 0.0
        %534 = vmatprep.subr.mxu0 0.0
        %535 = vmatpush1.xpose.msra.mxu0 0.0
        %536 = vmatprep.subr.mxu0 0.0
        %537 = vmatpush1.xpose.msra.mxu0 0.0
        %538 = vmatprep.subr.mxu0 0.0
        %539 = vmatpush1.xpose.msra.mxu0 0.0
        %540 = vmatprep.subr.mxu0 0.0
        %541 = vmatpush1.xpose.msra.mxu0 0.0
        %542 = vmatprep.subr.mxu0 0.0
        %543 = vmatpush1.xpose.msra.mxu0 0.0
        %544 = vmatprep.subr.mxu0 0.0
        %545 = vmatpush1.xpose.msra.mxu0 0.0
        %546 = vmatprep.subr.mxu0 0.0
        %547 = vmatpush1.xpose.msra.mxu0 0.0
        %548 = vmatprep.subr.mxu0 0.0
        %549 = vmatpush1.xpose.msra.mxu0 0.0
        %550 = vmatprep.subr.mxu0 0.0
        %551 = vmatpush1.xpose.msra.mxu0 0.0
        %552 = vmatprep.subr.mxu0 0.0
        %553 = vmatpush1.xpose.msra.mxu0 0.0
        %554 = vmatprep.subr.mxu0 0.0
        %555 = vmatpush1.xpose.msra.mxu0 0.0
        %556 = vmatprep.subr.mxu0 0.0
        %557 = vmatpush1.xpose.msra.mxu0 0.0
        %558 = vmatprep.subr.mxu0 0.0
        %559 = vmatpush1.xpose.msra.mxu0 0.0
        %560 = vmatprep.subr.mxu0 0.0
        %561 = vmatpush1.xpose.msra.mxu0 0.0
        %562 = vmatprep.subr.mxu0 0.0
        %563 = vmatpush1.xpose.msra.mxu0 0.0
        %564 = vmatprep.subr.mxu0 0.0
        %565 = vmatpush1.xpose.msra.mxu0 0.0
        %566 = vmatprep.subr.mxu0 0.0
        %567 = vmatpush1.xpose.msra.mxu0 0.0
        %568 = vmatprep.subr.mxu0 0.0
        %569 = vmatpush1.xpose.msra.mxu0 0.0
        %570 = vmatprep.subr.mxu0 0.0
        %571 = vmatpush1.xpose.msra.mxu0 0.0
        %572 = vmatprep.subr.mxu0 0.0
        %573 = vmatpush1.xpose.msra.mxu0 0.0
        %574 = vmatprep.subr.mxu0 0.0
        %575 = vmatpush1.xpose.msra.mxu0 0.0
        %576 = vmatprep.subr.mxu0 0.0
        %577 = vmatpush1.xpose.msra.mxu0 0.0
        %578 = vmatprep.subr.mxu0 0.0
        %579 = vmatpush1.xpose.msra.mxu0 0.0
        %580 = vmatprep.subr.mxu0 0.0
        %581 = vmatpush1.xpose.msra.mxu0 0.0
        %582 = vmatprep.mubr.f32.mxu0 0.0
        %583 = vmatmul.mubr.f32.gmra.mrb[0].mxu0 %v514
        %v584 = vpop.f32.mrb[0].mxu0
        %v585 = vadd.f32 0.0, %v584
        %v586 = vpop.f32.mrb[0].mxu0
        %587 = vdwg.mxu0
        %vm588 = vcmp.gt.f32.partialorder %v431, 0.0
        %vm589 = vcmp.gt.f32.partialorder %v432, 0.0
        %v590 = vsel %vm588, 1, 0
        %v591 = vsel %vm589, 1, 0
        %v592 = vlaneseq
        %v593 = vshrl.u32 %v592, 7
        %v594 = vsub.s32 0, %v593
        %v595 = vrot.slane %v590, %v594
        %v596 = vlaneseq
        %v597 = vshrl.u32 %v596, 7
        %v598 = vsub.s32 0, %v597
        %v599 = vrot.slane %v591, %v598
        %vm600 = vcmp.eq.s32.totalorder %v595, 1
        %vm601 = vcmp.eq.s32.totalorder %v599, 1
        %v602 = vsel %vm600, %v508, -1e+30
        %v603 = vsel %vm601, %v585, -1e+30
        %vm604 = vcmask 64512
        %v605 = vsel %vm604, %v602, -inf
        %606 = vmax.xlane.f32.xlu0 %v605
        %v607 = vpop.xlane.xlu0 %606
        %v608 = vsel %vm604, %v603, -inf
        %609 = vmax.xlane.f32.xlu0 %v608
        %v610 = vpop.xlane.xlu0 %609
        %v611 = vsub.f32 %v602, %v607
        %v612 = vsub.f32 %v603, %v610
        %v613 = vmul.f32 %v611, 1.442695
        %v614 = vpow.pop %v613
        %v615 = vmul.f32 %v612, 1.442695
        %v616 = vpow.pop %v615
        %v617 = vsel %vm604, %v614, 0.0
        %618 = vadd.xlane.f32.xlu0 %v617
        %v619 = vpop.xlane.xlu0 %618
        %v620 = vsel %vm604, %v616, 0.0
        %621 = vadd.xlane.f32.xlu0 %v620
        %v622 = vpop.xlane.xlu0 %621
        %v623 = vrcp.pop %v619
        %v624 = vrcp.pop %v622
        %v625 = vmul.f32 %v619, %v623
        %v626 = vmul.f32 %v622, %v624
        %v627 = vsub.f32 2.0, %v625
        %v628 = vsub.f32 2.0, %v626
        %v629 = vmul.f32 %v623, %v627
        %v630 = vmul.f32 %v624, %v628
        %v631 = vmul.f32 %v614, %v629
        %v632 = vmul.f32 %v616, %v630
        %633 = vrot.lane.b32.xlu0 %v423, 64
        %v634 = vpop.permute.xlu0 %633
        %v637 = vsel %vm604, %v631, 0
        %639 = vmatprep.subr.mxu0 0.0
        %640 = vmatpush1.msra.mxu0 %v634
        %641 = vmatprep.subr.mxu0 0.0
        %642 = vmatpush1.msra.mxu0 0.0
        %643 = vmatprep.subr.mxu0 0.0
        %644 = vmatpush1.msra.mxu0 0.0
        %645 = vmatprep.subr.mxu0 0.0
        %646 = vmatpush1.msra.mxu0 0.0
        %647 = vmatprep.subr.mxu0 0.0
        %648 = vmatpush1.msra.mxu0 0.0
        %649 = vmatprep.subr.mxu0 0.0
        %650 = vmatpush1.msra.mxu0 0.0
        %651 = vmatprep.subr.mxu0 0.0
        %652 = vmatpush1.msra.mxu0 0.0
        %653 = vmatprep.subr.mxu0 0.0
        %654 = vmatpush1.msra.mxu0 0.0
        %655 = vmatprep.subr.mxu0 0.0
        %656 = vmatpush1.msra.mxu0 0.0
        %657 = vmatprep.subr.mxu0 0.0
        %658 = vmatpush1.msra.mxu0 0.0
        %659 = vmatprep.subr.mxu0 0.0
        %660 = vmatpush1.msra.mxu0 0.0
        %661 = vmatprep.subr.mxu0 0.0
        %662 = vmatpush1.msra.mxu0 0.0
        %663 = vmatprep.subr.mxu0 0.0
        %664 = vmatpush1.msra.mxu0 0.0
        %665 = vmatprep.subr.mxu0 0.0
        %666 = vmatpush1.msra.mxu0 0.0
        %667 = vmatprep.subr.mxu0 0.0
        %668 = vmatpush1.msra.mxu0 0.0
        %669 = vmatprep.subr.mxu0 0.0
        %670 = vmatpush1.msra.mxu0 0.0
        %671 = vmatprep.subr.mxu0 0.0
        %672 = vmatpush1.msra.mxu0 0.0
        %673 = vmatprep.subr.mxu0 0.0
        %674 = vmatpush1.msra.mxu0 0.0
        %675 = vmatprep.subr.mxu0 0.0
        %676 = vmatpush1.msra.mxu0 0.0
        %677 = vmatprep.subr.mxu0 0.0
        %678 = vmatpush1.msra.mxu0 0.0
        %679 = vmatprep.subr.mxu0 0.0
        %680 = vmatpush1.msra.mxu0 0.0
        %681 = vmatprep.subr.mxu0 0.0
        %682 = vmatpush1.msra.mxu0 0.0
        %683 = vmatprep.subr.mxu0 0.0
        %684 = vmatpush1.msra.mxu0 0.0
        %685 = vmatprep.subr.mxu0 0.0
        %686 = vmatpush1.msra.mxu0 0.0
        %687 = vmatprep.subr.mxu0 0.0
        %688 = vmatpush1.msra.mxu0 0.0
        %689 = vmatprep.subr.mxu0 0.0
        %690 = vmatpush1.msra.mxu0 0.0
        %691 = vmatprep.subr.mxu0 0.0
        %692 = vmatpush1.msra.mxu0 0.0
        %693 = vmatprep.subr.mxu0 0.0
        %694 = vmatpush1.msra.mxu0 0.0
        %695 = vmatprep.subr.mxu0 0.0
        %696 = vmatpush1.msra.mxu0 0.0
        %697 = vmatprep.subr.mxu0 0.0
        %698 = vmatpush1.msra.mxu0 0.0
        %699 = vmatprep.subr.mxu0 0.0
        %700 = vmatpush1.msra.mxu0 0.0
        %701 = vmatprep.subr.mxu0 0.0
        %702 = vmatpush1.msra.mxu0 0.0
        %703 = vmatprep.mubr.f32.mxu0 0.0
        %704 = vmatmul.mubr.f32.gmra.mrb[0].mxu0 %v637
        %v705 = vpop.f32.mrb[0].mxu0
        %v706 = vadd.f32 0.0, %v705
        %v707 = vpop.f32.mrb[0].mxu0
        %708 = vdwg.mxu0
        %709 = vrot.lane.b32.xlu0 %v428, 64
        %v710 = vpop.permute.xlu0 %709
        %v713 = vsel %vm604, %v632, 0
        %715 = vmatprep.subr.mxu0 0.0
        %716 = vmatpush1.msra.mxu0 %v710
        %717 = vmatprep.subr.mxu0 0.0
        %718 = vmatpush1.msra.mxu0 0.0
        %719 = vmatprep.subr.mxu0 0.0
        %720 = vmatpush1.msra.mxu0 0.0
        %721 = vmatprep.subr.mxu0 0.0
        %722 = vmatpush1.msra.mxu0 0.0
        %723 = vmatprep.subr.mxu0 0.0
        %724 = vmatpush1.msra.mxu0 0.0
        %725 = vmatprep.subr.mxu0 0.0
        %726 = vmatpush1.msra.mxu0 0.0
        %727 = vmatprep.subr.mxu0 0.0
        %728 = vmatpush1.msra.mxu0 0.0
        %729 = vmatprep.subr.mxu0 0.0
        %730 = vmatpush1.msra.mxu0 0.0
        %731 = vmatprep.subr.mxu0 0.0
        %732 = vmatpush1.msra.mxu0 0.0
        %733 = vmatprep.subr.mxu0 0.0
        %734 = vmatpush1.msra.mxu0 0.0
        %735 = vmatprep.subr.mxu0 0.0
        %736 = vmatpush1.msra.mxu0 0.0
        %737 = vmatprep.subr.mxu0 0.0
        %738 = vmatpush1.msra.mxu0 0.0
        %739 = vmatprep.subr.mxu0 0.0
        %740 = vmatpush1.msra.mxu0 0.0
        %741 = vmatprep.subr.mxu0 0.0
        %742 = vmatpush1.msra.mxu0 0.0
        %743 = vmatprep.subr.mxu0 0.0
        %744 = vmatpush1.msra.mxu0 0.0
        %745 = vmatprep.subr.mxu0 0.0
        %746 = vmatpush1.msra.mxu0 0.0
        %747 = vmatprep.subr.mxu0 0.0
        %748 = vmatpush1.msra.mxu0 0.0
        %749 = vmatprep.subr.mxu0 0.0
        %750 = vmatpush1.msra.mxu0 0.0
        %751 = vmatprep.subr.mxu0 0.0
        %752 = vmatpush1.msra.mxu0 0.0
        %753 = vmatprep.subr.mxu0 0.0
        %754 = vmatpush1.msra.mxu0 0.0
        %755 = vmatprep.subr.mxu0 0.0
        %756 = vmatpush1.msra.mxu0 0.0
        %757 = vmatprep.subr.mxu0 0.0
        %758 = vmatpush1.msra.mxu0 0.0
        %759 = vmatprep.subr.mxu0 0.0
        %760 = vmatpush1.msra.mxu0 0.0
        %761 = vmatprep.subr.mxu0 0.0
        %762 = vmatpush1.msra.mxu0 0.0
        %763 = vmatprep.subr.mxu0 0.0
        %764 = vmatpush1.msra.mxu0 0.0
        %765 = vmatprep.subr.mxu0 0.0
        %766 = vmatpush1.msra.mxu0 0.0
        %767 = vmatprep.subr.mxu0 0.0
        %768 = vmatpush1.msra.mxu0 0.0
        %769 = vmatprep.subr.mxu0 0.0
        %770 = vmatpush1.msra.mxu0 0.0
        %771 = vmatprep.subr.mxu0 0.0
        %772 = vmatpush1.msra.mxu0 0.0
        %773 = vmatprep.subr.mxu0 0.0
        %774 = vmatpush1.msra.mxu0 0.0
        %775 = vmatprep.subr.mxu0 0.0
        %776 = vmatpush1.msra.mxu0 0.0
        %777 = vmatprep.subr.mxu0 0.0
        %778 = vmatpush1.msra.mxu0 0.0
        %779 = vmatprep.mubr.f32.mxu0 0.0
        %780 = vmatmul.mubr.f32.gmra.mrb[0].mxu0 %v713
        %v781 = vpop.f32.mrb[0].mxu0
        %v782 = vadd.f32 0.0, %v781
        %v783 = vpop.f32.mrb[0].mxu0
        %784 = vdwg.mxu0
        %785 = vrot.lane.b32.xlu0 %v423, 124
        %v786 = vpop.permute.xlu0 %785
        %787 = vrot.lane.b32.xlu0 %v423, 92
        %v788 = vpop.permute.xlu0 %787
        %v789 = vsel %vm436, %v786, 0
        %v791 = vsel %vm436, %v788, 0
        %793 = vmatprep.subr.mxu0 0.0
        %794 = vmatpush1.xpose.msra.mxu0 %v791
        %795 = vmatprep.subr.mxu0 0.0
        %796 = vmatpush1.xpose.msra.mxu0 0.0
        %797 = vmatprep.subr.mxu0 0.0
        %798 = vmatpush1.xpose.msra.mxu0 0.0
        %799 = vmatprep.subr.mxu0 0.0
        %800 = vmatpush1.xpose.msra.mxu0 0.0
        %801 = vmatprep.subr.mxu0 0.0
        %802 = vmatpush1.xpose.msra.mxu0 0.0
        %803 = vmatprep.subr.mxu0 0.0
        %804 = vmatpush1.xpose.msra.mxu0 0.0
        %805 = vmatprep.subr.mxu0 0.0
        %806 = vmatpush1.xpose.msra.mxu0 0.0
        %807 = vmatprep.subr.mxu0 0.0
        %808 = vmatpush1.xpose.msra.mxu0 0.0
        %809 = vmatprep.subr.mxu0 0.0
        %810 = vmatpush1.xpose.msra.mxu0 0.0
        %811 = vmatprep.subr.mxu0 0.0
        %812 = vmatpush1.xpose.msra.mxu0 0.0
        %813 = vmatprep.subr.mxu0 0.0
        %814 = vmatpush1.xpose.msra.mxu0 0.0
        %815 = vmatprep.subr.mxu0 0.0
        %816 = vmatpush1.xpose.msra.mxu0 0.0
        %817 = vmatprep.subr.mxu0 0.0
        %818 = vmatpush1.xpose.msra.mxu0 0.0
        %819 = vmatprep.subr.mxu0 0.0
        %820 = vmatpush1.xpose.msra.mxu0 0.0
        %821 = vmatprep.subr.mxu0 0.0
        %822 = vmatpush1.xpose.msra.mxu0 0.0
        %823 = vmatprep.subr.mxu0 0.0
        %824 = vmatpush1.xpose.msra.mxu0 0.0
        %825 = vmatprep.subr.mxu0 0.0
        %826 = vmatpush1.xpose.msra.mxu0 0.0
        %827 = vmatprep.subr.mxu0 0.0
        %828 = vmatpush1.xpose.msra.mxu0 0.0
        %829 = vmatprep.subr.mxu0 0.0
        %830 = vmatpush1.xpose.msra.mxu0 0.0
        %831 = vmatprep.subr.mxu0 0.0
        %832 = vmatpush1.xpose.msra.mxu0 0.0
        %833 = vmatprep.subr.mxu0 0.0
        %834 = vmatpush1.xpose.msra.mxu0 0.0
        %835 = vmatprep.subr.mxu0 0.0
        %836 = vmatpush1.xpose.msra.mxu0 0.0
        %837 = vmatprep.subr.mxu0 0.0
        %838 = vmatpush1.xpose.msra.mxu0 0.0
        %839 = vmatprep.subr.mxu0 0.0
        %840 = vmatpush1.xpose.msra.mxu0 0.0
        %841 = vmatprep.subr.mxu0 0.0
        %842 = vmatpush1.xpose.msra.mxu0 0.0
        %843 = vmatprep.subr.mxu0 0.0
        %844 = vmatpush1.xpose.msra.mxu0 0.0
        %845 = vmatprep.subr.mxu0 0.0
        %846 = vmatpush1.xpose.msra.mxu0 0.0
        %847 = vmatprep.subr.mxu0 0.0
        %848 = vmatpush1.xpose.msra.mxu0 0.0
        %849 = vmatprep.subr.mxu0 0.0
        %850 = vmatpush1.xpose.msra.mxu0 0.0
        %851 = vmatprep.subr.mxu0 0.0
        %852 = vmatpush1.xpose.msra.mxu0 0.0
        %853 = vmatprep.subr.mxu0 0.0
        %854 = vmatpush1.xpose.msra.mxu0 0.0
        %855 = vmatprep.subr.mxu0 0.0
        %856 = vmatpush1.xpose.msra.mxu0 0.0
        %857 = vmatprep.mubr.f32.mxu0 0.0
        %858 = vmatmul.mubr.f32.gmra.mrb[0].mxu0 %v789
        %v859 = vpop.f32.mrb[0].mxu0
        %v860 = vadd.f32 0.0, %v859
        %v861 = vpop.f32.mrb[0].mxu0
        %862 = vdwg.mxu0
        %863 = vrot.lane.b32.xlu0 %v428, 124
        %v864 = vpop.permute.xlu0 %863
        %865 = vrot.lane.b32.xlu0 %v428, 92
        %v866 = vpop.permute.xlu0 %865
        %v867 = vsel %vm436, %v864, 0
        %v869 = vsel %vm436, %v866, 0
        %871 = vmatprep.subr.mxu0 0.0
        %872 = vmatpush1.xpose.msra.mxu0 %v869
        %873 = vmatprep.subr.mxu0 0.0
        %874 = vmatpush1.xpose.msra.mxu0 0.0
        %875 = vmatprep.subr.mxu0 0.0
        %876 = vmatpush1.xpose.msra.mxu0 0.0
        %877 = vmatprep.subr.mxu0 0.0
        %878 = vmatpush1.xpose.msra.mxu0 0.0
        %879 = vmatprep.subr.mxu0 0.0
        %880 = vmatpush1.xpose.msra.mxu0 0.0
        %881 = vmatprep.subr.mxu0 0.0
        %882 = vmatpush1.xpose.msra.mxu0 0.0
        %883 = vmatprep.subr.mxu0 0.0
        %884 = vmatpush1.xpose.msra.mxu0 0.0
        %885 = vmatprep.subr.mxu0 0.0
        %886 = vmatpush1.xpose.msra.mxu0 0.0
        %887 = vmatprep.subr.mxu0 0.0
        %888 = vmatpush1.xpose.msra.mxu0 0.0
        %889 = vmatprep.subr.mxu0 0.0
        %890 = vmatpush1.xpose.msra.mxu0 0.0
        %891 = vmatprep.subr.mxu0 0.0
        %892 = vmatpush1.xpose.msra.mxu0 0.0
        %893 = vmatprep.subr.mxu0 0.0
        %894 = vmatpush1.xpose.msra.mxu0 0.0
        %895 = vmatprep.subr.mxu0 0.0
        %896 = vmatpush1.xpose.msra.mxu0 0.0
        %897 = vmatprep.subr.mxu0 0.0
        %898 = vmatpush1.xpose.msra.mxu0 0.0
        %899 = vmatprep.subr.mxu0 0.0
        %900 = vmatpush1.xpose.msra.mxu0 0.0
        %901 = vmatprep.subr.mxu0 0.0
        %902 = vmatpush1.xpose.msra.mxu0 0.0
        %903 = vmatprep.subr.mxu0 0.0
        %904 = vmatpush1.xpose.msra.mxu0 0.0
        %905 = vmatprep.subr.mxu0 0.0
        %906 = vmatpush1.xpose.msra.mxu0 0.0
        %907 = vmatprep.subr.mxu0 0.0
        %908 = vmatpush1.xpose.msra.mxu0 0.0
        %909 = vmatprep.subr.mxu0 0.0
        %910 = vmatpush1.xpose.msra.mxu0 0.0
        %911 = vmatprep.subr.mxu0 0.0
        %912 = vmatpush1.xpose.msra.mxu0 0.0
        %913 = vmatprep.subr.mxu0 0.0
        %914 = vmatpush1.xpose.msra.mxu0 0.0
        %915 = vmatprep.subr.mxu0 0.0
        %916 = vmatpush1.xpose.msra.mxu0 0.0
        %917 = vmatprep.subr.mxu0 0.0
        %918 = vmatpush1.xpose.msra.mxu0 0.0
        %919 = vmatprep.subr.mxu0 0.0
        %920 = vmatpush1.xpose.msra.mxu0 0.0
        %921 = vmatprep.subr.mxu0 0.0
        %922 = vmatpush1.xpose.msra.mxu0 0.0
        %923 = vmatprep.subr.mxu0 0.0
        %924 = vmatpush1.xpose.msra.mxu0 0.0
        %925 = vmatprep.subr.mxu0 0.0
        %926 = vmatpush1.xpose.msra.mxu0 0.0
        %927 = vmatprep.subr.mxu0 0.0
        %928 = vmatpush1.xpose.msra.mxu0 0.0
        %929 = vmatprep.subr.mxu0 0.0
        %930 = vmatpush1.xpose.msra.mxu0 0.0
        %931 = vmatprep.subr.mxu0 0.0
        %932 = vmatpush1.xpose.msra.mxu0 0.0
        %933 = vmatprep.subr.mxu0 0.0
        %934 = vmatpush1.xpose.msra.mxu0 0.0
        %935 = vmatprep.mubr.f32.mxu0 0.0
        %936 = vmatmul.mubr.f32.gmra.mrb[0].mxu0 %v867
        %v937 = vpop.f32.mrb[0].mxu0
        %v938 = vadd.f32 0.0, %v937
        %v939 = vpop.f32.mrb[0].mxu0
        %940 = vdwg.mxu0
        %v941 = vsel %vm600, %v860, -1e+30
        %v942 = vsel %vm601, %v938, -1e+30
        %v943 = vsel %vm604, %v941, -inf
        %944 = vmax.xlane.f32.xlu0 %v943
        %v945 = vpop.xlane.xlu0 %944
        %v946 = vsel %vm604, %v942, -inf
        %947 = vmax.xlane.f32.xlu0 %v946
        %v948 = vpop.xlane.xlu0 %947
        %v949 = vsub.f32 %v941, %v945
        %v950 = vsub.f32 %v942, %v948
        %v951 = vmul.f32 %v949, 1.442695
        %v952 = vpow.pop %v951
        %v953 = vmul.f32 %v950, 1.442695
        %v954 = vpow.pop %v953
        %v955 = vsel %vm604, %v952, 0.0
        %956 = vadd.xlane.f32.xlu0 %v955
        %v957 = vpop.xlane.xlu0 %956
        %v958 = vsel %vm604, %v954, 0.0
        %959 = vadd.xlane.f32.xlu0 %v958
        %v960 = vpop.xlane.xlu0 %959
        %v961 = vrcp.pop %v957
        %v962 = vrcp.pop %v960
        %v963 = vmul.f32 %v957, %v961
        %v964 = vmul.f32 %v960, %v962
        %v965 = vsub.f32 2.0, %v963
        %v966 = vsub.f32 2.0, %v964
        %v967 = vmul.f32 %v961, %v965
        %v968 = vmul.f32 %v962, %v966
        %v969 = vmul.f32 %v952, %v967
        %v970 = vmul.f32 %v954, %v968
        %971 = vrot.lane.b32.xlu0 %v423, 60
        %v972 = vpop.permute.xlu0 %971
        %v975 = vsel %vm604, %v969, 0
        %977 = vmatprep.subr.mxu0 0.0
        %978 = vmatpush1.msra.mxu0 %v972
        %979 = vmatprep.subr.mxu0 0.0
        %980 = vmatpush1.msra.mxu0 0.0
        %981 = vmatprep.subr.mxu0 0.0
        %982 = vmatpush1.msra.mxu0 0.0
        %983 = vmatprep.subr.mxu0 0.0
        %984 = vmatpush1.msra.mxu0 0.0
        %985 = vmatprep.subr.mxu0 0.0
        %986 = vmatpush1.msra.mxu0 0.0
        %987 = vmatprep.subr.mxu0 0.0
        %988 = vmatpush1.msra.mxu0 0.0
        %989 = vmatprep.subr.mxu0 0.0
        %990 = vmatpush1.msra.mxu0 0.0
        %991 = vmatprep.subr.mxu0 0.0
        %992 = vmatpush1.msra.mxu0 0.0
        %993 = vmatprep.subr.mxu0 0.0
        %994 = vmatpush1.msra.mxu0 0.0
        %995 = vmatprep.subr.mxu0 0.0
        %996 = vmatpush1.msra.mxu0 0.0
        %997 = vmatprep.subr.mxu0 0.0
        %998 = vmatpush1.msra.mxu0 0.0
        %999 = vmatprep.subr.mxu0 0.0
        %1000 = vmatpush1.msra.mxu0 0.0
        %1001 = vmatprep.subr.mxu0 0.0
        %1002 = vmatpush1.msra.mxu0 0.0
        %1003 = vmatprep.subr.mxu0 0.0
        %1004 = vmatpush1.msra.mxu0 0.0
        %1005 = vmatprep.subr.mxu0 0.0
        %1006 = vmatpush1.msra.mxu0 0.0
        %1007 = vmatprep.subr.mxu0 0.0
        %1008 = vmatpush1.msra.mxu0 0.0
        %1009 = vmatprep.subr.mxu0 0.0
        %1010 = vmatpush1.msra.mxu0 0.0
        %1011 = vmatprep.subr.mxu0 0.0
        %1012 = vmatpush1.msra.mxu0 0.0
        %1013 = vmatprep.subr.mxu0 0.0
        %1014 = vmatpush1.msra.mxu0 0.0
        %1015 = vmatprep.subr.mxu0 0.0
        %1016 = vmatpush1.msra.mxu0 0.0
        %1017 = vmatprep.subr.mxu0 0.0
        %1018 = vmatpush1.msra.mxu0 0.0
        %1019 = vmatprep.subr.mxu0 0.0
        %1020 = vmatpush1.msra.mxu0 0.0
        %1021 = vmatprep.subr.mxu0 0.0
        %1022 = vmatpush1.msra.mxu0 0.0
        %1023 = vmatprep.subr.mxu0 0.0
        %1024 = vmatpush1.msra.mxu0 0.0
        %1025 = vmatprep.subr.mxu0 0.0
        %1026 = vmatpush1.msra.mxu0 0.0
        %1027 = vmatprep.subr.mxu0 0.0
        %1028 = vmatpush1.msra.mxu0 0.0
        %1029 = vmatprep.subr.mxu0 0.0
        %1030 = vmatpush1.msra.mxu0 0.0
        %1031 = vmatprep.subr.mxu0 0.0
        %1032 = vmatpush1.msra.mxu0 0.0
        %1033 = vmatprep.subr.mxu0 0.0
        %1034 = vmatpush1.msra.mxu0 0.0
        %1035 = vmatprep.subr.mxu0 0.0
        %1036 = vmatpush1.msra.mxu0 0.0
        %1037 = vmatprep.subr.mxu0 0.0
        %1038 = vmatpush1.msra.mxu0 0.0
        %1039 = vmatprep.subr.mxu0 0.0
        %1040 = vmatpush1.msra.mxu0 0.0
        %1041 = vmatprep.mubr.f32.mxu0 0.0
        %1042 = vmatmul.mubr.f32.gmra.mrb[0].mxu0 %v975
        %v1043 = vpop.f32.mrb[0].mxu0
        %v1044 = vadd.f32 0.0, %v1043
        %v1045 = vpop.f32.mrb[0].mxu0
        %1046 = vdwg.mxu0
        %1047 = vrot.lane.b32.xlu0 %v428, 60
        %v1048 = vpop.permute.xlu0 %1047
        %v1051 = vsel %vm604, %v970, 0
        %1053 = vmatprep.subr.mxu0 0.0
        %1054 = vmatpush1.msra.mxu0 %v1048
        %1055 = vmatprep.subr.mxu0 0.0
        %1056 = vmatpush1.msra.mxu0 0.0
        %1057 = vmatprep.subr.mxu0 0.0
        %1058 = vmatpush1.msra.mxu0 0.0
        %1059 = vmatprep.subr.mxu0 0.0
        %1060 = vmatpush1.msra.mxu0 0.0
        %1061 = vmatprep.subr.mxu0 0.0
        %1062 = vmatpush1.msra.mxu0 0.0
        %1063 = vmatprep.subr.mxu0 0.0
        %1064 = vmatpush1.msra.mxu0 0.0
        %1065 = vmatprep.subr.mxu0 0.0
        %1066 = vmatpush1.msra.mxu0 0.0
        %1067 = vmatprep.subr.mxu0 0.0
        %1068 = vmatpush1.msra.mxu0 0.0
        %1069 = vmatprep.subr.mxu0 0.0
        %1070 = vmatpush1.msra.mxu0 0.0
        %1071 = vmatprep.subr.mxu0 0.0
        %1072 = vmatpush1.msra.mxu0 0.0
        %1073 = vmatprep.subr.mxu0 0.0
        %1074 = vmatpush1.msra.mxu0 0.0
        %1075 = vmatprep.subr.mxu0 0.0
        %1076 = vmatpush1.msra.mxu0 0.0
        %1077 = vmatprep.subr.mxu0 0.0
        %1078 = vmatpush1.msra.mxu0 0.0
        %1079 = vmatprep.subr.mxu0 0.0
        %1080 = vmatpush1.msra.mxu0 0.0
        %1081 = vmatprep.subr.mxu0 0.0
        %1082 = vmatpush1.msra.mxu0 0.0
        %1083 = vmatprep.subr.mxu0 0.0
        %1084 = vmatpush1.msra.mxu0 0.0
        %1085 = vmatprep.subr.mxu0 0.0
        %1086 = vmatpush1.msra.mxu0 0.0
        %1087 = vmatprep.subr.mxu0 0.0
        %1088 = vmatpush1.msra.mxu0 0.0
        %1089 = vmatprep.subr.mxu0 0.0
        %1090 = vmatpush1.msra.mxu0 0.0
        %1091 = vmatprep.subr.mxu0 0.0
        %1092 = vmatpush1.msra.mxu0 0.0
        %1093 = vmatprep.subr.mxu0 0.0
        %1094 = vmatpush1.msra.mxu0 0.0
        %1095 = vmatprep.subr.mxu0 0.0
        %1096 = vmatpush1.msra.mxu0 0.0
        %1097 = vmatprep.subr.mxu0 0.0
        %1098 = vmatpush1.msra.mxu0 0.0
        %1099 = vmatprep.subr.mxu0 0.0
        %1100 = vmatpush1.msra.mxu0 0.0
        %1101 = vmatprep.subr.mxu0 0.0
        %1102 = vmatpush1.msra.mxu0 0.0
        %1103 = vmatprep.subr.mxu0 0.0
        %1104 = vmatpush1.msra.mxu0 0.0
        %1105 = vmatprep.subr.mxu0 0.0
        %1106 = vmatpush1.msra.mxu0 0.0
        %1107 = vmatprep.subr.mxu0 0.0
        %1108 = vmatpush1.msra.mxu0 0.0
        %1109 = vmatprep.subr.mxu0 0.0
        %1110 = vmatpush1.msra.mxu0 0.0
        %1111 = vmatprep.subr.mxu0 0.0
        %1112 = vmatpush1.msra.mxu0 0.0
        %1113 = vmatprep.subr.mxu0 0.0
        %1114 = vmatpush1.msra.mxu0 0.0
        %1115 = vmatprep.subr.mxu0 0.0
        %1116 = vmatpush1.msra.mxu0 0.0
        %1117 = vmatprep.mubr.f32.mxu0 0.0
        %1118 = vmatmul.mubr.f32.gmra.mrb[0].mxu0 %v1051
        %v1119 = vpop.f32.mrb[0].mxu0
        %v1120 = vadd.f32 0.0, %v1119
        %v1121 = vpop.f32.mrb[0].mxu0
        %1122 = vdwg.mxu0
        %1123 = vrot.lane.b32.xlu0 %v423, 120
        %v1124 = vpop.permute.xlu0 %1123
        %1125 = vrot.lane.b32.xlu0 %v423, 88
        %v1126 = vpop.permute.xlu0 %1125
        %v1127 = vsel %vm436, %v1124, 0
        %v1129 = vsel %vm436, %v1126, 0
        %1131 = vmatprep.subr.mxu0 0.0
        %1132 = vmatpush1.xpose.msra.mxu0 %v1129
        %1133 = vmatprep.subr.mxu0 0.0
        %1134 = vmatpush1.xpose.msra.mxu0 0.0
        %1135 = vmatprep.subr.mxu0 0.0
        %1136 = vmatpush1.xpose.msra.mxu0 0.0
        %1137 = vmatprep.subr.mxu0 0.0
        %1138 = vmatpush1.xpose.msra.mxu0 0.0
        %1139 = vmatprep.subr.mxu0 0.0
        %1140 = vmatpush1.xpose.msra.mxu0 0.0
        %1141 = vmatprep.subr.mxu0 0.0
        %1142 = vmatpush1.xpose.msra.mxu0 0.0
        %1143 = vmatprep.subr.mxu0 0.0
        %1144 = vmatpush1.xpose.msra.mxu0 0.0
        %1145 = vmatprep.subr.mxu0 0.0
        %1146 = vmatpush1.xpose.msra.mxu0 0.0
        %1147 = vmatprep.subr.mxu0 0.0
        %1148 = vmatpush1.xpose.msra.mxu0 0.0
        %1149 = vmatprep.subr.mxu0 0.0
        %1150 = vmatpush1.xpose.msra.mxu0 0.0
        %1151 = vmatprep.subr.mxu0 0.0
        %1152 = vmatpush1.xpose.msra.mxu0 0.0
        %1153 = vmatprep.subr.mxu0 0.0
        %1154 = vmatpush1.xpose.msra.mxu0 0.0
        %1155 = vmatprep.subr.mxu0 0.0
        %1156 = vmatpush1.xpose.msra.mxu0 0.0
        %1157 = vmatprep.subr.mxu0 0.0
        %1158 = vmatpush1.xpose.msra.mxu0 0.0
        %1159 = vmatprep.subr.mxu0 0.0
        %1160 = vmatpush1.xpose.msra.mxu0 0.0
        %1161 = vmatprep.subr.mxu0 0.0
        %1162 = vmatpush1.xpose.msra.mxu0 0.0
        %1163 = vmatprep.subr.mxu0 0.0
        %1164 = vmatpush1.xpose.msra.mxu0 0.0
        %1165 = vmatprep.subr.mxu0 0.0
        %1166 = vmatpush1.xpose.msra.mxu0 0.0
        %1167 = vmatprep.subr.mxu0 0.0
        %1168 = vmatpush1.xpose.msra.mxu0 0.0
        %1169 = vmatprep.subr.mxu0 0.0
        %1170 = vmatpush1.xpose.msra.mxu0 0.0
        %1171 = vmatprep.subr.mxu0 0.0
        %1172 = vmatpush1.xpose.msra.mxu0 0.0
        %1173 = vmatprep.subr.mxu0 0.0
        %1174 = vmatpush1.xpose.msra.mxu0 0.0
        %1175 = vmatprep.subr.mxu0 0.0
        %1176 = vmatpush1.xpose.msra.mxu0 0.0
        %1177 = vmatprep.subr.mxu0 0.0
        %1178 = vmatpush1.xpose.msra.mxu0 0.0
        %1179 = vmatprep.subr.mxu0 0.0
        %1180 = vmatpush1.xpose.msra.mxu0 0.0
        %1181 = vmatprep.subr.mxu0 0.0
        %1182 = vmatpush1.xpose.msra.mxu0 0.0
        %1183 = vmatprep.subr.mxu0 0.0
        %1184 = vmatpush1.xpose.msra.mxu0 0.0
        %1185 = vmatprep.subr.mxu0 0.0
        %1186 = vmatpush1.xpose.msra.mxu0 0.0
        %1187 = vmatprep.subr.mxu0 0.0
        %1188 = vmatpush1.xpose.msra.mxu0 0.0
        %1189 = vmatprep.subr.mxu0 0.0
        %1190 = vmatpush1.xpose.msra.mxu0 0.0
        %1191 = vmatprep.subr.mxu0 0.0
        %1192 = vmatpush1.xpose.msra.mxu0 0.0
        %1193 = vmatprep.subr.mxu0 0.0
        %1194 = vmatpush1.xpose.msra.mxu0 0.0
        %1195 = vmatprep.mubr.f32.mxu0 0.0
        %1196 = vmatmul.mubr.f32.gmra.mrb[0].mxu0 %v1127
        %v1197 = vpop.f32.mrb[0].mxu0
        %v1198 = vadd.f32 0.0, %v1197
        %v1199 = vpop.f32.mrb[0].mxu0
        %1200 = vdwg.mxu0
        %1201 = vrot.lane.b32.xlu0 %v428, 120
        %v1202 = vpop.permute.xlu0 %1201
        %1203 = vrot.lane.b32.xlu0 %v428, 88
        %v1204 = vpop.permute.xlu0 %1203
        %v1205 = vsel %vm436, %v1202, 0
        %v1207 = vsel %vm436, %v1204, 0
        %1209 = vmatprep.subr.mxu0 0.0
        %1210 = vmatpush1.xpose.msra.mxu0 %v1207
        %1211 = vmatprep.subr.mxu0 0.0
        %1212 = vmatpush1.xpose.msra.mxu0 0.0
        %1213 = vmatprep.subr.mxu0 0.0
        %1214 = vmatpush1.xpose.msra.mxu0 0.0
        %1215 = vmatprep.subr.mxu0 0.0
        %1216 = vmatpush1.xpose.msra.mxu0 0.0
        %1217 = vmatprep.subr.mxu0 0.0
        %1218 = vmatpush1.xpose.msra.mxu0 0.0
        %1219 = vmatprep.subr.mxu0 0.0
        %1220 = vmatpush1.xpose.msra.mxu0 0.0
        %1221 = vmatprep.subr.mxu0 0.0
        %1222 = vmatpush1.xpose.msra.mxu0 0.0
        %1223 = vmatprep.subr.mxu0 0.0
        %1224 = vmatpush1.xpose.msra.mxu0 0.0
        %1225 = vmatprep.subr.mxu0 0.0
        %1226 = vmatpush1.xpose.msra.mxu0 0.0
        %1227 = vmatprep.subr.mxu0 0.0
        %1228 = vmatpush1.xpose.msra.mxu0 0.0
        %1229 = vmatprep.subr.mxu0 0.0
        %1230 = vmatpush1.xpose.msra.mxu0 0.0
        %1231 = vmatprep.subr.mxu0 0.0
        %1232 = vmatpush1.xpose.msra.mxu0 0.0
        %1233 = vmatprep.subr.mxu0 0.0
        %1234 = vmatpush1.xpose.msra.mxu0 0.0
        %1235 = vmatprep.subr.mxu0 0.0
        %1236 = vmatpush1.xpose.msra.mxu0 0.0
        %1237 = vmatprep.subr.mxu0 0.0
        %1238 = vmatpush1.xpose.msra.mxu0 0.0
        %1239 = vmatprep.subr.mxu0 0.0
        %1240 = vmatpush1.xpose.msra.mxu0 0.0
        %1241 = vmatprep.subr.mxu0 0.0
        %1242 = vmatpush1.xpose.msra.mxu0 0.0
        %1243 = vmatprep.subr.mxu0 0.0
        %1244 = vmatpush1.xpose.msra.mxu0 0.0
        %1245 = vmatprep.subr.mxu0 0.0
        %1246 = vmatpush1.xpose.msra.mxu0 0.0
        %1247 = vmatprep.subr.mxu0 0.0
        %1248 = vmatpush1.xpose.msra.mxu0 0.0
        %1249 = vmatprep.subr.mxu0 0.0
        %1250 = vmatpush1.xpose.msra.mxu0 0.0
        %1251 = vmatprep.subr.mxu0 0.0
        %1252 = vmatpush1.xpose.msra.mxu0 0.0
        %1253 = vmatprep.subr.mxu0 0.0
        %1254 = vmatpush1.xpose.msra.mxu0 0.0
        %1255 = vmatprep.subr.mxu0 0.0
        %1256 = vmatpush1.xpose.msra.mxu0 0.0
        %1257 = vmatprep.subr.mxu0 0.0
        %1258 = vmatpush1.xpose.msra.mxu0 0.0
        %1259 = vmatprep.subr.mxu0 0.0
        %1260 = vmatpush1.xpose.msra.mxu0 0.0
        %1261 = vmatprep.subr.mxu0 0.0
        %1262 = vmatpush1.xpose.msra.mxu0 0.0
        %1263 = vmatprep.subr.mxu0 0.0
        %1264 = vmatpush1.xpose.msra.mxu0 0.0
        %1265 = vmatprep.subr.mxu0 0.0
        %1266 = vmatpush1.xpose.msra.mxu0 0.0
        %1267 = vmatprep.subr.mxu0 0.0
        %1268 = vmatpush1.xpose.msra.mxu0 0.0
        %1269 = vmatprep.subr.mxu0 0.0
        %1270 = vmatpush1.xpose.msra.mxu0 0.0
        %1271 = vmatprep.subr.mxu0 0.0
        %1272 = vmatpush1.xpose.msra.mxu0 0.0
        %1273 = vmatprep.mubr.f32.mxu0 0.0
        %1274 = vmatmul.mubr.f32.gmra.mrb[0].mxu0 %v1205
        %v1275 = vpop.f32.mrb[0].mxu0
        %v1276 = vadd.f32 0.0, %v1275
        %v1277 = vpop.f32.mrb[0].mxu0
        %1278 = vdwg.mxu0
        %v1279 = vsel %vm600, %v1198, -1e+30
        %v1280 = vsel %vm601, %v1276, -1e+30
        %v1281 = vsel %vm604, %v1279, -inf
        %1282 = vmax.xlane.f32.xlu0 %v1281
        %v1283 = vpop.xlane.xlu0 %1282
        %v1284 = vsel %vm604, %v1280, -inf
        %1285 = vmax.xlane.f32.xlu0 %v1284
        %v1286 = vpop.xlane.xlu0 %1285
        %v1287 = vsub.f32 %v1279, %v1283
        %v1288 = vsub.f32 %v1280, %v1286
        %v1289 = vmul.f32 %v1287, 1.442695
        %v1290 = vpow.pop %v1289
        %v1291 = vmul.f32 %v1288, 1.442695
        %v1292 = vpow.pop %v1291
        %v1293 = vsel %vm604, %v1290, 0.0
        %1294 = vadd.xlane.f32.xlu0 %v1293
        %v1295 = vpop.xlane.xlu0 %1294
        %v1296 = vsel %vm604, %v1292, 0.0
        %1297 = vadd.xlane.f32.xlu0 %v1296
        %v1298 = vpop.xlane.xlu0 %1297
        %v1299 = vrcp.pop %v1295
        %v1300 = vrcp.pop %v1298
        %v1301 = vmul.f32 %v1295, %v1299
        %v1302 = vmul.f32 %v1298, %v1300
        %v1303 = vsub.f32 2.0, %v1301
        %v1304 = vsub.f32 2.0, %v1302
        %v1305 = vmul.f32 %v1299, %v1303
        %v1306 = vmul.f32 %v1300, %v1304
        %v1307 = vmul.f32 %v1290, %v1305
        %v1308 = vmul.f32 %v1292, %v1306
        %1309 = vrot.lane.b32.xlu0 %v423, 56
        %v1310 = vpop.permute.xlu0 %1309
        %v1313 = vsel %vm604, %v1307, 0
        %1315 = vmatprep.subr.mxu0 0.0
        %1316 = vmatpush1.msra.mxu0 %v1310
        %1317 = vmatprep.subr.mxu0 0.0
        %1318 = vmatpush1.msra.mxu0 0.0
        %1319 = vmatprep.subr.mxu0 0.0
        %1320 = vmatpush1.msra.mxu0 0.0
        %1321 = vmatprep.subr.mxu0 0.0
        %1322 = vmatpush1.msra.mxu0 0.0
        %1323 = vmatprep.subr.mxu0 0.0
        %1324 = vmatpush1.msra.mxu0 0.0
        %1325 = vmatprep.subr.mxu0 0.0
        %1326 = vmatpush1.msra.mxu0 0.0
        %1327 = vmatprep.subr.mxu0 0.0
        %1328 = vmatpush1.msra.mxu0 0.0
        %1329 = vmatprep.subr.mxu0 0.0
        %1330 = vmatpush1.msra.mxu0 0.0
        %1331 = vmatprep.subr.mxu0 0.0
        %1332 = vmatpush1.msra.mxu0 0.0
        %1333 = vmatprep.subr.mxu0 0.0
        %1334 = vmatpush1.msra.mxu0 0.0
        %1335 = vmatprep.subr.mxu0 0.0
        %1336 = vmatpush1.msra.mxu0 0.0
        %1337 = vmatprep.subr.mxu0 0.0
        %1338 = vmatpush1.msra.mxu0 0.0
        %1339 = vmatprep.subr.mxu0 0.0
        %1340 = vmatpush1.msra.mxu0 0.0
        %1341 = vmatprep.subr.mxu0 0.0
        %1342 = vmatpush1.msra.mxu0 0.0
        %1343 = vmatprep.subr.mxu0 0.0
        %1344 = vmatpush1.msra.mxu0 0.0
        %1345 = vmatprep.subr.mxu0 0.0
        %1346 = vmatpush1.msra.mxu0 0.0
        %1347 = vmatprep.subr.mxu0 0.0
        %1348 = vmatpush1.msra.mxu0 0.0
        %1349 = vmatprep.subr.mxu0 0.0
        %1350 = vmatpush1.msra.mxu0 0.0
        %1351 = vmatprep.subr.mxu0 0.0
        %1352 = vmatpush1.msra.mxu0 0.0
        %1353 = vmatprep.subr.mxu0 0.0
        %1354 = vmatpush1.msra.mxu0 0.0
        %1355 = vmatprep.subr.mxu0 0.0
        %1356 = vmatpush1.msra.mxu0 0.0
        %1357 = vmatprep.subr.mxu0 0.0
        %1358 = vmatpush1.msra.mxu0 0.0
        %1359 = vmatprep.subr.mxu0 0.0
        %1360 = vmatpush1.msra.mxu0 0.0
        %1361 = vmatprep.subr.mxu0 0.0
        %1362 = vmatpush1.msra.mxu0 0.0
        %1363 = vmatprep.subr.mxu0 0.0
        %1364 = vmatpush1.msra.mxu0 0.0
        %1365 = vmatprep.subr.mxu0 0.0
        %1366 = vmatpush1.msra.mxu0 0.0
        %1367 = vmatprep.subr.mxu0 0.0
        %1368 = vmatpush1.msra.mxu0 0.0
        %1369 = vmatprep.subr.mxu0 0.0
        %1370 = vmatpush1.msra.mxu0 0.0
        %1371 = vmatprep.subr.mxu0 0.0
        %1372 = vmatpush1.msra.mxu0 0.0
        %1373 = vmatprep.subr.mxu0 0.0
        %1374 = vmatpush1.msra.mxu0 0.0
        %1375 = vmatprep.subr.mxu0 0.0
        %1376 = vmatpush1.msra.mxu0 0.0
        %1377 = vmatprep.subr.mxu0 0.0
        %1378 = vmatpush1.msra.mxu0 0.0
        %1379 = vmatprep.mubr.f32.mxu0 0.0
        %1380 = vmatmul.mubr.f32.gmra.mrb[0].mxu0 %v1313
        %v1381 = vpop.f32.mrb[0].mxu0
        %v1382 = vadd.f32 0.0, %v1381
        %v1383 = vpop.f32.mrb[0].mxu0
        %1384 = vdwg.mxu0
        %1385 = vrot.lane.b32.xlu0 %v428, 56
        %v1386 = vpop.permute.xlu0 %1385
        %v1389 = vsel %vm604, %v1308, 0
        %1391 = vmatprep.subr.mxu0 0.0
        %1392 = vmatpush1.msra.mxu0 %v1386
        %1393 = vmatprep.subr.mxu0 0.0
        %1394 = vmatpush1.msra.mxu0 0.0
        %1395 = vmatprep.subr.mxu0 0.0
        %1396 = vmatpush1.msra.mxu0 0.0
        %1397 = vmatprep.subr.mxu0 0.0
        %1398 = vmatpush1.msra.mxu0 0.0
        %1399 = vmatprep.subr.mxu0 0.0
        %1400 = vmatpush1.msra.mxu0 0.0
        %1401 = vmatprep.subr.mxu0 0.0
        %1402 = vmatpush1.msra.mxu0 0.0
        %1403 = vmatprep.subr.mxu0 0.0
        %1404 = vmatpush1.msra.mxu0 0.0
        %1405 = vmatprep.subr.mxu0 0.0
        %1406 = vmatpush1.msra.mxu0 0.0
        %1407 = vmatprep.subr.mxu0 0.0
        %1408 = vmatpush1.msra.mxu0 0.0
        %1409 = vmatprep.subr.mxu0 0.0
        %1410 = vmatpush1.msra.mxu0 0.0
        %1411 = vmatprep.subr.mxu0 0.0
        %1412 = vmatpush1.msra.mxu0 0.0
        %1413 = vmatprep.subr.mxu0 0.0
        %1414 = vmatpush1.msra.mxu0 0.0
        %1415 = vmatprep.subr.mxu0 0.0
        %1416 = vmatpush1.msra.mxu0 0.0
        %1417 = vmatprep.subr.mxu0 0.0
        %1418 = vmatpush1.msra.mxu0 0.0
        %1419 = vmatprep.subr.mxu0 0.0
        %1420 = vmatpush1.msra.mxu0 0.0
        %1421 = vmatprep.subr.mxu0 0.0
        %1422 = vmatpush1.msra.mxu0 0.0
        %1423 = vmatprep.subr.mxu0 0.0
        %1424 = vmatpush1.msra.mxu0 0.0
        %1425 = vmatprep.subr.mxu0 0.0
        %1426 = vmatpush1.msra.mxu0 0.0
        %1427 = vmatprep.subr.mxu0 0.0
        %1428 = vmatpush1.msra.mxu0 0.0
        %1429 = vmatprep.subr.mxu0 0.0
        %1430 = vmatpush1.msra.mxu0 0.0
        %1431 = vmatprep.subr.mxu0 0.0
        %1432 = vmatpush1.msra.mxu0 0.0
        %1433 = vmatprep.subr.mxu0 0.0
        %1434 = vmatpush1.msra.mxu0 0.0
        %1435 = vmatprep.subr.mxu0 0.0
        %1436 = vmatpush1.msra.mxu0 0.0
        %1437 = vmatprep.subr.mxu0 0.0
        %1438 = vmatpush1.msra.mxu0 0.0
        %1439 = vmatprep.subr.mxu0 0.0
        %1440 = vmatpush1.msra.mxu0 0.0
        %1441 = vmatprep.subr.mxu0 0.0
        %1442 = vmatpush1.msra.mxu0 0.0
        %1443 = vmatprep.subr.mxu0 0.0
        %1444 = vmatpush1.msra.mxu0 0.0
        %1445 = vmatprep.subr.mxu0 0.0
        %1446 = vmatpush1.msra.mxu0 0.0
        %1447 = vmatprep.subr.mxu0 0.0
        %1448 = vmatpush1.msra.mxu0 0.0
        %1449 = vmatprep.subr.mxu0 0.0
        %1450 = vmatpush1.msra.mxu0 0.0
        %1451 = vmatprep.subr.mxu0 0.0
        %1452 = vmatpush1.msra.mxu0 0.0
        %1453 = vmatprep.subr.mxu0 0.0
        %1454 = vmatpush1.msra.mxu0 0.0
        %1455 = vmatprep.mubr.f32.mxu0 0.0
        %1456 = vmatmul.mubr.f32.gmra.mrb[0].mxu0 %v1389
        %v1457 = vpop.f32.mrb[0].mxu0
        %v1458 = vadd.f32 0.0, %v1457
        %v1459 = vpop.f32.mrb[0].mxu0
        %1460 = vdwg.mxu0
        %1461 = vrot.lane.b32.xlu0 %v423, 116
        %v1462 = vpop.permute.xlu0 %1461
        %1463 = vrot.lane.b32.xlu0 %v423, 84
        %v1464 = vpop.permute.xlu0 %1463
        %v1465 = vsel %vm436, %v1462, 0
        %v1467 = vsel %vm436, %v1464, 0
        %1469 = vmatprep.subr.mxu0 0.0
        %1470 = vmatpush1.xpose.msra.mxu0 %v1467
        %1471 = vmatprep.subr.mxu0 0.0
        %1472 = vmatpush1.xpose.msra.mxu0 0.0
        %1473 = vmatprep.subr.mxu0 0.0
        %1474 = vmatpush1.xpose.msra.mxu0 0.0
        %1475 = vmatprep.subr.mxu0 0.0
        %1476 = vmatpush1.xpose.msra.mxu0 0.0
        %1477 = vmatprep.subr.mxu0 0.0
        %1478 = vmatpush1.xpose.msra.mxu0 0.0
        %1479 = vmatprep.subr.mxu0 0.0
        %1480 = vmatpush1.xpose.msra.mxu0 0.0
        %1481 = vmatprep.subr.mxu0 0.0
        %1482 = vmatpush1.xpose.msra.mxu0 0.0
        %1483 = vmatprep.subr.mxu0 0.0
        %1484 = vmatpush1.xpose.msra.mxu0 0.0
        %1485 = vmatprep.subr.mxu0 0.0
        %1486 = vmatpush1.xpose.msra.mxu0 0.0
        %1487 = vmatprep.subr.mxu0 0.0
        %1488 = vmatpush1.xpose.msra.mxu0 0.0
        %1489 = vmatprep.subr.mxu0 0.0
        %1490 = vmatpush1.xpose.msra.mxu0 0.0
        %1491 = vmatprep.subr.mxu0 0.0
        %1492 = vmatpush1.xpose.msra.mxu0 0.0
        %1493 = vmatprep.subr.mxu0 0.0
        %1494 = vmatpush1.xpose.msra.mxu0 0.0
        %1495 = vmatprep.subr.mxu0 0.0
        %1496 = vmatpush1.xpose.msra.mxu0 0.0
        %1497 = vmatprep.subr.mxu0 0.0
        %1498 = vmatpush1.xpose.msra.mxu0 0.0
        %1499 = vmatprep.subr.mxu0 0.0
        %1500 = vmatpush1.xpose.msra.mxu0 0.0
        %1501 = vmatprep.subr.mxu0 0.0
        %1502 = vmatpush1.xpose.msra.mxu0 0.0
        %1503 = vmatprep.subr.mxu0 0.0
        %1504 = vmatpush1.xpose.msra.mxu0 0.0
        %1505 = vmatprep.subr.mxu0 0.0
        %1506 = vmatpush1.xpose.msra.mxu0 0.0
        %1507 = vmatprep.subr.mxu0 0.0
        %1508 = vmatpush1.xpose.msra.mxu0 0.0
        %1509 = vmatprep.subr.mxu0 0.0
        %1510 = vmatpush1.xpose.msra.mxu0 0.0
        %1511 = vmatprep.subr.mxu0 0.0
        %1512 = vmatpush1.xpose.msra.mxu0 0.0
        %1513 = vmatprep.subr.mxu0 0.0
        %1514 = vmatpush1.xpose.msra.mxu0 0.0
        %1515 = vmatprep.subr.mxu0 0.0
        %1516 = vmatpush1.xpose.msra.mxu0 0.0
        %1517 = vmatprep.subr.mxu0 0.0
        %1518 = vmatpush1.xpose.msra.mxu0 0.0
        %1519 = vmatprep.subr.mxu0 0.0
        %1520 = vmatpush1.xpose.msra.mxu0 0.0
        %1521 = vmatprep.subr.mxu0 0.0
        %1522 = vmatpush1.xpose.msra.mxu0 0.0
        %1523 = vmatprep.subr.mxu0 0.0
        %1524 = vmatpush1.xpose.msra.mxu0 0.0
        %1525 = vmatprep.subr.mxu0 0.0
        %1526 = vmatpush1.xpose.msra.mxu0 0.0
        %1527 = vmatprep.subr.mxu0 0.0
        %1528 = vmatpush1.xpose.msra.mxu0 0.0
        %1529 = vmatprep.subr.mxu0 0.0
        %1530 = vmatpush1.xpose.msra.mxu0 0.0
        %1531 = vmatprep.subr.mxu0 0.0
        %1532 = vmatpush1.xpose.msra.mxu0 0.0
        %1533 = vmatprep.mubr.f32.mxu0 0.0
        %1534 = vmatmul.mubr.f32.gmra.mrb[0].mxu0 %v1465
        %v1535 = vpop.f32.mrb[0].mxu0
        %v1536 = vadd.f32 0.0, %v1535
        %v1537 = vpop.f32.mrb[0].mxu0
        %1538 = vdwg.mxu0
        %1539 = vrot.lane.b32.xlu0 %v428, 116
        %v1540 = vpop.permute.xlu0 %1539
        %1541 = vrot.lane.b32.xlu0 %v428, 84
        %v1542 = vpop.permute.xlu0 %1541
        %v1543 = vsel %vm436, %v1540, 0
        %v1545 = vsel %vm436, %v1542, 0
        %1547 = vmatprep.subr.mxu0 0.0
        %1548 = vmatpush1.xpose.msra.mxu0 %v1545
        %1549 = vmatprep.subr.mxu0 0.0
        %1550 = vmatpush1.xpose.msra.mxu0 0.0
        %1551 = vmatprep.subr.mxu0 0.0
        %1552 = vmatpush1.xpose.msra.mxu0 0.0
        %1553 = vmatprep.subr.mxu0 0.0
        %1554 = vmatpush1.xpose.msra.mxu0 0.0
        %1555 = vmatprep.subr.mxu0 0.0
        %1556 = vmatpush1.xpose.msra.mxu0 0.0
        %1557 = vmatprep.subr.mxu0 0.0
        %1558 = vmatpush1.xpose.msra.mxu0 0.0
        %1559 = vmatprep.subr.mxu0 0.0
        %1560 = vmatpush1.xpose.msra.mxu0 0.0
        %1561 = vmatprep.subr.mxu0 0.0
        %1562 = vmatpush1.xpose.msra.mxu0 0.0
        %1563 = vmatprep.subr.mxu0 0.0
        %1564 = vmatpush1.xpose.msra.mxu0 0.0
        %1565 = vmatprep.subr.mxu0 0.0
        %1566 = vmatpush1.xpose.msra.mxu0 0.0
        %1567 = vmatprep.subr.mxu0 0.0
        %1568 = vmatpush1.xpose.msra.mxu0 0.0
        %1569 = vmatprep.subr.mxu0 0.0
        %1570 = vmatpush1.xpose.msra.mxu0 0.0
        %1571 = vmatprep.subr.mxu0 0.0
        %1572 = vmatpush1.xpose.msra.mxu0 0.0
        %1573 = vmatprep.subr.mxu0 0.0
        %1574 = vmatpush1.xpose.msra.mxu0 0.0
        %1575 = vmatprep.subr.mxu0 0.0
        %1576 = vmatpush1.xpose.msra.mxu0 0.0
        %1577 = vmatprep.subr.mxu0 0.0
        %1578 = vmatpush1.xpose.msra.mxu0 0.0
        %1579 = vmatprep.subr.mxu0 0.0
        %1580 = vmatpush1.xpose.msra.mxu0 0.0
        %1581 = vmatprep.subr.mxu0 0.0
        %1582 = vmatpush1.xpose.msra.mxu0 0.0
        %1583 = vmatprep.subr.mxu0 0.0
        %1584 = vmatpush1.xpose.msra.mxu0 0.0
        %1585 = vmatprep.subr.mxu0 0.0
        %1586 = vmatpush1.xpose.msra.mxu0 0.0
        %1587 = vmatprep.subr.mxu0 0.0
        %1588 = vmatpush1.xpose.msra.mxu0 0.0
        %1589 = vmatprep.subr.mxu0 0.0
        %1590 = vmatpush1.xpose.msra.mxu0 0.0
        %1591 = vmatprep.subr.mxu0 0.0
        %1592 = vmatpush1.xpose.msra.mxu0 0.0
        %1593 = vmatprep.subr.mxu0 0.0
        %1594 = vmatpush1.xpose.msra.mxu0 0.0
        %1595 = vmatprep.subr.mxu0 0.0
        %1596 = vmatpush1.xpose.msra.mxu0 0.0
        %1597 = vmatprep.subr.mxu0 0.0
        %1598 = vmatpush1.xpose.msra.mxu0 0.0
        %1599 = vmatprep.subr.mxu0 0.0
        %1600 = vmatpush1.xpose.msra.mxu0 0.0
        %1601 = vmatprep.subr.mxu0 0.0
        %1602 = vmatpush1.xpose.msra.mxu0 0.0
        %1603 = vmatprep.subr.mxu0 0.0
        %1604 = vmatpush1.xpose.msra.mxu0 0.0
        %1605 = vmatprep.subr.mxu0 0.0
        %1606 = vmatpush1.xpose.msra.mxu0 0.0
        %1607 = vmatprep.subr.mxu0 0.0
        %1608 = vmatpush1.xpose.msra.mxu0 0.0
        %1609 = vmatprep.subr.mxu0 0.0
        %1610 = vmatpush1.xpose.msra.mxu0 0.0
        %1611 = vmatprep.mubr.f32.mxu0 0.0
        %1612 = vmatmul.mubr.f32.gmra.mrb[0].mxu0 %v1543
        %v1613 = vpop.f32.mrb[0].mxu0
        %v1614 = vadd.f32 0.0, %v1613
        %v1615 = vpop.f32.mrb[0].mxu0
        %1616 = vdwg.mxu0
        %v1617 = vsel %vm600, %v1536, -1e+30
        %v1618 = vsel %vm601, %v1614, -1e+30
        %v1619 = vsel %vm604, %v1617, -inf
        %1620 = vmax.xlane.f32.xlu0 %v1619
        %v1621 = vpop.xlane.xlu0 %1620
        %v1622 = vsel %vm604, %v1618, -inf
        %1623 = vmax.xlane.f32.xlu0 %v1622
        %v1624 = vpop.xlane.xlu0 %1623
        %v1625 = vsub.f32 %v1617, %v1621
        %v1626 = vsub.f32 %v1618, %v1624
        %v1627 = vmul.f32 %v1625, 1.442695
        %v1628 = vpow.pop %v1627
        %v1629 = vmul.f32 %v1626, 1.442695
        %v1630 = vpow.pop %v1629
        %v1631 = vsel %vm604, %v1628, 0.0
        %1632 = vadd.xlane.f32.xlu0 %v1631
        %v1633 = vpop.xlane.xlu0 %1632
        %v1634 = vsel %vm604, %v1630, 0.0
        %1635 = vadd.xlane.f32.xlu0 %v1634
        %v1636 = vpop.xlane.xlu0 %1635
        %v1637 = vrcp.pop %v1633
        %v1638 = vrcp.pop %v1636
        %v1639 = vmul.f32 %v1633, %v1637
        %v1640 = vmul.f32 %v1636, %v1638
        %v1641 = vsub.f32 2.0, %v1639
        %v1642 = vsub.f32 2.0, %v1640
        %v1643 = vmul.f32 %v1637, %v1641
        %v1644 = vmul.f32 %v1638, %v1642
        %v1645 = vmul.f32 %v1628, %v1643
        %v1646 = vmul.f32 %v1630, %v1644
        %1647 = vrot.lane.b32.xlu0 %v423, 52
        %v1648 = vpop.permute.xlu0 %1647
        %v1651 = vsel %vm604, %v1645, 0
        %1653 = vmatprep.subr.mxu0 0.0
        %1654 = vmatpush1.msra.mxu0 %v1648
        %1655 = vmatprep.subr.mxu0 0.0
        %1656 = vmatpush1.msra.mxu0 0.0
        %1657 = vmatprep.subr.mxu0 0.0
        %1658 = vmatpush1.msra.mxu0 0.0
        %1659 = vmatprep.subr.mxu0 0.0
        %1660 = vmatpush1.msra.mxu0 0.0
        %1661 = vmatprep.subr.mxu0 0.0
        %1662 = vmatpush1.msra.mxu0 0.0
        %1663 = vmatprep.subr.mxu0 0.0
        %1664 = vmatpush1.msra.mxu0 0.0
        %1665 = vmatprep.subr.mxu0 0.0
        %1666 = vmatpush1.msra.mxu0 0.0
        %1667 = vmatprep.subr.mxu0 0.0
        %1668 = vmatpush1.msra.mxu0 0.0
        %1669 = vmatprep.subr.mxu0 0.0
        %1670 = vmatpush1.msra.mxu0 0.0
        %1671 = vmatprep.subr.mxu0 0.0
        %1672 = vmatpush1.msra.mxu0 0.0
        %1673 = vmatprep.subr.mxu0 0.0
        %1674 = vmatpush1.msra.mxu0 0.0
        %1675 = vmatprep.subr.mxu0 0.0
        %1676 = vmatpush1.msra.mxu0 0.0
        %1677 = vmatprep.subr.mxu0 0.0
        %1678 = vmatpush1.msra.mxu0 0.0
        %1679 = vmatprep.subr.mxu0 0.0
        %1680 = vmatpush1.msra.mxu0 0.0
        %1681 = vmatprep.subr.mxu0 0.0
        %1682 = vmatpush1.msra.mxu0 0.0
        %1683 = vmatprep.subr.mxu0 0.0
        %1684 = vmatpush1.msra.mxu0 0.0
        %1685 = vmatprep.subr.mxu0 0.0
        %1686 = vmatpush1.msra.mxu0 0.0
        %1687 = vmatprep.subr.mxu0 0.0
        %1688 = vmatpush1.msra.mxu0 0.0
        %1689 = vmatprep.subr.mxu0 0.0
        %1690 = vmatpush1.msra.mxu0 0.0
        %1691 = vmatprep.subr.mxu0 0.0
        %1692 = vmatpush1.msra.mxu0 0.0
        %1693 = vmatprep.subr.mxu0 0.0
        %1694 = vmatpush1.msra.mxu0 0.0
        %1695 = vmatprep.subr.mxu0 0.0
        %1696 = vmatpush1.msra.mxu0 0.0
        %1697 = vmatprep.subr.mxu0 0.0
        %1698 = vmatpush1.msra.mxu0 0.0
        %1699 = vmatprep.subr.mxu0 0.0
        %1700 = vmatpush1.msra.mxu0 0.0
        %1701 = vmatprep.subr.mxu0 0.0
        %1702 = vmatpush1.msra.mxu0 0.0
        %1703 = vmatprep.subr.mxu0 0.0
        %1704 = vmatpush1.msra.mxu0 0.0
        %1705 = vmatprep.subr.mxu0 0.0
        %1706 = vmatpush1.msra.mxu0 0.0
        %1707 = vmatprep.subr.mxu0 0.0
        %1708 = vmatpush1.msra.mxu0 0.0
        %1709 = vmatprep.subr.mxu0 0.0
        %1710 = vmatpush1.msra.mxu0 0.0
        %1711 = vmatprep.subr.mxu0 0.0
        %1712 = vmatpush1.msra.mxu0 0.0
        %1713 = vmatprep.subr.mxu0 0.0
        %1714 = vmatpush1.msra.mxu0 0.0
        %1715 = vmatprep.subr.mxu0 0.0
        %1716 = vmatpush1.msra.mxu0 0.0
        %1717 = vmatprep.mubr.f32.mxu0 0.0
        %1718 = vmatmul.mubr.f32.gmra.mrb[0].mxu0 %v1651
        %v1719 = vpop.f32.mrb[0].mxu0
        %v1720 = vadd.f32 0.0, %v1719
        %v1721 = vpop.f32.mrb[0].mxu0
        %1722 = vdwg.mxu0
        %1723 = vrot.lane.b32.xlu0 %v428, 52
        %v1724 = vpop.permute.xlu0 %1723
        %v1727 = vsel %vm604, %v1646, 0
        %1729 = vmatprep.subr.mxu0 0.0
        %1730 = vmatpush1.msra.mxu0 %v1724
        %1731 = vmatprep.subr.mxu0 0.0
        %1732 = vmatpush1.msra.mxu0 0.0
        %1733 = vmatprep.subr.mxu0 0.0
        %1734 = vmatpush1.msra.mxu0 0.0
        %1735 = vmatprep.subr.mxu0 0.0
        %1736 = vmatpush1.msra.mxu0 0.0
        %1737 = vmatprep.subr.mxu0 0.0
        %1738 = vmatpush1.msra.mxu0 0.0
        %1739 = vmatprep.subr.mxu0 0.0
        %1740 = vmatpush1.msra.mxu0 0.0
        %1741 = vmatprep.subr.mxu0 0.0
        %1742 = vmatpush1.msra.mxu0 0.0
        %1743 = vmatprep.subr.mxu0 0.0
        %1744 = vmatpush1.msra.mxu0 0.0
        %1745 = vmatprep.subr.mxu0 0.0
        %1746 = vmatpush1.msra.mxu0 0.0
        %1747 = vmatprep.subr.mxu0 0.0
        %1748 = vmatpush1.msra.mxu0 0.0
        %1749 = vmatprep.subr.mxu0 0.0
        %1750 = vmatpush1.msra.mxu0 0.0
        %1751 = vmatprep.subr.mxu0 0.0
        %1752 = vmatpush1.msra.mxu0 0.0
        %1753 = vmatprep.subr.mxu0 0.0
        %1754 = vmatpush1.msra.mxu0 0.0
        %1755 = vmatprep.subr.mxu0 0.0
        %1756 = vmatpush1.msra.mxu0 0.0
        %1757 = vmatprep.subr.mxu0 0.0
        %1758 = vmatpush1.msra.mxu0 0.0
        %1759 = vmatprep.subr.mxu0 0.0
        %1760 = vmatpush1.msra.mxu0 0.0
        %1761 = vmatprep.subr.mxu0 0.0
        %1762 = vmatpush1.msra.mxu0 0.0
        %1763 = vmatprep.subr.mxu0 0.0
        %1764 = vmatpush1.msra.mxu0 0.0
        %1765 = vmatprep.subr.mxu0 0.0
        %1766 = vmatpush1.msra.mxu0 0.0
        %1767 = vmatprep.subr.mxu0 0.0
        %1768 = vmatpush1.msra.mxu0 0.0
        %1769 = vmatprep.subr.mxu0 0.0
        %1770 = vmatpush1.msra.mxu0 0.0
        %1771 = vmatprep.subr.mxu0 0.0
        %1772 = vmatpush1.msra.mxu0 0.0
        %1773 = vmatprep.subr.mxu0 0.0
        %1774 = vmatpush1.msra.mxu0 0.0
        %1775 = vmatprep.subr.mxu0 0.0
        %1776 = vmatpush1.msra.mxu0 0.0
        %1777 = vmatprep.subr.mxu0 0.0
        %1778 = vmatpush1.msra.mxu0 0.0
        %1779 = vmatprep.subr.mxu0 0.0
        %1780 = vmatpush1.msra.mxu0 0.0
        %1781 = vmatprep.subr.mxu0 0.0
        %1782 = vmatpush1.msra.mxu0 0.0
        %1783 = vmatprep.subr.mxu0 0.0
        %1784 = vmatpush1.msra.mxu0 0.0
        %1785 = vmatprep.subr.mxu0 0.0
        %1786 = vmatpush1.msra.mxu0 0.0
        %1787 = vmatprep.subr.mxu0 0.0
        %1788 = vmatpush1.msra.mxu0 0.0
        %1789 = vmatprep.subr.mxu0 0.0
        %1790 = vmatpush1.msra.mxu0 0.0
        %1791 = vmatprep.subr.mxu0 0.0
        %1792 = vmatpush1.msra.mxu0 0.0
        %1793 = vmatprep.mubr.f32.mxu0 0.0
        %1794 = vmatmul.mubr.f32.gmra.mrb[0].mxu0 %v1727
        %v1795 = vpop.f32.mrb[0].mxu0
        %v1796 = vadd.f32 0.0, %v1795
        %v1797 = vpop.f32.mrb[0].mxu0
        %1798 = vdwg.mxu0
        %1799 = vrot.lane.b32.xlu0 %v423, 112
        %v1800 = vpop.permute.xlu0 %1799
        %1801 = vrot.lane.b32.xlu0 %v423, 80
        %v1802 = vpop.permute.xlu0 %1801
        %v1803 = vsel %vm436, %v1800, 0
        %v1805 = vsel %vm436, %v1802, 0
        %1807 = vmatprep.subr.mxu0 0.0
        %1808 = vmatpush1.xpose.msra.mxu0 %v1805
        %1809 = vmatprep.subr.mxu0 0.0
        %1810 = vmatpush1.xpose.msra.mxu0 0.0
        %1811 = vmatprep.subr.mxu0 0.0
        %1812 = vmatpush1.xpose.msra.mxu0 0.0
        %1813 = vmatprep.subr.mxu0 0.0
        %1814 = vmatpush1.xpose.msra.mxu0 0.0
        %1815 = vmatprep.subr.mxu0 0.0
        %1816 = vmatpush1.xpose.msra.mxu0 0.0
        %1817 = vmatprep.subr.mxu0 0.0
        %1818 = vmatpush1.xpose.msra.mxu0 0.0
        %1819 = vmatprep.subr.mxu0 0.0
        %1820 = vmatpush1.xpose.msra.mxu0 0.0
        %1821 = vmatprep.subr.mxu0 0.0
        %1822 = vmatpush1.xpose.msra.mxu0 0.0
        %1823 = vmatprep.subr.mxu0 0.0
        %1824 = vmatpush1.xpose.msra.mxu0 0.0
        %1825 = vmatprep.subr.mxu0 0.0
        %1826 = vmatpush1.xpose.msra.mxu0 0.0
        %1827 = vmatprep.subr.mxu0 0.0
        %1828 = vmatpush1.xpose.msra.mxu0 0.0
        %1829 = vmatprep.subr.mxu0 0.0
        %1830 = vmatpush1.xpose.msra.mxu0 0.0
        %1831 = vmatprep.subr.mxu0 0.0
        %1832 = vmatpush1.xpose.msra.mxu0 0.0
        %1833 = vmatprep.subr.mxu0 0.0
        %1834 = vmatpush1.xpose.msra.mxu0 0.0
        %1835 = vmatprep.subr.mxu0 0.0
        %1836 = vmatpush1.xpose.msra.mxu0 0.0
        %1837 = vmatprep.subr.mxu0 0.0
        %1838 = vmatpush1.xpose.msra.mxu0 0.0
        %1839 = vmatprep.subr.mxu0 0.0
        %1840 = vmatpush1.xpose.msra.mxu0 0.0
        %1841 = vmatprep.subr.mxu0 0.0
        %1842 = vmatpush1.xpose.msra.mxu0 0.0
        %1843 = vmatprep.subr.mxu0 0.0
        %1844 = vmatpush1.xpose.msra.mxu0 0.0
        %1845 = vmatprep.subr.mxu0 0.0
        %1846 = vmatpush1.xpose.msra.mxu0 0.0
        %1847 = vmatprep.subr.mxu0 0.0
        %1848 = vmatpush1.xpose.msra.mxu0 0.0
        %1849 = vmatprep.subr.mxu0 0.0
        %1850 = vmatpush1.xpose.msra.mxu0 0.0
        %1851 = vmatprep.subr.mxu0 0.0
        %1852 = vmatpush1.xpose.msra.mxu0 0.0
        %1853 = vmatprep.subr.mxu0 0.0
        %1854 = vmatpush1.xpose.msra.mxu0 0.0
        %1855 = vmatprep.subr.mxu0 0.0
        %1856 = vmatpush1.xpose.msra.mxu0 0.0
        %1857 = vmatprep.subr.mxu0 0.0
        %1858 = vmatpush1.xpose.msra.mxu0 0.0
        %1859 = vmatprep.subr.mxu0 0.0
        %1860 = vmatpush1.xpose.msra.mxu0 0.0
        %1861 = vmatprep.subr.mxu0 0.0
        %1862 = vmatpush1.xpose.msra.mxu0 0.0
        %1863 = vmatprep.subr.mxu0 0.0
        %1864 = vmatpush1.xpose.msra.mxu0 0.0
        %1865 = vmatprep.subr.mxu0 0.0
        %1866 = vmatpush1.xpose.msra.mxu0 0.0
        %1867 = vmatprep.subr.mxu0 0.0
        %1868 = vmatpush1.xpose.msra.mxu0 0.0
        %1869 = vmatprep.subr.mxu0 0.0
        %1870 = vmatpush1.xpose.msra.mxu0 0.0
        %1871 = vmatprep.mubr.f32.mxu0 0.0
        %1872 = vmatmul.mubr.f32.gmra.mrb[0].mxu0 %v1803
        %v1873 = vpop.f32.mrb[0].mxu0
        %v1874 = vadd.f32 0.0, %v1873
        %v1875 = vpop.f32.mrb[0].mxu0
        %1876 = vdwg.mxu0
        %1877 = vrot.lane.b32.xlu0 %v428, 112
        %v1878 = vpop.permute.xlu0 %1877
        %1879 = vrot.lane.b32.xlu0 %v428, 80
        %v1880 = vpop.permute.xlu0 %1879
        %v1881 = vsel %vm436, %v1878, 0
        %v1883 = vsel %vm436, %v1880, 0
        %1885 = vmatprep.subr.mxu0 0.0
        %1886 = vmatpush1.xpose.msra.mxu0 %v1883
        %1887 = vmatprep.subr.mxu0 0.0
        %1888 = vmatpush1.xpose.msra.mxu0 0.0
        %1889 = vmatprep.subr.mxu0 0.0
        %1890 = vmatpush1.xpose.msra.mxu0 0.0
        %1891 = vmatprep.subr.mxu0 0.0
        %1892 = vmatpush1.xpose.msra.mxu0 0.0
        %1893 = vmatprep.subr.mxu0 0.0
        %1894 = vmatpush1.xpose.msra.mxu0 0.0
        %1895 = vmatprep.subr.mxu0 0.0
        %1896 = vmatpush1.xpose.msra.mxu0 0.0
        %1897 = vmatprep.subr.mxu0 0.0
        %1898 = vmatpush1.xpose.msra.mxu0 0.0
        %1899 = vmatprep.subr.mxu0 0.0
        %1900 = vmatpush1.xpose.msra.mxu0 0.0
        %1901 = vmatprep.subr.mxu0 0.0
        %1902 = vmatpush1.xpose.msra.mxu0 0.0
        %1903 = vmatprep.subr.mxu0 0.0
        %1904 = vmatpush1.xpose.msra.mxu0 0.0
        %1905 = vmatprep.subr.mxu0 0.0
        %1906 = vmatpush1.xpose.msra.mxu0 0.0
        %1907 = vmatprep.subr.mxu0 0.0
        %1908 = vmatpush1.xpose.msra.mxu0 0.0
        %1909 = vmatprep.subr.mxu0 0.0
        %1910 = vmatpush1.xpose.msra.mxu0 0.0
        %1911 = vmatprep.subr.mxu0 0.0
        %1912 = vmatpush1.xpose.msra.mxu0 0.0
        %1913 = vmatprep.subr.mxu0 0.0
        %1914 = vmatpush1.xpose.msra.mxu0 0.0
        %1915 = vmatprep.subr.mxu0 0.0
        %1916 = vmatpush1.xpose.msra.mxu0 0.0
        %1917 = vmatprep.subr.mxu0 0.0
        %1918 = vmatpush1.xpose.msra.mxu0 0.0
        %1919 = vmatprep.subr.mxu0 0.0
        %1920 = vmatpush1.xpose.msra.mxu0 0.0
        %1921 = vmatprep.subr.mxu0 0.0
        %1922 = vmatpush1.xpose.msra.mxu0 0.0
        %1923 = vmatprep.subr.mxu0 0.0
        %1924 = vmatpush1.xpose.msra.mxu0 0.0
        %1925 = vmatprep.subr.mxu0 0.0
        %1926 = vmatpush1.xpose.msra.mxu0 0.0
        %1927 = vmatprep.subr.mxu0 0.0
        %1928 = vmatpush1.xpose.msra.mxu0 0.0
        %1929 = vmatprep.subr.mxu0 0.0
        %1930 = vmatpush1.xpose.msra.mxu0 0.0
        %1931 = vmatprep.subr.mxu0 0.0
        %1932 = vmatpush1.xpose.msra.mxu0 0.0
        %1933 = vmatprep.subr.mxu0 0.0
        %1934 = vmatpush1.xpose.msra.mxu0 0.0
        %1935 = vmatprep.subr.mxu0 0.0
        %1936 = vmatpush1.xpose.msra.mxu0 0.0
        %1937 = vmatprep.subr.mxu0 0.0
        %1938 = vmatpush1.xpose.msra.mxu0 0.0
        %1939 = vmatprep.subr.mxu0 0.0
        %1940 = vmatpush1.xpose.msra.mxu0 0.0
        %1941 = vmatprep.subr.mxu0 0.0
        %1942 = vmatpush1.xpose.msra.mxu0 0.0
        %1943 = vmatprep.subr.mxu0 0.0
        %1944 = vmatpush1.xpose.msra.mxu0 0.0
        %1945 = vmatprep.subr.mxu0 0.0
        %1946 = vmatpush1.xpose.msra.mxu0 0.0
        %1947 = vmatprep.subr.mxu0 0.0
        %1948 = vmatpush1.xpose.msra.mxu0 0.0
        %1949 = vmatprep.mubr.f32.mxu0 0.0
        %1950 = vmatmul.mubr.f32.gmra.mrb[0].mxu0 %v1881
        %v1951 = vpop.f32.mrb[0].mxu0
        %v1952 = vadd.f32 0.0, %v1951
        %v1953 = vpop.f32.mrb[0].mxu0
        %1954 = vdwg.mxu0
        %v1955 = vsel %vm600, %v1874, -1e+30
        %v1956 = vsel %vm601, %v1952, -1e+30
        %v1957 = vsel %vm604, %v1955, -inf
        %1958 = vmax.xlane.f32.xlu0 %v1957
        %v1959 = vpop.xlane.xlu0 %1958
        %v1960 = vsel %vm604, %v1956, -inf
        %1961 = vmax.xlane.f32.xlu0 %v1960
        %v1962 = vpop.xlane.xlu0 %1961
        %v1963 = vsub.f32 %v1955, %v1959
        %v1964 = vsub.f32 %v1956, %v1962
        %v1965 = vmul.f32 %v1963, 1.442695
        %v1966 = vpow.pop %v1965
        %v1967 = vmul.f32 %v1964, 1.442695
        %v1968 = vpow.pop %v1967
        %v1969 = vsel %vm604, %v1966, 0.0
        %1970 = vadd.xlane.f32.xlu0 %v1969
        %v1971 = vpop.xlane.xlu0 %1970
        %v1972 = vsel %vm604, %v1968, 0.0
        %1973 = vadd.xlane.f32.xlu0 %v1972
        %v1974 = vpop.xlane.xlu0 %1973
        %v1975 = vrcp.pop %v1971
        %v1976 = vrcp.pop %v1974
        %v1977 = vmul.f32 %v1971, %v1975
        %v1978 = vmul.f32 %v1974, %v1976
        %v1979 = vsub.f32 2.0, %v1977
        %v1980 = vsub.f32 2.0, %v1978
        %v1981 = vmul.f32 %v1975, %v1979
        %v1982 = vmul.f32 %v1976, %v1980
        %v1983 = vmul.f32 %v1966, %v1981
        %v1984 = vmul.f32 %v1968, %v1982
        %1985 = vrot.lane.b32.xlu0 %v423, 48
        %v1986 = vpop.permute.xlu0 %1985
        %v1989 = vsel %vm604, %v1983, 0
        %1991 = vmatprep.subr.mxu0 0.0
        %1992 = vmatpush1.msra.mxu0 %v1986
        %1993 = vmatprep.subr.mxu0 0.0
        %1994 = vmatpush1.msra.mxu0 0.0
        %1995 = vmatprep.subr.mxu0 0.0
        %1996 = vmatpush1.msra.mxu0 0.0
        %1997 = vmatprep.subr.mxu0 0.0
        %1998 = vmatpush1.msra.mxu0 0.0
        %1999 = vmatprep.subr.mxu0 0.0
        %2000 = vmatpush1.msra.mxu0 0.0
        %2001 = vmatprep.subr.mxu0 0.0
        %2002 = vmatpush1.msra.mxu0 0.0
        %2003 = vmatprep.subr.mxu0 0.0
        %2004 = vmatpush1.msra.mxu0 0.0
        %2005 = vmatprep.subr.mxu0 0.0
        %2006 = vmatpush1.msra.mxu0 0.0
        %2007 = vmatprep.subr.mxu0 0.0
        %2008 = vmatpush1.msra.mxu0 0.0
        %2009 = vmatprep.subr.mxu0 0.0
        %2010 = vmatpush1.msra.mxu0 0.0
        %2011 = vmatprep.subr.mxu0 0.0
        %2012 = vmatpush1.msra.mxu0 0.0
        %2013 = vmatprep.subr.mxu0 0.0
        %2014 = vmatpush1.msra.mxu0 0.0
        %2015 = vmatprep.subr.mxu0 0.0
        %2016 = vmatpush1.msra.mxu0 0.0
        %2017 = vmatprep.subr.mxu0 0.0
        %2018 = vmatpush1.msra.mxu0 0.0
        %2019 = vmatprep.subr.mxu0 0.0
        %2020 = vmatpush1.msra.mxu0 0.0
        %2021 = vmatprep.subr.mxu0 0.0
        %2022 = vmatpush1.msra.mxu0 0.0
        %2023 = vmatprep.subr.mxu0 0.0
        %2024 = vmatpush1.msra.mxu0 0.0
        %2025 = vmatprep.subr.mxu0 0.0
        %2026 = vmatpush1.msra.mxu0 0.0
        %2027 = vmatprep.subr.mxu0 0.0
        %2028 = vmatpush1.msra.mxu0 0.0
        %2029 = vmatprep.subr.mxu0 0.0
        %2030 = vmatpush1.msra.mxu0 0.0
        %2031 = vmatprep.subr.mxu0 0.0
        %2032 = vmatpush1.msra.mxu0 0.0
        %2033 = vmatprep.subr.mxu0 0.0
        %2034 = vmatpush1.msra.mxu0 0.0
        %2035 = vmatprep.subr.mxu0 0.0
        %2036 = vmatpush1.msra.mxu0 0.0
        %2037 = vmatprep.subr.mxu0 0.0
        %2038 = vmatpush1.msra.mxu0 0.0
        %2039 = vmatprep.subr.mxu0 0.0
        %2040 = vmatpush1.msra.mxu0 0.0
        %2041 = vmatprep.subr.mxu0 0.0
        %2042 = vmatpush1.msra.mxu0 0.0
        %2043 = vmatprep.subr.mxu0 0.0
        %2044 = vmatpush1.msra.mxu0 0.0
        %2045 = vmatprep.subr.mxu0 0.0
        %2046 = vmatpush1.msra.mxu0 0.0
        %2047 = vmatprep.subr.mxu0 0.0
        %2048 = vmatpush1.msra.mxu0 0.0
        %2049 = vmatprep.subr.mxu0 0.0
        %2050 = vmatpush1.msra.mxu0 0.0
        %2051 = vmatprep.subr.mxu0 0.0
        %2052 = vmatpush1.msra.mxu0 0.0
        %2053 = vmatprep.subr.mxu0 0.0
        %2054 = vmatpush1.msra.mxu0 0.0
        %2055 = vmatprep.mubr.f32.mxu0 0.0
        %2056 = vmatmul.mubr.f32.gmra.mrb[0].mxu0 %v1989
        %v2057 = vpop.f32.mrb[0].mxu0
        %v2058 = vadd.f32 0.0, %v2057
        %v2059 = vpop.f32.mrb[0].mxu0
        %2060 = vdwg.mxu0
        %2061 = vrot.lane.b32.xlu0 %v428, 48
        %v2062 = vpop.permute.xlu0 %2061
        %v2065 = vsel %vm604, %v1984, 0
        %2067 = vmatprep.subr.mxu0 0.0
        %2068 = vmatpush1.msra.mxu0 %v2062
        %2069 = vmatprep.subr.mxu0 0.0
        %2070 = vmatpush1.msra.mxu0 0.0
        %2071 = vmatprep.subr.mxu0 0.0
        %2072 = vmatpush1.msra.mxu0 0.0
        %2073 = vmatprep.subr.mxu0 0.0
        %2074 = vmatpush1.msra.mxu0 0.0
        %2075 = vmatprep.subr.mxu0 0.0
        %2076 = vmatpush1.msra.mxu0 0.0
        %2077 = vmatprep.subr.mxu0 0.0
        %2078 = vmatpush1.msra.mxu0 0.0
        %2079 = vmatprep.subr.mxu0 0.0
        %2080 = vmatpush1.msra.mxu0 0.0
        %2081 = vmatprep.subr.mxu0 0.0
        %2082 = vmatpush1.msra.mxu0 0.0
        %2083 = vmatprep.subr.mxu0 0.0
        %2084 = vmatpush1.msra.mxu0 0.0
        %2085 = vmatprep.subr.mxu0 0.0
        %2086 = vmatpush1.msra.mxu0 0.0
        %2087 = vmatprep.subr.mxu0 0.0
        %2088 = vmatpush1.msra.mxu0 0.0
        %2089 = vmatprep.subr.mxu0 0.0
        %2090 = vmatpush1.msra.mxu0 0.0
        %2091 = vmatprep.subr.mxu0 0.0
        %2092 = vmatpush1.msra.mxu0 0.0
        %2093 = vmatprep.subr.mxu0 0.0
        %2094 = vmatpush1.msra.mxu0 0.0
        %2095 = vmatprep.subr.mxu0 0.0
        %2096 = vmatpush1.msra.mxu0 0.0
        %2097 = vmatprep.subr.mxu0 0.0
        %2098 = vmatpush1.msra.mxu0 0.0
        %2099 = vmatprep.subr.mxu0 0.0
        %2100 = vmatpush1.msra.mxu0 0.0
        %2101 = vmatprep.subr.mxu0 0.0
        %2102 = vmatpush1.msra.mxu0 0.0
        %2103 = vmatprep.subr.mxu0 0.0
        %2104 = vmatpush1.msra.mxu0 0.0
        %2105 = vmatprep.subr.mxu0 0.0
        %2106 = vmatpush1.msra.mxu0 0.0
        %2107 = vmatprep.subr.mxu0 0.0
        %2108 = vmatpush1.msra.mxu0 0.0
        %2109 = vmatprep.subr.mxu0 0.0
        %2110 = vmatpush1.msra.mxu0 0.0
        %2111 = vmatprep.subr.mxu0 0.0
        %2112 = vmatpush1.msra.mxu0 0.0
        %2113 = vmatprep.subr.mxu0 0.0
        %2114 = vmatpush1.msra.mxu0 0.0
        %2115 = vmatprep.subr.mxu0 0.0
        %2116 = vmatpush1.msra.mxu0 0.0
        %2117 = vmatprep.subr.mxu0 0.0
        %2118 = vmatpush1.msra.mxu0 0.0
        %2119 = vmatprep.subr.mxu0 0.0
        %2120 = vmatpush1.msra.mxu0 0.0
        %2121 = vmatprep.subr.mxu0 0.0
        %2122 = vmatpush1.msra.mxu0 0.0
        %2123 = vmatprep.subr.mxu0 0.0
        %2124 = vmatpush1.msra.mxu0 0.0
        %2125 = vmatprep.subr.mxu0 0.0
        %2126 = vmatpush1.msra.mxu0 0.0
        %2127 = vmatprep.subr.mxu0 0.0
        %2128 = vmatpush1.msra.mxu0 0.0
        %2129 = vmatprep.subr.mxu0 0.0
        %2130 = vmatpush1.msra.mxu0 0.0
        %2131 = vmatprep.mubr.f32.mxu0 0.0
        %2132 = vmatmul.mubr.f32.gmra.mrb[0].mxu0 %v2065
        %v2133 = vpop.f32.mrb[0].mxu0
        %v2134 = vadd.f32 0.0, %v2133
        %v2135 = vpop.f32.mrb[0].mxu0
        %2136 = vdwg.mxu0
        %2137 = vrot.lane.b32.xlu0 %v423, 108
        %v2138 = vpop.permute.xlu0 %2137
        %2139 = vrot.lane.b32.xlu0 %v423, 76
        %v2140 = vpop.permute.xlu0 %2139
        %v2141 = vsel %vm436, %v2138, 0
        %v2143 = vsel %vm436, %v2140, 0
        %2145 = vmatprep.subr.mxu0 0.0
        %2146 = vmatpush1.xpose.msra.mxu0 %v2143
        %2147 = vmatprep.subr.mxu0 0.0
        %2148 = vmatpush1.xpose.msra.mxu0 0.0
        %2149 = vmatprep.subr.mxu0 0.0
        %2150 = vmatpush1.xpose.msra.mxu0 0.0
        %2151 = vmatprep.subr.mxu0 0.0
        %2152 = vmatpush1.xpose.msra.mxu0 0.0
        %2153 = vmatprep.subr.mxu0 0.0
        %2154 = vmatpush1.xpose.msra.mxu0 0.0
        %2155 = vmatprep.subr.mxu0 0.0
        %2156 = vmatpush1.xpose.msra.mxu0 0.0
        %2157 = vmatprep.subr.mxu0 0.0
        %2158 = vmatpush1.xpose.msra.mxu0 0.0
        %2159 = vmatprep.subr.mxu0 0.0
        %2160 = vmatpush1.xpose.msra.mxu0 0.0
        %2161 = vmatprep.subr.mxu0 0.0
        %2162 = vmatpush1.xpose.msra.mxu0 0.0
        %2163 = vmatprep.subr.mxu0 0.0
        %2164 = vmatpush1.xpose.msra.mxu0 0.0
        %2165 = vmatprep.subr.mxu0 0.0
        %2166 = vmatpush1.xpose.msra.mxu0 0.0
        %2167 = vmatprep.subr.mxu0 0.0
        %2168 = vmatpush1.xpose.msra.mxu0 0.0
        %2169 = vmatprep.subr.mxu0 0.0
        %2170 = vmatpush1.xpose.msra.mxu0 0.0
        %2171 = vmatprep.subr.mxu0 0.0
        %2172 = vmatpush1.xpose.msra.mxu0 0.0
        %2173 = vmatprep.subr.mxu0 0.0
        %2174 = vmatpush1.xpose.msra.mxu0 0.0
        %2175 = vmatprep.subr.mxu0 0.0
        %2176 = vmatpush1.xpose.msra.mxu0 0.0
        %2177 = vmatprep.subr.mxu0 0.0
        %2178 = vmatpush1.xpose.msra.mxu0 0.0
        %2179 = vmatprep.subr.mxu0 0.0
        %2180 = vmatpush1.xpose.msra.mxu0 0.0
        %2181 = vmatprep.subr.mxu0 0.0
        %2182 = vmatpush1.xpose.msra.mxu0 0.0
        %2183 = vmatprep.subr.mxu0 0.0
        %2184 = vmatpush1.xpose.msra.mxu0 0.0
        %2185 = vmatprep.subr.mxu0 0.0
        %2186 = vmatpush1.xpose.msra.mxu0 0.0
        %2187 = vmatprep.subr.mxu0 0.0
        %2188 = vmatpush1.xpose.msra.mxu0 0.0
        %2189 = vmatprep.subr.mxu0 0.0
        %2190 = vmatpush1.xpose.msra.mxu0 0.0
        %2191 = vmatprep.subr.mxu0 0.0
        %2192 = vmatpush1.xpose.msra.mxu0 0.0
        %2193 = vmatprep.subr.mxu0 0.0
        %2194 = vmatpush1.xpose.msra.mxu0 0.0
        %2195 = vmatprep.subr.mxu0 0.0
        %2196 = vmatpush1.xpose.msra.mxu0 0.0
        %2197 = vmatprep.subr.mxu0 0.0
        %2198 = vmatpush1.xpose.msra.mxu0 0.0
        %2199 = vmatprep.subr.mxu0 0.0
        %2200 = vmatpush1.xpose.msra.mxu0 0.0
        %2201 = vmatprep.subr.mxu0 0.0
        %2202 = vmatpush1.xpose.msra.mxu0 0.0
        %2203 = vmatprep.subr.mxu0 0.0
        %2204 = vmatpush1.xpose.msra.mxu0 0.0
        %2205 = vmatprep.subr.mxu0 0.0
        %2206 = vmatpush1.xpose.msra.mxu0 0.0
        %2207 = vmatprep.subr.mxu0 0.0
        %2208 = vmatpush1.xpose.msra.mxu0 0.0
        %2209 = vmatprep.mubr.f32.mxu0 0.0
        %2210 = vmatmul.mubr.f32.gmra.mrb[0].mxu0 %v2141
        %v2211 = vpop.f32.mrb[0].mxu0
        %v2212 = vadd.f32 0.0, %v2211
        %v2213 = vpop.f32.mrb[0].mxu0
        %2214 = vdwg.mxu0
        %2215 = vrot.lane.b32.xlu0 %v428, 108
        %v2216 = vpop.permute.xlu0 %2215
        %2217 = vrot.lane.b32.xlu0 %v428, 76
        %v2218 = vpop.permute.xlu0 %2217
        %v2219 = vsel %vm436, %v2216, 0
        %v2221 = vsel %vm436, %v2218, 0
        %2223 = vmatprep.subr.mxu0 0.0
        %2224 = vmatpush1.xpose.msra.mxu0 %v2221
        %2225 = vmatprep.subr.mxu0 0.0
        %2226 = vmatpush1.xpose.msra.mxu0 0.0
        %2227 = vmatprep.subr.mxu0 0.0
        %2228 = vmatpush1.xpose.msra.mxu0 0.0
        %2229 = vmatprep.subr.mxu0 0.0
        %2230 = vmatpush1.xpose.msra.mxu0 0.0
        %2231 = vmatprep.subr.mxu0 0.0
        %2232 = vmatpush1.xpose.msra.mxu0 0.0
        %2233 = vmatprep.subr.mxu0 0.0
        %2234 = vmatpush1.xpose.msra.mxu0 0.0
        %2235 = vmatprep.subr.mxu0 0.0
        %2236 = vmatpush1.xpose.msra.mxu0 0.0
        %2237 = vmatprep.subr.mxu0 0.0
        %2238 = vmatpush1.xpose.msra.mxu0 0.0
        %2239 = vmatprep.subr.mxu0 0.0
        %2240 = vmatpush1.xpose.msra.mxu0 0.0
        %2241 = vmatprep.subr.mxu0 0.0
        %2242 = vmatpush1.xpose.msra.mxu0 0.0
        %2243 = vmatprep.subr.mxu0 0.0
        %2244 = vmatpush1.xpose.msra.mxu0 0.0
        %2245 = vmatprep.subr.mxu0 0.0
        %2246 = vmatpush1.xpose.msra.mxu0 0.0
        %2247 = vmatprep.subr.mxu0 0.0
        %2248 = vmatpush1.xpose.msra.mxu0 0.0
        %2249 = vmatprep.subr.mxu0 0.0
        %2250 = vmatpush1.xpose.msra.mxu0 0.0
        %2251 = vmatprep.subr.mxu0 0.0
        %2252 = vmatpush1.xpose.msra.mxu0 0.0
        %2253 = vmatprep.subr.mxu0 0.0
        %2254 = vmatpush1.xpose.msra.mxu0 0.0
        %2255 = vmatprep.subr.mxu0 0.0
        %2256 = vmatpush1.xpose.msra.mxu0 0.0
        %2257 = vmatprep.subr.mxu0 0.0
        %2258 = vmatpush1.xpose.msra.mxu0 0.0
        %2259 = vmatprep.subr.mxu0 0.0
        %2260 = vmatpush1.xpose.msra.mxu0 0.0
        %2261 = vmatprep.subr.mxu0 0.0
        %2262 = vmatpush1.xpose.msra.mxu0 0.0
        %2263 = vmatprep.subr.mxu0 0.0
        %2264 = vmatpush1.xpose.msra.mxu0 0.0
        %2265 = vmatprep.subr.mxu0 0.0
        %2266 = vmatpush1.xpose.msra.mxu0 0.0
        %2267 = vmatprep.subr.mxu0 0.0
        %2268 = vmatpush1.xpose.msra.mxu0 0.0
        %2269 = vmatprep.subr.mxu0 0.0
        %2270 = vmatpush1.xpose.msra.mxu0 0.0
        %2271 = vmatprep.subr.mxu0 0.0
        %2272 = vmatpush1.xpose.msra.mxu0 0.0
        %2273 = vmatprep.subr.mxu0 0.0
        %2274 = vmatpush1.xpose.msra.mxu0 0.0
        %2275 = vmatprep.subr.mxu0 0.0
        %2276 = vmatpush1.xpose.msra.mxu0 0.0
        %2277 = vmatprep.subr.mxu0 0.0
        %2278 = vmatpush1.xpose.msra.mxu0 0.0
        %2279 = vmatprep.subr.mxu0 0.0
        %2280 = vmatpush1.xpose.msra.mxu0 0.0
        %2281 = vmatprep.subr.mxu0 0.0
        %2282 = vmatpush1.xpose.msra.mxu0 0.0
        %2283 = vmatprep.subr.mxu0 0.0
        %2284 = vmatpush1.xpose.msra.mxu0 0.0
        %2285 = vmatprep.subr.mxu0 0.0
        %2286 = vmatpush1.xpose.msra.mxu0 0.0
        %2287 = vmatprep.mubr.f32.mxu0 0.0
        %2288 = vmatmul.mubr.f32.gmra.mrb[0].mxu0 %v2219
        %v2289 = vpop.f32.mrb[0].mxu0
        %v2290 = vadd.f32 0.0, %v2289
        %v2291 = vpop.f32.mrb[0].mxu0
        %2292 = vdwg.mxu0
        %v2293 = vsel %vm600, %v2212, -1e+30
        %v2294 = vsel %vm601, %v2290, -1e+30
        %v2295 = vsel %vm604, %v2293, -inf
        %2296 = vmax.xlane.f32.xlu0 %v2295
        %v2297 = vpop.xlane.xlu0 %2296
        %v2298 = vsel %vm604, %v2294, -inf
        %2299 = vmax.xlane.f32.xlu0 %v2298
        %v2300 = vpop.xlane.xlu0 %2299
        %v2301 = vsub.f32 %v2293, %v2297
        %v2302 = vsub.f32 %v2294, %v2300
        %v2303 = vmul.f32 %v2301, 1.442695
        %v2304 = vpow.pop %v2303
        %v2305 = vmul.f32 %v2302, 1.442695
        %v2306 = vpow.pop %v2305
        %v2307 = vsel %vm604, %v2304, 0.0
        %2308 = vadd.xlane.f32.xlu0 %v2307
        %v2309 = vpop.xlane.xlu0 %2308
        %v2310 = vsel %vm604, %v2306, 0.0
        %2311 = vadd.xlane.f32.xlu0 %v2310
        %v2312 = vpop.xlane.xlu0 %2311
        %v2313 = vrcp.pop %v2309
        %v2314 = vrcp.pop %v2312
        %v2315 = vmul.f32 %v2309, %v2313
        %v2316 = vmul.f32 %v2312, %v2314
        %v2317 = vsub.f32 2.0, %v2315
        %v2318 = vsub.f32 2.0, %v2316
        %v2319 = vmul.f32 %v2313, %v2317
        %v2320 = vmul.f32 %v2314, %v2318
        %v2321 = vmul.f32 %v2304, %v2319
        %v2322 = vmul.f32 %v2306, %v2320
        %2323 = vrot.lane.b32.xlu0 %v423, 44
        %v2324 = vpop.permute.xlu0 %2323
        %v2327 = vsel %vm604, %v2321, 0
        %2329 = vmatprep.subr.mxu0 0.0
        %2330 = vmatpush1.msra.mxu0 %v2324
        %2331 = vmatprep.subr.mxu0 0.0
        %2332 = vmatpush1.msra.mxu0 0.0
        %2333 = vmatprep.subr.mxu0 0.0
        %2334 = vmatpush1.msra.mxu0 0.0
        %2335 = vmatprep.subr.mxu0 0.0
        %2336 = vmatpush1.msra.mxu0 0.0
        %2337 = vmatprep.subr.mxu0 0.0
        %2338 = vmatpush1.msra.mxu0 0.0
        %2339 = vmatprep.subr.mxu0 0.0
        %2340 = vmatpush1.msra.mxu0 0.0
        %2341 = vmatprep.subr.mxu0 0.0
        %2342 = vmatpush1.msra.mxu0 0.0
        %2343 = vmatprep.subr.mxu0 0.0
        %2344 = vmatpush1.msra.mxu0 0.0
        %2345 = vmatprep.subr.mxu0 0.0
        %2346 = vmatpush1.msra.mxu0 0.0
        %2347 = vmatprep.subr.mxu0 0.0
        %2348 = vmatpush1.msra.mxu0 0.0
        %2349 = vmatprep.subr.mxu0 0.0
        %2350 = vmatpush1.msra.mxu0 0.0
        %2351 = vmatprep.subr.mxu0 0.0
        %2352 = vmatpush1.msra.mxu0 0.0
        %2353 = vmatprep.subr.mxu0 0.0
        %2354 = vmatpush1.msra.mxu0 0.0
        %2355 = vmatprep.subr.mxu0 0.0
        %2356 = vmatpush1.msra.mxu0 0.0
        %2357 = vmatprep.subr.mxu0 0.0
        %2358 = vmatpush1.msra.mxu0 0.0
        %2359 = vmatprep.subr.mxu0 0.0
        %2360 = vmatpush1.msra.mxu0 0.0
        %2361 = vmatprep.subr.mxu0 0.0
        %2362 = vmatpush1.msra.mxu0 0.0
        %2363 = vmatprep.subr.mxu0 0.0
        %2364 = vmatpush1.msra.mxu0 0.0
        %2365 = vmatprep.subr.mxu0 0.0
        %2366 = vmatpush1.msra.mxu0 0.0
        %2367 = vmatprep.subr.mxu0 0.0
        %2368 = vmatpush1.msra.mxu0 0.0
        %2369 = vmatprep.subr.mxu0 0.0
        %2370 = vmatpush1.msra.mxu0 0.0
        %2371 = vmatprep.subr.mxu0 0.0
        %2372 = vmatpush1.msra.mxu0 0.0
        %2373 = vmatprep.subr.mxu0 0.0
        %2374 = vmatpush1.msra.mxu0 0.0
        %2375 = vmatprep.subr.mxu0 0.0
        %2376 = vmatpush1.msra.mxu0 0.0
        %2377 = vmatprep.subr.mxu0 0.0
        %2378 = vmatpush1.msra.mxu0 0.0
        %2379 = vmatprep.subr.mxu0 0.0
        %2380 = vmatpush1.msra.mxu0 0.0
        %2381 = vmatprep.subr.mxu0 0.0
        %2382 = vmatpush1.msra.mxu0 0.0
        %2383 = vmatprep.subr.mxu0 0.0
        %2384 = vmatpush1.msra.mxu0 0.0
        %2385 = vmatprep.subr.mxu0 0.0
        %2386 = vmatpush1.msra.mxu0 0.0
        %2387 = vmatprep.subr.mxu0 0.0
        %2388 = vmatpush1.msra.mxu0 0.0
        %2389 = vmatprep.subr.mxu0 0.0
        %2390 = vmatpush1.msra.mxu0 0.0
        %2391 = vmatprep.subr.mxu0 0.0
        %2392 = vmatpush1.msra.mxu0 0.0
        %2393 = vmatprep.mubr.f32.mxu0 0.0
        %2394 = vmatmul.mubr.f32.gmra.mrb[0].mxu0 %v2327
        %v2395 = vpop.f32.mrb[0].mxu0
        %v2396 = vadd.f32 0.0, %v2395
        %v2397 = vpop.f32.mrb[0].mxu0
        %2398 = vdwg.mxu0
        %2399 = vrot.lane.b32.xlu0 %v428, 44
        %v2400 = vpop.permute.xlu0 %2399
        %v2403 = vsel %vm604, %v2322, 0
        %2405 = vmatprep.subr.mxu0 0.0
        %2406 = vmatpush1.msra.mxu0 %v2400
        %2407 = vmatprep.subr.mxu0 0.0
        %2408 = vmatpush1.msra.mxu0 0.0
        %2409 = vmatprep.subr.mxu0 0.0
        %2410 = vmatpush1.msra.mxu0 0.0
        %2411 = vmatprep.subr.mxu0 0.0
        %2412 = vmatpush1.msra.mxu0 0.0
        %2413 = vmatprep.subr.mxu0 0.0
        %2414 = vmatpush1.msra.mxu0 0.0
        %2415 = vmatprep.subr.mxu0 0.0
        %2416 = vmatpush1.msra.mxu0 0.0
        %2417 = vmatprep.subr.mxu0 0.0
        %2418 = vmatpush1.msra.mxu0 0.0
        %2419 = vmatprep.subr.mxu0 0.0
        %2420 = vmatpush1.msra.mxu0 0.0
        %2421 = vmatprep.subr.mxu0 0.0
        %2422 = vmatpush1.msra.mxu0 0.0
        %2423 = vmatprep.subr.mxu0 0.0
        %2424 = vmatpush1.msra.mxu0 0.0
        %2425 = vmatprep.subr.mxu0 0.0
        %2426 = vmatpush1.msra.mxu0 0.0
        %2427 = vmatprep.subr.mxu0 0.0
        %2428 = vmatpush1.msra.mxu0 0.0
        %2429 = vmatprep.subr.mxu0 0.0
        %2430 = vmatpush1.msra.mxu0 0.0
        %2431 = vmatprep.subr.mxu0 0.0
        %2432 = vmatpush1.msra.mxu0 0.0
        %2433 = vmatprep.subr.mxu0 0.0
        %2434 = vmatpush1.msra.mxu0 0.0
        %2435 = vmatprep.subr.mxu0 0.0
        %2436 = vmatpush1.msra.mxu0 0.0
        %2437 = vmatprep.subr.mxu0 0.0
        %2438 = vmatpush1.msra.mxu0 0.0
        %2439 = vmatprep.subr.mxu0 0.0
        %2440 = vmatpush1.msra.mxu0 0.0
        %2441 = vmatprep.subr.mxu0 0.0
        %2442 = vmatpush1.msra.mxu0 0.0
        %2443 = vmatprep.subr.mxu0 0.0
        %2444 = vmatpush1.msra.mxu0 0.0
        %2445 = vmatprep.subr.mxu0 0.0
        %2446 = vmatpush1.msra.mxu0 0.0
        %2447 = vmatprep.subr.mxu0 0.0
        %2448 = vmatpush1.msra.mxu0 0.0
        %2449 = vmatprep.subr.mxu0 0.0
        %2450 = vmatpush1.msra.mxu0 0.0
        %2451 = vmatprep.subr.mxu0 0.0
        %2452 = vmatpush1.msra.mxu0 0.0
        %2453 = vmatprep.subr.mxu0 0.0
        %2454 = vmatpush1.msra.mxu0 0.0
        %2455 = vmatprep.subr.mxu0 0.0
        %2456 = vmatpush1.msra.mxu0 0.0
        %2457 = vmatprep.subr.mxu0 0.0
        %2458 = vmatpush1.msra.mxu0 0.0
        %2459 = vmatprep.subr.mxu0 0.0
        %2460 = vmatpush1.msra.mxu0 0.0
        %2461 = vmatprep.subr.mxu0 0.0
        %2462 = vmatpush1.msra.mxu0 0.0
        %2463 = vmatprep.subr.mxu0 0.0
        %2464 = vmatpush1.msra.mxu0 0.0
        %2465 = vmatprep.subr.mxu0 0.0
        %2466 = vmatpush1.msra.mxu0 0.0
        %2467 = vmatprep.subr.mxu0 0.0
        %2468 = vmatpush1.msra.mxu0 0.0
        %2469 = vmatprep.mubr.f32.mxu0 0.0
        %2470 = vmatmul.mubr.f32.gmra.mrb[0].mxu0 %v2403
        %v2471 = vpop.f32.mrb[0].mxu0
        %v2472 = vadd.f32 0.0, %v2471
        %v2473 = vpop.f32.mrb[0].mxu0
        %2474 = vdwg.mxu0
        %2475 = vrot.lane.b32.xlu0 %v423, 104
        %v2476 = vpop.permute.xlu0 %2475
        %2477 = vrot.lane.b32.xlu0 %v423, 72
        %v2478 = vpop.permute.xlu0 %2477
        %v2479 = vsel %vm436, %v2476, 0
        %v2481 = vsel %vm436, %v2478, 0
        %2483 = vmatprep.subr.mxu0 0.0
        %2484 = vmatpush1.xpose.msra.mxu0 %v2481
        %2485 = vmatprep.subr.mxu0 0.0
        %2486 = vmatpush1.xpose.msra.mxu0 0.0
        %2487 = vmatprep.subr.mxu0 0.0
        %2488 = vmatpush1.xpose.msra.mxu0 0.0
        %2489 = vmatprep.subr.mxu0 0.0
        %2490 = vmatpush1.xpose.msra.mxu0 0.0
        %2491 = vmatprep.subr.mxu0 0.0
        %2492 = vmatpush1.xpose.msra.mxu0 0.0
        %2493 = vmatprep.subr.mxu0 0.0
        %2494 = vmatpush1.xpose.msra.mxu0 0.0
        %2495 = vmatprep.subr.mxu0 0.0
        %2496 = vmatpush1.xpose.msra.mxu0 0.0
        %2497 = vmatprep.subr.mxu0 0.0
        %2498 = vmatpush1.xpose.msra.mxu0 0.0
        %2499 = vmatprep.subr.mxu0 0.0
        %2500 = vmatpush1.xpose.msra.mxu0 0.0
        %2501 = vmatprep.subr.mxu0 0.0
        %2502 = vmatpush1.xpose.msra.mxu0 0.0
        %2503 = vmatprep.subr.mxu0 0.0
        %2504 = vmatpush1.xpose.msra.mxu0 0.0
        %2505 = vmatprep.subr.mxu0 0.0
        %2506 = vmatpush1.xpose.msra.mxu0 0.0
        %2507 = vmatprep.subr.mxu0 0.0
        %2508 = vmatpush1.xpose.msra.mxu0 0.0
        %2509 = vmatprep.subr.mxu0 0.0
        %2510 = vmatpush1.xpose.msra.mxu0 0.0
        %2511 = vmatprep.subr.mxu0 0.0
        %2512 = vmatpush1.xpose.msra.mxu0 0.0
        %2513 = vmatprep.subr.mxu0 0.0
        %2514 = vmatpush1.xpose.msra.mxu0 0.0
        %2515 = vmatprep.subr.mxu0 0.0
        %2516 = vmatpush1.xpose.msra.mxu0 0.0
        %2517 = vmatprep.subr.mxu0 0.0
        %2518 = vmatpush1.xpose.msra.mxu0 0.0
        %2519 = vmatprep.subr.mxu0 0.0
        %2520 = vmatpush1.xpose.msra.mxu0 0.0
        %2521 = vmatprep.subr.mxu0 0.0
        %2522 = vmatpush1.xpose.msra.mxu0 0.0
        %2523 = vmatprep.subr.mxu0 0.0
        %2524 = vmatpush1.xpose.msra.mxu0 0.0
        %2525 = vmatprep.subr.mxu0 0.0
        %2526 = vmatpush1.xpose.msra.mxu0 0.0
        %2527 = vmatprep.subr.mxu0 0.0
        %2528 = vmatpush1.xpose.msra.mxu0 0.0
        %2529 = vmatprep.subr.mxu0 0.0
        %2530 = vmatpush1.xpose.msra.mxu0 0.0
        %2531 = vmatprep.subr.mxu0 0.0
        %2532 = vmatpush1.xpose.msra.mxu0 0.0
        %2533 = vmatprep.subr.mxu0 0.0
        %2534 = vmatpush1.xpose.msra.mxu0 0.0
        %2535 = vmatprep.subr.mxu0 0.0
        %2536 = vmatpush1.xpose.msra.mxu0 0.0
        %2537 = vmatprep.subr.mxu0 0.0
        %2538 = vmatpush1.xpose.msra.mxu0 0.0
        %2539 = vmatprep.subr.mxu0 0.0
        %2540 = vmatpush1.xpose.msra.mxu0 0.0
        %2541 = vmatprep.subr.mxu0 0.0
        %2542 = vmatpush1.xpose.msra.mxu0 0.0
        %2543 = vmatprep.subr.mxu0 0.0
        %2544 = vmatpush1.xpose.msra.mxu0 0.0
        %2545 = vmatprep.subr.mxu0 0.0
        %2546 = vmatpush1.xpose.msra.mxu0 0.0
        %2547 = vmatprep.mubr.f32.mxu0 0.0
        %2548 = vmatmul.mubr.f32.gmra.mrb[0].mxu0 %v2479
        %v2549 = vpop.f32.mrb[0].mxu0
        %v2550 = vadd.f32 0.0, %v2549
        %v2551 = vpop.f32.mrb[0].mxu0
        %2552 = vdwg.mxu0
        %2553 = vrot.lane.b32.xlu0 %v428, 104
        %v2554 = vpop.permute.xlu0 %2553
        %2555 = vrot.lane.b32.xlu0 %v428, 72
        %v2556 = vpop.permute.xlu0 %2555
        %v2557 = vsel %vm436, %v2554, 0
        %v2559 = vsel %vm436, %v2556, 0
        %2561 = vmatprep.subr.mxu0 0.0
        %2562 = vmatpush1.xpose.msra.mxu0 %v2559
        %2563 = vmatprep.subr.mxu0 0.0
        %2564 = vmatpush1.xpose.msra.mxu0 0.0
        %2565 = vmatprep.subr.mxu0 0.0
        %2566 = vmatpush1.xpose.msra.mxu0 0.0
        %2567 = vmatprep.subr.mxu0 0.0
        %2568 = vmatpush1.xpose.msra.mxu0 0.0
        %2569 = vmatprep.subr.mxu0 0.0
        %2570 = vmatpush1.xpose.msra.mxu0 0.0
        %2571 = vmatprep.subr.mxu0 0.0
        %2572 = vmatpush1.xpose.msra.mxu0 0.0
        %2573 = vmatprep.subr.mxu0 0.0
        %2574 = vmatpush1.xpose.msra.mxu0 0.0
        %2575 = vmatprep.subr.mxu0 0.0
        %2576 = vmatpush1.xpose.msra.mxu0 0.0
        %2577 = vmatprep.subr.mxu0 0.0
        %2578 = vmatpush1.xpose.msra.mxu0 0.0
        %2579 = vmatprep.subr.mxu0 0.0
        %2580 = vmatpush1.xpose.msra.mxu0 0.0
        %2581 = vmatprep.subr.mxu0 0.0
        %2582 = vmatpush1.xpose.msra.mxu0 0.0
        %2583 = vmatprep.subr.mxu0 0.0
        %2584 = vmatpush1.xpose.msra.mxu0 0.0
        %2585 = vmatprep.subr.mxu0 0.0
        %2586 = vmatpush1.xpose.msra.mxu0 0.0
        %2587 = vmatprep.subr.mxu0 0.0
        %2588 = vmatpush1.xpose.msra.mxu0 0.0
        %2589 = vmatprep.subr.mxu0 0.0
        %2590 = vmatpush1.xpose.msra.mxu0 0.0
        %2591 = vmatprep.subr.mxu0 0.0
        %2592 = vmatpush1.xpose.msra.mxu0 0.0
        %2593 = vmatprep.subr.mxu0 0.0
        %2594 = vmatpush1.xpose.msra.mxu0 0.0
        %2595 = vmatprep.subr.mxu0 0.0
        %2596 = vmatpush1.xpose.msra.mxu0 0.0
        %2597 = vmatprep.subr.mxu0 0.0
        %2598 = vmatpush1.xpose.msra.mxu0 0.0
        %2599 = vmatprep.subr.mxu0 0.0
        %2600 = vmatpush1.xpose.msra.mxu0 0.0
        %2601 = vmatprep.subr.mxu0 0.0
        %2602 = vmatpush1.xpose.msra.mxu0 0.0
        %2603 = vmatprep.subr.mxu0 0.0
        %2604 = vmatpush1.xpose.msra.mxu0 0.0
        %2605 = vmatprep.subr.mxu0 0.0
        %2606 = vmatpush1.xpose.msra.mxu0 0.0
        %2607 = vmatprep.subr.mxu0 0.0
        %2608 = vmatpush1.xpose.msra.mxu0 0.0
        %2609 = vmatprep.subr.mxu0 0.0
        %2610 = vmatpush1.xpose.msra.mxu0 0.0
        %2611 = vmatprep.subr.mxu0 0.0
        %2612 = vmatpush1.xpose.msra.mxu0 0.0
        %2613 = vmatprep.subr.mxu0 0.0
        %2614 = vmatpush1.xpose.msra.mxu0 0.0
        %2615 = vmatprep.subr.mxu0 0.0
        %2616 = vmatpush1.xpose.msra.mxu0 0.0
        %2617 = vmatprep.subr.mxu0 0.0
        %2618 = vmatpush1.xpose.msra.mxu0 0.0
        %2619 = vmatprep.subr.mxu0 0.0
        %2620 = vmatpush1.xpose.msra.mxu0 0.0
        %2621 = vmatprep.subr.mxu0 0.0
        %2622 = vmatpush1.xpose.msra.mxu0 0.0
        %2623 = vmatprep.subr.mxu0 0.0
        %2624 = vmatpush1.xpose.msra.mxu0 0.0
        %2625 = vmatprep.mubr.f32.mxu0 0.0
        %2626 = vmatmul.mubr.f32.gmra.mrb[0].mxu0 %v2557
        %v2627 = vpop.f32.mrb[0].mxu0
        %v2628 = vadd.f32 0.0, %v2627
        %v2629 = vpop.f32.mrb[0].mxu0
        %2630 = vdwg.mxu0
        %v2631 = vsel %vm600, %v2550, -1e+30
        %v2632 = vsel %vm601, %v2628, -1e+30
        %v2633 = vsel %vm604, %v2631, -inf
        %2634 = vmax.xlane.f32.xlu0 %v2633
        %v2635 = vpop.xlane.xlu0 %2634
        %v2636 = vsel %vm604, %v2632, -inf
        %2637 = vmax.xlane.f32.xlu0 %v2636
        %v2638 = vpop.xlane.xlu0 %2637
        %v2639 = vsub.f32 %v2631, %v2635
        %v2640 = vsub.f32 %v2632, %v2638
        %v2641 = vmul.f32 %v2639, 1.442695
        %v2642 = vpow.pop %v2641
        %v2643 = vmul.f32 %v2640, 1.442695
        %v2644 = vpow.pop %v2643
        %v2645 = vsel %vm604, %v2642, 0.0
        %2646 = vadd.xlane.f32.xlu0 %v2645
        %v2647 = vpop.xlane.xlu0 %2646
        %v2648 = vsel %vm604, %v2644, 0.0
        %2649 = vadd.xlane.f32.xlu0 %v2648
        %v2650 = vpop.xlane.xlu0 %2649
        %v2651 = vrcp.pop %v2647
        %v2652 = vrcp.pop %v2650
        %v2653 = vmul.f32 %v2647, %v2651
        %v2654 = vmul.f32 %v2650, %v2652
        %v2655 = vsub.f32 2.0, %v2653
        %v2656 = vsub.f32 2.0, %v2654
        %v2657 = vmul.f32 %v2651, %v2655
        %v2658 = vmul.f32 %v2652, %v2656
        %v2659 = vmul.f32 %v2642, %v2657
        %v2660 = vmul.f32 %v2644, %v2658
        %2661 = vrot.lane.b32.xlu0 %v423, 40
        %v2662 = vpop.permute.xlu0 %2661
        %v2665 = vsel %vm604, %v2659, 0
        %2667 = vmatprep.subr.mxu0 0.0
        %2668 = vmatpush1.msra.mxu0 %v2662
        %2669 = vmatprep.subr.mxu0 0.0
        %2670 = vmatpush1.msra.mxu0 0.0
        %2671 = vmatprep.subr.mxu0 0.0
        %2672 = vmatpush1.msra.mxu0 0.0
        %2673 = vmatprep.subr.mxu0 0.0
        %2674 = vmatpush1.msra.mxu0 0.0
        %2675 = vmatprep.subr.mxu0 0.0
        %2676 = vmatpush1.msra.mxu0 0.0
        %2677 = vmatprep.subr.mxu0 0.0
        %2678 = vmatpush1.msra.mxu0 0.0
        %2679 = vmatprep.subr.mxu0 0.0
        %2680 = vmatpush1.msra.mxu0 0.0
        %2681 = vmatprep.subr.mxu0 0.0
        %2682 = vmatpush1.msra.mxu0 0.0
        %2683 = vmatprep.subr.mxu0 0.0
        %2684 = vmatpush1.msra.mxu0 0.0
        %2685 = vmatprep.subr.mxu0 0.0
        %2686 = vmatpush1.msra.mxu0 0.0
        %2687 = vmatprep.subr.mxu0 0.0
        %2688 = vmatpush1.msra.mxu0 0.0
        %2689 = vmatprep.subr.mxu0 0.0
        %2690 = vmatpush1.msra.mxu0 0.0
        %2691 = vmatprep.subr.mxu0 0.0
        %2692 = vmatpush1.msra.mxu0 0.0
        %2693 = vmatprep.subr.mxu0 0.0
        %2694 = vmatpush1.msra.mxu0 0.0
        %2695 = vmatprep.subr.mxu0 0.0
        %2696 = vmatpush1.msra.mxu0 0.0
        %2697 = vmatprep.subr.mxu0 0.0
        %2698 = vmatpush1.msra.mxu0 0.0
        %2699 = vmatprep.subr.mxu0 0.0
        %2700 = vmatpush1.msra.mxu0 0.0
        %2701 = vmatprep.subr.mxu0 0.0
        %2702 = vmatpush1.msra.mxu0 0.0
        %2703 = vmatprep.subr.mxu0 0.0
        %2704 = vmatpush1.msra.mxu0 0.0
        %2705 = vmatprep.subr.mxu0 0.0
        %2706 = vmatpush1.msra.mxu0 0.0
        %2707 = vmatprep.subr.mxu0 0.0
        %2708 = vmatpush1.msra.mxu0 0.0
        %2709 = vmatprep.subr.mxu0 0.0
        %2710 = vmatpush1.msra.mxu0 0.0
        %2711 = vmatprep.subr.mxu0 0.0
        %2712 = vmatpush1.msra.mxu0 0.0
        %2713 = vmatprep.subr.mxu0 0.0
        %2714 = vmatpush1.msra.mxu0 0.0
        %2715 = vmatprep.subr.mxu0 0.0
        %2716 = vmatpush1.msra.mxu0 0.0
        %2717 = vmatprep.subr.mxu0 0.0
        %2718 = vmatpush1.msra.mxu0 0.0
        %2719 = vmatprep.subr.mxu0 0.0
        %2720 = vmatpush1.msra.mxu0 0.0
        %2721 = vmatprep.subr.mxu0 0.0
        %2722 = vmatpush1.msra.mxu0 0.0
        %2723 = vmatprep.subr.mxu0 0.0
        %2724 = vmatpush1.msra.mxu0 0.0
        %2725 = vmatprep.subr.mxu0 0.0
        %2726 = vmatpush1.msra.mxu0 0.0
        %2727 = vmatprep.subr.mxu0 0.0
        %2728 = vmatpush1.msra.mxu0 0.0
        %2729 = vmatprep.subr.mxu0 0.0
        %2730 = vmatpush1.msra.mxu0 0.0
        %2731 = vmatprep.mubr.f32.mxu0 0.0
        %2732 = vmatmul.mubr.f32.gmra.mrb[0].mxu0 %v2665
        %v2733 = vpop.f32.mrb[0].mxu0
        %v2734 = vadd.f32 0.0, %v2733
        %v2735 = vpop.f32.mrb[0].mxu0
        %2736 = vdwg.mxu0
        %2737 = vrot.lane.b32.xlu0 %v428, 40
        %v2738 = vpop.permute.xlu0 %2737
        %v2741 = vsel %vm604, %v2660, 0
        %2743 = vmatprep.subr.mxu0 0.0
        %2744 = vmatpush1.msra.mxu0 %v2738
        %2745 = vmatprep.subr.mxu0 0.0
        %2746 = vmatpush1.msra.mxu0 0.0
        %2747 = vmatprep.subr.mxu0 0.0
        %2748 = vmatpush1.msra.mxu0 0.0
        %2749 = vmatprep.subr.mxu0 0.0
        %2750 = vmatpush1.msra.mxu0 0.0
        %2751 = vmatprep.subr.mxu0 0.0
        %2752 = vmatpush1.msra.mxu0 0.0
        %2753 = vmatprep.subr.mxu0 0.0
        %2754 = vmatpush1.msra.mxu0 0.0
        %2755 = vmatprep.subr.mxu0 0.0
        %2756 = vmatpush1.msra.mxu0 0.0
        %2757 = vmatprep.subr.mxu0 0.0
        %2758 = vmatpush1.msra.mxu0 0.0
        %2759 = vmatprep.subr.mxu0 0.0
        %2760 = vmatpush1.msra.mxu0 0.0
        %2761 = vmatprep.subr.mxu0 0.0
        %2762 = vmatpush1.msra.mxu0 0.0
        %2763 = vmatprep.subr.mxu0 0.0
        %2764 = vmatpush1.msra.mxu0 0.0
        %2765 = vmatprep.subr.mxu0 0.0
        %2766 = vmatpush1.msra.mxu0 0.0
        %2767 = vmatprep.subr.mxu0 0.0
        %2768 = vmatpush1.msra.mxu0 0.0
        %2769 = vmatprep.subr.mxu0 0.0
        %2770 = vmatpush1.msra.mxu0 0.0
        %2771 = vmatprep.subr.mxu0 0.0
        %2772 = vmatpush1.msra.mxu0 0.0
        %2773 = vmatprep.subr.mxu0 0.0
        %2774 = vmatpush1.msra.mxu0 0.0
        %2775 = vmatprep.subr.mxu0 0.0
        %2776 = vmatpush1.msra.mxu0 0.0
        %2777 = vmatprep.subr.mxu0 0.0
        %2778 = vmatpush1.msra.mxu0 0.0
        %2779 = vmatprep.subr.mxu0 0.0
        %2780 = vmatpush1.msra.mxu0 0.0
        %2781 = vmatprep.subr.mxu0 0.0
        %2782 = vmatpush1.msra.mxu0 0.0
        %2783 = vmatprep.subr.mxu0 0.0
        %2784 = vmatpush1.msra.mxu0 0.0
        %2785 = vmatprep.subr.mxu0 0.0
        %2786 = vmatpush1.msra.mxu0 0.0
        %2787 = vmatprep.subr.mxu0 0.0
        %2788 = vmatpush1.msra.mxu0 0.0
        %2789 = vmatprep.subr.mxu0 0.0
        %2790 = vmatpush1.msra.mxu0 0.0
        %2791 = vmatprep.subr.mxu0 0.0
        %2792 = vmatpush1.msra.mxu0 0.0
        %2793 = vmatprep.subr.mxu0 0.0
        %2794 = vmatpush1.msra.mxu0 0.0
        %2795 = vmatprep.subr.mxu0 0.0
        %2796 = vmatpush1.msra.mxu0 0.0
        %2797 = vmatprep.subr.mxu0 0.0
        %2798 = vmatpush1.msra.mxu0 0.0
        %2799 = vmatprep.subr.mxu0 0.0
        %2800 = vmatpush1.msra.mxu0 0.0
        %2801 = vmatprep.subr.mxu0 0.0
        %2802 = vmatpush1.msra.mxu0 0.0
        %2803 = vmatprep.subr.mxu0 0.0
        %2804 = vmatpush1.msra.mxu0 0.0
        %2805 = vmatprep.subr.mxu0 0.0
        %2806 = vmatpush1.msra.mxu0 0.0
        %2807 = vmatprep.mubr.f32.mxu0 0.0
        %2808 = vmatmul.mubr.f32.gmra.mrb[0].mxu0 %v2741
        %v2809 = vpop.f32.mrb[0].mxu0
        %v2810 = vadd.f32 0.0, %v2809
        %v2811 = vpop.f32.mrb[0].mxu0
        %2812 = vdwg.mxu0
        %2813 = vrot.lane.b32.xlu0 %v423, 100
        %v2814 = vpop.permute.xlu0 %2813
        %2815 = vrot.lane.b32.xlu0 %v423, 68
        %v2816 = vpop.permute.xlu0 %2815
        %v2817 = vsel %vm436, %v2814, 0
        %v2819 = vsel %vm436, %v2816, 0
        %2821 = vmatprep.subr.mxu0 0.0
        %2822 = vmatpush1.xpose.msra.mxu0 %v2819
        %2823 = vmatprep.subr.mxu0 0.0
        %2824 = vmatpush1.xpose.msra.mxu0 0.0
        %2825 = vmatprep.subr.mxu0 0.0
        %2826 = vmatpush1.xpose.msra.mxu0 0.0
        %2827 = vmatprep.subr.mxu0 0.0
        %2828 = vmatpush1.xpose.msra.mxu0 0.0
        %2829 = vmatprep.subr.mxu0 0.0
        %2830 = vmatpush1.xpose.msra.mxu0 0.0
        %2831 = vmatprep.subr.mxu0 0.0
        %2832 = vmatpush1.xpose.msra.mxu0 0.0
        %2833 = vmatprep.subr.mxu0 0.0
        %2834 = vmatpush1.xpose.msra.mxu0 0.0
        %2835 = vmatprep.subr.mxu0 0.0
        %2836 = vmatpush1.xpose.msra.mxu0 0.0
        %2837 = vmatprep.subr.mxu0 0.0
        %2838 = vmatpush1.xpose.msra.mxu0 0.0
        %2839 = vmatprep.subr.mxu0 0.0
        %2840 = vmatpush1.xpose.msra.mxu0 0.0
        %2841 = vmatprep.subr.mxu0 0.0
        %2842 = vmatpush1.xpose.msra.mxu0 0.0
        %2843 = vmatprep.subr.mxu0 0.0
        %2844 = vmatpush1.xpose.msra.mxu0 0.0
        %2845 = vmatprep.subr.mxu0 0.0
        %2846 = vmatpush1.xpose.msra.mxu0 0.0
        %2847 = vmatprep.subr.mxu0 0.0
        %2848 = vmatpush1.xpose.msra.mxu0 0.0
        %2849 = vmatprep.subr.mxu0 0.0
        %2850 = vmatpush1.xpose.msra.mxu0 0.0
        %2851 = vmatprep.subr.mxu0 0.0
        %2852 = vmatpush1.xpose.msra.mxu0 0.0
        %2853 = vmatprep.subr.mxu0 0.0
        %2854 = vmatpush1.xpose.msra.mxu0 0.0
        %2855 = vmatprep.subr.mxu0 0.0
        %2856 = vmatpush1.xpose.msra.mxu0 0.0
        %2857 = vmatprep.subr.mxu0 0.0
        %2858 = vmatpush1.xpose.msra.mxu0 0.0
        %2859 = vmatprep.subr.mxu0 0.0
        %2860 = vmatpush1.xpose.msra.mxu0 0.0
        %2861 = vmatprep.subr.mxu0 0.0
        %2862 = vmatpush1.xpose.msra.mxu0 0.0
        %2863 = vmatprep.subr.mxu0 0.0
        %2864 = vmatpush1.xpose.msra.mxu0 0.0
        %2865 = vmatprep.subr.mxu0 0.0
        %2866 = vmatpush1.xpose.msra.mxu0 0.0
        %2867 = vmatprep.subr.mxu0 0.0
        %2868 = vmatpush1.xpose.msra.mxu0 0.0
        %2869 = vmatprep.subr.mxu0 0.0
        %2870 = vmatpush1.xpose.msra.mxu0 0.0
        %2871 = vmatprep.subr.mxu0 0.0
        %2872 = vmatpush1.xpose.msra.mxu0 0.0
        %2873 = vmatprep.subr.mxu0 0.0
        %2874 = vmatpush1.xpose.msra.mxu0 0.0
        %2875 = vmatprep.subr.mxu0 0.0
        %2876 = vmatpush1.xpose.msra.mxu0 0.0
        %2877 = vmatprep.subr.mxu0 0.0
        %2878 = vmatpush1.xpose.msra.mxu0 0.0
        %2879 = vmatprep.subr.mxu0 0.0
        %2880 = vmatpush1.xpose.msra.mxu0 0.0
        %2881 = vmatprep.subr.mxu0 0.0
        %2882 = vmatpush1.xpose.msra.mxu0 0.0
        %2883 = vmatprep.subr.mxu0 0.0
        %2884 = vmatpush1.xpose.msra.mxu0 0.0
        %2885 = vmatprep.mubr.f32.mxu0 0.0
        %2886 = vmatmul.mubr.f32.gmra.mrb[0].mxu0 %v2817
        %v2887 = vpop.f32.mrb[0].mxu0
        %v2888 = vadd.f32 0.0, %v2887
        %v2889 = vpop.f32.mrb[0].mxu0
        %2890 = vdwg.mxu0
        %2891 = vrot.lane.b32.xlu0 %v428, 100
        %v2892 = vpop.permute.xlu0 %2891
        %2893 = vrot.lane.b32.xlu0 %v428, 68
        %v2894 = vpop.permute.xlu0 %2893
        %v2895 = vsel %vm436, %v2892, 0
        %v2897 = vsel %vm436, %v2894, 0
        %2899 = vmatprep.subr.mxu0 0.0
        %2900 = vmatpush1.xpose.msra.mxu0 %v2897
        %2901 = vmatprep.subr.mxu0 0.0
        %2902 = vmatpush1.xpose.msra.mxu0 0.0
        %2903 = vmatprep.subr.mxu0 0.0
        %2904 = vmatpush1.xpose.msra.mxu0 0.0
        %2905 = vmatprep.subr.mxu0 0.0
        %2906 = vmatpush1.xpose.msra.mxu0 0.0
        %2907 = vmatprep.subr.mxu0 0.0
        %2908 = vmatpush1.xpose.msra.mxu0 0.0
        %2909 = vmatprep.subr.mxu0 0.0
        %2910 = vmatpush1.xpose.msra.mxu0 0.0
        %2911 = vmatprep.subr.mxu0 0.0
        %2912 = vmatpush1.xpose.msra.mxu0 0.0
        %2913 = vmatprep.subr.mxu0 0.0
        %2914 = vmatpush1.xpose.msra.mxu0 0.0
        %2915 = vmatprep.subr.mxu0 0.0
        %2916 = vmatpush1.xpose.msra.mxu0 0.0
        %2917 = vmatprep.subr.mxu0 0.0
        %2918 = vmatpush1.xpose.msra.mxu0 0.0
        %2919 = vmatprep.subr.mxu0 0.0
        %2920 = vmatpush1.xpose.msra.mxu0 0.0
        %2921 = vmatprep.subr.mxu0 0.0
        %2922 = vmatpush1.xpose.msra.mxu0 0.0
        %2923 = vmatprep.subr.mxu0 0.0
        %2924 = vmatpush1.xpose.msra.mxu0 0.0
        %2925 = vmatprep.subr.mxu0 0.0
        %2926 = vmatpush1.xpose.msra.mxu0 0.0
        %2927 = vmatprep.subr.mxu0 0.0
        %2928 = vmatpush1.xpose.msra.mxu0 0.0
        %2929 = vmatprep.subr.mxu0 0.0
        %2930 = vmatpush1.xpose.msra.mxu0 0.0
        %2931 = vmatprep.subr.mxu0 0.0
        %2932 = vmatpush1.xpose.msra.mxu0 0.0
        %2933 = vmatprep.subr.mxu0 0.0
        %2934 = vmatpush1.xpose.msra.mxu0 0.0
        %2935 = vmatprep.subr.mxu0 0.0
        %2936 = vmatpush1.xpose.msra.mxu0 0.0
        %2937 = vmatprep.subr.mxu0 0.0
        %2938 = vmatpush1.xpose.msra.mxu0 0.0
        %2939 = vmatprep.subr.mxu0 0.0
        %2940 = vmatpush1.xpose.msra.mxu0 0.0
        %2941 = vmatprep.subr.mxu0 0.0
        %2942 = vmatpush1.xpose.msra.mxu0 0.0
        %2943 = vmatprep.subr.mxu0 0.0
        %2944 = vmatpush1.xpose.msra.mxu0 0.0
        %2945 = vmatprep.subr.mxu0 0.0
        %2946 = vmatpush1.xpose.msra.mxu0 0.0
        %2947 = vmatprep.subr.mxu0 0.0
        %2948 = vmatpush1.xpose.msra.mxu0 0.0
        %2949 = vmatprep.subr.mxu0 0.0
        %2950 = vmatpush1.xpose.msra.mxu0 0.0
        %2951 = vmatprep.subr.mxu0 0.0
        %2952 = vmatpush1.xpose.msra.mxu0 0.0
        %2953 = vmatprep.subr.mxu0 0.0
        %2954 = vmatpush1.xpose.msra.mxu0 0.0
        %2955 = vmatprep.subr.mxu0 0.0
        %2956 = vmatpush1.xpose.msra.mxu0 0.0
        %2957 = vmatprep.subr.mxu0 0.0
        %2958 = vmatpush1.xpose.msra.mxu0 0.0
        %2959 = vmatprep.subr.mxu0 0.0
        %2960 = vmatpush1.xpose.msra.mxu0 0.0
        %2961 = vmatprep.subr.mxu0 0.0
        %2962 = vmatpush1.xpose.msra.mxu0 0.0
        %2963 = vmatprep.mubr.f32.mxu0 0.0
        %2964 = vmatmul.mubr.f32.gmra.mrb[0].mxu0 %v2895
        %v2965 = vpop.f32.mrb[0].mxu0
        %v2966 = vadd.f32 0.0, %v2965
        %v2967 = vpop.f32.mrb[0].mxu0
        %2968 = vdwg.mxu0
        %v2969 = vsel %vm600, %v2888, -1e+30
        %v2970 = vsel %vm601, %v2966, -1e+30
        %v2971 = vsel %vm604, %v2969, -inf
        %2972 = vmax.xlane.f32.xlu0 %v2971
        %v2973 = vpop.xlane.xlu0 %2972
        %v2974 = vsel %vm604, %v2970, -inf
        %2975 = vmax.xlane.f32.xlu0 %v2974
        %v2976 = vpop.xlane.xlu0 %2975
        %v2977 = vsub.f32 %v2969, %v2973
        %v2978 = vsub.f32 %v2970, %v2976
        %v2979 = vmul.f32 %v2977, 1.442695
        %v2980 = vpow.pop %v2979
        %v2981 = vmul.f32 %v2978, 1.442695
        %v2982 = vpow.pop %v2981
        %v2983 = vsel %vm604, %v2980, 0.0
        %2984 = vadd.xlane.f32.xlu0 %v2983
        %v2985 = vpop.xlane.xlu0 %2984
        %v2986 = vsel %vm604, %v2982, 0.0
        %2987 = vadd.xlane.f32.xlu0 %v2986
        %v2988 = vpop.xlane.xlu0 %2987
        %v2989 = vrcp.pop %v2985
        %v2990 = vrcp.pop %v2988
        %v2991 = vmul.f32 %v2985, %v2989
        %v2992 = vmul.f32 %v2988, %v2990
        %v2993 = vsub.f32 2.0, %v2991
        %v2994 = vsub.f32 2.0, %v2992
        %v2995 = vmul.f32 %v2989, %v2993
        %v2996 = vmul.f32 %v2990, %v2994
        %v2997 = vmul.f32 %v2980, %v2995
        %v2998 = vmul.f32 %v2982, %v2996
        %2999 = vrot.lane.b32.xlu0 %v423, 36
        %v3000 = vpop.permute.xlu0 %2999
        %v3003 = vsel %vm604, %v2997, 0
        %3005 = vmatprep.subr.mxu0 0.0
        %3006 = vmatpush1.msra.mxu0 %v3000
        %3007 = vmatprep.subr.mxu0 0.0
        %3008 = vmatpush1.msra.mxu0 0.0
        %3009 = vmatprep.subr.mxu0 0.0
        %3010 = vmatpush1.msra.mxu0 0.0
        %3011 = vmatprep.subr.mxu0 0.0
        %3012 = vmatpush1.msra.mxu0 0.0
        %3013 = vmatprep.subr.mxu0 0.0
        %3014 = vmatpush1.msra.mxu0 0.0
        %3015 = vmatprep.subr.mxu0 0.0
        %3016 = vmatpush1.msra.mxu0 0.0
        %3017 = vmatprep.subr.mxu0 0.0
        %3018 = vmatpush1.msra.mxu0 0.0
        %3019 = vmatprep.subr.mxu0 0.0
        %3020 = vmatpush1.msra.mxu0 0.0
        %3021 = vmatprep.subr.mxu0 0.0
        %3022 = vmatpush1.msra.mxu0 0.0
        %3023 = vmatprep.subr.mxu0 0.0
        %3024 = vmatpush1.msra.mxu0 0.0
        %3025 = vmatprep.subr.mxu0 0.0
        %3026 = vmatpush1.msra.mxu0 0.0
        %3027 = vmatprep.subr.mxu0 0.0
        %3028 = vmatpush1.msra.mxu0 0.0
        %3029 = vmatprep.subr.mxu0 0.0
        %3030 = vmatpush1.msra.mxu0 0.0
        %3031 = vmatprep.subr.mxu0 0.0
        %3032 = vmatpush1.msra.mxu0 0.0
        %3033 = vmatprep.subr.mxu0 0.0
        %3034 = vmatpush1.msra.mxu0 0.0
        %3035 = vmatprep.subr.mxu0 0.0
        %3036 = vmatpush1.msra.mxu0 0.0
        %3037 = vmatprep.subr.mxu0 0.0
        %3038 = vmatpush1.msra.mxu0 0.0
        %3039 = vmatprep.subr.mxu0 0.0
        %3040 = vmatpush1.msra.mxu0 0.0
        %3041 = vmatprep.subr.mxu0 0.0
        %3042 = vmatpush1.msra.mxu0 0.0
        %3043 = vmatprep.subr.mxu0 0.0
        %3044 = vmatpush1.msra.mxu0 0.0
        %3045 = vmatprep.subr.mxu0 0.0
        %3046 = vmatpush1.msra.mxu0 0.0
        %3047 = vmatprep.subr.mxu0 0.0
        %3048 = vmatpush1.msra.mxu0 0.0
        %3049 = vmatprep.subr.mxu0 0.0
        %3050 = vmatpush1.msra.mxu0 0.0
        %3051 = vmatprep.subr.mxu0 0.0
        %3052 = vmatpush1.msra.mxu0 0.0
        %3053 = vmatprep.subr.mxu0 0.0
        %3054 = vmatpush1.msra.mxu0 0.0
        %3055 = vmatprep.subr.mxu0 0.0
        %3056 = vmatpush1.msra.mxu0 0.0
        %3057 = vmatprep.subr.mxu0 0.0
        %3058 = vmatpush1.msra.mxu0 0.0
        %3059 = vmatprep.subr.mxu0 0.0
        %3060 = vmatpush1.msra.mxu0 0.0
        %3061 = vmatprep.subr.mxu0 0.0
        %3062 = vmatpush1.msra.mxu0 0.0
        %3063 = vmatprep.subr.mxu0 0.0
        %3064 = vmatpush1.msra.mxu0 0.0
        %3065 = vmatprep.subr.mxu0 0.0
        %3066 = vmatpush1.msra.mxu0 0.0
        %3067 = vmatprep.subr.mxu0 0.0
        %3068 = vmatpush1.msra.mxu0 0.0
        %3069 = vmatprep.mubr.f32.mxu0 0.0
        %3070 = vmatmul.mubr.f32.gmra.mrb[0].mxu0 %v3003
        %v3071 = vpop.f32.mrb[0].mxu0
        %v3072 = vadd.f32 0.0, %v3071
        %v3073 = vpop.f32.mrb[0].mxu0
        %3074 = vdwg.mxu0
        %3075 = vrot.lane.b32.xlu0 %v428, 36
        %v3076 = vpop.permute.xlu0 %3075
        %v3079 = vsel %vm604, %v2998, 0
        %3081 = vmatprep.subr.mxu0 0.0
        %3082 = vmatpush1.msra.mxu0 %v3076
        %3083 = vmatprep.subr.mxu0 0.0
        %3084 = vmatpush1.msra.mxu0 0.0
        %3085 = vmatprep.subr.mxu0 0.0
        %3086 = vmatpush1.msra.mxu0 0.0
        %3087 = vmatprep.subr.mxu0 0.0
        %3088 = vmatpush1.msra.mxu0 0.0
        %3089 = vmatprep.subr.mxu0 0.0
        %3090 = vmatpush1.msra.mxu0 0.0
        %3091 = vmatprep.subr.mxu0 0.0
        %3092 = vmatpush1.msra.mxu0 0.0
        %3093 = vmatprep.subr.mxu0 0.0
        %3094 = vmatpush1.msra.mxu0 0.0
        %3095 = vmatprep.subr.mxu0 0.0
        %3096 = vmatpush1.msra.mxu0 0.0
        %3097 = vmatprep.subr.mxu0 0.0
        %3098 = vmatpush1.msra.mxu0 0.0
        %3099 = vmatprep.subr.mxu0 0.0
        %3100 = vmatpush1.msra.mxu0 0.0
        %3101 = vmatprep.subr.mxu0 0.0
        %3102 = vmatpush1.msra.mxu0 0.0
        %3103 = vmatprep.subr.mxu0 0.0
        %3104 = vmatpush1.msra.mxu0 0.0
        %3105 = vmatprep.subr.mxu0 0.0
        %3106 = vmatpush1.msra.mxu0 0.0
        %3107 = vmatprep.subr.mxu0 0.0
        %3108 = vmatpush1.msra.mxu0 0.0
        %3109 = vmatprep.subr.mxu0 0.0
        %3110 = vmatpush1.msra.mxu0 0.0
        %3111 = vmatprep.subr.mxu0 0.0
        %3112 = vmatpush1.msra.mxu0 0.0
        %3113 = vmatprep.subr.mxu0 0.0
        %3114 = vmatpush1.msra.mxu0 0.0
        %3115 = vmatprep.subr.mxu0 0.0
        %3116 = vmatpush1.msra.mxu0 0.0
        %3117 = vmatprep.subr.mxu0 0.0
        %3118 = vmatpush1.msra.mxu0 0.0
        %3119 = vmatprep.subr.mxu0 0.0
        %3120 = vmatpush1.msra.mxu0 0.0
        %3121 = vmatprep.subr.mxu0 0.0
        %3122 = vmatpush1.msra.mxu0 0.0
        %3123 = vmatprep.subr.mxu0 0.0
        %3124 = vmatpush1.msra.mxu0 0.0
        %3125 = vmatprep.subr.mxu0 0.0
        %3126 = vmatpush1.msra.mxu0 0.0
        %3127 = vmatprep.subr.mxu0 0.0
        %3128 = vmatpush1.msra.mxu0 0.0
        %3129 = vmatprep.subr.mxu0 0.0
        %3130 = vmatpush1.msra.mxu0 0.0
        %3131 = vmatprep.subr.mxu0 0.0
        %3132 = vmatpush1.msra.mxu0 0.0
        %3133 = vmatprep.subr.mxu0 0.0
        %3134 = vmatpush1.msra.mxu0 0.0
        %3135 = vmatprep.subr.mxu0 0.0
        %3136 = vmatpush1.msra.mxu0 0.0
        %3137 = vmatprep.subr.mxu0 0.0
        %3138 = vmatpush1.msra.mxu0 0.0
        %3139 = vmatprep.subr.mxu0 0.0
        %3140 = vmatpush1.msra.mxu0 0.0
        %3141 = vmatprep.subr.mxu0 0.0
        %3142 = vmatpush1.msra.mxu0 0.0
        %3143 = vmatprep.subr.mxu0 0.0
        %3144 = vmatpush1.msra.mxu0 0.0
        %3145 = vmatprep.mubr.f32.mxu0 0.0
        %3146 = vmatmul.mubr.f32.gmra.mrb[0].mxu0 %v3079
        %v3147 = vpop.f32.mrb[0].mxu0
        %v3148 = vadd.f32 0.0, %v3147
        %v3149 = vpop.f32.mrb[0].mxu0
        %3150 = vdwg.mxu0
        %3153 = vrot.lane.b32.xlu0 %v1044, 4
        %v3154 = vpop.permute.xlu0 %3153
        %3155 = vrot.lane.b32.xlu0 %v1120, 4
        %v3156 = vpop.permute.xlu0 %3155
        %3161 = vrot.lane.b32.xlu0 %v1382, 8
        %v3162 = vpop.permute.xlu0 %3161
        %3163 = vrot.lane.b32.xlu0 %v1458, 8
        %v3164 = vpop.permute.xlu0 %3163
        %3169 = vrot.lane.b32.xlu0 %v1720, 12
        %v3170 = vpop.permute.xlu0 %3169
        %3171 = vrot.lane.b32.xlu0 %v1796, 12
        %v3172 = vpop.permute.xlu0 %3171
        %3177 = vrot.lane.b32.xlu0 %v2058, 16
        %v3178 = vpop.permute.xlu0 %3177
        %3179 = vrot.lane.b32.xlu0 %v2134, 16
        %v3180 = vpop.permute.xlu0 %3179
        %3185 = vrot.lane.b32.xlu0 %v2396, 20
        %v3186 = vpop.permute.xlu0 %3185
        %3187 = vrot.lane.b32.xlu0 %v2472, 20
        %v3188 = vpop.permute.xlu0 %3187
        %3193 = vrot.lane.b32.xlu0 %v2734, 24
        %v3194 = vpop.permute.xlu0 %3193
        %3195 = vrot.lane.b32.xlu0 %v2810, 24
        %v3196 = vpop.permute.xlu0 %3195
        %3201 = vrot.lane.b32.xlu0 %v3072, 28
        %v3202 = vpop.permute.xlu0 %3201
        %3203 = vrot.lane.b32.xlu0 %v3148, 28
        %v3204 = vpop.permute.xlu0 %3203
        %v3207 = vsel %vm436, %v706, %v3154
        %v3208 = vsel %vm436, %v782, %v3156
        %v3209 = vsel %vm604, %v3207, %v3162
        %v3210 = vsel %vm604, %v3208, %v3164
        %vm3211 = vcmask 97280
        %v3212 = vsel %vm3211, %v3209, %v3170
        %v3213 = vsel %vm3211, %v3210, %v3172
        %vm3214 = vcmask 130048
        %v3215 = vsel %vm3214, %v3212, %v3178
        %v3216 = vsel %vm3214, %v3213, %v3180
        %vm3217 = vcmask 162816
        %v3218 = vsel %vm3217, %v3215, %v3186
        %v3219 = vsel %vm3217, %v3216, %v3188
        %vm3220 = vcmask 195584
        %v3221 = vsel %vm3220, %v3218, %v3194
        %v3222 = vsel %vm3220, %v3219, %v3196
        %vm3223 = vcmask 228352
        %v3224 = vsel %vm3223, %v3221, %v3202
        %v3225 = vsel %vm3223, %v3222, %v3204
        %v3226 = vld [vmem:[#allocation2] sm:$0xff]
        %v3227 = vld [vmem:[#allocation2 + $0x8] sm:$0xff]
        %v3228 = vld [vmem:[#allocation2 + $0x10] sm:$0xff]
        %v3229 = vld [vmem:[#allocation2 + $0x18] sm:$0xff]
        %v3230 = vld [vmem:[%s6] sm:$0x1]
        %v3232 = vlaneseq
        %v3233 = vshrl.u32 %v3232, 7
        %v3234 = vsub.s32 0, %v3233
        %v3235 = vrot.slane %v3230, %v3234
        %v3238 = vsel %vm349, %v3224, 0
        %v3241 = vsel %vm349, %v3225, 0
        %3243 = vmatprep.subr.mxu0 0.0
        %3244 = vmatpush1.msra.mxu0 %v3226
        %3245 = vmatprep.subr.mxu0 0.0
        %3246 = vmatpush1.msra.mxu0 %v3227
        %3247 = vmatprep.subr.mxu0 0.0
        %3248 = vmatpush1.msra.mxu0 %v3228
        %3249 = vmatprep.subr.mxu0 0.0
        %3250 = vmatpush1.msra.mxu0 %v3229
        %3251 = vmatprep.subr.mxu0 0.0
        %3252 = vmatpush1.msra.mxu0 0.0
        %3253 = vmatprep.subr.mxu0 0.0
        %3254 = vmatpush1.msra.mxu0 0.0
        %3255 = vmatprep.subr.mxu0 0.0
        %3256 = vmatpush1.msra.mxu0 0.0
        %3257 = vmatprep.subr.mxu0 0.0
        %3258 = vmatpush1.msra.mxu0 0.0
        %3259 = vmatprep.subr.mxu0 0.0
        %3260 = vmatpush1.msra.mxu0 0.0
        %3261 = vmatprep.subr.mxu0 0.0
        %3262 = vmatpush1.msra.mxu0 0.0
        %3263 = vmatprep.subr.mxu0 0.0
        %3264 = vmatpush1.msra.mxu0 0.0
        %3265 = vmatprep.subr.mxu0 0.0
        %3266 = vmatpush1.msra.mxu0 0.0
        %3267 = vmatprep.subr.mxu0 0.0
        %3268 = vmatpush1.msra.mxu0 0.0
        %3269 = vmatprep.subr.mxu0 0.0
        %3270 = vmatpush1.msra.mxu0 0.0
        %3271 = vmatprep.subr.mxu0 0.0
        %3272 = vmatpush1.msra.mxu0 0.0
        %3273 = vmatprep.subr.mxu0 0.0
        %3274 = vmatpush1.msra.mxu0 0.0
        %3275 = vmatprep.subr.mxu0 0.0
        %3276 = vmatpush1.msra.mxu0 0.0
        %3277 = vmatprep.subr.mxu0 0.0
        %3278 = vmatpush1.msra.mxu0 0.0
        %3279 = vmatprep.subr.mxu0 0.0
        %3280 = vmatpush1.msra.mxu0 0.0
        %3281 = vmatprep.subr.mxu0 0.0
        %3282 = vmatpush1.msra.mxu0 0.0
        %3283 = vmatprep.subr.mxu0 0.0
        %3284 = vmatpush1.msra.mxu0 0.0
        %3285 = vmatprep.subr.mxu0 0.0
        %3286 = vmatpush1.msra.mxu0 0.0
        %3287 = vmatprep.subr.mxu0 0.0
        %3288 = vmatpush1.msra.mxu0 0.0
        %3289 = vmatprep.subr.mxu0 0.0
        %3290 = vmatpush1.msra.mxu0 0.0
        %3291 = vmatprep.subr.mxu0 0.0
        %3292 = vmatpush1.msra.mxu0 0.0
        %3293 = vmatprep.subr.mxu0 0.0
        %3294 = vmatpush1.msra.mxu0 0.0
        %3295 = vmatprep.subr.mxu0 0.0
        %3296 = vmatpush1.msra.mxu0 0.0
        %3297 = vmatprep.subr.mxu0 0.0
        %3298 = vmatpush1.msra.mxu0 0.0
        %3299 = vmatprep.subr.mxu0 0.0
        %3300 = vmatpush1.msra.mxu0 0.0
        %3301 = vmatprep.subr.mxu0 0.0
        %3302 = vmatpush1.msra.mxu0 0.0
        %3303 = vmatprep.subr.mxu0 0.0
        %3304 = vmatpush1.msra.mxu0 0.0
        %3305 = vmatprep.subr.mxu0 0.0
        %3306 = vmatpush1.msra.mxu0 0.0
        %3307 = vmatprep.mubr.f32.mxu0 0.0
        %3308 = vmatmul.mubr.f32.gmra.mrb[0].mxu0 %v3238
        %v3309 = vpop.f32.mrb[0].mxu0
        %v3310 = vadd.f32 %v3235, %v3309
        %v3311 = vpop.f32.mrb[0].mxu0
        %3312 = vmatprep.mubr.f32.mxu0 0.0
        %3313 = vmatmul.mubr.f32.gmra.mrb[0].mxu0 %v3241
        %v3314 = vpop.f32.mrb[0].mxu0
        %v3315 = vadd.f32 %v3235, %v3314
        %v3316 = vpop.f32.mrb[0].mxu0
        %3317 = vdwg.mxu0
        %v3318 = vld [vmem:[%s333] sm:$0xff]
        %v3319 = vld [vmem:[%s333 + $0x8] sm:$0xff]
        %3321 = vset.pattern.permute.xlu0 0
        %3322 = vperm.xlu0 %3321, %v3318
        %v3323 = vpop.permute.xlu0 %3322
        %3326 = vset.pattern.permute.xlu0 0
        %3327 = vperm.xlu0 %3326, %v3319
        %v3328 = vpop.permute.xlu0 %3327
        %v3330 = vmul.f32 %v3310, %v3323
        %v3331 = vmul.f32 %v3315, %v3328
        %3332 = vst.msk [vmem:[%s317] sm:$0xff] %vm349, %v3330
        %3333 = vst.msk [vmem:[%s317 + $0x8] sm:$0xff] %vm349, %v3331
        %s3334 = sand.u32 %s192, 1
        %s3335 = scalar_lea.sflag [#allocation4], %s3334
        %s3336 = sand.u32 %s192, 1
        %s3337 = smul.addr %s3336, 16
        %s3338 = scalar_lea.vmem [#allocation5], %s3337
        // Predicated region
        $region53: #{_mha_forward.1} parent=47 // pred_check
          %p3339 = pneg %p202
        $region54: #{_mha_forward.1} parent=47 // pred_check_branch
          %3341 = sbr.rel (%p3339) target = $region56
        $region55: #{_mha_forward.1} parent=47 // pred_region
          %s3342 = smul.u32 2, %s22
          %s3344 = ssub.s32 256, 256
          %3345 = vsyncadd %s3335, %s3344
          %s3346 = smul.addr %s3342, 128
          %s3347 = scalar_lea.hbm %s7, %s3346
          %s3348 = sshll.u32 %s3338, 4
          %s3349 = int_to_ptr.vmem [resolvable:$true] %s3348
          %3354 = dma.vmem_to_hbm [thread:$0]  %s3349, 256, %s3347, %s3335, 128, 128, 8
        $region56: #{_mha_forward.1} parent=47 // pred_fallthru
          _
      $region48: #{_mha_forward.1} parent=5 // pred_fallthru
        _
      %p3355 = scmp.le.s32.totalorder 2, %s17
      // Predicated region
      $region57: #{_mha_forward.1} parent=5 // pred_check
        %p3356 = pneg %p3355
      $region58: #{_mha_forward.1} parent=5 // pred_check_branch
        %3358 = sbr.rel (%p3356) target = $region60
      $region59: #{_mha_forward.1} parent=5 // pred_region
        %s3359 = ssub.s32 %s17, 2
        // Predicated region
        $region61: #{_mha_forward.1} parent=59 // pred_check
          %p3360 = pneg %p208
        $region62: #{_mha_forward.1} parent=59 // pred_check_branch
          %3362 = sbr.rel (%p3360) target = $region64
        $region63: #{_mha_forward.1} parent=59 // pred_region
          %s3363 = sand.u32 %s193, 1
          %s3364 = scalar_lea.sflag [#allocation4], %s3363
          %s3365 = sand.u32 %s193, 1
          %s3366 = smul.addr %s3365, 16
          %s3367 = scalar_lea.vmem [#allocation5], %s3366
          %3368 = dma.done %s3364, 256
        $region64: #{_mha_forward.1} parent=59 // pred_fallthru
          _
      $region60: #{_mha_forward.1} parent=5 // pred_fallthru
        _
    $region6: #{_mha_forward.1} parent=1 // loop_footer
      %s21 = sadd.s32 1, %s17
    $region7: #{_mha_forward.1} parent=1 // loop_footer_branch
      %16 = sbr.rel target = $region3
    $region8: #{_mha_forward.1} parent=1 // loop_exit
      _
    %3369 = vsyncpa [#allocation3], 1
    %s3370 = scalar_lea.sflag [#allocation3], 1
    %3371 = vsyncpa %s3370, 1
    %3372 = vsyncpa [#allocation4], 1
    %s3373 = scalar_lea.sflag [#allocation4], 1
    %3374 = vsyncpa %s3373, 1

// kernel: _mha_forward.1
$region0: #{_mha_forward.1}
  #allocation0 [shape = 'u32[]', space=smem, size = 0x4, offset = 0x4, fixed_abs, tag = 'smem constant byte address 0x4 - core index']
  #allocation1 [shape = 'u32[144,128]{1,0:T(1,128)}', space=vmem, size = 0x12000, scoped, tag = 'internal scratch']
  %s0 = inlined_call_operand.vmem [shape: f32[4,8,32], index: 0, kind: input, shape index: {}]
  %s1 = inlined_call_operand.vmem [shape: f32[4,1,8], index: 1, kind: input, shape index: {}]
  %s2 = inlined_call_operand.vmem [shape: f32[4,8,1], index: 2, kind: input, shape index: {}]
  %s3 = inlined_call_operand.vmem [shape: f32[32,96], index: 3, kind: input, shape index: {}]
  %s4 = inlined_call_operand.vmem [shape: f32[1,96], index: 4, kind: input, shape index: {}]
  %s5 = inlined_call_operand.hbm [shape: f32[32,32], index: 5, kind: input, shape index: {}]
  %s6 = inlined_call_operand.vmem [shape: f32[1,32], index: 6, kind: input, shape index: {}]
  %s7 = inlined_call_operand.hbm [shape: f32[4,8,32], index: 7, kind: output, shape index: {}]
  %s8 = sld [smem:[#allocation0]]
  $region65: #{_mha_forward.1} parent=0
    _
  %s10 = ssub.s32 1, %s8
  %s11 = scalar_select 0, %s10, %s8
  $region1: #{_mha_forward.1} parent=0
    #allocation2 [shape = 'u8[16384]{0}', space=vmem, size = 0x4000, scoped, tag = 'input window, operand 5, single buffered']
    #allocation3 [shape = 's32[2]{0}', space=sflag, size = 0x8, scoped, tag = 'scoped memory for _mha_forward.1']
    #allocation4 [shape = 's32[2]{0}', space=sflag, size = 0x8, scoped, tag = 'scoped memory for _mha_forward.1']
    #allocation5 [shape = 'u8[16384]{0}', space=vmem, size = 0x4000, scoped, tag = 'output window, operand 0']
    %12 = vsyncpa [#allocation3], 0
    %13 = vsyncpa [#allocation4], 0
    %s14 = scalar_lea.sflag [#allocation4], 1
    %15 = vsyncpa %s14, 0
    loop: start=0, step=1, limit=4
    $region2: #{_mha_forward.1} parent=1 // loop_pre_header
      _
    $region3: #{_mha_forward.1} parent=1 // loop_header
      %s17 = sphi 0, %s21
      %p18 = scmp.ge.s32.totalorder %s17, 4
      %s27 = sphi 0, %s29
      %s30 = sphi 0, %s27
      %s31 = sphi 0, %s30
      %s47 = sphi 0, %s31
      %s53 = sphi 0, %s55
      %s56 = sphi 0, %s53
      %s57 = sphi 0, %s56
      %s73 = sphi 0, %s57
      %s79 = sphi 0, %s81
      %s82 = sphi 0, %s79
      %s83 = sphi 0, %s82
      %s99 = sphi 0, %s83
      %s103 = sphi 0, %s103
      %s105 = sphi 0, %s103
      %s106 = sphi 0, %s105
      %s120 = sphi 0, %s106
      %s124 = sphi 0, %s124
      %s126 = sphi 0, %s124
      %s127 = sphi 0, %s126
      %s141 = sphi 0, %s127
      %s145 = sphi 0, %s145
      %s147 = sphi 0, %s145
      %s148 = sphi 0, %s147
      %s162 = sphi 0, %s148
      %s166 = sphi 0, %s166
      %s168 = sphi 0, %s166
      %s169 = sphi 0, %s168
      %s183 = sphi 0, %s169
      %s189 = sphi 0, %s191
      %s192 = sphi 0, %s189
      %s193 = sphi 0, %s192
      %s209 = sphi 0, %s193
    $region4: #{_mha_forward.1} parent=1 // loop_header_branch
      %20 = sbr.rel (%p18) target = $region8
    $region5: #{_mha_forward.1} parent=1 // loop_body
      %s22 = ssub.s32 %s17, 1
      %s23 = ssub.s32 %s17, 2
      %s24 = sadd.s32 %s17, 1
      %s25 = ssub.s32 %s17, %s24
      %p26 = scmp.eq.s32.totalorder %s25, 0
      %s28 = sadd.s32 %s27, 1
      %s29 = scalar_select %p26, %s27, %s28
      %p32 = pneg %p26
      %p33 = scmp.eq.s32.totalorder %s17, 1
      %p34 = por %p32, %p33
      %p35 = scmp.ne.s32.totalorder %s27, %s30
      %p36 = scmp.eq.s32.totalorder %s17, 0
      %p37 = por %p35, %p36
      %p38 = scmp.ne.s32.totalorder %s27, %s30
      %p39 = scmp.eq.s32.totalorder %s22, 1
      %p40 = por %p38, %p39
      %p41 = scmp.ne.s32.totalorder %s30, %s31
      %p42 = scmp.eq.s32.totalorder %s22, 0
      %p43 = por %p41, %p42
      %p44 = scmp.ne.s32.totalorder %s30, %s31
      %p45 = scmp.eq.s32.totalorder %s23, 1
      %p46 = por %p44, %p45
      %p48 = scmp.ne.s32.totalorder %s31, %s47
      %p49 = scmp.eq.s32.totalorder %s23, 0
      %p50 = por %p48, %p49
      %s51 = ssub.s32 %s17, %s24
      %p52 = scmp.eq.s32.totalorder %s51, 0
      %s54 = sadd.s32 %s53, 1
      %s55 = scalar_select %p52, %s53, %s54
      %p58 = pneg %p52
      %p59 = scmp.eq.s32.totalorder %s17, 1
      %p60 = por %p58, %p59
      %p61 = scmp.ne.s32.totalorder %s53, %s56
      %p62 = scmp.eq.s32.totalorder %s17, 0
      %p63 = por %p61, %p62
      %p64 = scmp.ne.s32.totalorder %s53, %s56
      %p65 = scmp.eq.s32.totalorder %s22, 1
      %p66 = por %p64, %p65
      %p67 = scmp.ne.s32.totalorder %s56, %s57
      %p68 = scmp.eq.s32.totalorder %s22, 0
      %p69 = por %p67, %p68
      %p70 = scmp.ne.s32.totalorder %s56, %s57
      %p71 = scmp.eq.s32.totalorder %s23, 1
      %p72 = por %p70, %p71
      %p74 = scmp.ne.s32.totalorder %s57, %s73
      %p75 = scmp.eq.s32.totalorder %s23, 0
      %p76 = por %p74, %p75
      %s77 = ssub.s32 %s17, %s24
      %p78 = scmp.eq.s32.totalorder %s77, 0
      %s80 = sadd.s32 %s79, 1
      %s81 = scalar_select %p78, %s79, %s80
      %p84 = pneg %p78
      %p85 = scmp.eq.s32.totalorder %s17, 1
      %p86 = por %p84, %p85
      %p87 = scmp.ne.s32.totalorder %s79, %s82
      %p88 = scmp.eq.s32.totalorder %s17, 0
      %p89 = por %p87, %p88
      %p90 = scmp.ne.s32.totalorder %s79, %s82
      %p91 = scmp.eq.s32.totalorder %s22, 1
      %p92 = por %p90, %p91
      %p93 = scmp.ne.s32.totalorder %s82, %s83
      %p94 = scmp.eq.s32.totalorder %s22, 0
      %p95 = por %p93, %p94
      %p96 = scmp.ne.s32.totalorder %s82, %s83
      %p97 = scmp.eq.s32.totalorder %s23, 1
      %p98 = por %p96, %p97
      %p100 = scmp.ne.s32.totalorder %s83, %s99
      %p101 = scmp.eq.s32.totalorder %s23, 0
      %p102 = por %p100, %p101
      %s104 = sadd.s32 %s103, 1
      %p107 = scmp.eq.s32.totalorder %s17, 1
      %p108 = scmp.ne.s32.totalorder %s103, %s105
      %p109 = scmp.eq.s32.totalorder %s17, 0
      %p110 = por %p108, %p109
      %p111 = scmp.ne.s32.totalorder %s103, %s105
      %p112 = scmp.eq.s32.totalorder %s22, 1
      %p113 = por %p111, %p112
      %p114 = scmp.ne.s32.totalorder %s105, %s106
      %p115 = scmp.eq.s32.totalorder %s22, 0
      %p116 = por %p114, %p115
      %p117 = scmp.ne.s32.totalorder %s105, %s106
      %p118 = scmp.eq.s32.totalorder %s23, 1
      %p119 = por %p117, %p118
      %p121 = scmp.ne.s32.totalorder %s106, %s120
      %p122 = scmp.eq.s32.totalorder %s23, 0
      %p123 = por %p121, %p122
      %s125 = sadd.s32 %s124, 1
      %p128 = scmp.eq.s32.totalorder %s17, 1
      %p129 = scmp.ne.s32.totalorder %s124, %s126
      %p130 = scmp.eq.s32.totalorder %s17, 0
      %p131 = por %p129, %p130
      %p132 = scmp.ne.s32.totalorder %s124, %s126
      %p133 = scmp.eq.s32.totalorder %s22, 1
      %p134 = por %p132, %p133
      %p135 = scmp.ne.s32.totalorder %s126, %s127
      %p136 = scmp.eq.s32.totalorder %s22, 0
      %p137 = por %p135, %p136
      %p138 = scmp.ne.s32.totalorder %s126, %s127
      %p139 = scmp.eq.s32.totalorder %s23, 1
      %p140 = por %p138, %p139
      %p142 = scmp.ne.s32.totalorder %s127, %s141
      %p143 = scmp.eq.s32.totalorder %s23, 0
      %p144 = por %p142, %p143
      %s146 = sadd.s32 %s145, 1
      %p149 = scmp.eq.s32.totalorder %s17, 1
      %p150 = scmp.ne.s32.totalorder %s145, %s147
      %p151 = scmp.eq.s32.totalorder %s17, 0
      %p152 = por %p150, %p151
      %p153 = scmp.ne.s32.totalorder %s145, %s147
      %p154 = scmp.eq.s32.totalorder %s22, 1
      %p155 = por %p153, %p154
      %p156 = scmp.ne.s32.totalorder %s147, %s148
      %p157 = scmp.eq.s32.totalorder %s22, 0
      %p158 = por %p156, %p157
      %p159 = scmp.ne.s32.totalorder %s147, %s148
      %p160 = scmp.eq.s32.totalorder %s23, 1
      %p161 = por %p159, %p160
      %p163 = scmp.ne.s32.totalorder %s148, %s162
      %p164 = scmp.eq.s32.totalorder %s23, 0
      %p165 = por %p163, %p164
      %s167 = sadd.s32 %s166, 1
      %p170 = scmp.eq.s32.totalorder %s17, 1
      %p171 = scmp.ne.s32.totalorder %s166, %s168
      %p172 = scmp.eq.s32.totalorder %s17, 0
      %p173 = por %p171, %p172
      %p174 = scmp.ne.s32.totalorder %s166, %s168
      %p175 = scmp.eq.s32.totalorder %s22, 1
      %p176 = por %p174, %p175
      %p177 = scmp.ne.s32.totalorder %s168, %s169
      %p178 = scmp.eq.s32.totalorder %s22, 0
      %p179 = por %p177, %p178
      %p180 = scmp.ne.s32.totalorder %s168, %s169
      %p181 = scmp.eq.s32.totalorder %s23, 1
      %p182 = por %p180, %p181
      %p184 = scmp.ne.s32.totalorder %s169, %s183
      %p185 = scmp.eq.s32.totalorder %s23, 0
      %p186 = por %p184, %p185
      %s187 = ssub.s32 %s17, %s24
      %p188 = scmp.eq.s32.totalorder %s187, 0
      %s190 = sadd.s32 %s189, 1
      %s191 = scalar_select %p188, %s189, %s190
      %p194 = pneg %p188
      %p195 = scmp.eq.s32.totalorder %s17, 1
      %p196 = por %p194, %p195
      %p197 = scmp.ne.s32.totalorder %s189, %s192
      %p198 = scmp.eq.s32.totalorder %s17, 0
      %p199 = por %p197, %p198
      %p200 = scmp.ne.s32.totalorder %s189, %s192
      %p201 = scmp.eq.s32.totalorder %s22, 1
      %p202 = por %p200, %p201
      %p203 = scmp.ne.s32.totalorder %s192, %s193
      %p204 = scmp.eq.s32.totalorder %s22, 0
      %p205 = por %p203, %p204
      %p206 = scmp.ne.s32.totalorder %s192, %s193
      %p207 = scmp.eq.s32.totalorder %s23, 1
      %p208 = por %p206, %p207
      %p210 = scmp.ne.s32.totalorder %s193, %s209
      %p211 = scmp.eq.s32.totalorder %s23, 0
      %p212 = por %p210, %p211
      %p213 = scmp.le.s32.totalorder 1, %s17
      %p214 = scmp.lt.s32.totalorder %s17, 3
      %p215 = pnand %p213, %p214
      %p216 = pneg %p215
      // Predicated region
      $region9: #{_mha_forward.1} parent=5 // pred_check
        _
      $region10: #{_mha_forward.1} parent=5 // pred_check_branch
        %218 = sbr.rel (%p215) target = $region12
      $region11: #{_mha_forward.1} parent=5 // pred_region
        %s219 = ssub.s32 %s17, 1
        // Predicated region
        $region13: #{_mha_forward.1} parent=11 // pred_check
          %p220 = pneg %p116
        $region14: #{_mha_forward.1} parent=11 // pred_check_branch
          %222 = sbr.rel (%p220) target = $region16
        $region15: #{_mha_forward.1} parent=11 // pred_region
          _
        $region16: #{_mha_forward.1} parent=11 // pred_fallthru
          _
        // Predicated region
        $region17: #{_mha_forward.1} parent=11 // pred_check
          %p223 = pneg %p137
        $region18: #{_mha_forward.1} parent=11 // pred_check_branch
          %225 = sbr.rel (%p223) target = $region20
        $region19: #{_mha_forward.1} parent=11 // pred_region
          _
        $region20: #{_mha_forward.1} parent=11 // pred_fallthru
          _
        // Predicated region
        $region21: #{_mha_forward.1} parent=11 // pred_check
          %p226 = pneg %p158
        $region22: #{_mha_forward.1} parent=11 // pred_check_branch
          %228 = sbr.rel (%p226) target = $region24
        $region23: #{_mha_forward.1} parent=11 // pred_region
          %s230 = ssub.s32 512, 512
          %231 = vsyncadd [#allocation3], %s230
          %s232 = sshll.u32 [#allocation2], 4
          %s233 = int_to_ptr.vmem [resolvable:$true] %s232
          %238 = dma.hbm_to_vmem [thread:$0]  %s5, 512, %s233, [#allocation3], 128, 128, 8
        $region24: #{_mha_forward.1} parent=11 // pred_fallthru
          _
        // Predicated region
        $region25: #{_mha_forward.1} parent=11 // pred_check
          %p239 = pneg %p179
        $region26: #{_mha_forward.1} parent=11 // pred_check_branch
          %241 = sbr.rel (%p239) target = $region28
        $region27: #{_mha_forward.1} parent=11 // pred_region
          _
        $region28: #{_mha_forward.1} parent=11 // pred_fallthru
          _
      $region12: #{_mha_forward.1} parent=5 // pred_fallthru
        _
      %p242 = scmp.lt.s32.totalorder %s17, 2
      // Predicated region
      $region29: #{_mha_forward.1} parent=5 // pred_check
        %p243 = pneg %p242
      $region30: #{_mha_forward.1} parent=5 // pred_check_branch
        %245 = sbr.rel (%p243) target = $region32
      $region31: #{_mha_forward.1} parent=5 // pred_region
        // Predicated region
        $region33: #{_mha_forward.1} parent=31 // pred_check
          %p246 = pneg %p37
        $region34: #{_mha_forward.1} parent=31 // pred_check_branch
          %248 = sbr.rel (%p246) target = $region36
        $region35: #{_mha_forward.1} parent=31 // pred_region
          %s249 = smul.u32 2, %s17
          %p250 = scmp.lt.s32.totalorder %s249, 3
          %s251 = scalar_select %p250, %s249, 3
          %s252 = smul.addr %s251, 8
          %s253 = scalar_lea.vmem %s0, %s252
          %s254 = smul.u32 2, %s17
        $region36: #{_mha_forward.1} parent=31 // pred_fallthru
          _
        // Predicated region
        $region37: #{_mha_forward.1} parent=31 // pred_check
          %p255 = pneg %p63
        $region38: #{_mha_forward.1} parent=31 // pred_check_branch
          %257 = sbr.rel (%p255) target = $region40
        $region39: #{_mha_forward.1} parent=31 // pred_region
          %s258 = smul.u32 2, %s17
          %p259 = scmp.lt.s32.totalorder %s258, 3
          %s260 = scalar_select %p259, %s258, 3
          %s261 = scalar_lea.vmem %s1, %s260
          %s262 = smul.u32 2, %s17
        $region40: #{_mha_forward.1} parent=31 // pred_fallthru
          _
        // Predicated region
        $region41: #{_mha_forward.1} parent=31 // pred_check
          %p263 = pneg %p89
        $region42: #{_mha_forward.1} parent=31 // pred_check_branch
          %265 = sbr.rel (%p263) target = $region44
        $region43: #{_mha_forward.1} parent=31 // pred_region
          %s266 = smul.u32 2, %s17
          %p267 = scmp.lt.s32.totalorder %s266, 3
          %s268 = scalar_select %p267, %s266, 3
          %s269 = smul.addr %s268, 8
          %s270 = scalar_lea.vmem %s2, %s269
          %s271 = smul.u32 2, %s17
        $region44: #{_mha_forward.1} parent=31 // pred_fallthru
          _
      $region32: #{_mha_forward.1} parent=5 // pred_fallthru
        _
      %p272 = scmp.le.s32.totalorder 1, %s17
      %p273 = scmp.lt.s32.totalorder %s17, 3
      %p274 = pnand %p272, %p273
      %p275 = pneg %p274
      // Predicated region
      $region45: #{_mha_forward.1} parent=5 // pred_check
        _
      $region46: #{_mha_forward.1} parent=5 // pred_check_branch
        %277 = sbr.rel (%p274) target = $region48
      $region47: #{_mha_forward.1} parent=5 // pred_region
        %s278 = ssub.s32 %s17, 1
        // Predicated region
        $region49: #{_mha_forward.1} parent=47 // pred_check
          %p279 = pneg %p158
        $region50: #{_mha_forward.1} parent=47 // pred_check_branch
          %281 = sbr.rel (%p279) target = $region52
        $region51: #{_mha_forward.1} parent=47 // pred_region
          %282 = dma.done [#allocation3], 512
        $region52: #{_mha_forward.1} parent=47 // pred_fallthru
          _
        %s283 = smul.u32 2, %s22
        %p284 = scmp.lt.s32.totalorder %s283, 3
        %s285 = scalar_select %p284, %s283, 3
        %s286 = smul.addr %s285, 8
        %s287 = scalar_lea.vmem %s0, %s286
        %p288 = pneg %p43
        %p289 = pneg %p40
        %s290 = smul.u32 2, %s22
        %p291 = scmp.lt.s32.totalorder %s290, 3
        %s292 = scalar_select %p291, %s290, 3
        %s293 = scalar_lea.vmem %s1, %s292
        %p294 = pneg %p69
        %p295 = pneg %p66
        %s296 = smul.u32 2, %s22
        %p297 = scmp.lt.s32.totalorder %s296, 3
        %s298 = scalar_select %p297, %s296, 3
        %s299 = smul.addr %s298, 8
        %s300 = scalar_lea.vmem %s2, %s299
        %p301 = pneg %p95
        %p302 = pneg %p92
        %p303 = pneg %p116
        %p304 = pneg %p113
        %p305 = pneg %p137
        %p306 = pneg %p134
        %p307 = pneg %p158
        %p308 = pneg %p155
        %p309 = pneg %p179
        %p310 = pneg %p176
        %p311 = pneg %p205
        %p312 = pneg %p202
        %s313 = sand.u32 %s192, 1
        %s314 = scalar_lea.sflag [#allocation4], %s313
        %s315 = sand.u32 %s192, 1
        %s316 = smul.addr %s315, 16
        %s317 = scalar_lea.vmem [#allocation5], %s316
        %s318 = smul.u32 2, %s22
        %p319 = scmp.lt.s32.totalorder %s318, 3
        %s320 = scalar_select %p319, %s318, 3
        %s321 = smul.addr %s320, 8
        %s322 = scalar_lea.vmem %s0, %s321
        %s323 = smul.u32 2, %s22
        %s324 = smul.u32 2, %s22
        %p325 = scmp.lt.s32.totalorder %s324, 3
        %s326 = scalar_select %p325, %s324, 3
        %s327 = scalar_lea.vmem %s1, %s326
        %s328 = smul.u32 2, %s22
        %s329 = smul.u32 2, %s22
        %p330 = scmp.lt.s32.totalorder %s329, 3
        %s331 = scalar_select %p330, %s329, 3
        %s332 = smul.addr %s331, 8
        %s333 = scalar_lea.vmem %s2, %s332
        %s334 = smul.u32 2, %s22
        %s335 = smul.u32 2, %s22
        %v336 = vld [vmem:[%s322] sm:$0xff]
        %v337 = vld [vmem:[%s322 + $0x8] sm:$0xff]
        %v338 = vld [vmem:[%s3] sm:$0xff]
        %v339 = vld [vmem:[%s3 + $0x8] sm:$0xff]
        %v340 = vld [vmem:[%s3 + $0x10] sm:$0xff]
        %v341 = vld [vmem:[%s3 + $0x18] sm:$0xff]
        %v342 = vld [vmem:[%s4] sm:$0x1]
        %v344 = vlaneseq
        %v345 = vshrl.u32 %v344, 7
        %v346 = vsub.s32 0, %v345
        %v347 = vrot.slane %v342, %v346
        %vm349 = vcmask 261120
        %v351 = vsel %vm349, %v336, 0
        %v354 = vsel %vm349, %v337, 0
        %356 = vmatprep.subr.mxu0 0.0
        %357 = vmatpush1.msra.mxu0 %v338
        %358 = vmatprep.subr.mxu0 0.0
        %359 = vmatpush1.msra.mxu0 %v339
        %360 = vmatprep.subr.mxu0 0.0
        %361 = vmatpush1.msra.mxu0 %v340
        %362 = vmatprep.subr.mxu0 0.0
        %363 = vmatpush1.msra.mxu0 %v341
        %364 = vmatprep.subr.mxu0 0.0
        %365 = vmatpush1.msra.mxu0 0.0
        %366 = vmatprep.subr.mxu0 0.0
        %367 = vmatpush1.msra.mxu0 0.0
        %368 = vmatprep.subr.mxu0 0.0
        %369 = vmatpush1.msra.mxu0 0.0
        %370 = vmatprep.subr.mxu0 0.0
        %371 = vmatpush1.msra.mxu0 0.0
        %372 = vmatprep.subr.mxu0 0.0
        %373 = vmatpush1.msra.mxu0 0.0
        %374 = vmatprep.subr.mxu0 0.0
        %375 = vmatpush1.msra.mxu0 0.0
        %376 = vmatprep.subr.mxu0 0.0
        %377 = vmatpush1.msra.mxu0 0.0
        %378 = vmatprep.subr.mxu0 0.0
        %379 = vmatpush1.msra.mxu0 0.0
        %380 = vmatprep.subr.mxu0 0.0
        %381 = vmatpush1.msra.mxu0 0.0
        %382 = vmatprep.subr.mxu0 0.0
        %383 = vmatpush1.msra.mxu0 0.0
        %384 = vmatprep.subr.mxu0 0.0
        %385 = vmatpush1.msra.mxu0 0.0
        %386 = vmatprep.subr.mxu0 0.0
        %387 = vmatpush1.msra.mxu0 0.0
        %388 = vmatprep.subr.mxu0 0.0
        %389 = vmatpush1.msra.mxu0 0.0
        %390 = vmatprep.subr.mxu0 0.0
        %391 = vmatpush1.msra.mxu0 0.0
        %392 = vmatprep.subr.mxu0 0.0
        %393 = vmatpush1.msra.mxu0 0.0
        %394 = vmatprep.subr.mxu0 0.0
        %395 = vmatpush1.msra.mxu0 0.0
        %396 = vmatprep.subr.mxu0 0.0
        %397 = vmatpush1.msra.mxu0 0.0
        %398 = vmatprep.subr.mxu0 0.0
        %399 = vmatpush1.msra.mxu0 0.0
        %400 = vmatprep.subr.mxu0 0.0
        %401 = vmatpush1.msra.mxu0 0.0
        %402 = vmatprep.subr.mxu0 0.0
        %403 = vmatpush1.msra.mxu0 0.0
        %404 = vmatprep.subr.mxu0 0.0
        %405 = vmatpush1.msra.mxu0 0.0
        %406 = vmatprep.subr.mxu0 0.0
        %407 = vmatpush1.msra.mxu0 0.0
        %408 = vmatprep.subr.mxu0 0.0
        %409 = vmatpush1.msra.mxu0 0.0
        %410 = vmatprep.subr.mxu0 0.0
        %411 = vmatpush1.msra.mxu0 0.0
        %412 = vmatprep.subr.mxu0 0.0
        %413 = vmatpush1.msra.mxu0 0.0
        %414 = vmatprep.subr.mxu0 0.0
        %415 = vmatpush1.msra.mxu0 0.0
        %416 = vmatprep.subr.mxu0 0.0
        %417 = vmatpush1.msra.mxu0 0.0
        %418 = vmatprep.subr.mxu0 0.0
        %419 = vmatpush1.msra.mxu0 0.0
        %420 = vmatprep.mubr.f32.mxu0 0.0
        %421 = vmatmul.mubr.f32.gmra.mrb[0].mxu0 %v351
        %v422 = vpop.f32.mrb[0].mxu0
        %v423 = vadd.f32 %v347, %v422
        %v424 = vpop.f32.mrb[0].mxu0
        %425 = vmatprep.mubr.f32.mxu0 0.0
        %426 = vmatmul.mubr.f32.gmra.mrb[0].mxu0 %v354
        %v427 = vpop.f32.mrb[0].mxu0
        %v428 = vadd.f32 %v347, %v427
        %v429 = vpop.f32.mrb[0].mxu0
        %430 = vdwg.mxu0
        %v431 = vld [vmem:[%s327] sm:$0x1]
        %v432 = vld [vmem:[%s327 + $0x1] sm:$0x1]
        %434 = vrot.lane.b32.xlu0 %v423, 96
        %v435 = vpop.permute.xlu0 %434
        %vm436 = vcmask 31744
        %v437 = vsel %vm436, %v423, 0
        %v439 = vsel %vm436, %v435, 0
        %441 = vmatprep.subr.mxu0 0.0
        %442 = vmatpush1.xpose.msra.mxu0 %v439
        %443 = vmatprep.subr.mxu0 0.0
        %444 = vmatpush1.xpose.msra.mxu0 0.0
        %445 = vmatprep.subr.mxu0 0.0
        %446 = vmatpush1.xpose.msra.mxu0 0.0
        %447 = vmatprep.subr.mxu0 0.0
        %448 = vmatpush1.xpose.msra.mxu0 0.0
        %449 = vmatprep.subr.mxu0 0.0
        %450 = vmatpush1.xpose.msra.mxu0 0.0
        %451 = vmatprep.subr.mxu0 0.0
        %452 = vmatpush1.xpose.msra.mxu0 0.0
        %453 = vmatprep.subr.mxu0 0.0
        %454 = vmatpush1.xpose.msra.mxu0 0.0
        %455 = vmatprep.subr.mxu0 0.0
        %456 = vmatpush1.xpose.msra.mxu0 0.0
        %457 = vmatprep.subr.mxu0 0.0
        %458 = vmatpush1.xpose.msra.mxu0 0.0
        %459 = vmatprep.subr.mxu0 0.0
        %460 = vmatpush1.xpose.msra.mxu0 0.0
        %461 = vmatprep.subr.mxu0 0.0
        %462 = vmatpush1.xpose.msra.mxu0 0.0
        %463 = vmatprep.subr.mxu0 0.0
        %464 = vmatpush1.xpose.msra.mxu0 0.0
        %465 = vmatprep.subr.mxu0 0.0
        %466 = vmatpush1.xpose.msra.mxu0 0.0
        %467 = vmatprep.subr.mxu0 0.0
        %468 = vmatpush1.xpose.msra.mxu0 0.0
        %469 = vmatprep.subr.mxu0 0.0
        %470 = vmatpush1.xpose.msra.mxu0 0.0
        %471 = vmatprep.subr.mxu0 0.0
        %472 = vmatpush1.xpose.msra.mxu0 0.0
        %473 = vmatprep.subr.mxu0 0.0
        %474 = vmatpush1.xpose.msra.mxu0 0.0
        %475 = vmatprep.subr.mxu0 0.0
        %476 = vmatpush1.xpose.msra.mxu0 0.0
        %477 = vmatprep.subr.mxu0 0.0
        %478 = vmatpush1.xpose.msra.mxu0 0.0
        %479 = vmatprep.subr.mxu0 0.0
        %480 = vmatpush1.xpose.msra.mxu0 0.0
        %481 = vmatprep.subr.mxu0 0.0
        %482 = vmatpush1.xpose.msra.mxu0 0.0
        %483 = vmatprep.subr.mxu0 0.0
        %484 = vmatpush1.xpose.msra.mxu0 0.0
        %485 = vmatprep.subr.mxu0 0.0
        %486 = vmatpush1.xpose.msra.mxu0 0.0
        %487 = vmatprep.subr.mxu0 0.0
        %488 = vmatpush1.xpose.msra.mxu0 0.0
        %489 = vmatprep.subr.mxu0 0.0
        %490 = vmatpush1.xpose.msra.mxu0 0.0
        %491 = vmatprep.subr.mxu0 0.0
        %492 = vmatpush1.xpose.msra.mxu0 0.0
        %493 = vmatprep.subr.mxu0 0.0
        %494 = vmatpush1.xpose.msra.mxu0 0.0
        %495 = vmatprep.subr.mxu0 0.0
        %496 = vmatpush1.xpose.msra.mxu0 0.0
        %497 = vmatprep.subr.mxu0 0.0
        %498 = vmatpush1.xpose.msra.mxu0 0.0
        %499 = vmatprep.subr.mxu0 0.0
        %500 = vmatpush1.xpose.msra.mxu0 0.0
        %501 = vmatprep.subr.mxu0 0.0
        %502 = vmatpush1.xpose.msra.mxu0 0.0
        %503 = vmatprep.subr.mxu0 0.0
        %504 = vmatpush1.xpose.msra.mxu0 0.0
        %505 = vmatprep.mubr.f32.mxu0 0.0
        %506 = vmatmul.mubr.f32.gmra.mrb[0].mxu0 %v437
        %v507 = vpop.f32.mrb[0].mxu0
        %v508 = vadd.f32 0.0, %v507
        %v509 = vpop.f32.mrb[0].mxu0
        %510 = vdwg.mxu0
        %512 = vrot.lane.b32.xlu0 %v428, 96
        %v513 = vpop.permute.xlu0 %512
        %v514 = vsel %vm436, %v428, 0
        %v516 = vsel %vm436, %v513, 0
        %518 = vmatprep.subr.mxu0 0.0
        %519 = vmatpush1.xpose.msra.mxu0 %v516
        %520 = vmatprep.subr.mxu0 0.0
        %521 = vmatpush1.xpose.msra.mxu0 0.0
        %522 = vmatprep.subr.mxu0 0.0
        %523 = vmatpush1.xpose.msra.mxu0 0.0
        %524 = vmatprep.subr.mxu0 0.0
        %525 = vmatpush1.xpose.msra.mxu0 0.0
        %526 = vmatprep.subr.mxu0 0.0
        %527 = vmatpush1.xpose.msra.mxu0 0.0
        %528 = vmatprep.subr.mxu0 0.0
        %529 = vmatpush1.xpose.msra.mxu0 0.0
        %530 = vmatprep.subr.mxu0 0.0
        %531 = vmatpush1.xpose.msra.mxu0 0.0
        %532 = vmatprep.subr.mxu0 0.0
        %533 = vmatpush1.xpose.msra.mxu0 0.0
        %534 = vmatprep.subr.mxu0 0.0
        %535 = vmatpush1.xpose.msra.mxu0 0.0
        %536 = vmatprep.subr.mxu0 0.0
        %537 = vmatpush1.xpose.msra.mxu0 0.0
        %538 = vmatprep.subr.mxu0 0.0
        %539 = vmatpush1.xpose.msra.mxu0 0.0
        %540 = vmatprep.subr.mxu0 0.0
        %541 = vmatpush1.xpose.msra.mxu0 0.0
        %542 = vmatprep.subr.mxu0 0.0
        %543 = vmatpush1.xpose.msra.mxu0 0.0
        %544 = vmatprep.subr.mxu0 0.0
        %545 = vmatpush1.xpose.msra.mxu0 0.0
        %546 = vmatprep.subr.mxu0 0.0
        %547 = vmatpush1.xpose.msra.mxu0 0.0
        %548 = vmatprep.subr.mxu0 0.0
        %549 = vmatpush1.xpose.msra.mxu0 0.0
        %550 = vmatprep.subr.mxu0 0.0
        %551 = vmatpush1.xpose.msra.mxu0 0.0
        %552 = vmatprep.subr.mxu0 0.0
        %553 = vmatpush1.xpose.msra.mxu0 0.0
        %554 = vmatprep.subr.mxu0 0.0
        %555 = vmatpush1.xpose.msra.mxu0 0.0
        %556 = vmatprep.subr.mxu0 0.0
        %557 = vmatpush1.xpose.msra.mxu0 0.0
        %558 = vmatprep.subr.mxu0 0.0
        %559 = vmatpush1.xpose.msra.mxu0 0.0
        %560 = vmatprep.subr.mxu0 0.0
        %561 = vmatpush1.xpose.msra.mxu0 0.0
        %562 = vmatprep.subr.mxu0 0.0
        %563 = vmatpush1.xpose.msra.mxu0 0.0
        %564 = vmatprep.subr.mxu0 0.0
        %565 = vmatpush1.xpose.msra.mxu0 0.0
        %566 = vmatprep.subr.mxu0 0.0
        %567 = vmatpush1.xpose.msra.mxu0 0.0
        %568 = vmatprep.subr.mxu0 0.0
        %569 = vmatpush1.xpose.msra.mxu0 0.0
        %570 = vmatprep.subr.mxu0 0.0
        %571 = vmatpush1.xpose.msra.mxu0 0.0
        %572 = vmatprep.subr.mxu0 0.0
        %573 = vmatpush1.xpose.msra.mxu0 0.0
        %574 = vmatprep.subr.mxu0 0.0
        %575 = vmatpush1.xpose.msra.mxu0 0.0
        %576 = vmatprep.subr.mxu0 0.0
        %577 = vmatpush1.xpose.msra.mxu0 0.0
        %578 = vmatprep.subr.mxu0 0.0
        %579 = vmatpush1.xpose.msra.mxu0 0.0
        %580 = vmatprep.subr.mxu0 0.0
        %581 = vmatpush1.xpose.msra.mxu0 0.0
        %582 = vmatprep.mubr.f32.mxu0 0.0
        %583 = vmatmul.mubr.f32.gmra.mrb[0].mxu0 %v514
        %v584 = vpop.f32.mrb[0].mxu0
        %v585 = vadd.f32 0.0, %v584
        %v586 = vpop.f32.mrb[0].mxu0
        %587 = vdwg.mxu0
        %vm588 = vcmp.gt.f32.partialorder %v431, 0.0
        %vm589 = vcmp.gt.f32.partialorder %v432, 0.0
        %v590 = vsel %vm588, 1, 0
        %v591 = vsel %vm589, 1, 0
        %v592 = vlaneseq
        %v593 = vshrl.u32 %v592, 7
        %v594 = vsub.s32 0, %v593
        %v595 = vrot.slane %v590, %v594
        %v596 = vlaneseq
        %v597 = vshrl.u32 %v596, 7
        %v598 = vsub.s32 0, %v597
        %v599 = vrot.slane %v591, %v598
        %vm600 = vcmp.eq.s32.totalorder %v595, 1
        %vm601 = vcmp.eq.s32.totalorder %v599, 1
        %v602 = vsel %vm600, %v508, -1e+30
        %v603 = vsel %vm601, %v585, -1e+30
        %vm604 = vcmask 64512
        %v605 = vsel %vm604, %v602, -inf
        %606 = vmax.xlane.f32.xlu0 %v605
        %v607 = vpop.xlane.xlu0 %606
        %v608 = vsel %vm604, %v603, -inf
        %609 = vmax.xlane.f32.xlu0 %v608
        %v610 = vpop.xlane.xlu0 %609
        %v611 = vsub.f32 %v602, %v607
        %v612 = vsub.f32 %v603, %v610
        %v613 = vmul.f32 %v611, 1.442695
        %v614 = vpow.pop %v613
        %v615 = vmul.f32 %v612, 1.442695
        %v616 = vpow.pop %v615
        %v617 = vsel %vm604, %v614, 0.0
        %618 = vadd.xlane.f32.xlu0 %v617
        %v619 = vpop.xlane.xlu0 %618
        %v620 = vsel %vm604, %v616, 0.0
        %621 = vadd.xlane.f32.xlu0 %v620
        %v622 = vpop.xlane.xlu0 %621
        %v623 = vrcp.pop %v619
        %v624 = vrcp.pop %v622
        %v625 = vmul.f32 %v619, %v623
        %v626 = vmul.f32 %v622, %v624
        %v627 = vsub.f32 2.0, %v625
        %v628 = vsub.f32 2.0, %v626
        %v629 = vmul.f32 %v623, %v627
        %v630 = vmul.f32 %v624, %v628
        %v631 = vmul.f32 %v614, %v629
        %v632 = vmul.f32 %v616, %v630
        %633 = vrot.lane.b32.xlu0 %v423, 64
        %v634 = vpop.permute.xlu0 %633
        %v637 = vsel %vm604, %v631, 0
        %639 = vmatprep.subr.mxu0 0.0
        %640 = vmatpush1.msra.mxu0 %v634
        %641 = vmatprep.subr.mxu0 0.0
        %642 = vmatpush1.msra.mxu0 0.0
        %643 = vmatprep.subr.mxu0 0.0
        %644 = vmatpush1.msra.mxu0 0.0
        %645 = vmatprep.subr.mxu0 0.0
        %646 = vmatpush1.msra.mxu0 0.0
        %647 = vmatprep.subr.mxu0 0.0
        %648 = vmatpush1.msra.mxu0 0.0
        %649 = vmatprep.subr.mxu0 0.0
        %650 = vmatpush1.msra.mxu0 0.0
        %651 = vmatprep.subr.mxu0 0.0
        %652 = vmatpush1.msra.mxu0 0.0
        %653 = vmatprep.subr.mxu0 0.0
        %654 = vmatpush1.msra.mxu0 0.0
        %655 = vmatprep.subr.mxu0 0.0
        %656 = vmatpush1.msra.mxu0 0.0
        %657 = vmatprep.subr.mxu0 0.0
        %658 = vmatpush1.msra.mxu0 0.0
        %659 = vmatprep.subr.mxu0 0.0
        %660 = vmatpush1.msra.mxu0 0.0
        %661 = vmatprep.subr.mxu0 0.0
        %662 = vmatpush1.msra.mxu0 0.0
        %663 = vmatprep.subr.mxu0 0.0
        %664 = vmatpush1.msra.mxu0 0.0
        %665 = vmatprep.subr.mxu0 0.0
        %666 = vmatpush1.msra.mxu0 0.0
        %667 = vmatprep.subr.mxu0 0.0
        %668 = vmatpush1.msra.mxu0 0.0
        %669 = vmatprep.subr.mxu0 0.0
        %670 = vmatpush1.msra.mxu0 0.0
        %671 = vmatprep.subr.mxu0 0.0
        %672 = vmatpush1.msra.mxu0 0.0
        %673 = vmatprep.subr.mxu0 0.0
        %674 = vmatpush1.msra.mxu0 0.0
        %675 = vmatprep.subr.mxu0 0.0
        %676 = vmatpush1.msra.mxu0 0.0
        %677 = vmatprep.subr.mxu0 0.0
        %678 = vmatpush1.msra.mxu0 0.0
        %679 = vmatprep.subr.mxu0 0.0
        %680 = vmatpush1.msra.mxu0 0.0
        %681 = vmatprep.subr.mxu0 0.0
        %682 = vmatpush1.msra.mxu0 0.0
        %683 = vmatprep.subr.mxu0 0.0
        %684 = vmatpush1.msra.mxu0 0.0
        %685 = vmatprep.subr.mxu0 0.0
        %686 = vmatpush1.msra.mxu0 0.0
        %687 = vmatprep.subr.mxu0 0.0
        %688 = vmatpush1.msra.mxu0 0.0
        %689 = vmatprep.subr.mxu0 0.0
        %690 = vmatpush1.msra.mxu0 0.0
        %691 = vmatprep.subr.mxu0 0.0
        %692 = vmatpush1.msra.mxu0 0.0
        %693 = vmatprep.subr.mxu0 0.0
        %694 = vmatpush1.msra.mxu0 0.0
        %695 = vmatprep.subr.mxu0 0.0
        %696 = vmatpush1.msra.mxu0 0.0
        %697 = vmatprep.subr.mxu0 0.0
        %698 = vmatpush1.msra.mxu0 0.0
        %699 = vmatprep.subr.mxu0 0.0
        %700 = vmatpush1.msra.mxu0 0.0
        %701 = vmatprep.subr.mxu0 0.0
        %702 = vmatpush1.msra.mxu0 0.0
        %703 = vmatprep.mubr.f32.mxu0 0.0
        %704 = vmatmul.mubr.f32.gmra.mrb[0].mxu0 %v637
        %v705 = vpop.f32.mrb[0].mxu0
        %v706 = vadd.f32 0.0, %v705
        %v707 = vpop.f32.mrb[0].mxu0
        %708 = vdwg.mxu0
        %709 = vrot.lane.b32.xlu0 %v428, 64
        %v710 = vpop.permute.xlu0 %709
        %v713 = vsel %vm604, %v632, 0
        %715 = vmatprep.subr.mxu0 0.0
        %716 = vmatpush1.msra.mxu0 %v710
        %717 = vmatprep.subr.mxu0 0.0
        %718 = vmatpush1.msra.mxu0 0.0
        %719 = vmatprep.subr.mxu0 0.0
        %720 = vmatpush1.msra.mxu0 0.0
        %721 = vmatprep.subr.mxu0 0.0
        %722 = vmatpush1.msra.mxu0 0.0
        %723 = vmatprep.subr.mxu0 0.0
        %724 = vmatpush1.msra.mxu0 0.0
        %725 = vmatprep.subr.mxu0 0.0
        %726 = vmatpush1.msra.mxu0 0.0
        %727 = vmatprep.subr.mxu0 0.0
        %728 = vmatpush1.msra.mxu0 0.0
        %729 = vmatprep.subr.mxu0 0.0
        %730 = vmatpush1.msra.mxu0 0.0
        %731 = vmatprep.subr.mxu0 0.0
        %732 = vmatpush1.msra.mxu0 0.0
        %733 = vmatprep.subr.mxu0 0.0
        %734 = vmatpush1.msra.mxu0 0.0
        %735 = vmatprep.subr.mxu0 0.0
        %736 = vmatpush1.msra.mxu0 0.0
        %737 = vmatprep.subr.mxu0 0.0
        %738 = vmatpush1.msra.mxu0 0.0
        %739 = vmatprep.subr.mxu0 0.0
        %740 = vmatpush1.msra.mxu0 0.0
        %741 = vmatprep.subr.mxu0 0.0
        %742 = vmatpush1.msra.mxu0 0.0
        %743 = vmatprep.subr.mxu0 0.0
        %744 = vmatpush1.msra.mxu0 0.0
        %745 = vmatprep.subr.mxu0 0.0
        %746 = vmatpush1.msra.mxu0 0.0
        %747 = vmatprep.subr.mxu0 0.0
        %748 = vmatpush1.msra.mxu0 0.0
        %749 = vmatprep.subr.mxu0 0.0
        %750 = vmatpush1.msra.mxu0 0.0
        %751 = vmatprep.subr.mxu0 0.0
        %752 = vmatpush1.msra.mxu0 0.0
        %753 = vmatprep.subr.mxu0 0.0
        %754 = vmatpush1.msra.mxu0 0.0
        %755 = vmatprep.subr.mxu0 0.0
        %756 = vmatpush1.msra.mxu0 0.0
        %757 = vmatprep.subr.mxu0 0.0
        %758 = vmatpush1.msra.mxu0 0.0
        %759 = vmatprep.subr.mxu0 0.0
        %760 = vmatpush1.msra.mxu0 0.0
        %761 = vmatprep.subr.mxu0 0.0
        %762 = vmatpush1.msra.mxu0 0.0
        %763 = vmatprep.subr.mxu0 0.0
        %764 = vmatpush1.msra.mxu0 0.0
        %765 = vmatprep.subr.mxu0 0.0
        %766 = vmatpush1.msra.mxu0 0.0
        %767 = vmatprep.subr.mxu0 0.0
        %768 = vmatpush1.msra.mxu0 0.0
        %769 = vmatprep.subr.mxu0 0.0
        %770 = vmatpush1.msra.mxu0 0.0
        %771 = vmatprep.subr.mxu0 0.0
        %772 = vmatpush1.msra.mxu0 0.0
        %773 = vmatprep.subr.mxu0 0.0
        %774 = vmatpush1.msra.mxu0 0.0
        %775 = vmatprep.subr.mxu0 0.0
        %776 = vmatpush1.msra.mxu0 0.0
        %777 = vmatprep.subr.mxu0 0.0
        %778 = vmatpush1.msra.mxu0 0.0
        %779 = vmatprep.mubr.f32.mxu0 0.0
        %780 = vmatmul.mubr.f32.gmra.mrb[0].mxu0 %v713
        %v781 = vpop.f32.mrb[0].mxu0
        %v782 = vadd.f32 0.0, %v781
        %v783 = vpop.f32.mrb[0].mxu0
        %784 = vdwg.mxu0
        %785 = vrot.lane.b32.xlu0 %v423, 124
        %v786 = vpop.permute.xlu0 %785
        %787 = vrot.lane.b32.xlu0 %v423, 92
        %v788 = vpop.permute.xlu0 %787
        %v789 = vsel %vm436, %v786, 0
        %v791 = vsel %vm436, %v788, 0
        %793 = vmatprep.subr.mxu0 0.0
        %794 = vmatpush1.xpose.msra.mxu0 %v791
        %795 = vmatprep.subr.mxu0 0.0
        %796 = vmatpush1.xpose.msra.mxu0 0.0
        %797 = vmatprep.subr.mxu0 0.0
        %798 = vmatpush1.xpose.msra.mxu0 0.0
        %799 = vmatprep.subr.mxu0 0.0
        %800 = vmatpush1.xpose.msra.mxu0 0.0
        %801 = vmatprep.subr.mxu0 0.0
        %802 = vmatpush1.xpose.msra.mxu0 0.0
        %803 = vmatprep.subr.mxu0 0.0
        %804 = vmatpush1.xpose.msra.mxu0 0.0
        %805 = vmatprep.subr.mxu0 0.0
        %806 = vmatpush1.xpose.msra.mxu0 0.0
        %807 = vmatprep.subr.mxu0 0.0
        %808 = vmatpush1.xpose.msra.mxu0 0.0
        %809 = vmatprep.subr.mxu0 0.0
        %810 = vmatpush1.xpose.msra.mxu0 0.0
        %811 = vmatprep.subr.mxu0 0.0
        %812 = vmatpush1.xpose.msra.mxu0 0.0
        %813 = vmatprep.subr.mxu0 0.0
        %814 = vmatpush1.xpose.msra.mxu0 0.0
        %815 = vmatprep.subr.mxu0 0.0
        %816 = vmatpush1.xpose.msra.mxu0 0.0
        %817 = vmatprep.subr.mxu0 0.0
        %818 = vmatpush1.xpose.msra.mxu0 0.0
        %819 = vmatprep.subr.mxu0 0.0
        %820 = vmatpush1.xpose.msra.mxu0 0.0
        %821 = vmatprep.subr.mxu0 0.0
        %822 = vmatpush1.xpose.msra.mxu0 0.0
        %823 = vmatprep.subr.mxu0 0.0
        %824 = vmatpush1.xpose.msra.mxu0 0.0
        %825 = vmatprep.subr.mxu0 0.0
        %826 = vmatpush1.xpose.msra.mxu0 0.0
        %827 = vmatprep.subr.mxu0 0.0
        %828 = vmatpush1.xpose.msra.mxu0 0.0
        %829 = vmatprep.subr.mxu0 0.0
        %830 = vmatpush1.xpose.msra.mxu0 0.0
        %831 = vmatprep.subr.mxu0 0.0
        %832 = vmatpush1.xpose.msra.mxu0 0.0
        %833 = vmatprep.subr.mxu0 0.0
        %834 = vmatpush1.xpose.msra.mxu0 0.0
        %835 = vmatprep.subr.mxu0 0.0
        %836 = vmatpush1.xpose.msra.mxu0 0.0
        %837 = vmatprep.subr.mxu0 0.0
        %838 = vmatpush1.xpose.msra.mxu0 0.0
        %839 = vmatprep.subr.mxu0 0.0
        %840 = vmatpush1.xpose.msra.mxu0 0.0
        %841 = vmatprep.subr.mxu0 0.0
        %842 = vmatpush1.xpose.msra.mxu0 0.0
        %843 = vmatprep.subr.mxu0 0.0
        %844 = vmatpush1.xpose.msra.mxu0 0.0
        %845 = vmatprep.subr.mxu0 0.0
        %846 = vmatpush1.xpose.msra.mxu0 0.0
        %847 = vmatprep.subr.mxu0 0.0
        %848 = vmatpush1.xpose.msra.mxu0 0.0
        %849 = vmatprep.subr.mxu0 0.0
        %850 = vmatpush1.xpose.msra.mxu0 0.0
        %851 = vmatprep.subr.mxu0 0.0
        %852 = vmatpush1.xpose.msra.mxu0 0.0
        %853 = vmatprep.subr.mxu0 0.0
        %854 = vmatpush1.xpose.msra.mxu0 0.0
        %855 = vmatprep.subr.mxu0 0.0
        %856 = vmatpush1.xpose.msra.mxu0 0.0
        %857 = vmatprep.mubr.f32.mxu0 0.0
        %858 = vmatmul.mubr.f32.gmra.mrb[0].mxu0 %v789
        %v859 = vpop.f32.mrb[0].mxu0
        %v860 = vadd.f32 0.0, %v859
        %v861 = vpop.f32.mrb[0].mxu0
        %862 = vdwg.mxu0
        %863 = vrot.lane.b32.xlu0 %v428, 124
        %v864 = vpop.permute.xlu0 %863
        %865 = vrot.lane.b32.xlu0 %v428, 92
        %v866 = vpop.permute.xlu0 %865
        %v867 = vsel %vm436, %v864, 0
        %v869 = vsel %vm436, %v866, 0
        %871 = vmatprep.subr.mxu0 0.0
        %872 = vmatpush1.xpose.msra.mxu0 %v869
        %873 = vmatprep.subr.mxu0 0.0
        %874 = vmatpush1.xpose.msra.mxu0 0.0
        %875 = vmatprep.subr.mxu0 0.0
        %876 = vmatpush1.xpose.msra.mxu0 0.0
        %877 = vmatprep.subr.mxu0 0.0
        %878 = vmatpush1.xpose.msra.mxu0 0.0
        %879 = vmatprep.subr.mxu0 0.0
        %880 = vmatpush1.xpose.msra.mxu0 0.0
        %881 = vmatprep.subr.mxu0 0.0
        %882 = vmatpush1.xpose.msra.mxu0 0.0
        %883 = vmatprep.subr.mxu0 0.0
        %884 = vmatpush1.xpose.msra.mxu0 0.0
        %885 = vmatprep.subr.mxu0 0.0
        %886 = vmatpush1.xpose.msra.mxu0 0.0
        %887 = vmatprep.subr.mxu0 0.0
        %888 = vmatpush1.xpose.msra.mxu0 0.0
        %889 = vmatprep.subr.mxu0 0.0
        %890 = vmatpush1.xpose.msra.mxu0 0.0
        %891 = vmatprep.subr.mxu0 0.0
        %892 = vmatpush1.xpose.msra.mxu0 0.0
        %893 = vmatprep.subr.mxu0 0.0
        %894 = vmatpush1.xpose.msra.mxu0 0.0
        %895 = vmatprep.subr.mxu0 0.0
        %896 = vmatpush1.xpose.msra.mxu0 0.0
        %897 = vmatprep.subr.mxu0 0.0
        %898 = vmatpush1.xpose.msra.mxu0 0.0
        %899 = vmatprep.subr.mxu0 0.0
        %900 = vmatpush1.xpose.msra.mxu0 0.0
        %901 = vmatprep.subr.mxu0 0.0
        %902 = vmatpush1.xpose.msra.mxu0 0.0
        %903 = vmatprep.subr.mxu0 0.0
        %904 = vmatpush1.xpose.msra.mxu0 0.0
        %905 = vmatprep.subr.mxu0 0.0
        %906 = vmatpush1.xpose.msra.mxu0 0.0
        %907 = vmatprep.subr.mxu0 0.0
        %908 = vmatpush1.xpose.msra.mxu0 0.0
        %909 = vmatprep.subr.mxu0 0.0
        %910 = vmatpush1.xpose.msra.mxu0 0.0
        %911 = vmatprep.subr.mxu0 0.0
        %912 = vmatpush1.xpose.msra.mxu0 0.0
        %913 = vmatprep.subr.mxu0 0.0
        %914 = vmatpush1.xpose.msra.mxu0 0.0
        %915 = vmatprep.subr.mxu0 0.0
        %916 = vmatpush1.xpose.msra.mxu0 0.0
        %917 = vmatprep.subr.mxu0 0.0
        %918 = vmatpush1.xpose.msra.mxu0 0.0
        %919 = vmatprep.subr.mxu0 0.0
        %920 = vmatpush1.xpose.msra.mxu0 0.0
        %921 = vmatprep.subr.mxu0 0.0
        %922 = vmatpush1.xpose.msra.mxu0 0.0
        %923 = vmatprep.subr.mxu0 0.0
        %924 = vmatpush1.xpose.msra.mxu0 0.0
        %925 = vmatprep.subr.mxu0 0.0
        %926 = vmatpush1.xpose.msra.mxu0 0.0
        %927 = vmatprep.subr.mxu0 0.0
        %928 = vmatpush1.xpose.msra.mxu0 0.0
        %929 = vmatprep.subr.mxu0 0.0
        %930 = vmatpush1.xpose.msra.mxu0 0.0
        %931 = vmatprep.subr.mxu0 0.0
        %932 = vmatpush1.xpose.msra.mxu0 0.0
        %933 = vmatprep.subr.mxu0 0.0
        %934 = vmatpush1.xpose.msra.mxu0 0.0
        %935 = vmatprep.mubr.f32.mxu0 0.0
        %936 = vmatmul.mubr.f32.gmra.mrb[0].mxu0 %v867
        %v937 = vpop.f32.mrb[0].mxu0
        %v938 = vadd.f32 0.0, %v937
        %v939 = vpop.f32.mrb[0].mxu0
        %940 = vdwg.mxu0
        %v941 = vsel %vm600, %v860, -1e+30
        %v942 = vsel %vm601, %v938, -1e+30
        %v943 = vsel %vm604, %v941, -inf
        %944 = vmax.xlane.f32.xlu0 %v943
        %v945 = vpop.xlane.xlu0 %944
        %v946 = vsel %vm604, %v942, -inf
        %947 = vmax.xlane.f32.xlu0 %v946
        %v948 = vpop.xlane.xlu0 %947
        %v949 = vsub.f32 %v941, %v945
        %v950 = vsub.f32 %v942, %v948
        %v951 = vmul.f32 %v949, 1.442695
        %v952 = vpow.pop %v951
        %v953 = vmul.f32 %v950, 1.442695
        %v954 = vpow.pop %v953
        %v955 = vsel %vm604, %v952, 0.0
        %956 = vadd.xlane.f32.xlu0 %v955
        %v957 = vpop.xlane.xlu0 %956
        %v958 = vsel %vm604, %v954, 0.0
        %959 = vadd.xlane.f32.xlu0 %v958
        %v960 = vpop.xlane.xlu0 %959
        %v961 = vrcp.pop %v957
        %v962 = vrcp.pop %v960
        %v963 = vmul.f32 %v957, %v961
        %v964 = vmul.f32 %v960, %v962
        %v965 = vsub.f32 2.0, %v963
        %v966 = vsub.f32 2.0, %v964
        %v967 = vmul.f32 %v961, %v965
        %v968 = vmul.f32 %v962, %v966
        %v969 = vmul.f32 %v952, %v967
        %v970 = vmul.f32 %v954, %v968
        %971 = vrot.lane.b32.xlu0 %v423, 60
        %v972 = vpop.permute.xlu0 %971
        %v975 = vsel %vm604, %v969, 0
        %977 = vmatprep.subr.mxu0 0.0
        %978 = vmatpush1.msra.mxu0 %v972
        %979 = vmatprep.subr.mxu0 0.0
        %980 = vmatpush1.msra.mxu0 0.0
        %981 = vmatprep.subr.mxu0 0.0
        %982 = vmatpush1.msra.mxu0 0.0
        %983 = vmatprep.subr.mxu0 0.0
        %984 = vmatpush1.msra.mxu0 0.0
        %985 = vmatprep.subr.mxu0 0.0
        %986 = vmatpush1.msra.mxu0 0.0
        %987 = vmatprep.subr.mxu0 0.0
        %988 = vmatpush1.msra.mxu0 0.0
        %989 = vmatprep.subr.mxu0 0.0
        %990 = vmatpush1.msra.mxu0 0.0
        %991 = vmatprep.subr.mxu0 0.0
        %992 = vmatpush1.msra.mxu0 0.0
        %993 = vmatprep.subr.mxu0 0.0
        %994 = vmatpush1.msra.mxu0 0.0
        %995 = vmatprep.subr.mxu0 0.0
        %996 = vmatpush1.msra.mxu0 0.0
        %997 = vmatprep.subr.mxu0 0.0
        %998 = vmatpush1.msra.mxu0 0.0
        %999 = vmatprep.subr.mxu0 0.0
        %1000 = vmatpush1.msra.mxu0 0.0
        %1001 = vmatprep.subr.mxu0 0.0
        %1002 = vmatpush1.msra.mxu0 0.0
        %1003 = vmatprep.subr.mxu0 0.0
        %1004 = vmatpush1.msra.mxu0 0.0
        %1005 = vmatprep.subr.mxu0 0.0
        %1006 = vmatpush1.msra.mxu0 0.0
        %1007 = vmatprep.subr.mxu0 0.0
        %1008 = vmatpush1.msra.mxu0 0.0
        %1009 = vmatprep.subr.mxu0 0.0
        %1010 = vmatpush1.msra.mxu0 0.0
        %1011 = vmatprep.subr.mxu0 0.0
        %1012 = vmatpush1.msra.mxu0 0.0
        %1013 = vmatprep.subr.mxu0 0.0
        %1014 = vmatpush1.msra.mxu0 0.0
        %1015 = vmatprep.subr.mxu0 0.0
        %1016 = vmatpush1.msra.mxu0 0.0
        %1017 = vmatprep.subr.mxu0 0.0
        %1018 = vmatpush1.msra.mxu0 0.0
        %1019 = vmatprep.subr.mxu0 0.0
        %1020 = vmatpush1.msra.mxu0 0.0
        %1021 = vmatprep.subr.mxu0 0.0
        %1022 = vmatpush1.msra.mxu0 0.0
        %1023 = vmatprep.subr.mxu0 0.0
        %1024 = vmatpush1.msra.mxu0 0.0
        %1025 = vmatprep.subr.mxu0 0.0
        %1026 = vmatpush1.msra.mxu0 0.0
        %1027 = vmatprep.subr.mxu0 0.0
        %1028 = vmatpush1.msra.mxu0 0.0
        %1029 = vmatprep.subr.mxu0 0.0
        %1030 = vmatpush1.msra.mxu0 0.0
        %1031 = vmatprep.subr.mxu0 0.0
        %1032 = vmatpush1.msra.mxu0 0.0
        %1033 = vmatprep.subr.mxu0 0.0
        %1034 = vmatpush1.msra.mxu0 0.0
        %1035 = vmatprep.subr.mxu0 0.0
        %1036 = vmatpush1.msra.mxu0 0.0
        %1037 = vmatprep.subr.mxu0 0.0
        %1038 = vmatpush1.msra.mxu0 0.0
        %1039 = vmatprep.subr.mxu0 0.0
        %1040 = vmatpush1.msra.mxu0 0.0
        %1041 = vmatprep.mubr.f32.mxu0 0.0
        %1042 = vmatmul.mubr.f32.gmra.mrb[0].mxu0 %v975
        %v1043 = vpop.f32.mrb[0].mxu0
        %v1044 = vadd.f32 0.0, %v1043
        %v1045 = vpop.f32.mrb[0].mxu0
        %1046 = vdwg.mxu0
        %1047 = vrot.lane.b32.xlu0 %v428, 60
        %v1048 = vpop.permute.xlu0 %1047
        %v1051 = vsel %vm604, %v970, 0
        %1053 = vmatprep.subr.mxu0 0.0
        %1054 = vmatpush1.msra.mxu0 %v1048
        %1055 = vmatprep.subr.mxu0 0.0
        %1056 = vmatpush1.msra.mxu0 0.0
        %1057 = vmatprep.subr.mxu0 0.0
        %1058 = vmatpush1.msra.mxu0 0.0
        %1059 = vmatprep.subr.mxu0 0.0
        %1060 = vmatpush1.msra.mxu0 0.0
        %1061 = vmatprep.subr.mxu0 0.0
        %1062 = vmatpush1.msra.mxu0 0.0
        %1063 = vmatprep.subr.mxu0 0.0
        %1064 = vmatpush1.msra.mxu0 0.0
        %1065 = vmatprep.subr.mxu0 0.0
        %1066 = vmatpush1.msra.mxu0 0.0
        %1067 = vmatprep.subr.mxu0 0.0
        %1068 = vmatpush1.msra.mxu0 0.0
        %1069 = vmatprep.subr.mxu0 0.0
        %1070 = vmatpush1.msra.mxu0 0.0
        %1071 = vmatprep.subr.mxu0 0.0
        %1072 = vmatpush1.msra.mxu0 0.0
        %1073 = vmatprep.subr.mxu0 0.0
        %1074 = vmatpush1.msra.mxu0 0.0
        %1075 = vmatprep.subr.mxu0 0.0
        %1076 = vmatpush1.msra.mxu0 0.0
        %1077 = vmatprep.subr.mxu0 0.0
        %1078 = vmatpush1.msra.mxu0 0.0
        %1079 = vmatprep.subr.mxu0 0.0
        %1080 = vmatpush1.msra.mxu0 0.0
        %1081 = vmatprep.subr.mxu0 0.0
        %1082 = vmatpush1.msra.mxu0 0.0
        %1083 = vmatprep.subr.mxu0 0.0
        %1084 = vmatpush1.msra.mxu0 0.0
        %1085 = vmatprep.subr.mxu0 0.0
        %1086 = vmatpush1.msra.mxu0 0.0
        %1087 = vmatprep.subr.mxu0 0.0
        %1088 = vmatpush1.msra.mxu0 0.0
        %1089 = vmatprep.subr.mxu0 0.0
        %1090 = vmatpush1.msra.mxu0 0.0
        %1091 = vmatprep.subr.mxu0 0.0
        %1092 = vmatpush1.msra.mxu0 0.0
        %1093 = vmatprep.subr.mxu0 0.0
        %1094 = vmatpush1.msra.mxu0 0.0
        %1095 = vmatprep.subr.mxu0 0.0
        %1096 = vmatpush1.msra.mxu0 0.0
        %1097 = vmatprep.subr.mxu0 0.0
        %1098 = vmatpush1.msra.mxu0 0.0
        %1099 = vmatprep.subr.mxu0 0.0
        %1100 = vmatpush1.msra.mxu0 0.0
        %1101 = vmatprep.subr.mxu0 0.0
        %1102 = vmatpush1.msra.mxu0 0.0
        %1103 = vmatprep.subr.mxu0 0.0
        %1104 = vmatpush1.msra.mxu0 0.0
        %1105 = vmatprep.subr.mxu0 0.0
        %1106 = vmatpush1.msra.mxu0 0.0
        %1107 = vmatprep.subr.mxu0 0.0
        %1108 = vmatpush1.msra.mxu0 0.0
        %1109 = vmatprep.subr.mxu0 0.0
        %1110 = vmatpush1.msra.mxu0 0.0
        %1111 = vmatprep.subr.mxu0 0.0
        %1112 = vmatpush1.msra.mxu0 0.0
        %1113 = vmatprep.subr.mxu0 0.0
        %1114 = vmatpush1.msra.mxu0 0.0
        %1115 = vmatprep.subr.mxu0 0.0
        %1116 = vmatpush1.msra.mxu0 0.0
        %1117 = vmatprep.mubr.f32.mxu0 0.0
        %1118 = vmatmul.mubr.f32.gmra.mrb[0].mxu0 %v1051
        %v1119 = vpop.f32.mrb[0].mxu0
        %v1120 = vadd.f32 0.0, %v1119
        %v1121 = vpop.f32.mrb[0].mxu0
        %1122 = vdwg.mxu0
        %1123 = vrot.lane.b32.xlu0 %v423, 120
        %v1124 = vpop.permute.xlu0 %1123
        %1125 = vrot.lane.b32.xlu0 %v423, 88
        %v1126 = vpop.permute.xlu0 %1125
        %v1127 = vsel %vm436, %v1124, 0
        %v1129 = vsel %vm436, %v1126, 0
        %1131 = vmatprep.subr.mxu0 0.0
        %1132 = vmatpush1.xpose.msra.mxu0 %v1129
        %1133 = vmatprep.subr.mxu0 0.0
        %1134 = vmatpush1.xpose.msra.mxu0 0.0
        %1135 = vmatprep.subr.mxu0 0.0
        %1136 = vmatpush1.xpose.msra.mxu0 0.0
        %1137 = vmatprep.subr.mxu0 0.0
        %1138 = vmatpush1.xpose.msra.mxu0 0.0
        %1139 = vmatprep.subr.mxu0 0.0
        %1140 = vmatpush1.xpose.msra.mxu0 0.0
        %1141 = vmatprep.subr.mxu0 0.0
        %1142 = vmatpush1.xpose.msra.mxu0 0.0
        %1143 = vmatprep.subr.mxu0 0.0
        %1144 = vmatpush1.xpose.msra.mxu0 0.0
        %1145 = vmatprep.subr.mxu0 0.0
        %1146 = vmatpush1.xpose.msra.mxu0 0.0
        %1147 = vmatprep.subr.mxu0 0.0
        %1148 = vmatpush1.xpose.msra.mxu0 0.0
        %1149 = vmatprep.subr.mxu0 0.0
        %1150 = vmatpush1.xpose.msra.mxu0 0.0
        %1151 = vmatprep.subr.mxu0 0.0
        %1152 = vmatpush1.xpose.msra.mxu0 0.0
        %1153 = vmatprep.subr.mxu0 0.0
        %1154 = vmatpush1.xpose.msra.mxu0 0.0
        %1155 = vmatprep.subr.mxu0 0.0
        %1156 = vmatpush1.xpose.msra.mxu0 0.0
        %1157 = vmatprep.subr.mxu0 0.0
        %1158 = vmatpush1.xpose.msra.mxu0 0.0
        %1159 = vmatprep.subr.mxu0 0.0
        %1160 = vmatpush1.xpose.msra.mxu0 0.0
        %1161 = vmatprep.subr.mxu0 0.0
        %1162 = vmatpush1.xpose.msra.mxu0 0.0
        %1163 = vmatprep.subr.mxu0 0.0
        %1164 = vmatpush1.xpose.msra.mxu0 0.0
        %1165 = vmatprep.subr.mxu0 0.0
        %1166 = vmatpush1.xpose.msra.mxu0 0.0
        %1167 = vmatprep.subr.mxu0 0.0
        %1168 = vmatpush1.xpose.msra.mxu0 0.0
        %1169 = vmatprep.subr.mxu0 0.0
        %1170 = vmatpush1.xpose.msra.mxu0 0.0
        %1171 = vmatprep.subr.mxu0 0.0
        %1172 = vmatpush1.xpose.msra.mxu0 0.0
        %1173 = vmatprep.subr.mxu0 0.0
        %1174 = vmatpush1.xpose.msra.mxu0 0.0
        %1175 = vmatprep.subr.mxu0 0.0
        %1176 = vmatpush1.xpose.msra.mxu0 0.0
        %1177 = vmatprep.subr.mxu0 0.0
        %1178 = vmatpush1.xpose.msra.mxu0 0.0
        %1179 = vmatprep.subr.mxu0 0.0
        %1180 = vmatpush1.xpose.msra.mxu0 0.0
        %1181 = vmatprep.subr.mxu0 0.0
        %1182 = vmatpush1.xpose.msra.mxu0 0.0
        %1183 = vmatprep.subr.mxu0 0.0
        %1184 = vmatpush1.xpose.msra.mxu0 0.0
        %1185 = vmatprep.subr.mxu0 0.0
        %1186 = vmatpush1.xpose.msra.mxu0 0.0
        %1187 = vmatprep.subr.mxu0 0.0
        %1188 = vmatpush1.xpose.msra.mxu0 0.0
        %1189 = vmatprep.subr.mxu0 0.0
        %1190 = vmatpush1.xpose.msra.mxu0 0.0
        %1191 = vmatprep.subr.mxu0 0.0
        %1192 = vmatpush1.xpose.msra.mxu0 0.0
        %1193 = vmatprep.subr.mxu0 0.0
        %1194 = vmatpush1.xpose.msra.mxu0 0.0
        %1195 = vmatprep.mubr.f32.mxu0 0.0
        %1196 = vmatmul.mubr.f32.gmra.mrb[0].mxu0 %v1127
        %v1197 = vpop.f32.mrb[0].mxu0
        %v1198 = vadd.f32 0.0, %v1197
        %v1199 = vpop.f32.mrb[0].mxu0
        %1200 = vdwg.mxu0
        %1201 = vrot.lane.b32.xlu0 %v428, 120
        %v1202 = vpop.permute.xlu0 %1201
        %1203 = vrot.lane.b32.xlu0 %v428, 88
        %v1204 = vpop.permute.xlu0 %1203
        %v1205 = vsel %vm436, %v1202, 0
        %v1207 = vsel %vm436, %v1204, 0
        %1209 = vmatprep.subr.mxu0 0.0
        %1210 = vmatpush1.xpose.msra.mxu0 %v1207
        %1211 = vmatprep.subr.mxu0 0.0
        %1212 = vmatpush1.xpose.msra.mxu0 0.0
        %1213 = vmatprep.subr.mxu0 0.0
        %1214 = vmatpush1.xpose.msra.mxu0 0.0
        %1215 = vmatprep.subr.mxu0 0.0
        %1216 = vmatpush1.xpose.msra.mxu0 0.0
        %1217 = vmatprep.subr.mxu0 0.0
        %1218 = vmatpush1.xpose.msra.mxu0 0.0
        %1219 = vmatprep.subr.mxu0 0.0
        %1220 = vmatpush1.xpose.msra.mxu0 0.0
        %1221 = vmatprep.subr.mxu0 0.0
        %1222 = vmatpush1.xpose.msra.mxu0 0.0
        %1223 = vmatprep.subr.mxu0 0.0
        %1224 = vmatpush1.xpose.msra.mxu0 0.0
        %1225 = vmatprep.subr.mxu0 0.0
        %1226 = vmatpush1.xpose.msra.mxu0 0.0
        %1227 = vmatprep.subr.mxu0 0.0
        %1228 = vmatpush1.xpose.msra.mxu0 0.0
        %1229 = vmatprep.subr.mxu0 0.0
        %1230 = vmatpush1.xpose.msra.mxu0 0.0
        %1231 = vmatprep.subr.mxu0 0.0
        %1232 = vmatpush1.xpose.msra.mxu0 0.0
        %1233 = vmatprep.subr.mxu0 0.0
        %1234 = vmatpush1.xpose.msra.mxu0 0.0
        %1235 = vmatprep.subr.mxu0 0.0
        %1236 = vmatpush1.xpose.msra.mxu0 0.0
        %1237 = vmatprep.subr.mxu0 0.0
        %1238 = vmatpush1.xpose.msra.mxu0 0.0
        %1239 = vmatprep.subr.mxu0 0.0
        %1240 = vmatpush1.xpose.msra.mxu0 0.0
        %1241 = vmatprep.subr.mxu0 0.0
        %1242 = vmatpush1.xpose.msra.mxu0 0.0
        %1243 = vmatprep.subr.mxu0 0.0
        %1244 = vmatpush1.xpose.msra.mxu0 0.0
        %1245 = vmatprep.subr.mxu0 0.0
        %1246 = vmatpush1.xpose.msra.mxu0 0.0
        %1247 = vmatprep.subr.mxu0 0.0
        %1248 = vmatpush1.xpose.msra.mxu0 0.0
        %1249 = vmatprep.subr.mxu0 0.0
        %1250 = vmatpush1.xpose.msra.mxu0 0.0
        %1251 = vmatprep.subr.mxu0 0.0
        %1252 = vmatpush1.xpose.msra.mxu0 0.0
        %1253 = vmatprep.subr.mxu0 0.0
        %1254 = vmatpush1.xpose.msra.mxu0 0.0
        %1255 = vmatprep.subr.mxu0 0.0
        %1256 = vmatpush1.xpose.msra.mxu0 0.0
        %1257 = vmatprep.subr.mxu0 0.0
        %1258 = vmatpush1.xpose.msra.mxu0 0.0
        %1259 = vmatprep.subr.mxu0 0.0
        %1260 = vmatpush1.xpose.msra.mxu0 0.0
        %1261 = vmatprep.subr.mxu0 0.0
        %1262 = vmatpush1.xpose.msra.mxu0 0.0
        %1263 = vmatprep.subr.mxu0 0.0
        %1264 = vmatpush1.xpose.msra.mxu0 0.0
        %1265 = vmatprep.subr.mxu0 0.0
        %1266 = vmatpush1.xpose.msra.mxu0 0.0
        %1267 = vmatprep.subr.mxu0 0.0
        %1268 = vmatpush1.xpose.msra.mxu0 0.0
        %1269 = vmatprep.subr.mxu0 0.0
        %1270 = vmatpush1.xpose.msra.mxu0 0.0
        %1271 = vmatprep.subr.mxu0 0.0
        %1272 = vmatpush1.xpose.msra.mxu0 0.0
        %1273 = vmatprep.mubr.f32.mxu0 0.0
        %1274 = vmatmul.mubr.f32.gmra.mrb[0].mxu0 %v1205
        %v1275 = vpop.f32.mrb[0].mxu0
        %v1276 = vadd.f32 0.0, %v1275
        %v1277 = vpop.f32.mrb[0].mxu0
        %1278 = vdwg.mxu0
        %v1279 = vsel %vm600, %v1198, -1e+30
        %v1280 = vsel %vm601, %v1276, -1e+30
        %v1281 = vsel %vm604, %v1279, -inf
        %1282 = vmax.xlane.f32.xlu0 %v1281
        %v1283 = vpop.xlane.xlu0 %1282
        %v1284 = vsel %vm604, %v1280, -inf
        %1285 = vmax.xlane.f32.xlu0 %v1284
        %v1286 = vpop.xlane.xlu0 %1285
        %v1287 = vsub.f32 %v1279, %v1283
        %v1288 = vsub.f32 %v1280, %v1286
        %v1289 = vmul.f32 %v1287, 1.442695
        %v1290 = vpow.pop %v1289
        %v1291 = vmul.f32 %v1288, 1.442695
        %v1292 = vpow.pop %v1291
        %v1293 = vsel %vm604, %v1290, 0.0
        %1294 = vadd.xlane.f32.xlu0 %v1293
        %v1295 = vpop.xlane.xlu0 %1294
        %v1296 = vsel %vm604, %v1292, 0.0
        %1297 = vadd.xlane.f32.xlu0 %v1296
        %v1298 = vpop.xlane.xlu0 %1297
        %v1299 = vrcp.pop %v1295
        %v1300 = vrcp.pop %v1298
        %v1301 = vmul.f32 %v1295, %v1299
        %v1302 = vmul.f32 %v1298, %v1300
        %v1303 = vsub.f32 2.0, %v1301
        %v1304 = vsub.f32 2.0, %v1302
        %v1305 = vmul.f32 %v1299, %v1303
        %v1306 = vmul.f32 %v1300, %v1304
        %v1307 = vmul.f32 %v1290, %v1305
        %v1308 = vmul.f32 %v1292, %v1306
        %1309 = vrot.lane.b32.xlu0 %v423, 56
        %v1310 = vpop.permute.xlu0 %1309
        %v1313 = vsel %vm604, %v1307, 0
        %1315 = vmatprep.subr.mxu0 0.0
        %1316 = vmatpush1.msra.mxu0 %v1310
        %1317 = vmatprep.subr.mxu0 0.0
        %1318 = vmatpush1.msra.mxu0 0.0
        %1319 = vmatprep.subr.mxu0 0.0
        %1320 = vmatpush1.msra.mxu0 0.0
        %1321 = vmatprep.subr.mxu0 0.0
        %1322 = vmatpush1.msra.mxu0 0.0
        %1323 = vmatprep.subr.mxu0 0.0
        %1324 = vmatpush1.msra.mxu0 0.0
        %1325 = vmatprep.subr.mxu0 0.0
        %1326 = vmatpush1.msra.mxu0 0.0
        %1327 = vmatprep.subr.mxu0 0.0
        %1328 = vmatpush1.msra.mxu0 0.0
        %1329 = vmatprep.subr.mxu0 0.0
        %1330 = vmatpush1.msra.mxu0 0.0
        %1331 = vmatprep.subr.mxu0 0.0
        %1332 = vmatpush1.msra.mxu0 0.0
        %1333 = vmatprep.subr.mxu0 0.0
        %1334 = vmatpush1.msra.mxu0 0.0
        %1335 = vmatprep.subr.mxu0 0.0
        %1336 = vmatpush1.msra.mxu0 0.0
        %1337 = vmatprep.subr.mxu0 0.0
        %1338 = vmatpush1.msra.mxu0 0.0
        %1339 = vmatprep.subr.mxu0 0.0
        %1340 = vmatpush1.msra.mxu0 0.0
        %1341 = vmatprep.subr.mxu0 0.0
        %1342 = vmatpush1.msra.mxu0 0.0
        %1343 = vmatprep.subr.mxu0 0.0
        %1344 = vmatpush1.msra.mxu0 0.0
        %1345 = vmatprep.subr.mxu0 0.0
        %1346 = vmatpush1.msra.mxu0 0.0
        %1347 = vmatprep.subr.mxu0 0.0
        %1348 = vmatpush1.msra.mxu0 0.0
        %1349 = vmatprep.subr.mxu0 0.0
        %1350 = vmatpush1.msra.mxu0 0.0
        %1351 = vmatprep.subr.mxu0 0.0
        %1352 = vmatpush1.msra.mxu0 0.0
        %1353 = vmatprep.subr.mxu0 0.0
        %1354 = vmatpush1.msra.mxu0 0.0
        %1355 = vmatprep.subr.mxu0 0.0
        %1356 = vmatpush1.msra.mxu0 0.0
        %1357 = vmatprep.subr.mxu0 0.0
        %1358 = vmatpush1.msra.mxu0 0.0
        %1359 = vmatprep.subr.mxu0 0.0
        %1360 = vmatpush1.msra.mxu0 0.0
        %1361 = vmatprep.subr.mxu0 0.0
        %1362 = vmatpush1.msra.mxu0 0.0
        %1363 = vmatprep.subr.mxu0 0.0
        %1364 = vmatpush1.msra.mxu0 0.0
        %1365 = vmatprep.subr.mxu0 0.0
        %1366 = vmatpush1.msra.mxu0 0.0
        %1367 = vmatprep.subr.mxu0 0.0
        %1368 = vmatpush1.msra.mxu0 0.0
        %1369 = vmatprep.subr.mxu0 0.0
        %1370 = vmatpush1.msra.mxu0 0.0
        %1371 = vmatprep.subr.mxu0 0.0
        %1372 = vmatpush1.msra.mxu0 0.0
        %1373 = vmatprep.subr.mxu0 0.0
        %1374 = vmatpush1.msra.mxu0 0.0
        %1375 = vmatprep.subr.mxu0 0.0
        %1376 = vmatpush1.msra.mxu0 0.0
        %1377 = vmatprep.subr.mxu0 0.0
        %1378 = vmatpush1.msra.mxu0 0.0
        %1379 = vmatprep.mubr.f32.mxu0 0.0
        %1380 = vmatmul.mubr.f32.gmra.mrb[0].mxu0 %v1313
        %v1381 = vpop.f32.mrb[0].mxu0
        %v1382 = vadd.f32 0.0, %v1381
        %v1383 = vpop.f32.mrb[0].mxu0
        %1384 = vdwg.mxu0
        %1385 = vrot.lane.b32.xlu0 %v428, 56
        %v1386 = vpop.permute.xlu0 %1385
        %v1389 = vsel %vm604, %v1308, 0
        %1391 = vmatprep.subr.mxu0 0.0
        %1392 = vmatpush1.msra.mxu0 %v1386
        %1393 = vmatprep.subr.mxu0 0.0
        %1394 = vmatpush1.msra.mxu0 0.0
        %1395 = vmatprep.subr.mxu0 0.0
        %1396 = vmatpush1.msra.mxu0 0.0
        %1397 = vmatprep.subr.mxu0 0.0
        %1398 = vmatpush1.msra.mxu0 0.0
        %1399 = vmatprep.subr.mxu0 0.0
        %1400 = vmatpush1.msra.mxu0 0.0
        %1401 = vmatprep.subr.mxu0 0.0
        %1402 = vmatpush1.msra.mxu0 0.0
        %1403 = vmatprep.subr.mxu0 0.0
        %1404 = vmatpush1.msra.mxu0 0.0
        %1405 = vmatprep.subr.mxu0 0.0
        %1406 = vmatpush1.msra.mxu0 0.0
        %1407 = vmatprep.subr.mxu0 0.0
        %1408 = vmatpush1.msra.mxu0 0.0
        %1409 = vmatprep.subr.mxu0 0.0
        %1410 = vmatpush1.msra.mxu0 0.0
        %1411 = vmatprep.subr.mxu0 0.0
        %1412 = vmatpush1.msra.mxu0 0.0
        %1413 = vmatprep.subr.mxu0 0.0
        %1414 = vmatpush1.msra.mxu0 0.0
        %1415 = vmatprep.subr.mxu0 0.0
        %1416 = vmatpush1.msra.mxu0 0.0
        %1417 = vmatprep.subr.mxu0 0.0
        %1418 = vmatpush1.msra.mxu0 0.0
        %1419 = vmatprep.subr.mxu0 0.0
        %1420 = vmatpush1.msra.mxu0 0.0
        %1421 = vmatprep.subr.mxu0 0.0
        %1422 = vmatpush1.msra.mxu0 0.0
        %1423 = vmatprep.subr.mxu0 0.0
        %1424 = vmatpush1.msra.mxu0 0.0
        %1425 = vmatprep.subr.mxu0 0.0
        %1426 = vmatpush1.msra.mxu0 0.0
        %1427 = vmatprep.subr.mxu0 0.0
        %1428 = vmatpush1.msra.mxu0 0.0
        %1429 = vmatprep.subr.mxu0 0.0
        %1430 = vmatpush1.msra.mxu0 0.0
        %1431 = vmatprep.subr.mxu0 0.0
        %1432 = vmatpush1.msra.mxu0 0.0
        %1433 = vmatprep.subr.mxu0 0.0
        %1434 = vmatpush1.msra.mxu0 0.0
        %1435 = vmatprep.subr.mxu0 0.0
        %1436 = vmatpush1.msra.mxu0 0.0
        %1437 = vmatprep.subr.mxu0 0.0
        %1438 = vmatpush1.msra.mxu0 0.0
        %1439 = vmatprep.subr.mxu0 0.0
        %1440 = vmatpush1.msra.mxu0 0.0
        %1441 = vmatprep.subr.mxu0 0.0
        %1442 = vmatpush1.msra.mxu0 0.0
        %1443 = vmatprep.subr.mxu0 0.0
        %1444 = vmatpush1.msra.mxu0 0.0
        %1445 = vmatprep.subr.mxu0 0.0
        %1446 = vmatpush1.msra.mxu0 0.0
        %1447 = vmatprep.subr.mxu0 0.0
        %1448 = vmatpush1.msra.mxu0 0.0
        %1449 = vmatprep.subr.mxu0 0.0
        %1450 = vmatpush1.msra.mxu0 0.0
        %1451 = vmatprep.subr.mxu0 0.0
        %1452 = vmatpush1.msra.mxu0 0.0
        %1453 = vmatprep.subr.mxu0 0.0
        %1454 = vmatpush1.msra.mxu0 0.0
        %1455 = vmatprep.mubr.f32.mxu0 0.0
        %1456 = vmatmul.mubr.f32.gmra.mrb[0].mxu0 %v1389
        %v1457 = vpop.f32.mrb[0].mxu0
        %v1458 = vadd.f32 0.0, %v1457
        %v1459 = vpop.f32.mrb[0].mxu0
        %1460 = vdwg.mxu0
        %1461 = vrot.lane.b32.xlu0 %v423, 116
        %v1462 = vpop.permute.xlu0 %1461
        %1463 = vrot.lane.b32.xlu0 %v423, 84
        %v1464 = vpop.permute.xlu0 %1463
        %v1465 = vsel %vm436, %v1462, 0
        %v1467 = vsel %vm436, %v1464, 0
        %1469 = vmatprep.subr.mxu0 0.0
        %1470 = vmatpush1.xpose.msra.mxu0 %v1467
        %1471 = vmatprep.subr.mxu0 0.0
        %1472 = vmatpush1.xpose.msra.mxu0 0.0
        %1473 = vmatprep.subr.mxu0 0.0
        %1474 = vmatpush1.xpose.msra.mxu0 0.0
        %1475 = vmatprep.subr.mxu0 0.0
        %1476 = vmatpush1.xpose.msra.mxu0 0.0
        %1477 = vmatprep.subr.mxu0 0.0
        %1478 = vmatpush1.xpose.msra.mxu0 0.0
        %1479 = vmatprep.subr.mxu0 0.0
        %1480 = vmatpush1.xpose.msra.mxu0 0.0
        %1481 = vmatprep.subr.mxu0 0.0
        %1482 = vmatpush1.xpose.msra.mxu0 0.0
        %1483 = vmatprep.subr.mxu0 0.0
        %1484 = vmatpush1.xpose.msra.mxu0 0.0
        %1485 = vmatprep.subr.mxu0 0.0
        %1486 = vmatpush1.xpose.msra.mxu0 0.0
        %1487 = vmatprep.subr.mxu0 0.0
        %1488 = vmatpush1.xpose.msra.mxu0 0.0
        %1489 = vmatprep.subr.mxu0 0.0
        %1490 = vmatpush1.xpose.msra.mxu0 0.0
        %1491 = vmatprep.subr.mxu0 0.0
        %1492 = vmatpush1.xpose.msra.mxu0 0.0
        %1493 = vmatprep.subr.mxu0 0.0
        %1494 = vmatpush1.xpose.msra.mxu0 0.0
        %1495 = vmatprep.subr.mxu0 0.0
        %1496 = vmatpush1.xpose.msra.mxu0 0.0
        %1497 = vmatprep.subr.mxu0 0.0
        %1498 = vmatpush1.xpose.msra.mxu0 0.0
        %1499 = vmatprep.subr.mxu0 0.0
        %1500 = vmatpush1.xpose.msra.mxu0 0.0
        %1501 = vmatprep.subr.mxu0 0.0
        %1502 = vmatpush1.xpose.msra.mxu0 0.0
        %1503 = vmatprep.subr.mxu0 0.0
        %1504 = vmatpush1.xpose.msra.mxu0 0.0
        %1505 = vmatprep.subr.mxu0 0.0
        %1506 = vmatpush1.xpose.msra.mxu0 0.0
        %1507 = vmatprep.subr.mxu0 0.0
        %1508 = vmatpush1.xpose.msra.mxu0 0.0
        %1509 = vmatprep.subr.mxu0 0.0
        %1510 = vmatpush1.xpose.msra.mxu0 0.0
        %1511 = vmatprep.subr.mxu0 0.0
        %1512 = vmatpush1.xpose.msra.mxu0 0.0
        %1513 = vmatprep.subr.mxu0 0.0
        %1514 = vmatpush1.xpose.msra.mxu0 0.0
        %1515 = vmatprep.subr.mxu0 0.0
        %1516 = vmatpush1.xpose.msra.mxu0 0.0
        %1517 = vmatprep.subr.mxu0 0.0
        %1518 = vmatpush1.xpose.msra.mxu0 0.0
        %1519 = vmatprep.subr.mxu0 0.0
        %1520 = vmatpush1.xpose.msra.mxu0 0.0
        %1521 = vmatprep.subr.mxu0 0.0
        %1522 = vmatpush1.xpose.msra.mxu0 0.0
        %1523 = vmatprep.subr.mxu0 0.0
        %1524 = vmatpush1.xpose.msra.mxu0 0.0
        %1525 = vmatprep.subr.mxu0 0.0
        %1526 = vmatpush1.xpose.msra.mxu0 0.0
        %1527 = vmatprep.subr.mxu0 0.0
        %1528 = vmatpush1.xpose.msra.mxu0 0.0
        %1529 = vmatprep.subr.mxu0 0.0
        %1530 = vmatpush1.xpose.msra.mxu0 0.0
        %1531 = vmatprep.subr.mxu0 0.0
        %1532 = vmatpush1.xpose.msra.mxu0 0.0
        %1533 = vmatprep.mubr.f32.mxu0 0.0
        %1534 = vmatmul.mubr.f32.gmra.mrb[0].mxu0 %v1465
        %v1535 = vpop.f32.mrb[0].mxu0
        %v1536 = vadd.f32 0.0, %v1535
        %v1537 = vpop.f32.mrb[0].mxu0
        %1538 = vdwg.mxu0
        %1539 = vrot.lane.b32.xlu0 %v428, 116
        %v1540 = vpop.permute.xlu0 %1539
        %1541 = vrot.lane.b32.xlu0 %v428, 84
        %v1542 = vpop.permute.xlu0 %1541
        %v1543 = vsel %vm436, %v1540, 0
        %v1545 = vsel %vm436, %v1542, 0
        %1547 = vmatprep.subr.mxu0 0.0
        %1548 = vmatpush1.xpose.msra.mxu0 %v1545
        %1549 = vmatprep.subr.mxu0 0.0
        %1550 = vmatpush1.xpose.msra.mxu0 0.0
        %1551 = vmatprep.subr.mxu0 0.0
        %1552 = vmatpush1.xpose.msra.mxu0 0.0
        %1553 = vmatprep.subr.mxu0 0.0
        %1554 = vmatpush1.xpose.msra.mxu0 0.0
        %1555 = vmatprep.subr.mxu0 0.0
        %1556 = vmatpush1.xpose.msra.mxu0 0.0
        %1557 = vmatprep.subr.mxu0 0.0
        %1558 = vmatpush1.xpose.msra.mxu0 0.0
        %1559 = vmatprep.subr.mxu0 0.0
        %1560 = vmatpush1.xpose.msra.mxu0 0.0
        %1561 = vmatprep.subr.mxu0 0.0
        %1562 = vmatpush1.xpose.msra.mxu0 0.0
        %1563 = vmatprep.subr.mxu0 0.0
        %1564 = vmatpush1.xpose.msra.mxu0 0.0
        %1565 = vmatprep.subr.mxu0 0.0
        %1566 = vmatpush1.xpose.msra.mxu0 0.0
        %1567 = vmatprep.subr.mxu0 0.0
        %1568 = vmatpush1.xpose.msra.mxu0 0.0
        %1569 = vmatprep.subr.mxu0 0.0
        %1570 = vmatpush1.xpose.msra.mxu0 0.0
        %1571 = vmatprep.subr.mxu0 0.0
        %1572 = vmatpush1.xpose.msra.mxu0 0.0
        %1573 = vmatprep.subr.mxu0 0.0
        %1574 = vmatpush1.xpose.msra.mxu0 0.0
        %1575 = vmatprep.subr.mxu0 0.0
        %1576 = vmatpush1.xpose.msra.mxu0 0.0
        %1577 = vmatprep.subr.mxu0 0.0
        %1578 = vmatpush1.xpose.msra.mxu0 0.0
        %1579 = vmatprep.subr.mxu0 0.0
        %1580 = vmatpush1.xpose.msra.mxu0 0.0
        %1581 = vmatprep.subr.mxu0 0.0
        %1582 = vmatpush1.xpose.msra.mxu0 0.0
        %1583 = vmatprep.subr.mxu0 0.0
        %1584 = vmatpush1.xpose.msra.mxu0 0.0
        %1585 = vmatprep.subr.mxu0 0.0
        %1586 = vmatpush1.xpose.msra.mxu0 0.0
        %1587 = vmatprep.subr.mxu0 0.0
        %1588 = vmatpush1.xpose.msra.mxu0 0.0
        %1589 = vmatprep.subr.mxu0 0.0
        %1590 = vmatpush1.xpose.msra.mxu0 0.0
        %1591 = vmatprep.subr.mxu0 0.0
        %1592 = vmatpush1.xpose.msra.mxu0 0.0
        %1593 = vmatprep.subr.mxu0 0.0
        %1594 = vmatpush1.xpose.msra.mxu0 0.0
        %1595 = vmatprep.subr.mxu0 0.0
        %1596 = vmatpush1.xpose.msra.mxu0 0.0
        %1597 = vmatprep.subr.mxu0 0.0
        %1598 = vmatpush1.xpose.msra.mxu0 0.0
        %1599 = vmatprep.subr.mxu0 0.0
        %1600 = vmatpush1.xpose.msra.mxu0 0.0
        %1601 = vmatprep.subr.mxu0 0.0
        %1602 = vmatpush1.xpose.msra.mxu0 0.0
        %1603 = vmatprep.subr.mxu0 0.0
        %1604 = vmatpush1.xpose.msra.mxu0 0.0
        %1605 = vmatprep.subr.mxu0 0.0
        %1606 = vmatpush1.xpose.msra.mxu0 0.0
        %1607 = vmatprep.subr.mxu0 0.0
        %1608 = vmatpush1.xpose.msra.mxu0 0.0
        %1609 = vmatprep.subr.mxu0 0.0
        %1610 = vmatpush1.xpose.msra.mxu0 0.0
        %1611 = vmatprep.mubr.f32.mxu0 0.0
        %1612 = vmatmul.mubr.f32.gmra.mrb[0].mxu0 %v1543
        %v1613 = vpop.f32.mrb[0].mxu0
        %v1614 = vadd.f32 0.0, %v1613
        %v1615 = vpop.f32.mrb[0].mxu0
        %1616 = vdwg.mxu0
        %v1617 = vsel %vm600, %v1536, -1e+30
        %v1618 = vsel %vm601, %v1614, -1e+30
        %v1619 = vsel %vm604, %v1617, -inf
        %1620 = vmax.xlane.f32.xlu0 %v1619
        %v1621 = vpop.xlane.xlu0 %1620
        %v1622 = vsel %vm604, %v1618, -inf
        %1623 = vmax.xlane.f32.xlu0 %v1622
        %v1624 = vpop.xlane.xlu0 %1623
        %v1625 = vsub.f32 %v1617, %v1621
        %v1626 = vsub.f32 %v1618, %v1624
        %v1627 = vmul.f32 %v1625, 1.442695
        %v1628 = vpow.pop %v1627
        %v1629 = vmul.f32 %v1626, 1.442695
        %v1630 = vpow.pop %v1629
        %v1631 = vsel %vm604, %v1628, 0.0
        %1632 = vadd.xlane.f32.xlu0 %v1631
        %v1633 = vpop.xlane.xlu0 %1632
        %v1634 = vsel %vm604, %v1630, 0.0
        %1635 = vadd.xlane.f32.xlu0 %v1634
        %v1636 = vpop.xlane.xlu0 %1635
        %v1637 = vrcp.pop %v1633
        %v1638 = vrcp.pop %v1636
        %v1639 = vmul.f32 %v1633, %v1637
        %v1640 = vmul.f32 %v1636, %v1638
        %v1641 = vsub.f32 2.0, %v1639
        %v1642 = vsub.f32 2.0, %v1640
        %v1643 = vmul.f32 %v1637, %v1641
        %v1644 = vmul.f32 %v1638, %v1642
        %v1645 = vmul.f32 %v1628, %v1643
        %v1646 = vmul.f32 %v1630, %v1644
        %1647 = vrot.lane.b32.xlu0 %v423, 52
        %v1648 = vpop.permute.xlu0 %1647
        %v1651 = vsel %vm604, %v1645, 0
        %1653 = vmatprep.subr.mxu0 0.0
        %1654 = vmatpush1.msra.mxu0 %v1648
        %1655 = vmatprep.subr.mxu0 0.0
        %1656 = vmatpush1.msra.mxu0 0.0
        %1657 = vmatprep.subr.mxu0 0.0
        %1658 = vmatpush1.msra.mxu0 0.0
        %1659 = vmatprep.subr.mxu0 0.0
        %1660 = vmatpush1.msra.mxu0 0.0
        %1661 = vmatprep.subr.mxu0 0.0
        %1662 = vmatpush1.msra.mxu0 0.0
        %1663 = vmatprep.subr.mxu0 0.0
        %1664 = vmatpush1.msra.mxu0 0.0
        %1665 = vmatprep.subr.mxu0 0.0
        %1666 = vmatpush1.msra.mxu0 0.0
        %1667 = vmatprep.subr.mxu0 0.0
        %1668 = vmatpush1.msra.mxu0 0.0
        %1669 = vmatprep.subr.mxu0 0.0
        %1670 = vmatpush1.msra.mxu0 0.0
        %1671 = vmatprep.subr.mxu0 0.0
        %1672 = vmatpush1.msra.mxu0 0.0
        %1673 = vmatprep.subr.mxu0 0.0
        %1674 = vmatpush1.msra.mxu0 0.0
        %1675 = vmatprep.subr.mxu0 0.0
        %1676 = vmatpush1.msra.mxu0 0.0
        %1677 = vmatprep.subr.mxu0 0.0
        %1678 = vmatpush1.msra.mxu0 0.0
        %1679 = vmatprep.subr.mxu0 0.0
        %1680 = vmatpush1.msra.mxu0 0.0
        %1681 = vmatprep.subr.mxu0 0.0
        %1682 = vmatpush1.msra.mxu0 0.0
        %1683 = vmatprep.subr.mxu0 0.0
        %1684 = vmatpush1.msra.mxu0 0.0
        %1685 = vmatprep.subr.mxu0 0.0
        %1686 = vmatpush1.msra.mxu0 0.0
        %1687 = vmatprep.subr.mxu0 0.0
        %1688 = vmatpush1.msra.mxu0 0.0
        %1689 = vmatprep.subr.mxu0 0.0
        %1690 = vmatpush1.msra.mxu0 0.0
        %1691 = vmatprep.subr.mxu0 0.0
        %1692 = vmatpush1.msra.mxu0 0.0
        %1693 = vmatprep.subr.mxu0 0.0
        %1694 = vmatpush1.msra.mxu0 0.0
        %1695 = vmatprep.subr.mxu0 0.0
        %1696 = vmatpush1.msra.mxu0 0.0
        %1697 = vmatprep.subr.mxu0 0.0
        %1698 = vmatpush1.msra.mxu0 0.0
        %1699 = vmatprep.subr.mxu0 0.0
        %1700 = vmatpush1.msra.mxu0 0.0
        %1701 = vmatprep.subr.mxu0 0.0
        %1702 = vmatpush1.msra.mxu0 0.0
        %1703 = vmatprep.subr.mxu0 0.0
        %1704 = vmatpush1.msra.mxu0 0.0
        %1705 = vmatprep.subr.mxu0 0.0
        %1706 = vmatpush1.msra.mxu0 0.0
        %1707 = vmatprep.subr.mxu0 0.0
        %1708 = vmatpush1.msra.mxu0 0.0
        %1709 = vmatprep.subr.mxu0 0.0
        %1710 = vmatpush1.msra.mxu0 0.0
        %1711 = vmatprep.subr.mxu0 0.0
        %1712 = vmatpush1.msra.mxu0 0.0
        %1713 = vmatprep.subr.mxu0 0.0
        %1714 = vmatpush1.msra.mxu0 0.0
        %1715 = vmatprep.subr.mxu0 0.0
        %1716 = vmatpush1.msra.mxu0 0.0
        %1717 = vmatprep.mubr.f32.mxu0 0.0
        %1718 = vmatmul.mubr.f32.gmra.mrb[0].mxu0 %v1651
        %v1719 = vpop.f32.mrb[0].mxu0
        %v1720 = vadd.f32 0.0, %v1719
        %v1721 = vpop.f32.mrb[0].mxu0
        %1722 = vdwg.mxu0
        %1723 = vrot.lane.b32.xlu0 %v428, 52
        %v1724 = vpop.permute.xlu0 %1723
        %v1727 = vsel %vm604, %v1646, 0
        %1729 = vmatprep.subr.mxu0 0.0
        %1730 = vmatpush1.msra.mxu0 %v1724
        %1731 = vmatprep.subr.mxu0 0.0
        %1732 = vmatpush1.msra.mxu0 0.0
        %1733 = vmatprep.subr.mxu0 0.0
        %1734 = vmatpush1.msra.mxu0 0.0
        %1735 = vmatprep.subr.mxu0 0.0
        %1736 = vmatpush1.msra.mxu0 0.0
        %1737 = vmatprep.subr.mxu0 0.0
        %1738 = vmatpush1.msra.mxu0 0.0
        %1739 = vmatprep.subr.mxu0 0.0
        %1740 = vmatpush1.msra.mxu0 0.0
        %1741 = vmatprep.subr.mxu0 0.0
        %1742 = vmatpush1.msra.mxu0 0.0
        %1743 = vmatprep.subr.mxu0 0.0
        %1744 = vmatpush1.msra.mxu0 0.0
        %1745 = vmatprep.subr.mxu0 0.0
        %1746 = vmatpush1.msra.mxu0 0.0
        %1747 = vmatprep.subr.mxu0 0.0
        %1748 = vmatpush1.msra.mxu0 0.0
        %1749 = vmatprep.subr.mxu0 0.0
        %1750 = vmatpush1.msra.mxu0 0.0
        %1751 = vmatprep.subr.mxu0 0.0
        %1752 = vmatpush1.msra.mxu0 0.0
        %1753 = vmatprep.subr.mxu0 0.0
        %1754 = vmatpush1.msra.mxu0 0.0
        %1755 = vmatprep.subr.mxu0 0.0
        %1756 = vmatpush1.msra.mxu0 0.0
        %1757 = vmatprep.subr.mxu0 0.0
        %1758 = vmatpush1.msra.mxu0 0.0
        %1759 = vmatprep.subr.mxu0 0.0
        %1760 = vmatpush1.msra.mxu0 0.0
        %1761 = vmatprep.subr.mxu0 0.0
        %1762 = vmatpush1.msra.mxu0 0.0
        %1763 = vmatprep.subr.mxu0 0.0
        %1764 = vmatpush1.msra.mxu0 0.0
        %1765 = vmatprep.subr.mxu0 0.0
        %1766 = vmatpush1.msra.mxu0 0.0
        %1767 = vmatprep.subr.mxu0 0.0
        %1768 = vmatpush1.msra.mxu0 0.0
        %1769 = vmatprep.subr.mxu0 0.0
        %1770 = vmatpush1.msra.mxu0 0.0
        %1771 = vmatprep.subr.mxu0 0.0
        %1772 = vmatpush1.msra.mxu0 0.0
        %1773 = vmatprep.subr.mxu0 0.0
        %1774 = vmatpush1.msra.mxu0 0.0
        %1775 = vmatprep.subr.mxu0 0.0
        %1776 = vmatpush1.msra.mxu0 0.0
        %1777 = vmatprep.subr.mxu0 0.0
        %1778 = vmatpush1.msra.mxu0 0.0
        %1779 = vmatprep.subr.mxu0 0.0
        %1780 = vmatpush1.msra.mxu0 0.0
        %1781 = vmatprep.subr.mxu0 0.0
        %1782 = vmatpush1.msra.mxu0 0.0
        %1783 = vmatprep.subr.mxu0 0.0
        %1784 = vmatpush1.msra.mxu0 0.0
        %1785 = vmatprep.subr.mxu0 0.0
        %1786 = vmatpush1.msra.mxu0 0.0
        %1787 = vmatprep.subr.mxu0 0.0
        %1788 = vmatpush1.msra.mxu0 0.0
        %1789 = vmatprep.subr.mxu0 0.0
        %1790 = vmatpush1.msra.mxu0 0.0
        %1791 = vmatprep.subr.mxu0 0.0
        %1792 = vmatpush1.msra.mxu0 0.0
        %1793 = vmatprep.mubr.f32.mxu0 0.0
        %1794 = vmatmul.mubr.f32.gmra.mrb[0].mxu0 %v1727
        %v1795 = vpop.f32.mrb[0].mxu0
        %v1796 = vadd.f32 0.0, %v1795
        %v1797 = vpop.f32.mrb[0].mxu0
        %1798 = vdwg.mxu0
        %1799 = vrot.lane.b32.xlu0 %v423, 112
        %v1800 = vpop.permute.xlu0 %1799
        %1801 = vrot.lane.b32.xlu0 %v423, 80
        %v1802 = vpop.permute.xlu0 %1801
        %v1803 = vsel %vm436, %v1800, 0
        %v1805 = vsel %vm436, %v1802, 0
        %1807 = vmatprep.subr.mxu0 0.0
        %1808 = vmatpush1.xpose.msra.mxu0 %v1805
        %1809 = vmatprep.subr.mxu0 0.0
        %1810 = vmatpush1.xpose.msra.mxu0 0.0
        %1811 = vmatprep.subr.mxu0 0.0
        %1812 = vmatpush1.xpose.msra.mxu0 0.0
        %1813 = vmatprep.subr.mxu0 0.0
        %1814 = vmatpush1.xpose.msra.mxu0 0.0
        %1815 = vmatprep.subr.mxu0 0.0
        %1816 = vmatpush1.xpose.msra.mxu0 0.0
        %1817 = vmatprep.subr.mxu0 0.0
        %1818 = vmatpush1.xpose.msra.mxu0 0.0
        %1819 = vmatprep.subr.mxu0 0.0
        %1820 = vmatpush1.xpose.msra.mxu0 0.0
        %1821 = vmatprep.subr.mxu0 0.0
        %1822 = vmatpush1.xpose.msra.mxu0 0.0
        %1823 = vmatprep.subr.mxu0 0.0
        %1824 = vmatpush1.xpose.msra.mxu0 0.0
        %1825 = vmatprep.subr.mxu0 0.0
        %1826 = vmatpush1.xpose.msra.mxu0 0.0
        %1827 = vmatprep.subr.mxu0 0.0
        %1828 = vmatpush1.xpose.msra.mxu0 0.0
        %1829 = vmatprep.subr.mxu0 0.0
        %1830 = vmatpush1.xpose.msra.mxu0 0.0
        %1831 = vmatprep.subr.mxu0 0.0
        %1832 = vmatpush1.xpose.msra.mxu0 0.0
        %1833 = vmatprep.subr.mxu0 0.0
        %1834 = vmatpush1.xpose.msra.mxu0 0.0
        %1835 = vmatprep.subr.mxu0 0.0
        %1836 = vmatpush1.xpose.msra.mxu0 0.0
        %1837 = vmatprep.subr.mxu0 0.0
        %1838 = vmatpush1.xpose.msra.mxu0 0.0
        %1839 = vmatprep.subr.mxu0 0.0
        %1840 = vmatpush1.xpose.msra.mxu0 0.0
        %1841 = vmatprep.subr.mxu0 0.0
        %1842 = vmatpush1.xpose.msra.mxu0 0.0
        %1843 = vmatprep.subr.mxu0 0.0
        %1844 = vmatpush1.xpose.msra.mxu0 0.0
        %1845 = vmatprep.subr.mxu0 0.0
        %1846 = vmatpush1.xpose.msra.mxu0 0.0
        %1847 = vmatprep.subr.mxu0 0.0
        %1848 = vmatpush1.xpose.msra.mxu0 0.0
        %1849 = vmatprep.subr.mxu0 0.0
        %1850 = vmatpush1.xpose.msra.mxu0 0.0
        %1851 = vmatprep.subr.mxu0 0.0
        %1852 = vmatpush1.xpose.msra.mxu0 0.0
        %1853 = vmatprep.subr.mxu0 0.0
        %1854 = vmatpush1.xpose.msra.mxu0 0.0
        %1855 = vmatprep.subr.mxu0 0.0
        %1856 = vmatpush1.xpose.msra.mxu0 0.0
        %1857 = vmatprep.subr.mxu0 0.0
        %1858 = vmatpush1.xpose.msra.mxu0 0.0
        %1859 = vmatprep.subr.mxu0 0.0
        %1860 = vmatpush1.xpose.msra.mxu0 0.0
        %1861 = vmatprep.subr.mxu0 0.0
        %1862 = vmatpush1.xpose.msra.mxu0 0.0
        %1863 = vmatprep.subr.mxu0 0.0
        %1864 = vmatpush1.xpose.msra.mxu0 0.0
        %1865 = vmatprep.subr.mxu0 0.0
        %1866 = vmatpush1.xpose.msra.mxu0 0.0
        %1867 = vmatprep.subr.mxu0 0.0
        %1868 = vmatpush1.xpose.msra.mxu0 0.0
        %1869 = vmatprep.subr.mxu0 0.0
        %1870 = vmatpush1.xpose.msra.mxu0 0.0
        %1871 = vmatprep.mubr.f32.mxu0 0.0
        %1872 = vmatmul.mubr.f32.gmra.mrb[0].mxu0 %v1803
        %v1873 = vpop.f32.mrb[0].mxu0
        %v1874 = vadd.f32 0.0, %v1873
        %v1875 = vpop.f32.mrb[0].mxu0
        %1876 = vdwg.mxu0
        %1877 = vrot.lane.b32.xlu0 %v428, 112
        %v1878 = vpop.permute.xlu0 %1877
        %1879 = vrot.lane.b32.xlu0 %v428, 80
        %v1880 = vpop.permute.xlu0 %1879
        %v1881 = vsel %vm436, %v1878, 0
        %v1883 = vsel %vm436, %v1880, 0
        %1885 = vmatprep.subr.mxu0 0.0
        %1886 = vmatpush1.xpose.msra.mxu0 %v1883
        %1887 = vmatprep.subr.mxu0 0.0
        %1888 = vmatpush1.xpose.msra.mxu0 0.0
        %1889 = vmatprep.subr.mxu0 0.0
        %1890 = vmatpush1.xpose.msra.mxu0 0.0
        %1891 = vmatprep.subr.mxu0 0.0
        %1892 = vmatpush1.xpose.msra.mxu0 0.0
        %1893 = vmatprep.subr.mxu0 0.0
        %1894 = vmatpush1.xpose.msra.mxu0 0.0
        %1895 = vmatprep.subr.mxu0 0.0
        %1896 = vmatpush1.xpose.msra.mxu0 0.0
        %1897 = vmatprep.subr.mxu0 0.0
        %1898 = vmatpush1.xpose.msra.mxu0 0.0
        %1899 = vmatprep.subr.mxu0 0.0
        %1900 = vmatpush1.xpose.msra.mxu0 0.0
        %1901 = vmatprep.subr.mxu0 0.0
        %1902 = vmatpush1.xpose.msra.mxu0 0.0
        %1903 = vmatprep.subr.mxu0 0.0
        %1904 = vmatpush1.xpose.msra.mxu0 0.0
        %1905 = vmatprep.subr.mxu0 0.0
        %1906 = vmatpush1.xpose.msra.mxu0 0.0
        %1907 = vmatprep.subr.mxu0 0.0
        %1908 = vmatpush1.xpose.msra.mxu0 0.0
        %1909 = vmatprep.subr.mxu0 0.0
        %1910 = vmatpush1.xpose.msra.mxu0 0.0
        %1911 = vmatprep.subr.mxu0 0.0
        %1912 = vmatpush1.xpose.msra.mxu0 0.0
        %1913 = vmatprep.subr.mxu0 0.0
        %1914 = vmatpush1.xpose.msra.mxu0 0.0
        %1915 = vmatprep.subr.mxu0 0.0
        %1916 = vmatpush1.xpose.msra.mxu0 0.0
        %1917 = vmatprep.subr.mxu0 0.0
        %1918 = vmatpush1.xpose.msra.mxu0 0.0
        %1919 = vmatprep.subr.mxu0 0.0
        %1920 = vmatpush1.xpose.msra.mxu0 0.0
        %1921 = vmatprep.subr.mxu0 0.0
        %1922 = vmatpush1.xpose.msra.mxu0 0.0
        %1923 = vmatprep.subr.mxu0 0.0
        %1924 = vmatpush1.xpose.msra.mxu0 0.0
        %1925 = vmatprep.subr.mxu0 0.0
        %1926 = vmatpush1.xpose.msra.mxu0 0.0
        %1927 = vmatprep.subr.mxu0 0.0
        %1928 = vmatpush1.xpose.msra.mxu0 0.0
        %1929 = vmatprep.subr.mxu0 0.0
        %1930 = vmatpush1.xpose.msra.mxu0 0.0
        %1931 = vmatprep.subr.mxu0 0.0
        %1932 = vmatpush1.xpose.msra.mxu0 0.0
        %1933 = vmatprep.subr.mxu0 0.0
        %1934 = vmatpush1.xpose.msra.mxu0 0.0
        %1935 = vmatprep.subr.mxu0 0.0
        %1936 = vmatpush1.xpose.msra.mxu0 0.0
        %1937 = vmatprep.subr.mxu0 0.0
        %1938 = vmatpush1.xpose.msra.mxu0 0.0
        %1939 = vmatprep.subr.mxu0 0.0
        %1940 = vmatpush1.xpose.msra.mxu0 0.0
        %1941 = vmatprep.subr.mxu0 0.0
        %1942 = vmatpush1.xpose.msra.mxu0 0.0
        %1943 = vmatprep.subr.mxu0 0.0
        %1944 = vmatpush1.xpose.msra.mxu0 0.0
        %1945 = vmatprep.subr.mxu0 0.0
        %1946 = vmatpush1.xpose.msra.mxu0 0.0
        %1947 = vmatprep.subr.mxu0 0.0
        %1948 = vmatpush1.xpose.msra.mxu0 0.0
        %1949 = vmatprep.mubr.f32.mxu0 0.0
        %1950 = vmatmul.mubr.f32.gmra.mrb[0].mxu0 %v1881
        %v1951 = vpop.f32.mrb[0].mxu0
        %v1952 = vadd.f32 0.0, %v1951
        %v1953 = vpop.f32.mrb[0].mxu0
        %1954 = vdwg.mxu0
        %v1955 = vsel %vm600, %v1874, -1e+30
        %v1956 = vsel %vm601, %v1952, -1e+30
        %v1957 = vsel %vm604, %v1955, -inf
        %1958 = vmax.xlane.f32.xlu0 %v1957
        %v1959 = vpop.xlane.xlu0 %1958
        %v1960 = vsel %vm604, %v1956, -inf
        %1961 = vmax.xlane.f32.xlu0 %v1960
        %v1962 = vpop.xlane.xlu0 %1961
        %v1963 = vsub.f32 %v1955, %v1959
        %v1964 = vsub.f32 %v1956, %v1962
        %v1965 = vmul.f32 %v1963, 1.442695
        %v1966 = vpow.pop %v1965
        %v1967 = vmul.f32 %v1964, 1.442695
        %v1968 = vpow.pop %v1967
        %v1969 = vsel %vm604, %v1966, 0.0
        %1970 = vadd.xlane.f32.xlu0 %v1969
        %v1971 = vpop.xlane.xlu0 %1970
        %v1972 = vsel %vm604, %v1968, 0.0
        %1973 = vadd.xlane.f32.xlu0 %v1972
        %v1974 = vpop.xlane.xlu0 %1973
        %v1975 = vrcp.pop %v1971
        %v1976 = vrcp.pop %v1974
        %v1977 = vmul.f32 %v1971, %v1975
        %v1978 = vmul.f32 %v1974, %v1976
        %v1979 = vsub.f32 2.0, %v1977
        %v1980 = vsub.f32 2.0, %v1978
        %v1981 = vmul.f32 %v1975, %v1979
        %v1982 = vmul.f32 %v1976, %v1980
        %v1983 = vmul.f32 %v1966, %v1981
        %v1984 = vmul.f32 %v1968, %v1982
        %1985 = vrot.lane.b32.xlu0 %v423, 48
        %v1986 = vpop.permute.xlu0 %1985
        %v1989 = vsel %vm604, %v1983, 0
        %1991 = vmatprep.subr.mxu0 0.0
        %1992 = vmatpush1.msra.mxu0 %v1986
        %1993 = vmatprep.subr.mxu0 0.0
        %1994 = vmatpush1.msra.mxu0 0.0
        %1995 = vmatprep.subr.mxu0 0.0
        %1996 = vmatpush1.msra.mxu0 0.0
        %1997 = vmatprep.subr.mxu0 0.0
        %1998 = vmatpush1.msra.mxu0 0.0
        %1999 = vmatprep.subr.mxu0 0.0
        %2000 = vmatpush1.msra.mxu0 0.0
        %2001 = vmatprep.subr.mxu0 0.0
        %2002 = vmatpush1.msra.mxu0 0.0
        %2003 = vmatprep.subr.mxu0 0.0
        %2004 = vmatpush1.msra.mxu0 0.0
        %2005 = vmatprep.subr.mxu0 0.0
        %2006 = vmatpush1.msra.mxu0 0.0
        %2007 = vmatprep.subr.mxu0 0.0
        %2008 = vmatpush1.msra.mxu0 0.0
        %2009 = vmatprep.subr.mxu0 0.0
        %2010 = vmatpush1.msra.mxu0 0.0
        %2011 = vmatprep.subr.mxu0 0.0
        %2012 = vmatpush1.msra.mxu0 0.0
        %2013 = vmatprep.subr.mxu0 0.0
        %2014 = vmatpush1.msra.mxu0 0.0
        %2015 = vmatprep.subr.mxu0 0.0
        %2016 = vmatpush1.msra.mxu0 0.0
        %2017 = vmatprep.subr.mxu0 0.0
        %2018 = vmatpush1.msra.mxu0 0.0
        %2019 = vmatprep.subr.mxu0 0.0
        %2020 = vmatpush1.msra.mxu0 0.0
        %2021 = vmatprep.subr.mxu0 0.0
        %2022 = vmatpush1.msra.mxu0 0.0
        %2023 = vmatprep.subr.mxu0 0.0
        %2024 = vmatpush1.msra.mxu0 0.0
        %2025 = vmatprep.subr.mxu0 0.0
        %2026 = vmatpush1.msra.mxu0 0.0
        %2027 = vmatprep.subr.mxu0 0.0
        %2028 = vmatpush1.msra.mxu0 0.0
        %2029 = vmatprep.subr.mxu0 0.0
        %2030 = vmatpush1.msra.mxu0 0.0
        %2031 = vmatprep.subr.mxu0 0.0
        %2032 = vmatpush1.msra.mxu0 0.0
        %2033 = vmatprep.subr.mxu0 0.0
        %2034 = vmatpush1.msra.mxu0 0.0
        %2035 = vmatprep.subr.mxu0 0.0
        %2036 = vmatpush1.msra.mxu0 0.0
        %2037 = vmatprep.subr.mxu0 0.0
        %2038 = vmatpush1.msra.mxu0 0.0
        %2039 = vmatprep.subr.mxu0 0.0
        %2040 = vmatpush1.msra.mxu0 0.0
        %2041 = vmatprep.subr.mxu0 0.0
        %2042 = vmatpush1.msra.mxu0 0.0
        %2043 = vmatprep.subr.mxu0 0.0
        %2044 = vmatpush1.msra.mxu0 0.0
        %2045 = vmatprep.subr.mxu0 0.0
        %2046 = vmatpush1.msra.mxu0 0.0
        %2047 = vmatprep.subr.mxu0 0.0
        %2048 = vmatpush1.msra.mxu0 0.0
        %2049 = vmatprep.subr.mxu0 0.0
        %2050 = vmatpush1.msra.mxu0 0.0
        %2051 = vmatprep.subr.mxu0 0.0
        %2052 = vmatpush1.msra.mxu0 0.0
        %2053 = vmatprep.subr.mxu0 0.0
        %2054 = vmatpush1.msra.mxu0 0.0
        %2055 = vmatprep.mubr.f32.mxu0 0.0
        %2056 = vmatmul.mubr.f32.gmra.mrb[0].mxu0 %v1989
        %v2057 = vpop.f32.mrb[0].mxu0
        %v2058 = vadd.f32 0.0, %v2057
        %v2059 = vpop.f32.mrb[0].mxu0
        %2060 = vdwg.mxu0
        %2061 = vrot.lane.b32.xlu0 %v428, 48
        %v2062 = vpop.permute.xlu0 %2061
        %v2065 = vsel %vm604, %v1984, 0
        %2067 = vmatprep.subr.mxu0 0.0
        %2068 = vmatpush1.msra.mxu0 %v2062
        %2069 = vmatprep.subr.mxu0 0.0
        %2070 = vmatpush1.msra.mxu0 0.0
        %2071 = vmatprep.subr.mxu0 0.0
        %2072 = vmatpush1.msra.mxu0 0.0
        %2073 = vmatprep.subr.mxu0 0.0
        %2074 = vmatpush1.msra.mxu0 0.0
        %2075 = vmatprep.subr.mxu0 0.0
        %2076 = vmatpush1.msra.mxu0 0.0
        %2077 = vmatprep.subr.mxu0 0.0
        %2078 = vmatpush1.msra.mxu0 0.0
        %2079 = vmatprep.subr.mxu0 0.0
        %2080 = vmatpush1.msra.mxu0 0.0
        %2081 = vmatprep.subr.mxu0 0.0
        %2082 = vmatpush1.msra.mxu0 0.0
        %2083 = vmatprep.subr.mxu0 0.0
        %2084 = vmatpush1.msra.mxu0 0.0
        %2085 = vmatprep.subr.mxu0 0.0
        %2086 = vmatpush1.msra.mxu0 0.0
        %2087 = vmatprep.subr.mxu0 0.0
        %2088 = vmatpush1.msra.mxu0 0.0
        %2089 = vmatprep.subr.mxu0 0.0
        %2090 = vmatpush1.msra.mxu0 0.0
        %2091 = vmatprep.subr.mxu0 0.0
        %2092 = vmatpush1.msra.mxu0 0.0
        %2093 = vmatprep.subr.mxu0 0.0
        %2094 = vmatpush1.msra.mxu0 0.0
        %2095 = vmatprep.subr.mxu0 0.0
        %2096 = vmatpush1.msra.mxu0 0.0
        %2097 = vmatprep.subr.mxu0 0.0
        %2098 = vmatpush1.msra.mxu0 0.0
        %2099 = vmatprep.subr.mxu0 0.0
        %2100 = vmatpush1.msra.mxu0 0.0
        %2101 = vmatprep.subr.mxu0 0.0
        %2102 = vmatpush1.msra.mxu0 0.0
        %2103 = vmatprep.subr.mxu0 0.0
        %2104 = vmatpush1.msra.mxu0 0.0
        %2105 = vmatprep.subr.mxu0 0.0
        %2106 = vmatpush1.msra.mxu0 0.0
        %2107 = vmatprep.subr.mxu0 0.0
        %2108 = vmatpush1.msra.mxu0 0.0
        %2109 = vmatprep.subr.mxu0 0.0
        %2110 = vmatpush1.msra.mxu0 0.0
        %2111 = vmatprep.subr.mxu0 0.0
        %2112 = vmatpush1.msra.mxu0 0.0
        %2113 = vmatprep.subr.mxu0 0.0
        %2114 = vmatpush1.msra.mxu0 0.0
        %2115 = vmatprep.subr.mxu0 0.0
        %2116 = vmatpush1.msra.mxu0 0.0
        %2117 = vmatprep.subr.mxu0 0.0
        %2118 = vmatpush1.msra.mxu0 0.0
        %2119 = vmatprep.subr.mxu0 0.0
        %2120 = vmatpush1.msra.mxu0 0.0
        %2121 = vmatprep.subr.mxu0 0.0
        %2122 = vmatpush1.msra.mxu0 0.0
        %2123 = vmatprep.subr.mxu0 0.0
        %2124 = vmatpush1.msra.mxu0 0.0
        %2125 = vmatprep.subr.mxu0 0.0
        %2126 = vmatpush1.msra.mxu0 0.0
        %2127 = vmatprep.subr.mxu0 0.0
        %2128 = vmatpush1.msra.mxu0 0.0
        %2129 = vmatprep.subr.mxu0 0.0
        %2130 = vmatpush1.msra.mxu0 0.0
        %2131 = vmatprep.mubr.f32.mxu0 0.0
        %2132 = vmatmul.mubr.f32.gmra.mrb[0].mxu0 %v2065
        %v2133 = vpop.f32.mrb[0].mxu0
        %v2134 = vadd.f32 0.0, %v2133
        %v2135 = vpop.f32.mrb[0].mxu0
        %2136 = vdwg.mxu0
        %2137 = vrot.lane.b32.xlu0 %v423, 108
        %v2138 = vpop.permute.xlu0 %2137
        %2139 = vrot.lane.b32.xlu0 %v423, 76
        %v2140 = vpop.permute.xlu0 %2139
        %v2141 = vsel %vm436, %v2138, 0
        %v2143 = vsel %vm436, %v2140, 0
        %2145 = vmatprep.subr.mxu0 0.0
        %2146 = vmatpush1.xpose.msra.mxu0 %v2143
        %2147 = vmatprep.subr.mxu0 0.0
        %2148 = vmatpush1.xpose.msra.mxu0 0.0
        %2149 = vmatprep.subr.mxu0 0.0
        %2150 = vmatpush1.xpose.msra.mxu0 0.0
        %2151 = vmatprep.subr.mxu0 0.0
        %2152 = vmatpush1.xpose.msra.mxu0 0.0
        %2153 = vmatprep.subr.mxu0 0.0
        %2154 = vmatpush1.xpose.msra.mxu0 0.0
        %2155 = vmatprep.subr.mxu0 0.0
        %2156 = vmatpush1.xpose.msra.mxu0 0.0
        %2157 = vmatprep.subr.mxu0 0.0
        %2158 = vmatpush1.xpose.msra.mxu0 0.0
        %2159 = vmatprep.subr.mxu0 0.0
        %2160 = vmatpush1.xpose.msra.mxu0 0.0
        %2161 = vmatprep.subr.mxu0 0.0
        %2162 = vmatpush1.xpose.msra.mxu0 0.0
        %2163 = vmatprep.subr.mxu0 0.0
        %2164 = vmatpush1.xpose.msra.mxu0 0.0
        %2165 = vmatprep.subr.mxu0 0.0
        %2166 = vmatpush1.xpose.msra.mxu0 0.0
        %2167 = vmatprep.subr.mxu0 0.0
        %2168 = vmatpush1.xpose.msra.mxu0 0.0
        %2169 = vmatprep.subr.mxu0 0.0
        %2170 = vmatpush1.xpose.msra.mxu0 0.0
        %2171 = vmatprep.subr.mxu0 0.0
        %2172 = vmatpush1.xpose.msra.mxu0 0.0
        %2173 = vmatprep.subr.mxu0 0.0
        %2174 = vmatpush1.xpose.msra.mxu0 0.0
        %2175 = vmatprep.subr.mxu0 0.0
        %2176 = vmatpush1.xpose.msra.mxu0 0.0
        %2177 = vmatprep.subr.mxu0 0.0
        %2178 = vmatpush1.xpose.msra.mxu0 0.0
        %2179 = vmatprep.subr.mxu0 0.0
        %2180 = vmatpush1.xpose.msra.mxu0 0.0
        %2181 = vmatprep.subr.mxu0 0.0
        %2182 = vmatpush1.xpose.msra.mxu0 0.0
        %2183 = vmatprep.subr.mxu0 0.0
        %2184 = vmatpush1.xpose.msra.mxu0 0.0
        %2185 = vmatprep.subr.mxu0 0.0
        %2186 = vmatpush1.xpose.msra.mxu0 0.0
        %2187 = vmatprep.subr.mxu0 0.0
        %2188 = vmatpush1.xpose.msra.mxu0 0.0
        %2189 = vmatprep.subr.mxu0 0.0
        %2190 = vmatpush1.xpose.msra.mxu0 0.0
        %2191 = vmatprep.subr.mxu0 0.0
        %2192 = vmatpush1.xpose.msra.mxu0 0.0
        %2193 = vmatprep.subr.mxu0 0.0
        %2194 = vmatpush1.xpose.msra.mxu0 0.0
        %2195 = vmatprep.subr.mxu0 0.0
        %2196 = vmatpush1.xpose.msra.mxu0 0.0
        %2197 = vmatprep.subr.mxu0 0.0
        %2198 = vmatpush1.xpose.msra.mxu0 0.0
        %2199 = vmatprep.subr.mxu0 0.0
        %2200 = vmatpush1.xpose.msra.mxu0 0.0
        %2201 = vmatprep.subr.mxu0 0.0
        %2202 = vmatpush1.xpose.msra.mxu0 0.0
        %2203 = vmatprep.subr.mxu0 0.0
        %2204 = vmatpush1.xpose.msra.mxu0 0.0
        %2205 = vmatprep.subr.mxu0 0.0
        %2206 = vmatpush1.xpose.msra.mxu0 0.0
        %2207 = vmatprep.subr.mxu0 0.0
        %2208 = vmatpush1.xpose.msra.mxu0 0.0
        %2209 = vmatprep.mubr.f32.mxu0 0.0
        %2210 = vmatmul.mubr.f32.gmra.mrb[0].mxu0 %v2141
        %v2211 = vpop.f32.mrb[0].mxu0
        %v2212 = vadd.f32 0.0, %v2211
        %v2213 = vpop.f32.mrb[0].mxu0
        %2214 = vdwg.mxu0
        %2215 = vrot.lane.b32.xlu0 %v428, 108
        %v2216 = vpop.permute.xlu0 %2215
        %2217 = vrot.lane.b32.xlu0 %v428, 76
        %v2218 = vpop.permute.xlu0 %2217
        %v2219 = vsel %vm436, %v2216, 0
        %v2221 = vsel %vm436, %v2218, 0
        %2223 = vmatprep.subr.mxu0 0.0
        %2224 = vmatpush1.xpose.msra.mxu0 %v2221
        %2225 = vmatprep.subr.mxu0 0.0
        %2226 = vmatpush1.xpose.msra.mxu0 0.0
        %2227 = vmatprep.subr.mxu0 0.0
        %2228 = vmatpush1.xpose.msra.mxu0 0.0
        %2229 = vmatprep.subr.mxu0 0.0
        %2230 = vmatpush1.xpose.msra.mxu0 0.0
        %2231 = vmatprep.subr.mxu0 0.0
        %2232 = vmatpush1.xpose.msra.mxu0 0.0
        %2233 = vmatprep.subr.mxu0 0.0
        %2234 = vmatpush1.xpose.msra.mxu0 0.0
        %2235 = vmatprep.subr.mxu0 0.0
        %2236 = vmatpush1.xpose.msra.mxu0 0.0
        %2237 = vmatprep.subr.mxu0 0.0
        %2238 = vmatpush1.xpose.msra.mxu0 0.0
        %2239 = vmatprep.subr.mxu0 0.0
        %2240 = vmatpush1.xpose.msra.mxu0 0.0
        %2241 = vmatprep.subr.mxu0 0.0
        %2242 = vmatpush1.xpose.msra.mxu0 0.0
        %2243 = vmatprep.subr.mxu0 0.0
        %2244 = vmatpush1.xpose.msra.mxu0 0.0
        %2245 = vmatprep.subr.mxu0 0.0
        %2246 = vmatpush1.xpose.msra.mxu0 0.0
        %2247 = vmatprep.subr.mxu0 0.0
        %2248 = vmatpush1.xpose.msra.mxu0 0.0
        %2249 = vmatprep.subr.mxu0 0.0
        %2250 = vmatpush1.xpose.msra.mxu0 0.0
        %2251 = vmatprep.subr.mxu0 0.0
        %2252 = vmatpush1.xpose.msra.mxu0 0.0
        %2253 = vmatprep.subr.mxu0 0.0
        %2254 = vmatpush1.xpose.msra.mxu0 0.0
        %2255 = vmatprep.subr.mxu0 0.0
        %2256 = vmatpush1.xpose.msra.mxu0 0.0
        %2257 = vmatprep.subr.mxu0 0.0
        %2258 = vmatpush1.xpose.msra.mxu0 0.0
        %2259 = vmatprep.subr.mxu0 0.0
        %2260 = vmatpush1.xpose.msra.mxu0 0.0
        %2261 = vmatprep.subr.mxu0 0.0
        %2262 = vmatpush1.xpose.msra.mxu0 0.0
        %2263 = vmatprep.subr.mxu0 0.0
        %2264 = vmatpush1.xpose.msra.mxu0 0.0
        %2265 = vmatprep.subr.mxu0 0.0
        %2266 = vmatpush1.xpose.msra.mxu0 0.0
        %2267 = vmatprep.subr.mxu0 0.0
        %2268 = vmatpush1.xpose.msra.mxu0 0.0
        %2269 = vmatprep.subr.mxu0 0.0
        %2270 = vmatpush1.xpose.msra.mxu0 0.0
        %2271 = vmatprep.subr.mxu0 0.0
        %2272 = vmatpush1.xpose.msra.mxu0 0.0
        %2273 = vmatprep.subr.mxu0 0.0
        %2274 = vmatpush1.xpose.msra.mxu0 0.0
        %2275 = vmatprep.subr.mxu0 0.0
        %2276 = vmatpush1.xpose.msra.mxu0 0.0
        %2277 = vmatprep.subr.mxu0 0.0
        %2278 = vmatpush1.xpose.msra.mxu0 0.0
        %2279 = vmatprep.subr.mxu0 0.0
        %2280 = vmatpush1.xpose.msra.mxu0 0.0
        %2281 = vmatprep.subr.mxu0 0.0
        %2282 = vmatpush1.xpose.msra.mxu0 0.0
        %2283 = vmatprep.subr.mxu0 0.0
        %2284 = vmatpush1.xpose.msra.mxu0 0.0
        %2285 = vmatprep.subr.mxu0 0.0
        %2286 = vmatpush1.xpose.msra.mxu0 0.0
        %2287 = vmatprep.mubr.f32.mxu0 0.0
        %2288 = vmatmul.mubr.f32.gmra.mrb[0].mxu0 %v2219
        %v2289 = vpop.f32.mrb[0].mxu0
        %v2290 = vadd.f32 0.0, %v2289
        %v2291 = vpop.f32.mrb[0].mxu0
        %2292 = vdwg.mxu0
        %v2293 = vsel %vm600, %v2212, -1e+30
        %v2294 = vsel %vm601, %v2290, -1e+30
        %v2295 = vsel %vm604, %v2293, -inf
        %2296 = vmax.xlane.f32.xlu0 %v2295
        %v2297 = vpop.xlane.xlu0 %2296
        %v2298 = vsel %vm604, %v2294, -inf
        %2299 = vmax.xlane.f32.xlu0 %v2298
        %v2300 = vpop.xlane.xlu0 %2299
        %v2301 = vsub.f32 %v2293, %v2297
        %v2302 = vsub.f32 %v2294, %v2300
        %v2303 = vmul.f32 %v2301, 1.442695
        %v2304 = vpow.pop %v2303
        %v2305 = vmul.f32 %v2302, 1.442695
        %v2306 = vpow.pop %v2305
        %v2307 = vsel %vm604, %v2304, 0.0
        %2308 = vadd.xlane.f32.xlu0 %v2307
        %v2309 = vpop.xlane.xlu0 %2308
        %v2310 = vsel %vm604, %v2306, 0.0
        %2311 = vadd.xlane.f32.xlu0 %v2310
        %v2312 = vpop.xlane.xlu0 %2311
        %v2313 = vrcp.pop %v2309
        %v2314 = vrcp.pop %v2312
        %v2315 = vmul.f32 %v2309, %v2313
        %v2316 = vmul.f32 %v2312, %v2314
        %v2317 = vsub.f32 2.0, %v2315
        %v2318 = vsub.f32 2.0, %v2316
        %v2319 = vmul.f32 %v2313, %v2317
        %v2320 = vmul.f32 %v2314, %v2318
        %v2321 = vmul.f32 %v2304, %v2319
        %v2322 = vmul.f32 %v2306, %v2320
        %2323 = vrot.lane.b32.xlu0 %v423, 44
        %v2324 = vpop.permute.xlu0 %2323
        %v2327 = vsel %vm604, %v2321, 0
        %2329 = vmatprep.subr.mxu0 0.0
        %2330 = vmatpush1.msra.mxu0 %v2324
        %2331 = vmatprep.subr.mxu0 0.0
        %2332 = vmatpush1.msra.mxu0 0.0
        %2333 = vmatprep.subr.mxu0 0.0
        %2334 = vmatpush1.msra.mxu0 0.0
        %2335 = vmatprep.subr.mxu0 0.0
        %2336 = vmatpush1.msra.mxu0 0.0
        %2337 = vmatprep.subr.mxu0 0.0
        %2338 = vmatpush1.msra.mxu0 0.0
        %2339 = vmatprep.subr.mxu0 0.0
        %2340 = vmatpush1.msra.mxu0 0.0
        %2341 = vmatprep.subr.mxu0 0.0
        %2342 = vmatpush1.msra.mxu0 0.0
        %2343 = vmatprep.subr.mxu0 0.0
        %2344 = vmatpush1.msra.mxu0 0.0
        %2345 = vmatprep.subr.mxu0 0.0
        %2346 = vmatpush1.msra.mxu0 0.0
        %2347 = vmatprep.subr.mxu0 0.0
        %2348 = vmatpush1.msra.mxu0 0.0
        %2349 = vmatprep.subr.mxu0 0.0
        %2350 = vmatpush1.msra.mxu0 0.0
        %2351 = vmatprep.subr.mxu0 0.0
        %2352 = vmatpush1.msra.mxu0 0.0
        %2353 = vmatprep.subr.mxu0 0.0
        %2354 = vmatpush1.msra.mxu0 0.0
        %2355 = vmatprep.subr.mxu0 0.0
        %2356 = vmatpush1.msra.mxu0 0.0
        %2357 = vmatprep.subr.mxu0 0.0
        %2358 = vmatpush1.msra.mxu0 0.0
        %2359 = vmatprep.subr.mxu0 0.0
        %2360 = vmatpush1.msra.mxu0 0.0
        %2361 = vmatprep.subr.mxu0 0.0
        %2362 = vmatpush1.msra.mxu0 0.0
        %2363 = vmatprep.subr.mxu0 0.0
        %2364 = vmatpush1.msra.mxu0 0.0
        %2365 = vmatprep.subr.mxu0 0.0
        %2366 = vmatpush1.msra.mxu0 0.0
        %2367 = vmatprep.subr.mxu0 0.0
        %2368 = vmatpush1.msra.mxu0 0.0
        %2369 = vmatprep.subr.mxu0 0.0
        %2370 = vmatpush1.msra.mxu0 0.0
        %2371 = vmatprep.subr.mxu0 0.0
        %2372 = vmatpush1.msra.mxu0 0.0
        %2373 = vmatprep.subr.mxu0 0.0
        %2374 = vmatpush1.msra.mxu0 0.0
        %2375 = vmatprep.subr.mxu0 0.0
        %2376 = vmatpush1.msra.mxu0 0.0
        %2377 = vmatprep.subr.mxu0 0.0
        %2378 = vmatpush1.msra.mxu0 0.0
        %2379 = vmatprep.subr.mxu0 0.0
        %2380 = vmatpush1.msra.mxu0 0.0
        %2381 = vmatprep.subr.mxu0 0.0
        %2382 = vmatpush1.msra.mxu0 0.0
        %2383 = vmatprep.subr.mxu0 0.0
        %2384 = vmatpush1.msra.mxu0 0.0
        %2385 = vmatprep.subr.mxu0 0.0
        %2386 = vmatpush1.msra.mxu0 0.0
        %2387 = vmatprep.subr.mxu0 0.0
        %2388 = vmatpush1.msra.mxu0 0.0
        %2389 = vmatprep.subr.mxu0 0.0
        %2390 = vmatpush1.msra.mxu0 0.0
        %2391 = vmatprep.subr.mxu0 0.0
        %2392 = vmatpush1.msra.mxu0 0.0
        %2393 = vmatprep.mubr.f32.mxu0 0.0
        %2394 = vmatmul.mubr.f32.gmra.mrb[0].mxu0 %v2327
        %v2395 = vpop.f32.mrb[0].mxu0
        %v2396 = vadd.f32 0.0, %v2395
        %v2397 = vpop.f32.mrb[0].mxu0
        %2398 = vdwg.mxu0
        %2399 = vrot.lane.b32.xlu0 %v428, 44
        %v2400 = vpop.permute.xlu0 %2399
        %v2403 = vsel %vm604, %v2322, 0
        %2405 = vmatprep.subr.mxu0 0.0
        %2406 = vmatpush1.msra.mxu0 %v2400
        %2407 = vmatprep.subr.mxu0 0.0
        %2408 = vmatpush1.msra.mxu0 0.0
        %2409 = vmatprep.subr.mxu0 0.0
        %2410 = vmatpush1.msra.mxu0 0.0
        %2411 = vmatprep.subr.mxu0 0.0
        %2412 = vmatpush1.msra.mxu0 0.0
        %2413 = vmatprep.subr.mxu0 0.0
        %2414 = vmatpush1.msra.mxu0 0.0
        %2415 = vmatprep.subr.mxu0 0.0
        %2416 = vmatpush1.msra.mxu0 0.0
        %2417 = vmatprep.subr.mxu0 0.0
        %2418 = vmatpush1.msra.mxu0 0.0
        %2419 = vmatprep.subr.mxu0 0.0
        %2420 = vmatpush1.msra.mxu0 0.0
        %2421 = vmatprep.subr.mxu0 0.0
        %2422 = vmatpush1.msra.mxu0 0.0
        %2423 = vmatprep.subr.mxu0 0.0
        %2424 = vmatpush1.msra.mxu0 0.0
        %2425 = vmatprep.subr.mxu0 0.0
        %2426 = vmatpush1.msra.mxu0 0.0
        %2427 = vmatprep.subr.mxu0 0.0
        %2428 = vmatpush1.msra.mxu0 0.0
        %2429 = vmatprep.subr.mxu0 0.0
        %2430 = vmatpush1.msra.mxu0 0.0
        %2431 = vmatprep.subr.mxu0 0.0
        %2432 = vmatpush1.msra.mxu0 0.0
        %2433 = vmatprep.subr.mxu0 0.0
        %2434 = vmatpush1.msra.mxu0 0.0
        %2435 = vmatprep.subr.mxu0 0.0
        %2436 = vmatpush1.msra.mxu0 0.0
        %2437 = vmatprep.subr.mxu0 0.0
        %2438 = vmatpush1.msra.mxu0 0.0
        %2439 = vmatprep.subr.mxu0 0.0
        %2440 = vmatpush1.msra.mxu0 0.0
        %2441 = vmatprep.subr.mxu0 0.0
        %2442 = vmatpush1.msra.mxu0 0.0
        %2443 = vmatprep.subr.mxu0 0.0
        %2444 = vmatpush1.msra.mxu0 0.0
        %2445 = vmatprep.subr.mxu0 0.0
        %2446 = vmatpush1.msra.mxu0 0.0
        %2447 = vmatprep.subr.mxu0 0.0
        %2448 = vmatpush1.msra.mxu0 0.0
        %2449 = vmatprep.subr.mxu0 0.0
        %2450 = vmatpush1.msra.mxu0 0.0
        %2451 = vmatprep.subr.mxu0 0.0
        %2452 = vmatpush1.msra.mxu0 0.0
        %2453 = vmatprep.subr.mxu0 0.0
        %2454 = vmatpush1.msra.mxu0 0.0
        %2455 = vmatprep.subr.mxu0 0.0
        %2456 = vmatpush1.msra.mxu0 0.0
        %2457 = vmatprep.subr.mxu0 0.0
        %2458 = vmatpush1.msra.mxu0 0.0
        %2459 = vmatprep.subr.mxu0 0.0
        %2460 = vmatpush1.msra.mxu0 0.0
        %2461 = vmatprep.subr.mxu0 0.0
        %2462 = vmatpush1.msra.mxu0 0.0
        %2463 = vmatprep.subr.mxu0 0.0
        %2464 = vmatpush1.msra.mxu0 0.0
        %2465 = vmatprep.subr.mxu0 0.0
        %2466 = vmatpush1.msra.mxu0 0.0
        %2467 = vmatprep.subr.mxu0 0.0
        %2468 = vmatpush1.msra.mxu0 0.0
        %2469 = vmatprep.mubr.f32.mxu0 0.0
        %2470 = vmatmul.mubr.f32.gmra.mrb[0].mxu0 %v2403
        %v2471 = vpop.f32.mrb[0].mxu0
        %v2472 = vadd.f32 0.0, %v2471
        %v2473 = vpop.f32.mrb[0].mxu0
        %2474 = vdwg.mxu0
        %2475 = vrot.lane.b32.xlu0 %v423, 104
        %v2476 = vpop.permute.xlu0 %2475
        %2477 = vrot.lane.b32.xlu0 %v423, 72
        %v2478 = vpop.permute.xlu0 %2477
        %v2479 = vsel %vm436, %v2476, 0
        %v2481 = vsel %vm436, %v2478, 0
        %2483 = vmatprep.subr.mxu0 0.0
        %2484 = vmatpush1.xpose.msra.mxu0 %v2481
        %2485 = vmatprep.subr.mxu0 0.0
        %2486 = vmatpush1.xpose.msra.mxu0 0.0
        %2487 = vmatprep.subr.mxu0 0.0
        %2488 = vmatpush1.xpose.msra.mxu0 0.0
        %2489 = vmatprep.subr.mxu0 0.0
        %2490 = vmatpush1.xpose.msra.mxu0 0.0
        %2491 = vmatprep.subr.mxu0 0.0
        %2492 = vmatpush1.xpose.msra.mxu0 0.0
        %2493 = vmatprep.subr.mxu0 0.0
        %2494 = vmatpush1.xpose.msra.mxu0 0.0
        %2495 = vmatprep.subr.mxu0 0.0
        %2496 = vmatpush1.xpose.msra.mxu0 0.0
        %2497 = vmatprep.subr.mxu0 0.0
        %2498 = vmatpush1.xpose.msra.mxu0 0.0
        %2499 = vmatprep.subr.mxu0 0.0
        %2500 = vmatpush1.xpose.msra.mxu0 0.0
        %2501 = vmatprep.subr.mxu0 0.0
        %2502 = vmatpush1.xpose.msra.mxu0 0.0
        %2503 = vmatprep.subr.mxu0 0.0
        %2504 = vmatpush1.xpose.msra.mxu0 0.0
        %2505 = vmatprep.subr.mxu0 0.0
        %2506 = vmatpush1.xpose.msra.mxu0 0.0
        %2507 = vmatprep.subr.mxu0 0.0
        %2508 = vmatpush1.xpose.msra.mxu0 0.0
        %2509 = vmatprep.subr.mxu0 0.0
        %2510 = vmatpush1.xpose.msra.mxu0 0.0
        %2511 = vmatprep.subr.mxu0 0.0
        %2512 = vmatpush1.xpose.msra.mxu0 0.0
        %2513 = vmatprep.subr.mxu0 0.0
        %2514 = vmatpush1.xpose.msra.mxu0 0.0
        %2515 = vmatprep.subr.mxu0 0.0
        %2516 = vmatpush1.xpose.msra.mxu0 0.0
        %2517 = vmatprep.subr.mxu0 0.0
        %2518 = vmatpush1.xpose.msra.mxu0 0.0
        %2519 = vmatprep.subr.mxu0 0.0
        %2520 = vmatpush1.xpose.msra.mxu0 0.0
        %2521 = vmatprep.subr.mxu0 0.0
        %2522 = vmatpush1.xpose.msra.mxu0 0.0
        %2523 = vmatprep.subr.mxu0 0.0
        %2524 = vmatpush1.xpose.msra.mxu0 0.0
        %2525 = vmatprep.subr.mxu0 0.0
        %2526 = vmatpush1.xpose.msra.mxu0 0.0
        %2527 = vmatprep.subr.mxu0 0.0
        %2528 = vmatpush1.xpose.msra.mxu0 0.0
        %2529 = vmatprep.subr.mxu0 0.0
        %2530 = vmatpush1.xpose.msra.mxu0 0.0
        %2531 = vmatprep.subr.mxu0 0.0
        %2532 = vmatpush1.xpose.msra.mxu0 0.0
        %2533 = vmatprep.subr.mxu0 0.0
        %2534 = vmatpush1.xpose.msra.mxu0 0.0
        %2535 = vmatprep.subr.mxu0 0.0
        %2536 = vmatpush1.xpose.msra.mxu0 0.0
        %2537 = vmatprep.subr.mxu0 0.0
        %2538 = vmatpush1.xpose.msra.mxu0 0.0
        %2539 = vmatprep.subr.mxu0 0.0
        %2540 = vmatpush1.xpose.msra.mxu0 0.0
        %2541 = vmatprep.subr.mxu0 0.0
        %2542 = vmatpush1.xpose.msra.mxu0 0.0
        %2543 = vmatprep.subr.mxu0 0.0
        %2544 = vmatpush1.xpose.msra.mxu0 0.0
        %2545 = vmatprep.subr.mxu0 0.0
        %2546 = vmatpush1.xpose.msra.mxu0 0.0
        %2547 = vmatprep.mubr.f32.mxu0 0.0
        %2548 = vmatmul.mubr.f32.gmra.mrb[0].mxu0 %v2479
        %v2549 = vpop.f32.mrb[0].mxu0
        %v2550 = vadd.f32 0.0, %v2549
        %v2551 = vpop.f32.mrb[0].mxu0
        %2552 = vdwg.mxu0
        %2553 = vrot.lane.b32.xlu0 %v428, 104
        %v2554 = vpop.permute.xlu0 %2553
        %2555 = vrot.lane.b32.xlu0 %v428, 72
        %v2556 = vpop.permute.xlu0 %2555
        %v2557 = vsel %vm436, %v2554, 0
        %v2559 = vsel %vm436, %v2556, 0
        %2561 = vmatprep.subr.mxu0 0.0
        %2562 = vmatpush1.xpose.msra.mxu0 %v2559
        %2563 = vmatprep.subr.mxu0 0.0
        %2564 = vmatpush1.xpose.msra.mxu0 0.0
        %2565 = vmatprep.subr.mxu0 0.0
        %2566 = vmatpush1.xpose.msra.mxu0 0.0
        %2567 = vmatprep.subr.mxu0 0.0
        %2568 = vmatpush1.xpose.msra.mxu0 0.0
        %2569 = vmatprep.subr.mxu0 0.0
        %2570 = vmatpush1.xpose.msra.mxu0 0.0
        %2571 = vmatprep.subr.mxu0 0.0
        %2572 = vmatpush1.xpose.msra.mxu0 0.0
        %2573 = vmatprep.subr.mxu0 0.0
        %2574 = vmatpush1.xpose.msra.mxu0 0.0
        %2575 = vmatprep.subr.mxu0 0.0
        %2576 = vmatpush1.xpose.msra.mxu0 0.0
        %2577 = vmatprep.subr.mxu0 0.0
        %2578 = vmatpush1.xpose.msra.mxu0 0.0
        %2579 = vmatprep.subr.mxu0 0.0
        %2580 = vmatpush1.xpose.msra.mxu0 0.0
        %2581 = vmatprep.subr.mxu0 0.0
        %2582 = vmatpush1.xpose.msra.mxu0 0.0
        %2583 = vmatprep.subr.mxu0 0.0
        %2584 = vmatpush1.xpose.msra.mxu0 0.0
        %2585 = vmatprep.subr.mxu0 0.0
        %2586 = vmatpush1.xpose.msra.mxu0 0.0
        %2587 = vmatprep.subr.mxu0 0.0
        %2588 = vmatpush1.xpose.msra.mxu0 0.0
        %2589 = vmatprep.subr.mxu0 0.0
        %2590 = vmatpush1.xpose.msra.mxu0 0.0
        %2591 = vmatprep.subr.mxu0 0.0
        %2592 = vmatpush1.xpose.msra.mxu0 0.0
        %2593 = vmatprep.subr.mxu0 0.0
        %2594 = vmatpush1.xpose.msra.mxu0 0.0
        %2595 = vmatprep.subr.mxu0 0.0
        %2596 = vmatpush1.xpose.msra.mxu0 0.0
        %2597 = vmatprep.subr.mxu0 0.0
        %2598 = vmatpush1.xpose.msra.mxu0 0.0
        %2599 = vmatprep.subr.mxu0 0.0
        %2600 = vmatpush1.xpose.msra.mxu0 0.0
        %2601 = vmatprep.subr.mxu0 0.0
        %2602 = vmatpush1.xpose.msra.mxu0 0.0
        %2603 = vmatprep.subr.mxu0 0.0
        %2604 = vmatpush1.xpose.msra.mxu0 0.0
        %2605 = vmatprep.subr.mxu0 0.0
        %2606 = vmatpush1.xpose.msra.mxu0 0.0
        %2607 = vmatprep.subr.mxu0 0.0
        %2608 = vmatpush1.xpose.msra.mxu0 0.0
        %2609 = vmatprep.subr.mxu0 0.0
        %2610 = vmatpush1.xpose.msra.mxu0 0.0
        %2611 = vmatprep.subr.mxu0 0.0
        %2612 = vmatpush1.xpose.msra.mxu0 0.0
        %2613 = vmatprep.subr.mxu0 0.0
        %2614 = vmatpush1.xpose.msra.mxu0 0.0
        %2615 = vmatprep.subr.mxu0 0.0
        %2616 = vmatpush1.xpose.msra.mxu0 0.0
        %2617 = vmatprep.subr.mxu0 0.0
        %2618 = vmatpush1.xpose.msra.mxu0 0.0
        %2619 = vmatprep.subr.mxu0 0.0
        %2620 = vmatpush1.xpose.msra.mxu0 0.0
        %2621 = vmatprep.subr.mxu0 0.0
        %2622 = vmatpush1.xpose.msra.mxu0 0.0
        %2623 = vmatprep.subr.mxu0 0.0
        %2624 = vmatpush1.xpose.msra.mxu0 0.0
        %2625 = vmatprep.mubr.f32.mxu0 0.0
        %2626 = vmatmul.mubr.f32.gmra.mrb[0].mxu0 %v2557
        %v2627 = vpop.f32.mrb[0].mxu0
        %v2628 = vadd.f32 0.0, %v2627
        %v2629 = vpop.f32.mrb[0].mxu0
        %2630 = vdwg.mxu0
        %v2631 = vsel %vm600, %v2550, -1e+30
        %v2632 = vsel %vm601, %v2628, -1e+30
        %v2633 = vsel %vm604, %v2631, -inf
        %2634 = vmax.xlane.f32.xlu0 %v2633
        %v2635 = vpop.xlane.xlu0 %2634
        %v2636 = vsel %vm604, %v2632, -inf
        %2637 = vmax.xlane.f32.xlu0 %v2636
        %v2638 = vpop.xlane.xlu0 %2637
        %v2639 = vsub.f32 %v2631, %v2635
        %v2640 = vsub.f32 %v2632, %v2638
        %v2641 = vmul.f32 %v2639, 1.442695
        %v2642 = vpow.pop %v2641
        %v2643 = vmul.f32 %v2640, 1.442695
        %v2644 = vpow.pop %v2643
        %v2645 = vsel %vm604, %v2642, 0.0
        %2646 = vadd.xlane.f32.xlu0 %v2645
        %v2647 = vpop.xlane.xlu0 %2646
        %v2648 = vsel %vm604, %v2644, 0.0
        %2649 = vadd.xlane.f32.xlu0 %v2648
        %v2650 = vpop.xlane.xlu0 %2649
        %v2651 = vrcp.pop %v2647
        %v2652 = vrcp.pop %v2650
        %v2653 = vmul.f32 %v2647, %v2651
        %v2654 = vmul.f32 %v2650, %v2652
        %v2655 = vsub.f32 2.0, %v2653
        %v2656 = vsub.f32 2.0, %v2654
        %v2657 = vmul.f32 %v2651, %v2655
        %v2658 = vmul.f32 %v2652, %v2656
        %v2659 = vmul.f32 %v2642, %v2657
        %v2660 = vmul.f32 %v2644, %v2658
        %2661 = vrot.lane.b32.xlu0 %v423, 40
        %v2662 = vpop.permute.xlu0 %2661
        %v2665 = vsel %vm604, %v2659, 0
        %2667 = vmatprep.subr.mxu0 0.0
        %2668 = vmatpush1.msra.mxu0 %v2662
        %2669 = vmatprep.subr.mxu0 0.0
        %2670 = vmatpush1.msra.mxu0 0.0
        %2671 = vmatprep.subr.mxu0 0.0
        %2672 = vmatpush1.msra.mxu0 0.0
        %2673 = vmatprep.subr.mxu0 0.0
        %2674 = vmatpush1.msra.mxu0 0.0
        %2675 = vmatprep.subr.mxu0 0.0
        %2676 = vmatpush1.msra.mxu0 0.0
        %2677 = vmatprep.subr.mxu0 0.0
        %2678 = vmatpush1.msra.mxu0 0.0
        %2679 = vmatprep.subr.mxu0 0.0
        %2680 = vmatpush1.msra.mxu0 0.0
        %2681 = vmatprep.subr.mxu0 0.0
        %2682 = vmatpush1.msra.mxu0 0.0
        %2683 = vmatprep.subr.mxu0 0.0
        %2684 = vmatpush1.msra.mxu0 0.0
        %2685 = vmatprep.subr.mxu0 0.0
        %2686 = vmatpush1.msra.mxu0 0.0
        %2687 = vmatprep.subr.mxu0 0.0
        %2688 = vmatpush1.msra.mxu0 0.0
        %2689 = vmatprep.subr.mxu0 0.0
        %2690 = vmatpush1.msra.mxu0 0.0
        %2691 = vmatprep.subr.mxu0 0.0
        %2692 = vmatpush1.msra.mxu0 0.0
        %2693 = vmatprep.subr.mxu0 0.0
        %2694 = vmatpush1.msra.mxu0 0.0
        %2695 = vmatprep.subr.mxu0 0.0
        %2696 = vmatpush1.msra.mxu0 0.0
        %2697 = vmatprep.subr.mxu0 0.0
        %2698 = vmatpush1.msra.mxu0 0.0
        %2699 = vmatprep.subr.mxu0 0.0
        %2700 = vmatpush1.msra.mxu0 0.0
        %2701 = vmatprep.subr.mxu0 0.0
        %2702 = vmatpush1.msra.mxu0 0.0
        %2703 = vmatprep.subr.mxu0 0.0
        %2704 = vmatpush1.msra.mxu0 0.0
        %2705 = vmatprep.subr.mxu0 0.0
        %2706 = vmatpush1.msra.mxu0 0.0
        %2707 = vmatprep.subr.mxu0 0.0
        %2708 = vmatpush1.msra.mxu0 0.0
        %2709 = vmatprep.subr.mxu0 0.0
        %2710 = vmatpush1.msra.mxu0 0.0
        %2711 = vmatprep.subr.mxu0 0.0
        %2712 = vmatpush1.msra.mxu0 0.0
        %2713 = vmatprep.subr.mxu0 0.0
        %2714 = vmatpush1.msra.mxu0 0.0
        %2715 = vmatprep.subr.mxu0 0.0
        %2716 = vmatpush1.msra.mxu0 0.0
        %2717 = vmatprep.subr.mxu0 0.0
        %2718 = vmatpush1.msra.mxu0 0.0
        %2719 = vmatprep.subr.mxu0 0.0
        %2720 = vmatpush1.msra.mxu0 0.0
        %2721 = vmatprep.subr.mxu0 0.0
        %2722 = vmatpush1.msra.mxu0 0.0
        %2723 = vmatprep.subr.mxu0 0.0
        %2724 = vmatpush1.msra.mxu0 0.0
        %2725 = vmatprep.subr.mxu0 0.0
        %2726 = vmatpush1.msra.mxu0 0.0
        %2727 = vmatprep.subr.mxu0 0.0
        %2728 = vmatpush1.msra.mxu0 0.0
        %2729 = vmatprep.subr.mxu0 0.0
        %2730 = vmatpush1.msra.mxu0 0.0
        %2731 = vmatprep.mubr.f32.mxu0 0.0
        %2732 = vmatmul.mubr.f32.gmra.mrb[0].mxu0 %v2665
        %v2733 = vpop.f32.mrb[0].mxu0
        %v2734 = vadd.f32 0.0, %v2733
        %v2735 = vpop.f32.mrb[0].mxu0
        %2736 = vdwg.mxu0
        %2737 = vrot.lane.b32.xlu0 %v428, 40
        %v2738 = vpop.permute.xlu0 %2737
        %v2741 = vsel %vm604, %v2660, 0
        %2743 = vmatprep.subr.mxu0 0.0
        %2744 = vmatpush1.msra.mxu0 %v2738
        %2745 = vmatprep.subr.mxu0 0.0
        %2746 = vmatpush1.msra.mxu0 0.0
        %2747 = vmatprep.subr.mxu0 0.0
        %2748 = vmatpush1.msra.mxu0 0.0
        %2749 = vmatprep.subr.mxu0 0.0
        %2750 = vmatpush1.msra.mxu0 0.0
        %2751 = vmatprep.subr.mxu0 0.0
        %2752 = vmatpush1.msra.mxu0 0.0
        %2753 = vmatprep.subr.mxu0 0.0
        %2754 = vmatpush1.msra.mxu0 0.0
        %2755 = vmatprep.subr.mxu0 0.0
        %2756 = vmatpush1.msra.mxu0 0.0
        %2757 = vmatprep.subr.mxu0 0.0
        %2758 = vmatpush1.msra.mxu0 0.0
        %2759 = vmatprep.subr.mxu0 0.0
        %2760 = vmatpush1.msra.mxu0 0.0
        %2761 = vmatprep.subr.mxu0 0.0
        %2762 = vmatpush1.msra.mxu0 0.0
        %2763 = vmatprep.subr.mxu0 0.0
        %2764 = vmatpush1.msra.mxu0 0.0
        %2765 = vmatprep.subr.mxu0 0.0
        %2766 = vmatpush1.msra.mxu0 0.0
        %2767 = vmatprep.subr.mxu0 0.0
        %2768 = vmatpush1.msra.mxu0 0.0
        %2769 = vmatprep.subr.mxu0 0.0
        %2770 = vmatpush1.msra.mxu0 0.0
        %2771 = vmatprep.subr.mxu0 0.0
        %2772 = vmatpush1.msra.mxu0 0.0
        %2773 = vmatprep.subr.mxu0 0.0
        %2774 = vmatpush1.msra.mxu0 0.0
        %2775 = vmatprep.subr.mxu0 0.0
        %2776 = vmatpush1.msra.mxu0 0.0
        %2777 = vmatprep.subr.mxu0 0.0
        %2778 = vmatpush1.msra.mxu0 0.0
        %2779 = vmatprep.subr.mxu0 0.0
        %2780 = vmatpush1.msra.mxu0 0.0
        %2781 = vmatprep.subr.mxu0 0.0
        %2782 = vmatpush1.msra.mxu0 0.0
        %2783 = vmatprep.subr.mxu0 0.0
        %2784 = vmatpush1.msra.mxu0 0.0
        %2785 = vmatprep.subr.mxu0 0.0
        %2786 = vmatpush1.msra.mxu0 0.0
        %2787 = vmatprep.subr.mxu0 0.0
        %2788 = vmatpush1.msra.mxu0 0.0
        %2789 = vmatprep.subr.mxu0 0.0
        %2790 = vmatpush1.msra.mxu0 0.0
        %2791 = vmatprep.subr.mxu0 0.0
        %2792 = vmatpush1.msra.mxu0 0.0
        %2793 = vmatprep.subr.mxu0 0.0
        %2794 = vmatpush1.msra.mxu0 0.0
        %2795 = vmatprep.subr.mxu0 0.0
        %2796 = vmatpush1.msra.mxu0 0.0
        %2797 = vmatprep.subr.mxu0 0.0
        %2798 = vmatpush1.msra.mxu0 0.0
        %2799 = vmatprep.subr.mxu0 0.0
        %2800 = vmatpush1.msra.mxu0 0.0
        %2801 = vmatprep.subr.mxu0 0.0
        %2802 = vmatpush1.msra.mxu0 0.0
        %2803 = vmatprep.subr.mxu0 0.0
        %2804 = vmatpush1.msra.mxu0 0.0
        %2805 = vmatprep.subr.mxu0 0.0
        %2806 = vmatpush1.msra.mxu0 0.0
        %2807 = vmatprep.mubr.f32.mxu0 0.0
        %2808 = vmatmul.mubr.f32.gmra.mrb[0].mxu0 %v2741
        %v2809 = vpop.f32.mrb[0].mxu0
        %v2810 = vadd.f32 0.0, %v2809
        %v2811 = vpop.f32.mrb[0].mxu0
        %2812 = vdwg.mxu0
        %2813 = vrot.lane.b32.xlu0 %v423, 100
        %v2814 = vpop.permute.xlu0 %2813
        %2815 = vrot.lane.b32.xlu0 %v423, 68
        %v2816 = vpop.permute.xlu0 %2815
        %v2817 = vsel %vm436, %v2814, 0
        %v2819 = vsel %vm436, %v2816, 0
        %2821 = vmatprep.subr.mxu0 0.0
        %2822 = vmatpush1.xpose.msra.mxu0 %v2819
        %2823 = vmatprep.subr.mxu0 0.0
        %2824 = vmatpush1.xpose.msra.mxu0 0.0
        %2825 = vmatprep.subr.mxu0 0.0
        %2826 = vmatpush1.xpose.msra.mxu0 0.0
        %2827 = vmatprep.subr.mxu0 0.0
        %2828 = vmatpush1.xpose.msra.mxu0 0.0
        %2829 = vmatprep.subr.mxu0 0.0
        %2830 = vmatpush1.xpose.msra.mxu0 0.0
        %2831 = vmatprep.subr.mxu0 0.0
        %2832 = vmatpush1.xpose.msra.mxu0 0.0
        %2833 = vmatprep.subr.mxu0 0.0
        %2834 = vmatpush1.xpose.msra.mxu0 0.0
        %2835 = vmatprep.subr.mxu0 0.0
        %2836 = vmatpush1.xpose.msra.mxu0 0.0
        %2837 = vmatprep.subr.mxu0 0.0
        %2838 = vmatpush1.xpose.msra.mxu0 0.0
        %2839 = vmatprep.subr.mxu0 0.0
        %2840 = vmatpush1.xpose.msra.mxu0 0.0
        %2841 = vmatprep.subr.mxu0 0.0
        %2842 = vmatpush1.xpose.msra.mxu0 0.0
        %2843 = vmatprep.subr.mxu0 0.0
        %2844 = vmatpush1.xpose.msra.mxu0 0.0
        %2845 = vmatprep.subr.mxu0 0.0
        %2846 = vmatpush1.xpose.msra.mxu0 0.0
        %2847 = vmatprep.subr.mxu0 0.0
        %2848 = vmatpush1.xpose.msra.mxu0 0.0
        %2849 = vmatprep.subr.mxu0 0.0
        %2850 = vmatpush1.xpose.msra.mxu0 0.0
        %2851 = vmatprep.subr.mxu0 0.0
        %2852 = vmatpush1.xpose.msra.mxu0 0.0
        %2853 = vmatprep.subr.mxu0 0.0
        %2854 = vmatpush1.xpose.msra.mxu0 0.0
        %2855 = vmatprep.subr.mxu0 0.0
        %2856 = vmatpush1.xpose.msra.mxu0 0.0
        %2857 = vmatprep.subr.mxu0 0.0
        %2858 = vmatpush1.xpose.msra.mxu0 0.0
        %2859 = vmatprep.subr.mxu0 0.0
        %2860 = vmatpush1.xpose.msra.mxu0 0.0
        %2861 = vmatprep.subr.mxu0 0.0
        %2862 = vmatpush1.xpose.msra.mxu0 0.0
        %2863 = vmatprep.subr.mxu0 0.0
        %2864 = vmatpush1.xpose.msra.mxu0 0.0
        %2865 = vmatprep.subr.mxu0 0.0
        %2866 = vmatpush1.xpose.msra.mxu0 0.0
        %2867 = vmatprep.subr.mxu0 0.0
        %2868 = vmatpush1.xpose.msra.mxu0 0.0
        %2869 = vmatprep.subr.mxu0 0.0
        %2870 = vmatpush1.xpose.msra.mxu0 0.0
        %2871 = vmatprep.subr.mxu0 0.0
        %2872 = vmatpush1.xpose.msra.mxu0 0.0
        %2873 = vmatprep.subr.mxu0 0.0
        %2874 = vmatpush1.xpose.msra.mxu0 0.0
        %2875 = vmatprep.subr.mxu0 0.0
        %2876 = vmatpush1.xpose.msra.mxu0 0.0
        %2877 = vmatprep.subr.mxu0 0.0
        %2878 = vmatpush1.xpose.msra.mxu0 0.0
        %2879 = vmatprep.subr.mxu0 0.0
        %2880 = vmatpush1.xpose.msra.mxu0 0.0
        %2881 = vmatprep.subr.mxu0 0.0
        %2882 = vmatpush1.xpose.msra.mxu0 0.0
        %2883 = vmatprep.subr.mxu0 0.0
        %2884 = vmatpush1.xpose.msra.mxu0 0.0
        %2885 = vmatprep.mubr.f32.mxu0 0.0
        %2886 = vmatmul.mubr.f32.gmra.mrb[0].mxu0 %v2817
        %v2887 = vpop.f32.mrb[0].mxu0
        %v2888 = vadd.f32 0.0, %v2887
        %v2889 = vpop.f32.mrb[0].mxu0
        %2890 = vdwg.mxu0
        %2891 = vrot.lane.b32.xlu0 %v428, 100
        %v2892 = vpop.permute.xlu0 %2891
        %2893 = vrot.lane.b32.xlu0 %v428, 68
        %v2894 = vpop.permute.xlu0 %2893
        %v2895 = vsel %vm436, %v2892, 0
        %v2897 = vsel %vm436, %v2894, 0
        %2899 = vmatprep.subr.mxu0 0.0
        %2900 = vmatpush1.xpose.msra.mxu0 %v2897
        %2901 = vmatprep.subr.mxu0 0.0
        %2902 = vmatpush1.xpose.msra.mxu0 0.0
        %2903 = vmatprep.subr.mxu0 0.0
        %2904 = vmatpush1.xpose.msra.mxu0 0.0
        %2905 = vmatprep.subr.mxu0 0.0
        %2906 = vmatpush1.xpose.msra.mxu0 0.0
        %2907 = vmatprep.subr.mxu0 0.0
        %2908 = vmatpush1.xpose.msra.mxu0 0.0
        %2909 = vmatprep.subr.mxu0 0.0
        %2910 = vmatpush1.xpose.msra.mxu0 0.0
        %2911 = vmatprep.subr.mxu0 0.0
        %2912 = vmatpush1.xpose.msra.mxu0 0.0
        %2913 = vmatprep.subr.mxu0 0.0
        %2914 = vmatpush1.xpose.msra.mxu0 0.0
        %2915 = vmatprep.subr.mxu0 0.0
        %2916 = vmatpush1.xpose.msra.mxu0 0.0
        %2917 = vmatprep.subr.mxu0 0.0
        %2918 = vmatpush1.xpose.msra.mxu0 0.0
        %2919 = vmatprep.subr.mxu0 0.0
        %2920 = vmatpush1.xpose.msra.mxu0 0.0
        %2921 = vmatprep.subr.mxu0 0.0
        %2922 = vmatpush1.xpose.msra.mxu0 0.0
        %2923 = vmatprep.subr.mxu0 0.0
        %2924 = vmatpush1.xpose.msra.mxu0 0.0
        %2925 = vmatprep.subr.mxu0 0.0
        %2926 = vmatpush1.xpose.msra.mxu0 0.0
        %2927 = vmatprep.subr.mxu0 0.0
        %2928 = vmatpush1.xpose.msra.mxu0 0.0
        %2929 = vmatprep.subr.mxu0 0.0
        %2930 = vmatpush1.xpose.msra.mxu0 0.0
        %2931 = vmatprep.subr.mxu0 0.0
        %2932 = vmatpush1.xpose.msra.mxu0 0.0
        %2933 = vmatprep.subr.mxu0 0.0
        %2934 = vmatpush1.xpose.msra.mxu0 0.0
        %2935 = vmatprep.subr.mxu0 0.0
        %2936 = vmatpush1.xpose.msra.mxu0 0.0
        %2937 = vmatprep.subr.mxu0 0.0
        %2938 = vmatpush1.xpose.msra.mxu0 0.0
        %2939 = vmatprep.subr.mxu0 0.0
        %2940 = vmatpush1.xpose.msra.mxu0 0.0
        %2941 = vmatprep.subr.mxu0 0.0
        %2942 = vmatpush1.xpose.msra.mxu0 0.0
        %2943 = vmatprep.subr.mxu0 0.0
        %2944 = vmatpush1.xpose.msra.mxu0 0.0
        %2945 = vmatprep.subr.mxu0 0.0
        %2946 = vmatpush1.xpose.msra.mxu0 0.0
        %2947 = vmatprep.subr.mxu0 0.0
        %2948 = vmatpush1.xpose.msra.mxu0 0.0
        %2949 = vmatprep.subr.mxu0 0.0
        %2950 = vmatpush1.xpose.msra.mxu0 0.0
        %2951 = vmatprep.subr.mxu0 0.0
        %2952 = vmatpush1.xpose.msra.mxu0 0.0
        %2953 = vmatprep.subr.mxu0 0.0
        %2954 = vmatpush1.xpose.msra.mxu0 0.0
        %2955 = vmatprep.subr.mxu0 0.0
        %2956 = vmatpush1.xpose.msra.mxu0 0.0
        %2957 = vmatprep.subr.mxu0 0.0
        %2958 = vmatpush1.xpose.msra.mxu0 0.0
        %2959 = vmatprep.subr.mxu0 0.0
        %2960 = vmatpush1.xpose.msra.mxu0 0.0
        %2961 = vmatprep.subr.mxu0 0.0
        %2962 = vmatpush1.xpose.msra.mxu0 0.0
        %2963 = vmatprep.mubr.f32.mxu0 0.0
        %2964 = vmatmul.mubr.f32.gmra.mrb[0].mxu0 %v2895
        %v2965 = vpop.f32.mrb[0].mxu0
        %v2966 = vadd.f32 0.0, %v2965
        %v2967 = vpop.f32.mrb[0].mxu0
        %2968 = vdwg.mxu0
        %v2969 = vsel %vm600, %v2888, -1e+30
        %v2970 = vsel %vm601, %v2966, -1e+30
        %v2971 = vsel %vm604, %v2969, -inf
        %2972 = vmax.xlane.f32.xlu0 %v2971
        %v2973 = vpop.xlane.xlu0 %2972
        %v2974 = vsel %vm604, %v2970, -inf
        %2975 = vmax.xlane.f32.xlu0 %v2974
        %v2976 = vpop.xlane.xlu0 %2975
        %v2977 = vsub.f32 %v2969, %v2973
        %v2978 = vsub.f32 %v2970, %v2976
        %v2979 = vmul.f32 %v2977, 1.442695
        %v2980 = vpow.pop %v2979
        %v2981 = vmul.f32 %v2978, 1.442695
        %v2982 = vpow.pop %v2981
        %v2983 = vsel %vm604, %v2980, 0.0
        %2984 = vadd.xlane.f32.xlu0 %v2983
        %v2985 = vpop.xlane.xlu0 %2984
        %v2986 = vsel %vm604, %v2982, 0.0
        %2987 = vadd.xlane.f32.xlu0 %v2986
        %v2988 = vpop.xlane.xlu0 %2987
        %v2989 = vrcp.pop %v2985
        %v2990 = vrcp.pop %v2988
        %v2991 = vmul.f32 %v2985, %v2989
        %v2992 = vmul.f32 %v2988, %v2990
        %v2993 = vsub.f32 2.0, %v2991
        %v2994 = vsub.f32 2.0, %v2992
        %v2995 = vmul.f32 %v2989, %v2993
        %v2996 = vmul.f32 %v2990, %v2994
        %v2997 = vmul.f32 %v2980, %v2995
        %v2998 = vmul.f32 %v2982, %v2996
        %2999 = vrot.lane.b32.xlu0 %v423, 36
        %v3000 = vpop.permute.xlu0 %2999
        %v3003 = vsel %vm604, %v2997, 0
        %3005 = vmatprep.subr.mxu0 0.0
        %3006 = vmatpush1.msra.mxu0 %v3000
        %3007 = vmatprep.subr.mxu0 0.0
        %3008 = vmatpush1.msra.mxu0 0.0
        %3009 = vmatprep.subr.mxu0 0.0
        %3010 = vmatpush1.msra.mxu0 0.0
        %3011 = vmatprep.subr.mxu0 0.0
        %3012 = vmatpush1.msra.mxu0 0.0
        %3013 = vmatprep.subr.mxu0 0.0
        %3014 = vmatpush1.msra.mxu0 0.0
        %3015 = vmatprep.subr.mxu0 0.0
        %3016 = vmatpush1.msra.mxu0 0.0
        %3017 = vmatprep.subr.mxu0 0.0
        %3018 = vmatpush1.msra.mxu0 0.0
        %3019 = vmatprep.subr.mxu0 0.0
        %3020 = vmatpush1.msra.mxu0 0.0
        %3021 = vmatprep.subr.mxu0 0.0
        %3022 = vmatpush1.msra.mxu0 0.0
        %3023 = vmatprep.subr.mxu0 0.0
        %3024 = vmatpush1.msra.mxu0 0.0
        %3025 = vmatprep.subr.mxu0 0.0
        %3026 = vmatpush1.msra.mxu0 0.0
        %3027 = vmatprep.subr.mxu0 0.0
        %3028 = vmatpush1.msra.mxu0 0.0
        %3029 = vmatprep.subr.mxu0 0.0
        %3030 = vmatpush1.msra.mxu0 0.0
        %3031 = vmatprep.subr.mxu0 0.0
        %3032 = vmatpush1.msra.mxu0 0.0
        %3033 = vmatprep.subr.mxu0 0.0
        %3034 = vmatpush1.msra.mxu0 0.0
        %3035 = vmatprep.subr.mxu0 0.0
        %3036 = vmatpush1.msra.mxu0 0.0
        %3037 = vmatprep.subr.mxu0 0.0
        %3038 = vmatpush1.msra.mxu0 0.0
        %3039 = vmatprep.subr.mxu0 0.0
        %3040 = vmatpush1.msra.mxu0 0.0
        %3041 = vmatprep.subr.mxu0 0.0
        %3042 = vmatpush1.msra.mxu0 0.0
        %3043 = vmatprep.subr.mxu0 0.0
        %3044 = vmatpush1.msra.mxu0 0.0
        %3045 = vmatprep.subr.mxu0 0.0
        %3046 = vmatpush1.msra.mxu0 0.0
        %3047 = vmatprep.subr.mxu0 0.0
        %3048 = vmatpush1.msra.mxu0 0.0
        %3049 = vmatprep.subr.mxu0 0.0
        %3050 = vmatpush1.msra.mxu0 0.0
        %3051 = vmatprep.subr.mxu0 0.0
        %3052 = vmatpush1.msra.mxu0 0.0
        %3053 = vmatprep.subr.mxu0 0.0
        %3054 = vmatpush1.msra.mxu0 0.0
        %3055 = vmatprep.subr.mxu0 0.0
        %3056 = vmatpush1.msra.mxu0 0.0
        %3057 = vmatprep.subr.mxu0 0.0
        %3058 = vmatpush1.msra.mxu0 0.0
        %3059 = vmatprep.subr.mxu0 0.0
        %3060 = vmatpush1.msra.mxu0 0.0
        %3061 = vmatprep.subr.mxu0 0.0
        %3062 = vmatpush1.msra.mxu0 0.0
        %3063 = vmatprep.subr.mxu0 0.0
        %3064 = vmatpush1.msra.mxu0 0.0
        %3065 = vmatprep.subr.mxu0 0.0
        %3066 = vmatpush1.msra.mxu0 0.0
        %3067 = vmatprep.subr.mxu0 0.0
        %3068 = vmatpush1.msra.mxu0 0.0
        %3069 = vmatprep.mubr.f32.mxu0 0.0
        %3070 = vmatmul.mubr.f32.gmra.mrb[0].mxu0 %v3003
        %v3071 = vpop.f32.mrb[0].mxu0
        %v3072 = vadd.f32 0.0, %v3071
        %v3073 = vpop.f32.mrb[0].mxu0
        %3074 = vdwg.mxu0
        %3075 = vrot.lane.b32.xlu0 %v428, 36
        %v3076 = vpop.permute.xlu0 %3075
        %v3079 = vsel %vm604, %v2998, 0
        %3081 = vmatprep.subr.mxu0 0.0
        %3082 = vmatpush1.msra.mxu0 %v3076
        %3083 = vmatprep.subr.mxu0 0.0
        %3084 = vmatpush1.msra.mxu0 0.0
        %3085 = vmatprep.subr.mxu0 0.0
        %3086 = vmatpush1.msra.mxu0 0.0
        %3087 = vmatprep.subr.mxu0 0.0
        %3088 = vmatpush1.msra.mxu0 0.0
        %3089 = vmatprep.subr.mxu0 0.0
        %3090 = vmatpush1.msra.mxu0 0.0
        %3091 = vmatprep.subr.mxu0 0.0
        %3092 = vmatpush1.msra.mxu0 0.0
        %3093 = vmatprep.subr.mxu0 0.0
        %3094 = vmatpush1.msra.mxu0 0.0
        %3095 = vmatprep.subr.mxu0 0.0
        %3096 = vmatpush1.msra.mxu0 0.0
        %3097 = vmatprep.subr.mxu0 0.0
        %3098 = vmatpush1.msra.mxu0 0.0
        %3099 = vmatprep.subr.mxu0 0.0
        %3100 = vmatpush1.msra.mxu0 0.0
        %3101 = vmatprep.subr.mxu0 0.0
        %3102 = vmatpush1.msra.mxu0 0.0
        %3103 = vmatprep.subr.mxu0 0.0
        %3104 = vmatpush1.msra.mxu0 0.0
        %3105 = vmatprep.subr.mxu0 0.0
        %3106 = vmatpush1.msra.mxu0 0.0
        %3107 = vmatprep.subr.mxu0 0.0
        %3108 = vmatpush1.msra.mxu0 0.0
        %3109 = vmatprep.subr.mxu0 0.0
        %3110 = vmatpush1.msra.mxu0 0.0
        %3111 = vmatprep.subr.mxu0 0.0
        %3112 = vmatpush1.msra.mxu0 0.0
        %3113 = vmatprep.subr.mxu0 0.0
        %3114 = vmatpush1.msra.mxu0 0.0
        %3115 = vmatprep.subr.mxu0 0.0
        %3116 = vmatpush1.msra.mxu0 0.0
        %3117 = vmatprep.subr.mxu0 0.0
        %3118 = vmatpush1.msra.mxu0 0.0
        %3119 = vmatprep.subr.mxu0 0.0
        %3120 = vmatpush1.msra.mxu0 0.0
        %3121 = vmatprep.subr.mxu0 0.0
        %3122 = vmatpush1.msra.mxu0 0.0
        %3123 = vmatprep.subr.mxu0 0.0
        %3124 = vmatpush1.msra.mxu0 0.0
        %3125 = vmatprep.subr.mxu0 0.0
        %3126 = vmatpush1.msra.mxu0 0.0
        %3127 = vmatprep.subr.mxu0 0.0
        %3128 = vmatpush1.msra.mxu0 0.0
        %3129 = vmatprep.subr.mxu0 0.0
        %3130 = vmatpush1.msra.mxu0 0.0
        %3131 = vmatprep.subr.mxu0 0.0
        %3132 = vmatpush1.msra.mxu0 0.0
        %3133 = vmatprep.subr.mxu0 0.0
        %3134 = vmatpush1.msra.mxu0 0.0
        %3135 = vmatprep.subr.mxu0 0.0
        %3136 = vmatpush1.msra.mxu0 0.0
        %3137 = vmatprep.subr.mxu0 0.0
        %3138 = vmatpush1.msra.mxu0 0.0
        %3139 = vmatprep.subr.mxu0 0.0
        %3140 = vmatpush1.msra.mxu0 0.0
        %3141 = vmatprep.subr.mxu0 0.0
        %3142 = vmatpush1.msra.mxu0 0.0
        %3143 = vmatprep.subr.mxu0 0.0
        %3144 = vmatpush1.msra.mxu0 0.0
        %3145 = vmatprep.mubr.f32.mxu0 0.0
        %3146 = vmatmul.mubr.f32.gmra.mrb[0].mxu0 %v3079
        %v3147 = vpop.f32.mrb[0].mxu0
        %v3148 = vadd.f32 0.0, %v3147
        %v3149 = vpop.f32.mrb[0].mxu0
        %3150 = vdwg.mxu0
        %3153 = vrot.lane.b32.xlu0 %v1044, 4
        %v3154 = vpop.permute.xlu0 %3153
        %3155 = vrot.lane.b32.xlu0 %v1120, 4
        %v3156 = vpop.permute.xlu0 %3155
        %3161 = vrot.lane.b32.xlu0 %v1382, 8
        %v3162 = vpop.permute.xlu0 %3161
        %3163 = vrot.lane.b32.xlu0 %v1458, 8
        %v3164 = vpop.permute.xlu0 %3163
        %3169 = vrot.lane.b32.xlu0 %v1720, 12
        %v3170 = vpop.permute.xlu0 %3169
        %3171 = vrot.lane.b32.xlu0 %v1796, 12
        %v3172 = vpop.permute.xlu0 %3171
        %3177 = vrot.lane.b32.xlu0 %v2058, 16
        %v3178 = vpop.permute.xlu0 %3177
        %3179 = vrot.lane.b32.xlu0 %v2134, 16
        %v3180 = vpop.permute.xlu0 %3179
        %3185 = vrot.lane.b32.xlu0 %v2396, 20
        %v3186 = vpop.permute.xlu0 %3185
        %3187 = vrot.lane.b32.xlu0 %v2472, 20
        %v3188 = vpop.permute.xlu0 %3187
        %3193 = vrot.lane.b32.xlu0 %v2734, 24
        %v3194 = vpop.permute.xlu0 %3193
        %3195 = vrot.lane.b32.xlu0 %v2810, 24
        %v3196 = vpop.permute.xlu0 %3195
        %3201 = vrot.lane.b32.xlu0 %v3072, 28
        %v3202 = vpop.permute.xlu0 %3201
        %3203 = vrot.lane.b32.xlu0 %v3148, 28
        %v3204 = vpop.permute.xlu0 %3203
        %v3207 = vsel %vm436, %v706, %v3154
        %v3208 = vsel %vm436, %v782, %v3156
        %v3209 = vsel %vm604, %v3207, %v3162
        %v3210 = vsel %vm604, %v3208, %v3164
        %vm3211 = vcmask 97280
        %v3212 = vsel %vm3211, %v3209, %v3170
        %v3213 = vsel %vm3211, %v3210, %v3172
        %vm3214 = vcmask 130048
        %v3215 = vsel %vm3214, %v3212, %v3178
        %v3216 = vsel %vm3214, %v3213, %v3180
        %vm3217 = vcmask 162816
        %v3218 = vsel %vm3217, %v3215, %v3186
        %v3219 = vsel %vm3217, %v3216, %v3188
        %vm3220 = vcmask 195584
        %v3221 = vsel %vm3220, %v3218, %v3194
        %v3222 = vsel %vm3220, %v3219, %v3196
        %vm3223 = vcmask 228352
        %v3224 = vsel %vm3223, %v3221, %v3202
        %v3225 = vsel %vm3223, %v3222, %v3204
        %v3226 = vld [vmem:[#allocation2] sm:$0xff]
        %v3227 = vld [vmem:[#allocation2 + $0x8] sm:$0xff]
        %v3228 = vld [vmem:[#allocation2 + $0x10] sm:$0xff]
        %v3229 = vld [vmem:[#allocation2 + $0x18] sm:$0xff]
        %v3230 = vld [vmem:[%s6] sm:$0x1]
        %v3232 = vlaneseq
        %v3233 = vshrl.u32 %v3232, 7
        %v3234 = vsub.s32 0, %v3233
        %v3235 = vrot.slane %v3230, %v3234
        %v3238 = vsel %vm349, %v3224, 0
        %v3241 = vsel %vm349, %v3225, 0
        %3243 = vmatprep.subr.mxu0 0.0
        %3244 = vmatpush1.msra.mxu0 %v3226
        %3245 = vmatprep.subr.mxu0 0.0
        %3246 = vmatpush1.msra.mxu0 %v3227
        %3247 = vmatprep.subr.mxu0 0.0
        %3248 = vmatpush1.msra.mxu0 %v3228
        %3249 = vmatprep.subr.mxu0 0.0
        %3250 = vmatpush1.msra.mxu0 %v3229
        %3251 = vmatprep.subr.mxu0 0.0
        %3252 = vmatpush1.msra.mxu0 0.0
        %3253 = vmatprep.subr.mxu0 0.0
        %3254 = vmatpush1.msra.mxu0 0.0
        %3255 = vmatprep.subr.mxu0 0.0
        %3256 = vmatpush1.msra.mxu0 0.0
        %3257 = vmatprep.subr.mxu0 0.0
        %3258 = vmatpush1.msra.mxu0 0.0
        %3259 = vmatprep.subr.mxu0 0.0
        %3260 = vmatpush1.msra.mxu0 0.0
        %3261 = vmatprep.subr.mxu0 0.0
        %3262 = vmatpush1.msra.mxu0 0.0
        %3263 = vmatprep.subr.mxu0 0.0
        %3264 = vmatpush1.msra.mxu0 0.0
        %3265 = vmatprep.subr.mxu0 0.0
        %3266 = vmatpush1.msra.mxu0 0.0
        %3267 = vmatprep.subr.mxu0 0.0
        %3268 = vmatpush1.msra.mxu0 0.0
        %3269 = vmatprep.subr.mxu0 0.0
        %3270 = vmatpush1.msra.mxu0 0.0
        %3271 = vmatprep.subr.mxu0 0.0
        %3272 = vmatpush1.msra.mxu0 0.0
        %3273 = vmatprep.subr.mxu0 0.0
        %3274 = vmatpush1.msra.mxu0 0.0
        %3275 = vmatprep.subr.mxu0 0.0
        %3276 = vmatpush1.msra.mxu0 0.0
        %3277 = vmatprep.subr.mxu0 0.0
        %3278 = vmatpush1.msra.mxu0 0.0
        %3279 = vmatprep.subr.mxu0 0.0
        %3280 = vmatpush1.msra.mxu0 0.0
        %3281 = vmatprep.subr.mxu0 0.0
        %3282 = vmatpush1.msra.mxu0 0.0
        %3283 = vmatprep.subr.mxu0 0.0
        %3284 = vmatpush1.msra.mxu0 0.0
        %3285 = vmatprep.subr.mxu0 0.0
        %3286 = vmatpush1.msra.mxu0 0.0
        %3287 = vmatprep.subr.mxu0 0.0
        %3288 = vmatpush1.msra.mxu0 0.0
        %3289 = vmatprep.subr.mxu0 0.0
        %3290 = vmatpush1.msra.mxu0 0.0
        %3291 = vmatprep.subr.mxu0 0.0
        %3292 = vmatpush1.msra.mxu0 0.0
        %3293 = vmatprep.subr.mxu0 0.0
        %3294 = vmatpush1.msra.mxu0 0.0
        %3295 = vmatprep.subr.mxu0 0.0
        %3296 = vmatpush1.msra.mxu0 0.0
        %3297 = vmatprep.subr.mxu0 0.0
        %3298 = vmatpush1.msra.mxu0 0.0
        %3299 = vmatprep.subr.mxu0 0.0
        %3300 = vmatpush1.msra.mxu0 0.0
        %3301 = vmatprep.subr.mxu0 0.0
        %3302 = vmatpush1.msra.mxu0 0.0
        %3303 = vmatprep.subr.mxu0 0.0
        %3304 = vmatpush1.msra.mxu0 0.0
        %3305 = vmatprep.subr.mxu0 0.0
        %3306 = vmatpush1.msra.mxu0 0.0
        %3307 = vmatprep.mubr.f32.mxu0 0.0
        %3308 = vmatmul.mubr.f32.gmra.mrb[0].mxu0 %v3238
        %v3309 = vpop.f32.mrb[0].mxu0
        %v3310 = vadd.f32 %v3235, %v3309
        %v3311 = vpop.f32.mrb[0].mxu0
        %3312 = vmatprep.mubr.f32.mxu0 0.0
        %3313 = vmatmul.mubr.f32.gmra.mrb[0].mxu0 %v3241
        %v3314 = vpop.f32.mrb[0].mxu0
        %v3315 = vadd.f32 %v3235, %v3314
        %v3316 = vpop.f32.mrb[0].mxu0
        %3317 = vdwg.mxu0
        %v3318 = vld [vmem:[%s333] sm:$0xff]
        %v3319 = vld [vmem:[%s333 + $0x8] sm:$0xff]
        %3321 = vset.pattern.permute.xlu0 0
        %3322 = vperm.xlu0 %3321, %v3318
        %v3323 = vpop.permute.xlu0 %3322
        %3326 = vset.pattern.permute.xlu0 0
        %3327 = vperm.xlu0 %3326, %v3319
        %v3328 = vpop.permute.xlu0 %3327
        %v3330 = vmul.f32 %v3310, %v3323
        %v3331 = vmul.f32 %v3315, %v3328
        %3332 = vst.msk [vmem:[%s317] sm:$0xff] %vm349, %v3330
        %3333 = vst.msk [vmem:[%s317 + $0x8] sm:$0xff] %vm349, %v3331
        %s3334 = sand.u32 %s192, 1
        %s3335 = scalar_lea.sflag [#allocation4], %s3334
        %s3336 = sand.u32 %s192, 1
        %s3337 = smul.addr %s3336, 16
        %s3338 = scalar_lea.vmem [#allocation5], %s3337
        // Predicated region
        $region53: #{_mha_forward.1} parent=47 // pred_check
          %p3339 = pneg %p202
        $region54: #{_mha_forward.1} parent=47 // pred_check_branch
          %3341 = sbr.rel (%p3339) target = $region56
        $region55: #{_mha_forward.1} parent=47 // pred_region
          %s3342 = smul.u32 2, %s22
          %s3344 = ssub.s32 256, 256
          %3345 = vsyncadd %s3335, %s3344
          %s3346 = smul.addr %s3342, 128
          %s3347 = scalar_lea.hbm %s7, %s3346
          %s3348 = sshll.u32 %s3338, 4
          %s3349 = int_to_ptr.vmem [resolvable:$true] %s3348
          %3354 = dma.vmem_to_hbm [thread:$0]  %s3349, 256, %s3347, %s3335, 128, 128, 8
        $region56: #{_mha_forward.1} parent=47 // pred_fallthru
          _
      $region48: #{_mha_forward.1} parent=5 // pred_fallthru
        _
      %p3355 = scmp.le.s32.totalorder 2, %s17
      // Predicated region
      $region57: #{_mha_forward.1} parent=5 // pred_check
        %p3356 = pneg %p3355
      $region58: #{_mha_forward.1} parent=5 // pred_check_branch
        %3358 = sbr.rel (%p3356) target = $region60
      $region59: #{_mha_forward.1} parent=5 // pred_region
        %s3359 = ssub.s32 %s17, 2
        // Predicated region
        $region61: #{_mha_forward.1} parent=59 // pred_check
          %p3360 = pneg %p208
        $region62: #{_mha_forward.1} parent=59 // pred_check_branch
          %3362 = sbr.rel (%p3360) target = $region64
        $region63: #{_mha_forward.1} parent=59 // pred_region
          %s3363 = sand.u32 %s193, 1
          %s3364 = scalar_lea.sflag [#allocation4], %s3363
          %s3365 = sand.u32 %s193, 1
          %s3366 = smul.addr %s3365, 16
          %s3367 = scalar_lea.vmem [#allocation5], %s3366
          %3368 = dma.done %s3364, 256
        $region64: #{_mha_forward.1} parent=59 // pred_fallthru
          _
      $region60: #{_mha_forward.1} parent=5 // pred_fallthru
        _
    $region6: #{_mha_forward.1} parent=1 // loop_footer
      %s21 = sadd.s32 1, %s17
    $region7: #{_mha_forward.1} parent=1 // loop_footer_branch
      %16 = sbr.rel target = $region3
    $region8: #{_mha_forward.1} parent=1 // loop_exit
      _
    %3369 = vsyncpa [#allocation3], 1
    %s3370 = scalar_lea.sflag [#allocation3], 1
    %3371 = vsyncpa %s3370, 1
    %3372 = vsyncpa [#allocation4], 1
    %s3373 = scalar_lea.sflag [#allocation4], 1
    %3374 = vsyncpa %s3373, 1

</llo_original>
